<compile_context>
chip_gen: v5e
topology: v5e:2x2
jax: 0.10.0
libtpu: 0.0.40
codegen_flags: <defaults>
</compile_context>

<pallas_src>
import numpy as np
import jax
import jax.numpy as jnp
from jax import lax
from jax.experimental import pallas as pl
from jax.experimental.pallas import tpu as pltpu

_NEG = float(np.finfo(np.float32).min)
_HIGHEST = jax.lax.Precision.HIGHEST  # used only by the pure-JAX reference


# ---------------------------------------------------------------------------
# In-kernel helpers (pure jnp, traced inside the Pallas kernel)
# ---------------------------------------------------------------------------

def _pad_w(x, pad, value):
    if pad == 0:
        return x
    H, _, C = x.shape
    blk = jnp.full((H, pad, C), value, jnp.float32)
    return jnp.concatenate([blk, x, blk], axis=1)


def _pad_h(x, pad, value):
    if pad == 0:
        return x
    _, W, C = x.shape
    blk = jnp.full((pad, W, C), value, jnp.float32)
    return jnp.concatenate([blk, x, blk], axis=0)


def _avgpool3(x):
    """3x3 avg pool, stride 1, pad 1, count_include_pad=True."""
    H, W, C = x.shape
    xp = _pad_h(_pad_w(x, 1, 0.0), 1, 0.0)
    acc = jnp.zeros((H, W, C), jnp.float32)
    for dh in range(3):
        for dw in range(3):
            acc = acc + xp[dh:dh + H, dw:dw + W, :]
    return acc * (1.0 / 9.0)


def _maxpool3(x):
    """3x3 max pool, stride 1, pad 1 (pad value never wins: >=4 real elems/window)."""
    H, W, C = x.shape
    xp = _pad_h(_pad_w(x, 1, _NEG), 1, _NEG)
    acc = jnp.full((H, W, C), _NEG, jnp.float32)
    for dh in range(3):
        for dw in range(3):
            acc = jnp.maximum(acc, xp[dh:dh + H, dw:dw + W, :])
    return acc


def _conv_w(x, w, pad):
    """Conv kernel (1, k) along W, stride 1.  x: (H, W, Cin), w: (k, Cin, M) -> (H*W, M)."""
    H, W, Cin = x.shape
    k, _, M = w.shape
    xp = _pad_w(x, pad, 0.0)
    acc = jnp.zeros((H * W, M), jnp.float32)
    for dw in range(k):
        sl = xp[:, dw:dw + W, :].reshape(H * W, Cin)
        acc = acc + jnp.dot(sl, w[dw], preferred_element_type=jnp.float32)
    return acc


def _conv_h(x, w, pad):
    """Conv kernel (k, 1) along H, stride 1.  x: (H, W, Cin), w: (k, Cin, M) -> (H*W, M)."""
    H, W, Cin = x.shape
    k, _, M = w.shape
    xp = _pad_h(x, pad, 0.0)
    acc = jnp.zeros((H * W, M), jnp.float32)
    for dh in range(k):
        sl = xp[dh:dh + H, :, :].reshape(H * W, Cin)
        acc = acc + jnp.dot(sl, w[dh], preferred_element_type=jnp.float32)
    return acc


def _sep_block(x, w1, s1, b1, w2, s2, b2, pad):
    """Conv(1,k) -> BN -> ReLU -> Conv(k,1) -> BN -> ReLU (all stride 1)."""
    H, W, _ = x.shape
    M = w1.shape[-1]
    O = w2.shape[-1]
    y = _conv_w(x, w1, pad)                     # (H*W, M)
    y = jnp.maximum(y * s1 + b1, 0.0)           # BN1 + ReLU (s1/b1: (1, M))
    y = _conv_h(y.reshape(H, W, M), w2, pad)    # (H*W, O)
    y = jnp.maximum(y * s2 + b2, 0.0)           # BN2 + ReLU
    return y.reshape(H, W, O)


def _downsample(x, w, s, b):
    """1x1 conv (no bias) + BN (no ReLU)."""
    H, W, Cin = x.shape
    O = w.shape[-1]
    y = jnp.dot(x.reshape(H * W, Cin), w, preferred_element_type=jnp.float32)
    y = y * s + b
    return y.reshape(H, W, O)


# ---------------------------------------------------------------------------
# Fused NormalCell kernel
# ---------------------------------------------------------------------------

def _normal_cell_kernel(x_ref, *refs):
    out_ref = refs[-1]
    p = [r[...] for r in refs[:-1]]
    wd1, sd1, bd1, wd2, sd2, bd2 = p[0:6]
    p34 = p[6:12]     # SepBlock k=3 -> sepout4
    p54 = p[12:18]    # SepBlock k=5 -> sepout4
    p35 = p[18:24]    # SepBlock k=3 -> sepout5
    p36 = p[24:30]    # SepBlock k=3 -> sepout4

    x = x_ref[0].astype(jnp.float32)            # (H, W, C)
    C = x.shape[-1]
    sepout5 = wd2.shape[-1]
    sepout4 = p34[3].shape[-1]

    avgp = _avgpool3(x)                         # shared by avgpool1 / avgpool2
    maxp = _maxpool3(x)
    branch1 = jnp.maximum(avgp + maxp, 0.0)

    identity1 = _downsample(x, wd1, sd1, bd1)
    branch2 = jnp.maximum(identity1 + avgp, 0.0)

    sep1 = _sep_block(branch1, *p54, pad=2)
    sep2 = _sep_block(x, *p34, pad=1)
    branch3 = jnp.maximum(sep1 + sep2, 0.0)

    sep3 = _sep_block(branch1, *p35, pad=1)
    identity2 = _downsample(x, wd2, sd2, bd2)
    branch4 = jnp.maximum(sep3 + identity2, 0.0)

    avg3 = _avgpool3(branch3)
    sep4 = _sep_block(x, *p36, pad=1)
    branch5 = jnp.maximum(avg3 + sep4, 0.0)

    # Direct channel-slice writes (no in-kernel concat).
    out_ref[0, :, :, 0:C] = branch2.astype(out_ref.dtype)
    out_ref[0, :, :, C:C + sepout5] = branch4.astype(out_ref.dtype)
    out_ref[0, :, :, C + sepout5:C + sepout5 + sepout4] = branch5.astype(out_ref.dtype)


# ---------------------------------------------------------------------------
# pallas_call wrapper
# ---------------------------------------------------------------------------

def _full_spec(shape):
    nd = len(shape)
    return pl.BlockSpec(tuple(shape), lambda n, _nd=nd: (0,) * _nd)


def _batched_spec(inner_shape):
    nd = len(inner_shape)
    return pl.BlockSpec((1,) + tuple(inner_shape),
                        lambda n, _nd=nd: (n,) + (0,) * _nd)


def normal_cell_pallas(x, d1, d2, p34, p54, p35, p36):
    N, H, W, C = x.shape
    sepout5 = d2[0].shape[-1]
    sepout4 = p34[3].shape[-1]
    Cout = C + sepout5 + sepout4
    params = list(d1) + list(d2) + list(p34) + list(p54) + list(p35) + list(p36)
    return pl.pallas_call(
        _normal_cell_kernel,
        out_shape=jax.ShapeDtypeStruct((N, H, W, Cout), jnp.float32),
        grid=(N,),
        in_specs=[_batched_spec((H, W, C))] + [_full_spec(p.shape) for p in params],
        out_specs=_batched_spec((H, W, Cout)),
        compiler_params=pltpu.CompilerParams(
            dimension_semantics=("parallel",)),   # batch steps independent -> v7x 2 TCs
    )(x, *params)


normal_cell = jax.jit(normal_cell_pallas)


# ---------------------------------------------------------------------------
# Pure-JAX reference (for correctness check)
# ---------------------------------------------------------------------------

def _relu(v):
    return jnp.maximum(v, 0.0)


def _ref_avgpool(x):
    pad = ((0, 0), (1, 1), (1, 1), (0, 0))
    return lax.reduce_window(x, np.float32(0.0), lax.add,
                             (1, 3, 3, 1), (1, 1, 1, 1), pad) / 9.0


def _ref_maxpool(x):
    pad = ((0, 0), (1, 1), (1, 1), (0, 0))
    return lax.reduce_window(x, np.float32(-np.inf), lax.max,
                             (1, 3, 3, 1), (1, 1, 1, 1), pad)


def _ref_downsample(x, w, s, b):
    y = jnp.einsum('nhwc,co->nhwo', x, w, precision=_HIGHEST)
    return y * s.reshape(1, 1, 1, -1) + b.reshape(1, 1, 1, -1)


def _ref_sep(x, params, pad):
    w1, s1, b1, w2, s2, b2 = params
    y = lax.conv_general_dilated(x, w1[None], (1, 1), ((0, 0), (pad, pad)),
                                 dimension_numbers=('NHWC', 'HWIO', 'NHWC'),
                                 precision=_HIGHEST)
    y = _relu(y * s1.reshape(1, 1, 1, -1) + b1.reshape(1, 1, 1, -1))
    y = lax.conv_general_dilated(y, w2[:, None], (1, 1), ((pad, pad), (0, 0)),
                                 dimension_numbers=('NHWC', 'HWIO', 'NHWC'),
                                 precision=_HIGHEST)
    y = _relu(y * s2.reshape(1, 1, 1, -1) + b2.reshape(1, 1, 1, -1))
    return y


def normal_cell_ref(x, d1, d2, p34, p54, p35, p36):
    avgp = _ref_avgpool(x)
    maxp = _ref_maxpool(x)
    branch1 = _relu(avgp + maxp)
    identity1 = _ref_downsample(x, *d1)
    branch2 = _relu(identity1 + avgp)
    sep1 = _ref_sep(branch1, p54, 2)
    sep2 = _ref_sep(x, p34, 1)
    branch3 = _relu(sep1 + sep2)
    sep3 = _ref_sep(branch1, p35, 1)
    identity2 = _ref_downsample(x, *d2)
    branch4 = _relu(sep3 + identity2)
    avg3 = _ref_avgpool(branch3)
    sep4 = _ref_sep(x, p36, 1)
    branch5 = _relu(avg3 + sep4)
    return jnp.concatenate([branch2, branch4, branch5], axis=-1)


# ---------------------------------------------------------------------------
# Deterministic parameter init (conv bias + BN folded into scale/bias)
# ---------------------------------------------------------------------------

def _fold_bn(conv_bias, gamma, beta, mean, var, eps=1e-5):
    scale = gamma / jnp.sqrt(var + eps)
    bias = beta + (conv_bias - mean) * scale
    return scale, bias


def init_sep_params(key, c_in, mid, c_out, k):
    ks = jax.random.split(key, 12)
    w1 = 0.2 * jax.random.normal(ks[0], (k, c_in, mid), jnp.float32)
    cb1 = 0.1 * jax.random.normal(ks[1], (mid,), jnp.float32)
    g1 = 1.0 + 0.1 * jax.random.normal(ks[2], (mid,), jnp.float32)
    be1 = 0.1 * jax.random.normal(ks[3], (mid,), jnp.float32)
    mu1 = 0.1 * jax.random.normal(ks[4], (mid,), jnp.float32)
    v1 = 0.5 + 0.25 * jax.random.uniform(ks[5], (mid,), jnp.float32)
    s1, b1 = _fold_bn(cb1, g1, be1, mu1, v1)
    w2 = 0.2 * jax.random.normal(ks[6], (k, mid, c_out), jnp.float32)
    cb2 = 0.1 * jax.random.normal(ks[7], (c_out,), jnp.float32)
    g2 = 1.0 + 0.1 * jax.random.normal(ks[8], (c_out,), jnp.float32)
    be2 = 0.1 * jax.random.normal(ks[9], (c_out,), jnp.float32)
    mu2 = 0.1 * jax.random.normal(ks[10], (c_out,), jnp.float32)
    v2 = 0.5 + 0.25 * jax.random.uniform(ks[11], (c_out,), jnp.float32)
    s2, b2 = _fold_bn(cb2, g2, be2, mu2, v2)
    return (w1, s1.reshape(1, mid), b1.reshape(1, mid),
            w2, s2.reshape(1, c_out), b2.reshape(1, c_out))


def init_downsample_params(key, c_in, c_out):
    ks = jax.random.split(key, 5)
    w = 0.3 * jax.random.normal(ks[0], (c_in, c_out), jnp.float32)
    g = 1.0 + 0.1 * jax.random.normal(ks[1], (c_out,), jnp.float32)
    be = 0.1 * jax.random.normal(ks[2], (c_out,), jnp.float32)
    mu = 0.1 * jax.random.normal(ks[3], (c_out,), jnp.float32)
    v = 0.5 + 0.25 * jax.random.uniform(ks[4], (c_out,), jnp.float32)
    s, b = _fold_bn(jnp.zeros((c_out,), jnp.float32), g, be, mu, v)   # conv has bias=False
    return (w, s.reshape(1, c_out), b.reshape(1, c_out))


if __name__ == "__main__":
    key = jax.random.PRNGKey(0)
    N, C, H, W = 2, 4, 16, 16
    middle, sepout4, sepout5 = 8, 4, 4
    kx, kd1, kd2, k34, k54, k35, k36 = jax.random.split(key, 7)
    x = jax.random.normal(kx, (N, H, W, C), jnp.float32)   # layout: NHWC

    d1 = init_downsample_params(kd1, C, C)            # downsample1: C -> C
    d2 = init_downsample_params(kd2, C, sepout5)      # downsample2: C -> sepout5
    p34 = init_sep_params(k34, C, middle, sepout4, 3)  # sep3_4
    p54 = init_sep_params(k54, C, middle, sepout4, 5)  # sep5_4
    p35 = init_sep_params(k35, C, middle, sepout5, 3)  # sep3_5
    p36 = init_sep_params(k36, C, middle, sepout4, 3)  # sep3_6

    out = normal_cell(x, d1, d2, p34, p54, p35, p36)
    out = jax.block_until_ready(out)

    ref = normal_cell_ref(x, d1, d2, p34, p54, p35, p36)
    assert out.shape == (N, H, W, C + sepout5 + sepout4), out.shape
    # Kernel matmuls run at default (MXU) precision; reference at HIGHEST.
    np.testing.assert_allclose(np.asarray(out), np.asarray(ref), rtol=2e-2, atol=2e-2)
    print("KERNEL_OK")
</pallas_src>

<mosaic_0001>
module attributes {stable_mosaic.version = 11 : i64} {
  func.func @_normal_cell_kernel(%arg0: i32, %arg1: memref<1x16x16x4xf32, #tpu.memory_space<vmem>>, %arg2: memref<4x4xf32, #tpu.memory_space<vmem>>, %arg3: memref<1x4xf32, #tpu.memory_space<vmem>>, %arg4: memref<1x4xf32, #tpu.memory_space<vmem>>, %arg5: memref<4x4xf32, #tpu.memory_space<vmem>>, %arg6: memref<1x4xf32, #tpu.memory_space<vmem>>, %arg7: memref<1x4xf32, #tpu.memory_space<vmem>>, %arg8: memref<3x4x8xf32, #tpu.memory_space<vmem>>, %arg9: memref<1x8xf32, #tpu.memory_space<vmem>>, %arg10: memref<1x8xf32, #tpu.memory_space<vmem>>, %arg11: memref<3x8x4xf32, #tpu.memory_space<vmem>>, %arg12: memref<1x4xf32, #tpu.memory_space<vmem>>, %arg13: memref<1x4xf32, #tpu.memory_space<vmem>>, %arg14: memref<5x4x8xf32, #tpu.memory_space<vmem>>, %arg15: memref<1x8xf32, #tpu.memory_space<vmem>>, %arg16: memref<1x8xf32, #tpu.memory_space<vmem>>, %arg17: memref<5x8x4xf32, #tpu.memory_space<vmem>>, %arg18: memref<1x4xf32, #tpu.memory_space<vmem>>, %arg19: memref<1x4xf32, #tpu.memory_space<vmem>>, %arg20: memref<3x4x8xf32, #tpu.memory_space<vmem>>, %arg21: memref<1x8xf32, #tpu.memory_space<vmem>>, %arg22: memref<1x8xf32, #tpu.memory_space<vmem>>, %arg23: memref<3x8x4xf32, #tpu.memory_space<vmem>>, %arg24: memref<1x4xf32, #tpu.memory_space<vmem>>, %arg25: memref<1x4xf32, #tpu.memory_space<vmem>>, %arg26: memref<3x4x8xf32, #tpu.memory_space<vmem>>, %arg27: memref<1x8xf32, #tpu.memory_space<vmem>>, %arg28: memref<1x8xf32, #tpu.memory_space<vmem>>, %arg29: memref<3x8x4xf32, #tpu.memory_space<vmem>>, %arg30: memref<1x4xf32, #tpu.memory_space<vmem>>, %arg31: memref<1x4xf32, #tpu.memory_space<vmem>>, %arg32: memref<1x16x16x12xf32, #tpu.memory_space<vmem>>) attributes {dimension_semantics = [#tpu.dimension_semantics<parallel>], iteration_bounds = array<i64: 2>, scalar_prefetch = 0 : i64, scratch_operands = 0 : i64, tpu.core_type = #tpu.core_type<tc>, window_params = [{transform_indices = @transform_0, window_bounds = array<i64: 1, 16, 16, 4>}, {pipeline_mode = #tpu.pipeline_mode<synchronous>, transform_indices = @transform_1, window_bounds = array<i64: 4, 4>}, {pipeline_mode = #tpu.pipeline_mode<synchronous>, transform_indices = @transform_2, window_bounds = array<i64: 1, 4>}, {pipeline_mode = #tpu.pipeline_mode<synchronous>, transform_indices = @transform_3, window_bounds = array<i64: 1, 4>}, {pipeline_mode = #tpu.pipeline_mode<synchronous>, transform_indices = @transform_4, window_bounds = array<i64: 4, 4>}, {pipeline_mode = #tpu.pipeline_mode<synchronous>, transform_indices = @transform_5, window_bounds = array<i64: 1, 4>}, {pipeline_mode = #tpu.pipeline_mode<synchronous>, transform_indices = @transform_6, window_bounds = array<i64: 1, 4>}, {pipeline_mode = #tpu.pipeline_mode<synchronous>, transform_indices = @transform_7, window_bounds = array<i64: 3, 4, 8>}, {pipeline_mode = #tpu.pipeline_mode<synchronous>, transform_indices = @transform_8, window_bounds = array<i64: 1, 8>}, {pipeline_mode = #tpu.pipeline_mode<synchronous>, transform_indices = @transform_9, window_bounds = array<i64: 1, 8>}, {pipeline_mode = #tpu.pipeline_mode<synchronous>, transform_indices = @transform_10, window_bounds = array<i64: 3, 8, 4>}, {pipeline_mode = #tpu.pipeline_mode<synchronous>, transform_indices = @transform_11, window_bounds = array<i64: 1, 4>}, {pipeline_mode = #tpu.pipeline_mode<synchronous>, transform_indices = @transform_12, window_bounds = array<i64: 1, 4>}, {pipeline_mode = #tpu.pipeline_mode<synchronous>, transform_indices = @transform_13, window_bounds = array<i64: 5, 4, 8>}, {pipeline_mode = #tpu.pipeline_mode<synchronous>, transform_indices = @transform_14, window_bounds = array<i64: 1, 8>}, {pipeline_mode = #tpu.pipeline_mode<synchronous>, transform_indices = @transform_15, window_bounds = array<i64: 1, 8>}, {pipeline_mode = #tpu.pipeline_mode<synchronous>, transform_indices = @transform_16, window_bounds = array<i64: 5, 8, 4>}, {pipeline_mode = #tpu.pipeline_mode<synchronous>, transform_indices = @transform_17, window_bounds = array<i64: 1, 4>}, {pipeline_mode = #tpu.pipeline_mode<synchronous>, transform_indices = @transform_18, window_bounds = array<i64: 1, 4>}, {pipeline_mode = #tpu.pipeline_mode<synchronous>, transform_indices = @transform_19, window_bounds = array<i64: 3, 4, 8>}, {pipeline_mode = #tpu.pipeline_mode<synchronous>, transform_indices = @transform_20, window_bounds = array<i64: 1, 8>}, {pipeline_mode = #tpu.pipeline_mode<synchronous>, transform_indices = @transform_21, window_bounds = array<i64: 1, 8>}, {pipeline_mode = #tpu.pipeline_mode<synchronous>, transform_indices = @transform_22, window_bounds = array<i64: 3, 8, 4>}, {pipeline_mode = #tpu.pipeline_mode<synchronous>, transform_indices = @transform_23, window_bounds = array<i64: 1, 4>}, {pipeline_mode = #tpu.pipeline_mode<synchronous>, transform_indices = @transform_24, window_bounds = array<i64: 1, 4>}, {pipeline_mode = #tpu.pipeline_mode<synchronous>, transform_indices = @transform_25, window_bounds = array<i64: 3, 4, 8>}, {pipeline_mode = #tpu.pipeline_mode<synchronous>, transform_indices = @transform_26, window_bounds = array<i64: 1, 8>}, {pipeline_mode = #tpu.pipeline_mode<synchronous>, transform_indices = @transform_27, window_bounds = array<i64: 1, 8>}, {pipeline_mode = #tpu.pipeline_mode<synchronous>, transform_indices = @transform_28, window_bounds = array<i64: 3, 8, 4>}, {pipeline_mode = #tpu.pipeline_mode<synchronous>, transform_indices = @transform_29, window_bounds = array<i64: 1, 4>}, {pipeline_mode = #tpu.pipeline_mode<synchronous>, transform_indices = @transform_30, window_bounds = array<i64: 1, 4>}, {transform_indices = @transform_31, window_bounds = array<i64: 1, 16, 16, 12>}]} {
    %c0 = arith.constant 0 : index
    %c0_0 = arith.constant 0 : index
    %0 = vector.load %arg2[%c0, %c0_0] : memref<4x4xf32, #tpu.memory_space<vmem>>, vector<4x4xf32>
    %c0_1 = arith.constant 0 : index
    %c0_2 = arith.constant 0 : index
    %1 = vector.load %arg3[%c0_1, %c0_2] : memref<1x4xf32, #tpu.memory_space<vmem>>, vector<1x4xf32>
    %c0_3 = arith.constant 0 : index
    %c0_4 = arith.constant 0 : index
    %2 = vector.load %arg4[%c0_3, %c0_4] : memref<1x4xf32, #tpu.memory_space<vmem>>, vector<1x4xf32>
    %c0_5 = arith.constant 0 : index
    %c0_6 = arith.constant 0 : index
    %3 = vector.load %arg5[%c0_5, %c0_6] : memref<4x4xf32, #tpu.memory_space<vmem>>, vector<4x4xf32>
    %c0_7 = arith.constant 0 : index
    %c0_8 = arith.constant 0 : index
    %4 = vector.load %arg6[%c0_7, %c0_8] : memref<1x4xf32, #tpu.memory_space<vmem>>, vector<1x4xf32>
    %c0_9 = arith.constant 0 : index
    %c0_10 = arith.constant 0 : index
    %5 = vector.load %arg7[%c0_9, %c0_10] : memref<1x4xf32, #tpu.memory_space<vmem>>, vector<1x4xf32>
    %c0_11 = arith.constant 0 : index
    %c0_12 = arith.constant 0 : index
    %c0_13 = arith.constant 0 : index
    %6 = vector.load %arg8[%c0_11, %c0_12, %c0_13] : memref<3x4x8xf32, #tpu.memory_space<vmem>>, vector<3x4x8xf32>
    %c0_14 = arith.constant 0 : index
    %c0_15 = arith.constant 0 : index
    %7 = vector.load %arg9[%c0_14, %c0_15] : memref<1x8xf32, #tpu.memory_space<vmem>>, vector<1x8xf32>
    %c0_16 = arith.constant 0 : index
    %c0_17 = arith.constant 0 : index
    %8 = vector.load %arg10[%c0_16, %c0_17] : memref<1x8xf32, #tpu.memory_space<vmem>>, vector<1x8xf32>
    %c0_18 = arith.constant 0 : index
    %c0_19 = arith.constant 0 : index
    %c0_20 = arith.constant 0 : index
    %9 = vector.load %arg11[%c0_18, %c0_19, %c0_20] : memref<3x8x4xf32, #tpu.memory_space<vmem>>, vector<3x8x4xf32>
    %c0_21 = arith.constant 0 : index
    %c0_22 = arith.constant 0 : index
    %10 = vector.load %arg12[%c0_21, %c0_22] : memref<1x4xf32, #tpu.memory_space<vmem>>, vector<1x4xf32>
    %c0_23 = arith.constant 0 : index
    %c0_24 = arith.constant 0 : index
    %11 = vector.load %arg13[%c0_23, %c0_24] : memref<1x4xf32, #tpu.memory_space<vmem>>, vector<1x4xf32>
    %c0_25 = arith.constant 0 : index
    %c0_26 = arith.constant 0 : index
    %c0_27 = arith.constant 0 : index
    %12 = vector.load %arg14[%c0_25, %c0_26, %c0_27] : memref<5x4x8xf32, #tpu.memory_space<vmem>>, vector<5x4x8xf32>
    %c0_28 = arith.constant 0 : index
    %c0_29 = arith.constant 0 : index
    %13 = vector.load %arg15[%c0_28, %c0_29] : memref<1x8xf32, #tpu.memory_space<vmem>>, vector<1x8xf32>
    %c0_30 = arith.constant 0 : index
    %c0_31 = arith.constant 0 : index
    %14 = vector.load %arg16[%c0_30, %c0_31] : memref<1x8xf32, #tpu.memory_space<vmem>>, vector<1x8xf32>
    %c0_32 = arith.constant 0 : index
    %c0_33 = arith.constant 0 : index
    %c0_34 = arith.constant 0 : index
    %15 = vector.load %arg17[%c0_32, %c0_33, %c0_34] : memref<5x8x4xf32, #tpu.memory_space<vmem>>, vector<5x8x4xf32>
    %c0_35 = arith.constant 0 : index
    %c0_36 = arith.constant 0 : index
    %16 = vector.load %arg18[%c0_35, %c0_36] : memref<1x4xf32, #tpu.memory_space<vmem>>, vector<1x4xf32>
    %c0_37 = arith.constant 0 : index
    %c0_38 = arith.constant 0 : index
    %17 = vector.load %arg19[%c0_37, %c0_38] : memref<1x4xf32, #tpu.memory_space<vmem>>, vector<1x4xf32>
    %c0_39 = arith.constant 0 : index
    %c0_40 = arith.constant 0 : index
    %c0_41 = arith.constant 0 : index
    %18 = vector.load %arg20[%c0_39, %c0_40, %c0_41] : memref<3x4x8xf32, #tpu.memory_space<vmem>>, vector<3x4x8xf32>
    %c0_42 = arith.constant 0 : index
    %c0_43 = arith.constant 0 : index
    %19 = vector.load %arg21[%c0_42, %c0_43] : memref<1x8xf32, #tpu.memory_space<vmem>>, vector<1x8xf32>
    %c0_44 = arith.constant 0 : index
    %c0_45 = arith.constant 0 : index
    %20 = vector.load %arg22[%c0_44, %c0_45] : memref<1x8xf32, #tpu.memory_space<vmem>>, vector<1x8xf32>
    %c0_46 = arith.constant 0 : index
    %c0_47 = arith.constant 0 : index
    %c0_48 = arith.constant 0 : index
    %21 = vector.load %arg23[%c0_46, %c0_47, %c0_48] : memref<3x8x4xf32, #tpu.memory_space<vmem>>, vector<3x8x4xf32>
    %c0_49 = arith.constant 0 : index
    %c0_50 = arith.constant 0 : index
    %22 = vector.load %arg24[%c0_49, %c0_50] : memref<1x4xf32, #tpu.memory_space<vmem>>, vector<1x4xf32>
    %c0_51 = arith.constant 0 : index
    %c0_52 = arith.constant 0 : index
    %23 = vector.load %arg25[%c0_51, %c0_52] : memref<1x4xf32, #tpu.memory_space<vmem>>, vector<1x4xf32>
    %c0_53 = arith.constant 0 : index
    %c0_54 = arith.constant 0 : index
    %c0_55 = arith.constant 0 : index
    %24 = vector.load %arg26[%c0_53, %c0_54, %c0_55] : memref<3x4x8xf32, #tpu.memory_space<vmem>>, vector<3x4x8xf32>
    %c0_56 = arith.constant 0 : index
    %c0_57 = arith.constant 0 : index
    %25 = vector.load %arg27[%c0_56, %c0_57] : memref<1x8xf32, #tpu.memory_space<vmem>>, vector<1x8xf32>
    %c0_58 = arith.constant 0 : index
    %c0_59 = arith.constant 0 : index
    %26 = vector.load %arg28[%c0_58, %c0_59] : memref<1x8xf32, #tpu.memory_space<vmem>>, vector<1x8xf32>
    %c0_60 = arith.constant 0 : index
    %c0_61 = arith.constant 0 : index
    %c0_62 = arith.constant 0 : index
    %27 = vector.load %arg29[%c0_60, %c0_61, %c0_62] : memref<3x8x4xf32, #tpu.memory_space<vmem>>, vector<3x8x4xf32>
    %c0_63 = arith.constant 0 : index
    %c0_64 = arith.constant 0 : index
    %28 = vector.load %arg30[%c0_63, %c0_64] : memref<1x4xf32, #tpu.memory_space<vmem>>, vector<1x4xf32>
    %c0_65 = arith.constant 0 : index
    %c0_66 = arith.constant 0 : index
    %29 = vector.load %arg31[%c0_65, %c0_66] : memref<1x4xf32, #tpu.memory_space<vmem>>, vector<1x4xf32>
    %c0_67 = arith.constant 0 : index
    %c0_68 = arith.constant 0 : index
    %c0_69 = arith.constant 0 : index
    %c0_70 = arith.constant 0 : index
    %30 = vector.load %arg1[%c0_67, %c0_68, %c0_69, %c0_70] : memref<1x16x16x4xf32, #tpu.memory_space<vmem>>, vector<1x16x16x4xf32>
    %31 = vector.shape_cast %30 : vector<1x16x16x4xf32> to vector<16x16x4xf32>
    %cst = arith.constant 0.000000e+00 : f32
    %32 = vector.broadcast %cst : f32 to vector<16x1x4xf32>
    %33 = tpu.concatenate %32, %31, %32 in 1 : vector<16x1x4xf32>, vector<16x16x4xf32>, vector<16x1x4xf32> -> vector<16x18x4xf32>
    %cst_71 = arith.constant 0.000000e+00 : f32
    %34 = vector.broadcast %cst_71 : f32 to vector<1x18x4xf32>
    %35 = tpu.concatenate %34, %33, %34 in 0 : vector<1x18x4xf32>, vector<16x18x4xf32>, vector<1x18x4xf32> -> vector<18x18x4xf32>
    %cst_72 = arith.constant 0.000000e+00 : f32
    %36 = vector.broadcast %cst_72 : f32 to vector<16x16x4xf32>
    %37 = vector.extract_strided_slice %35 {offsets = [0, 0, 0], sizes = [16, 16, 4], strides = [1, 1, 1]} : vector<18x18x4xf32> to vector<16x16x4xf32>
    %38 = arith.addf %36, %37 : vector<16x16x4xf32>
    %39 = vector.extract_strided_slice %35 {offsets = [0, 1, 0], sizes = [16, 16, 4], strides = [1, 1, 1]} : vector<18x18x4xf32> to vector<16x16x4xf32>
    %40 = arith.addf %38, %39 : vector<16x16x4xf32>
    %41 = vector.extract_strided_slice %35 {offsets = [0, 2, 0], sizes = [16, 16, 4], strides = [1, 1, 1]} : vector<18x18x4xf32> to vector<16x16x4xf32>
    %42 = arith.addf %40, %41 : vector<16x16x4xf32>
    %43 = vector.extract_strided_slice %35 {offsets = [1, 0, 0], sizes = [16, 16, 4], strides = [1, 1, 1]} : vector<18x18x4xf32> to vector<16x16x4xf32>
    %44 = arith.addf %42, %43 : vector<16x16x4xf32>
    %45 = vector.extract_strided_slice %35 {offsets = [1, 1, 0], sizes = [16, 16, 4], strides = [1, 1, 1]} : vector<18x18x4xf32> to vector<16x16x4xf32>
    %46 = arith.addf %44, %45 : vector<16x16x4xf32>
    %47 = vector.extract_strided_slice %35 {offsets = [1, 2, 0], sizes = [16, 16, 4], strides = [1, 1, 1]} : vector<18x18x4xf32> to vector<16x16x4xf32>
    %48 = arith.addf %46, %47 : vector<16x16x4xf32>
    %49 = vector.extract_strided_slice %35 {offsets = [2, 0, 0], sizes = [16, 16, 4], strides = [1, 1, 1]} : vector<18x18x4xf32> to vector<16x16x4xf32>
    %50 = arith.addf %48, %49 : vector<16x16x4xf32>
    %51 = vector.extract_strided_slice %35 {offsets = [2, 1, 0], sizes = [16, 16, 4], strides = [1, 1, 1]} : vector<18x18x4xf32> to vector<16x16x4xf32>
    %52 = arith.addf %50, %51 : vector<16x16x4xf32>
    %53 = vector.extract_strided_slice %35 {offsets = [2, 2, 0], sizes = [16, 16, 4], strides = [1, 1, 1]} : vector<18x18x4xf32> to vector<16x16x4xf32>
    %54 = arith.addf %52, %53 : vector<16x16x4xf32>
    %cst_73 = arith.constant 0.111111112 : f32
    %55 = vector.broadcast %cst_73 : f32 to vector<16x16x4xf32>
    %56 = arith.mulf %54, %55 : vector<16x16x4xf32>
    %cst_74 = arith.constant -3.40282347E+38 : f32
    %57 = vector.broadcast %cst_74 : f32 to vector<16x1x4xf32>
    %58 = tpu.concatenate %57, %31, %57 in 1 : vector<16x1x4xf32>, vector<16x16x4xf32>, vector<16x1x4xf32> -> vector<16x18x4xf32>
    %cst_75 = arith.constant -3.40282347E+38 : f32
    %59 = vector.broadcast %cst_75 : f32 to vector<1x18x4xf32>
    %60 = tpu.concatenate %59, %58, %59 in 0 : vector<1x18x4xf32>, vector<16x18x4xf32>, vector<1x18x4xf32> -> vector<18x18x4xf32>
    %cst_76 = arith.constant -3.40282347E+38 : f32
    %61 = vector.broadcast %cst_76 : f32 to vector<16x16x4xf32>
    %62 = vector.extract_strided_slice %60 {offsets = [0, 0, 0], sizes = [16, 16, 4], strides = [1, 1, 1]} : vector<18x18x4xf32> to vector<16x16x4xf32>
    %63 = arith.maximumf %61, %62 : vector<16x16x4xf32>
    %64 = vector.extract_strided_slice %60 {offsets = [0, 1, 0], sizes = [16, 16, 4], strides = [1, 1, 1]} : vector<18x18x4xf32> to vector<16x16x4xf32>
    %65 = arith.maximumf %63, %64 : vector<16x16x4xf32>
    %66 = vector.extract_strided_slice %60 {offsets = [0, 2, 0], sizes = [16, 16, 4], strides = [1, 1, 1]} : vector<18x18x4xf32> to vector<16x16x4xf32>
    %67 = arith.maximumf %65, %66 : vector<16x16x4xf32>
    %68 = vector.extract_strided_slice %60 {offsets = [1, 0, 0], sizes = [16, 16, 4], strides = [1, 1, 1]} : vector<18x18x4xf32> to vector<16x16x4xf32>
    %69 = arith.maximumf %67, %68 : vector<16x16x4xf32>
    %70 = vector.extract_strided_slice %60 {offsets = [1, 1, 0], sizes = [16, 16, 4], strides = [1, 1, 1]} : vector<18x18x4xf32> to vector<16x16x4xf32>
    %71 = arith.maximumf %69, %70 : vector<16x16x4xf32>
    %72 = vector.extract_strided_slice %60 {offsets = [1, 2, 0], sizes = [16, 16, 4], strides = [1, 1, 1]} : vector<18x18x4xf32> to vector<16x16x4xf32>
    %73 = arith.maximumf %71, %72 : vector<16x16x4xf32>
    %74 = vector.extract_strided_slice %60 {offsets = [2, 0, 0], sizes = [16, 16, 4], strides = [1, 1, 1]} : vector<18x18x4xf32> to vector<16x16x4xf32>
    %75 = arith.maximumf %73, %74 : vector<16x16x4xf32>
    %76 = vector.extract_strided_slice %60 {offsets = [2, 1, 0], sizes = [16, 16, 4], strides = [1, 1, 1]} : vector<18x18x4xf32> to vector<16x16x4xf32>
    %77 = arith.maximumf %75, %76 : vector<16x16x4xf32>
    %78 = vector.extract_strided_slice %60 {offsets = [2, 2, 0], sizes = [16, 16, 4], strides = [1, 1, 1]} : vector<18x18x4xf32> to vector<16x16x4xf32>
    %79 = arith.maximumf %77, %78 : vector<16x16x4xf32>
    %80 = arith.addf %56, %79 : vector<16x16x4xf32>
    %cst_77 = arith.constant 0.000000e+00 : f32
    %81 = vector.broadcast %cst_77 : f32 to vector<16x16x4xf32>
    %82 = arith.maximumf %80, %81 : vector<16x16x4xf32>
    %83 = vector.shape_cast %31 : vector<16x16x4xf32> to vector<256x4xf32>
    %cst_78 = arith.constant dense<0.000000e+00> : vector<256x4xf32>
    %84 = tpu.matmul %83, %0, %cst_78 {dimension_numbers = #tpu.dot_dimension_numbers<[1], [0], [0], [1], [0, 0, 1, 1], [], []>} : vector<256x4xf32>, vector<4x4xf32>, vector<256x4xf32> -> vector<256x4xf32>
    %85 = vector.broadcast %1 : vector<1x4xf32> to vector<256x4xf32>
    %86 = arith.mulf %84, %85 : vector<256x4xf32>
    %87 = vector.broadcast %2 : vector<1x4xf32> to vector<256x4xf32>
    %88 = arith.addf %86, %87 : vector<256x4xf32>
    %89 = vector.shape_cast %88 : vector<256x4xf32> to vector<16x16x4xf32>
    %90 = arith.addf %89, %56 : vector<16x16x4xf32>
    %cst_79 = arith.constant 0.000000e+00 : f32
    %91 = vector.broadcast %cst_79 : f32 to vector<16x16x4xf32>
    %92 = arith.maximumf %90, %91 : vector<16x16x4xf32>
    %cst_80 = arith.constant 0.000000e+00 : f32
    %93 = vector.broadcast %cst_80 : f32 to vector<16x2x4xf32>
    %94 = tpu.concatenate %93, %82, %93 in 1 : vector<16x2x4xf32>, vector<16x16x4xf32>, vector<16x2x4xf32> -> vector<16x20x4xf32>
    %cst_81 = arith.constant 0.000000e+00 : f32
    %95 = vector.broadcast %cst_81 : f32 to vector<256x8xf32>
    %96 = vector.extract_strided_slice %94 {offsets = [0, 0, 0], sizes = [16, 16, 4], strides = [1, 1, 1]} : vector<16x20x4xf32> to vector<16x16x4xf32>
    %97 = vector.shape_cast %96 : vector<16x16x4xf32> to vector<256x4xf32>
    %98 = vector.extract_strided_slice %12 {offsets = [0, 0, 0], sizes = [1, 4, 8], strides = [1, 1, 1]} : vector<5x4x8xf32> to vector<1x4x8xf32>
    %99 = vector.shape_cast %98 : vector<1x4x8xf32> to vector<4x8xf32>
    %cst_82 = arith.constant dense<0.000000e+00> : vector<256x8xf32>
    %100 = tpu.matmul %97, %99, %cst_82 {dimension_numbers = #tpu.dot_dimension_numbers<[1], [0], [0], [1], [0, 0, 1, 1], [], []>} : vector<256x4xf32>, vector<4x8xf32>, vector<256x8xf32> -> vector<256x8xf32>
    %101 = arith.addf %95, %100 : vector<256x8xf32>
    %102 = vector.extract_strided_slice %94 {offsets = [0, 1, 0], sizes = [16, 16, 4], strides = [1, 1, 1]} : vector<16x20x4xf32> to vector<16x16x4xf32>
    %103 = vector.shape_cast %102 : vector<16x16x4xf32> to vector<256x4xf32>
    %104 = vector.extract_strided_slice %12 {offsets = [1, 0, 0], sizes = [1, 4, 8], strides = [1, 1, 1]} : vector<5x4x8xf32> to vector<1x4x8xf32>
    %105 = vector.shape_cast %104 : vector<1x4x8xf32> to vector<4x8xf32>
    %cst_83 = arith.constant dense<0.000000e+00> : vector<256x8xf32>
    %106 = tpu.matmul %103, %105, %cst_83 {dimension_numbers = #tpu.dot_dimension_numbers<[1], [0], [0], [1], [0, 0, 1, 1], [], []>} : vector<256x4xf32>, vector<4x8xf32>, vector<256x8xf32> -> vector<256x8xf32>
    %107 = arith.addf %101, %106 : vector<256x8xf32>
    %108 = vector.extract_strided_slice %94 {offsets = [0, 2, 0], sizes = [16, 16, 4], strides = [1, 1, 1]} : vector<16x20x4xf32> to vector<16x16x4xf32>
    %109 = vector.shape_cast %108 : vector<16x16x4xf32> to vector<256x4xf32>
    %110 = vector.extract_strided_slice %12 {offsets = [2, 0, 0], sizes = [1, 4, 8], strides = [1, 1, 1]} : vector<5x4x8xf32> to vector<1x4x8xf32>
    %111 = vector.shape_cast %110 : vector<1x4x8xf32> to vector<4x8xf32>
    %cst_84 = arith.constant dense<0.000000e+00> : vector<256x8xf32>
    %112 = tpu.matmul %109, %111, %cst_84 {dimension_numbers = #tpu.dot_dimension_numbers<[1], [0], [0], [1], [0, 0, 1, 1], [], []>} : vector<256x4xf32>, vector<4x8xf32>, vector<256x8xf32> -> vector<256x8xf32>
    %113 = arith.addf %107, %112 : vector<256x8xf32>
    %114 = vector.extract_strided_slice %94 {offsets = [0, 3, 0], sizes = [16, 16, 4], strides = [1, 1, 1]} : vector<16x20x4xf32> to vector<16x16x4xf32>
    %115 = vector.shape_cast %114 : vector<16x16x4xf32> to vector<256x4xf32>
    %116 = vector.extract_strided_slice %12 {offsets = [3, 0, 0], sizes = [1, 4, 8], strides = [1, 1, 1]} : vector<5x4x8xf32> to vector<1x4x8xf32>
    %117 = vector.shape_cast %116 : vector<1x4x8xf32> to vector<4x8xf32>
    %cst_85 = arith.constant dense<0.000000e+00> : vector<256x8xf32>
    %118 = tpu.matmul %115, %117, %cst_85 {dimension_numbers = #tpu.dot_dimension_numbers<[1], [0], [0], [1], [0, 0, 1, 1], [], []>} : vector<256x4xf32>, vector<4x8xf32>, vector<256x8xf32> -> vector<256x8xf32>
    %119 = arith.addf %113, %118 : vector<256x8xf32>
    %120 = vector.extract_strided_slice %94 {offsets = [0, 4, 0], sizes = [16, 16, 4], strides = [1, 1, 1]} : vector<16x20x4xf32> to vector<16x16x4xf32>
    %121 = vector.shape_cast %120 : vector<16x16x4xf32> to vector<256x4xf32>
    %122 = vector.extract_strided_slice %12 {offsets = [4, 0, 0], sizes = [1, 4, 8], strides = [1, 1, 1]} : vector<5x4x8xf32> to vector<1x4x8xf32>
    %123 = vector.shape_cast %122 : vector<1x4x8xf32> to vector<4x8xf32>
    %cst_86 = arith.constant dense<0.000000e+00> : vector<256x8xf32>
    %124 = tpu.matmul %121, %123, %cst_86 {dimension_numbers = #tpu.dot_dimension_numbers<[1], [0], [0], [1], [0, 0, 1, 1], [], []>} : vector<256x4xf32>, vector<4x8xf32>, vector<256x8xf32> -> vector<256x8xf32>
    %125 = arith.addf %119, %124 : vector<256x8xf32>
    %126 = vector.broadcast %13 : vector<1x8xf32> to vector<256x8xf32>
    %127 = arith.mulf %125, %126 : vector<256x8xf32>
    %128 = vector.broadcast %14 : vector<1x8xf32> to vector<256x8xf32>
    %129 = arith.addf %127, %128 : vector<256x8xf32>
    %cst_87 = arith.constant 0.000000e+00 : f32
    %130 = vector.broadcast %cst_87 : f32 to vector<256x8xf32>
    %131 = arith.maximumf %129, %130 : vector<256x8xf32>
    %132 = vector.shape_cast %131 : vector<256x8xf32> to vector<16x16x8xf32>
    %cst_88 = arith.constant 0.000000e+00 : f32
    %133 = vector.broadcast %cst_88 : f32 to vector<2x16x8xf32>
    %134 = tpu.concatenate %133, %132, %133 in 0 : vector<2x16x8xf32>, vector<16x16x8xf32>, vector<2x16x8xf32> -> vector<20x16x8xf32>
    %cst_89 = arith.constant 0.000000e+00 : f32
    %135 = vector.broadcast %cst_89 : f32 to vector<256x4xf32>
    %136 = vector.extract_strided_slice %134 {offsets = [0, 0, 0], sizes = [16, 16, 8], strides = [1, 1, 1]} : vector<20x16x8xf32> to vector<16x16x8xf32>
    %137 = vector.shape_cast %136 : vector<16x16x8xf32> to vector<256x8xf32>
    %138 = vector.extract_strided_slice %15 {offsets = [0, 0, 0], sizes = [1, 8, 4], strides = [1, 1, 1]} : vector<5x8x4xf32> to vector<1x8x4xf32>
    %139 = vector.shape_cast %138 : vector<1x8x4xf32> to vector<8x4xf32>
    %cst_90 = arith.constant dense<0.000000e+00> : vector<256x4xf32>
    %140 = tpu.matmul %137, %139, %cst_90 {dimension_numbers = #tpu.dot_dimension_numbers<[1], [0], [0], [1], [0, 0, 1, 1], [], []>} : vector<256x8xf32>, vector<8x4xf32>, vector<256x4xf32> -> vector<256x4xf32>
    %141 = arith.addf %135, %140 : vector<256x4xf32>
    %142 = vector.extract_strided_slice %134 {offsets = [1, 0, 0], sizes = [16, 16, 8], strides = [1, 1, 1]} : vector<20x16x8xf32> to vector<16x16x8xf32>
    %143 = vector.shape_cast %142 : vector<16x16x8xf32> to vector<256x8xf32>
    %144 = vector.extract_strided_slice %15 {offsets = [1, 0, 0], sizes = [1, 8, 4], strides = [1, 1, 1]} : vector<5x8x4xf32> to vector<1x8x4xf32>
    %145 = vector.shape_cast %144 : vector<1x8x4xf32> to vector<8x4xf32>
    %cst_91 = arith.constant dense<0.000000e+00> : vector<256x4xf32>
    %146 = tpu.matmul %143, %145, %cst_91 {dimension_numbers = #tpu.dot_dimension_numbers<[1], [0], [0], [1], [0, 0, 1, 1], [], []>} : vector<256x8xf32>, vector<8x4xf32>, vector<256x4xf32> -> vector<256x4xf32>
    %147 = arith.addf %141, %146 : vector<256x4xf32>
    %148 = vector.extract_strided_slice %134 {offsets = [2, 0, 0], sizes = [16, 16, 8], strides = [1, 1, 1]} : vector<20x16x8xf32> to vector<16x16x8xf32>
    %149 = vector.shape_cast %148 : vector<16x16x8xf32> to vector<256x8xf32>
    %150 = vector.extract_strided_slice %15 {offsets = [2, 0, 0], sizes = [1, 8, 4], strides = [1, 1, 1]} : vector<5x8x4xf32> to vector<1x8x4xf32>
    %151 = vector.shape_cast %150 : vector<1x8x4xf32> to vector<8x4xf32>
    %cst_92 = arith.constant dense<0.000000e+00> : vector<256x4xf32>
    %152 = tpu.matmul %149, %151, %cst_92 {dimension_numbers = #tpu.dot_dimension_numbers<[1], [0], [0], [1], [0, 0, 1, 1], [], []>} : vector<256x8xf32>, vector<8x4xf32>, vector<256x4xf32> -> vector<256x4xf32>
    %153 = arith.addf %147, %152 : vector<256x4xf32>
    %154 = vector.extract_strided_slice %134 {offsets = [3, 0, 0], sizes = [16, 16, 8], strides = [1, 1, 1]} : vector<20x16x8xf32> to vector<16x16x8xf32>
    %155 = vector.shape_cast %154 : vector<16x16x8xf32> to vector<256x8xf32>
    %156 = vector.extract_strided_slice %15 {offsets = [3, 0, 0], sizes = [1, 8, 4], strides = [1, 1, 1]} : vector<5x8x4xf32> to vector<1x8x4xf32>
    %157 = vector.shape_cast %156 : vector<1x8x4xf32> to vector<8x4xf32>
    %cst_93 = arith.constant dense<0.000000e+00> : vector<256x4xf32>
    %158 = tpu.matmul %155, %157, %cst_93 {dimension_numbers = #tpu.dot_dimension_numbers<[1], [0], [0], [1], [0, 0, 1, 1], [], []>} : vector<256x8xf32>, vector<8x4xf32>, vector<256x4xf32> -> vector<256x4xf32>
    %159 = arith.addf %153, %158 : vector<256x4xf32>
    %160 = vector.extract_strided_slice %134 {offsets = [4, 0, 0], sizes = [16, 16, 8], strides = [1, 1, 1]} : vector<20x16x8xf32> to vector<16x16x8xf32>
    %161 = vector.shape_cast %160 : vector<16x16x8xf32> to vector<256x8xf32>
    %162 = vector.extract_strided_slice %15 {offsets = [4, 0, 0], sizes = [1, 8, 4], strides = [1, 1, 1]} : vector<5x8x4xf32> to vector<1x8x4xf32>
    %163 = vector.shape_cast %162 : vector<1x8x4xf32> to vector<8x4xf32>
    %cst_94 = arith.constant dense<0.000000e+00> : vector<256x4xf32>
    %164 = tpu.matmul %161, %163, %cst_94 {dimension_numbers = #tpu.dot_dimension_numbers<[1], [0], [0], [1], [0, 0, 1, 1], [], []>} : vector<256x8xf32>, vector<8x4xf32>, vector<256x4xf32> -> vector<256x4xf32>
    %165 = arith.addf %159, %164 : vector<256x4xf32>
    %166 = vector.broadcast %16 : vector<1x4xf32> to vector<256x4xf32>
    %167 = arith.mulf %165, %166 : vector<256x4xf32>
    %168 = vector.broadcast %17 : vector<1x4xf32> to vector<256x4xf32>
    %169 = arith.addf %167, %168 : vector<256x4xf32>
    %cst_95 = arith.constant 0.000000e+00 : f32
    %170 = vector.broadcast %cst_95 : f32 to vector<256x4xf32>
    %171 = arith.maximumf %169, %170 : vector<256x4xf32>
    %172 = vector.shape_cast %171 : vector<256x4xf32> to vector<16x16x4xf32>
    %cst_96 = arith.constant 0.000000e+00 : f32
    %173 = vector.broadcast %cst_96 : f32 to vector<16x1x4xf32>
    %174 = tpu.concatenate %173, %31, %173 in 1 : vector<16x1x4xf32>, vector<16x16x4xf32>, vector<16x1x4xf32> -> vector<16x18x4xf32>
    %cst_97 = arith.constant 0.000000e+00 : f32
    %175 = vector.broadcast %cst_97 : f32 to vector<256x8xf32>
    %176 = vector.extract_strided_slice %174 {offsets = [0, 0, 0], sizes = [16, 16, 4], strides = [1, 1, 1]} : vector<16x18x4xf32> to vector<16x16x4xf32>
    %177 = vector.shape_cast %176 : vector<16x16x4xf32> to vector<256x4xf32>
    %178 = vector.extract_strided_slice %6 {offsets = [0, 0, 0], sizes = [1, 4, 8], strides = [1, 1, 1]} : vector<3x4x8xf32> to vector<1x4x8xf32>
    %179 = vector.shape_cast %178 : vector<1x4x8xf32> to vector<4x8xf32>
    %cst_98 = arith.constant dense<0.000000e+00> : vector<256x8xf32>
    %180 = tpu.matmul %177, %179, %cst_98 {dimension_numbers = #tpu.dot_dimension_numbers<[1], [0], [0], [1], [0, 0, 1, 1], [], []>} : vector<256x4xf32>, vector<4x8xf32>, vector<256x8xf32> -> vector<256x8xf32>
    %181 = arith.addf %175, %180 : vector<256x8xf32>
    %182 = vector.extract_strided_slice %174 {offsets = [0, 1, 0], sizes = [16, 16, 4], strides = [1, 1, 1]} : vector<16x18x4xf32> to vector<16x16x4xf32>
    %183 = vector.shape_cast %182 : vector<16x16x4xf32> to vector<256x4xf32>
    %184 = vector.extract_strided_slice %6 {offsets = [1, 0, 0], sizes = [1, 4, 8], strides = [1, 1, 1]} : vector<3x4x8xf32> to vector<1x4x8xf32>
    %185 = vector.shape_cast %184 : vector<1x4x8xf32> to vector<4x8xf32>
    %cst_99 = arith.constant dense<0.000000e+00> : vector<256x8xf32>
    %186 = tpu.matmul %183, %185, %cst_99 {dimension_numbers = #tpu.dot_dimension_numbers<[1], [0], [0], [1], [0, 0, 1, 1], [], []>} : vector<256x4xf32>, vector<4x8xf32>, vector<256x8xf32> -> vector<256x8xf32>
    %187 = arith.addf %181, %186 : vector<256x8xf32>
    %188 = vector.extract_strided_slice %174 {offsets = [0, 2, 0], sizes = [16, 16, 4], strides = [1, 1, 1]} : vector<16x18x4xf32> to vector<16x16x4xf32>
    %189 = vector.shape_cast %188 : vector<16x16x4xf32> to vector<256x4xf32>
    %190 = vector.extract_strided_slice %6 {offsets = [2, 0, 0], sizes = [1, 4, 8], strides = [1, 1, 1]} : vector<3x4x8xf32> to vector<1x4x8xf32>
    %191 = vector.shape_cast %190 : vector<1x4x8xf32> to vector<4x8xf32>
    %cst_100 = arith.constant dense<0.000000e+00> : vector<256x8xf32>
    %192 = tpu.matmul %189, %191, %cst_100 {dimension_numbers = #tpu.dot_dimension_numbers<[1], [0], [0], [1], [0, 0, 1, 1], [], []>} : vector<256x4xf32>, vector<4x8xf32>, vector<256x8xf32> -> vector<256x8xf32>
    %193 = arith.addf %187, %192 : vector<256x8xf32>
    %194 = vector.broadcast %7 : vector<1x8xf32> to vector<256x8xf32>
    %195 = arith.mulf %193, %194 : vector<256x8xf32>
    %196 = vector.broadcast %8 : vector<1x8xf32> to vector<256x8xf32>
    %197 = arith.addf %195, %196 : vector<256x8xf32>
    %cst_101 = arith.constant 0.000000e+00 : f32
    %198 = vector.broadcast %cst_101 : f32 to vector<256x8xf32>
    %199 = arith.maximumf %197, %198 : vector<256x8xf32>
    %200 = vector.shape_cast %199 : vector<256x8xf32> to vector<16x16x8xf32>
    %cst_102 = arith.constant 0.000000e+00 : f32
    %201 = vector.broadcast %cst_102 : f32 to vector<1x16x8xf32>
    %202 = tpu.concatenate %201, %200, %201 in 0 : vector<1x16x8xf32>, vector<16x16x8xf32>, vector<1x16x8xf32> -> vector<18x16x8xf32>
    %cst_103 = arith.constant 0.000000e+00 : f32
    %203 = vector.broadcast %cst_103 : f32 to vector<256x4xf32>
    %204 = vector.extract_strided_slice %202 {offsets = [0, 0, 0], sizes = [16, 16, 8], strides = [1, 1, 1]} : vector<18x16x8xf32> to vector<16x16x8xf32>
    %205 = vector.shape_cast %204 : vector<16x16x8xf32> to vector<256x8xf32>
    %206 = vector.extract_strided_slice %9 {offsets = [0, 0, 0], sizes = [1, 8, 4], strides = [1, 1, 1]} : vector<3x8x4xf32> to vector<1x8x4xf32>
    %207 = vector.shape_cast %206 : vector<1x8x4xf32> to vector<8x4xf32>
    %cst_104 = arith.constant dense<0.000000e+00> : vector<256x4xf32>
    %208 = tpu.matmul %205, %207, %cst_104 {dimension_numbers = #tpu.dot_dimension_numbers<[1], [0], [0], [1], [0, 0, 1, 1], [], []>} : vector<256x8xf32>, vector<8x4xf32>, vector<256x4xf32> -> vector<256x4xf32>
    %209 = arith.addf %203, %208 : vector<256x4xf32>
    %210 = vector.extract_strided_slice %202 {offsets = [1, 0, 0], sizes = [16, 16, 8], strides = [1, 1, 1]} : vector<18x16x8xf32> to vector<16x16x8xf32>
    %211 = vector.shape_cast %210 : vector<16x16x8xf32> to vector<256x8xf32>
    %212 = vector.extract_strided_slice %9 {offsets = [1, 0, 0], sizes = [1, 8, 4], strides = [1, 1, 1]} : vector<3x8x4xf32> to vector<1x8x4xf32>
    %213 = vector.shape_cast %212 : vector<1x8x4xf32> to vector<8x4xf32>
    %cst_105 = arith.constant dense<0.000000e+00> : vector<256x4xf32>
    %214 = tpu.matmul %211, %213, %cst_105 {dimension_numbers = #tpu.dot_dimension_numbers<[1], [0], [0], [1], [0, 0, 1, 1], [], []>} : vector<256x8xf32>, vector<8x4xf32>, vector<256x4xf32> -> vector<256x4xf32>
    %215 = arith.addf %209, %214 : vector<256x4xf32>
    %216 = vector.extract_strided_slice %202 {offsets = [2, 0, 0], sizes = [16, 16, 8], strides = [1, 1, 1]} : vector<18x16x8xf32> to vector<16x16x8xf32>
    %217 = vector.shape_cast %216 : vector<16x16x8xf32> to vector<256x8xf32>
    %218 = vector.extract_strided_slice %9 {offsets = [2, 0, 0], sizes = [1, 8, 4], strides = [1, 1, 1]} : vector<3x8x4xf32> to vector<1x8x4xf32>
    %219 = vector.shape_cast %218 : vector<1x8x4xf32> to vector<8x4xf32>
    %cst_106 = arith.constant dense<0.000000e+00> : vector<256x4xf32>
    %220 = tpu.matmul %217, %219, %cst_106 {dimension_numbers = #tpu.dot_dimension_numbers<[1], [0], [0], [1], [0, 0, 1, 1], [], []>} : vector<256x8xf32>, vector<8x4xf32>, vector<256x4xf32> -> vector<256x4xf32>
    %221 = arith.addf %215, %220 : vector<256x4xf32>
    %222 = vector.broadcast %10 : vector<1x4xf32> to vector<256x4xf32>
    %223 = arith.mulf %221, %222 : vector<256x4xf32>
    %224 = vector.broadcast %11 : vector<1x4xf32> to vector<256x4xf32>
    %225 = arith.addf %223, %224 : vector<256x4xf32>
    %cst_107 = arith.constant 0.000000e+00 : f32
    %226 = vector.broadcast %cst_107 : f32 to vector<256x4xf32>
    %227 = arith.maximumf %225, %226 : vector<256x4xf32>
    %228 = vector.shape_cast %227 : vector<256x4xf32> to vector<16x16x4xf32>
    %229 = arith.addf %172, %228 : vector<16x16x4xf32>
    %cst_108 = arith.constant 0.000000e+00 : f32
    %230 = vector.broadcast %cst_108 : f32 to vector<16x16x4xf32>
    %231 = arith.maximumf %229, %230 : vector<16x16x4xf32>
    %cst_109 = arith.constant 0.000000e+00 : f32
    %232 = vector.broadcast %cst_109 : f32 to vector<16x1x4xf32>
    %233 = tpu.concatenate %232, %82, %232 in 1 : vector<16x1x4xf32>, vector<16x16x4xf32>, vector<16x1x4xf32> -> vector<16x18x4xf32>
    %cst_110 = arith.constant 0.000000e+00 : f32
    %234 = vector.broadcast %cst_110 : f32 to vector<256x8xf32>
    %235 = vector.extract_strided_slice %233 {offsets = [0, 0, 0], sizes = [16, 16, 4], strides = [1, 1, 1]} : vector<16x18x4xf32> to vector<16x16x4xf32>
    %236 = vector.shape_cast %235 : vector<16x16x4xf32> to vector<256x4xf32>
    %237 = vector.extract_strided_slice %18 {offsets = [0, 0, 0], sizes = [1, 4, 8], strides = [1, 1, 1]} : vector<3x4x8xf32> to vector<1x4x8xf32>
    %238 = vector.shape_cast %237 : vector<1x4x8xf32> to vector<4x8xf32>
    %cst_111 = arith.constant dense<0.000000e+00> : vector<256x8xf32>
    %239 = tpu.matmul %236, %238, %cst_111 {dimension_numbers = #tpu.dot_dimension_numbers<[1], [0], [0], [1], [0, 0, 1, 1], [], []>} : vector<256x4xf32>, vector<4x8xf32>, vector<256x8xf32> -> vector<256x8xf32>
    %240 = arith.addf %234, %239 : vector<256x8xf32>
    %241 = vector.extract_strided_slice %233 {offsets = [0, 1, 0], sizes = [16, 16, 4], strides = [1, 1, 1]} : vector<16x18x4xf32> to vector<16x16x4xf32>
    %242 = vector.shape_cast %241 : vector<16x16x4xf32> to vector<256x4xf32>
    %243 = vector.extract_strided_slice %18 {offsets = [1, 0, 0], sizes = [1, 4, 8], strides = [1, 1, 1]} : vector<3x4x8xf32> to vector<1x4x8xf32>
    %244 = vector.shape_cast %243 : vector<1x4x8xf32> to vector<4x8xf32>
    %cst_112 = arith.constant dense<0.000000e+00> : vector<256x8xf32>
    %245 = tpu.matmul %242, %244, %cst_112 {dimension_numbers = #tpu.dot_dimension_numbers<[1], [0], [0], [1], [0, 0, 1, 1], [], []>} : vector<256x4xf32>, vector<4x8xf32>, vector<256x8xf32> -> vector<256x8xf32>
    %246 = arith.addf %240, %245 : vector<256x8xf32>
    %247 = vector.extract_strided_slice %233 {offsets = [0, 2, 0], sizes = [16, 16, 4], strides = [1, 1, 1]} : vector<16x18x4xf32> to vector<16x16x4xf32>
    %248 = vector.shape_cast %247 : vector<16x16x4xf32> to vector<256x4xf32>
    %249 = vector.extract_strided_slice %18 {offsets = [2, 0, 0], sizes = [1, 4, 8], strides = [1, 1, 1]} : vector<3x4x8xf32> to vector<1x4x8xf32>
    %250 = vector.shape_cast %249 : vector<1x4x8xf32> to vector<4x8xf32>
    %cst_113 = arith.constant dense<0.000000e+00> : vector<256x8xf32>
    %251 = tpu.matmul %248, %250, %cst_113 {dimension_numbers = #tpu.dot_dimension_numbers<[1], [0], [0], [1], [0, 0, 1, 1], [], []>} : vector<256x4xf32>, vector<4x8xf32>, vector<256x8xf32> -> vector<256x8xf32>
    %252 = arith.addf %246, %251 : vector<256x8xf32>
    %253 = vector.broadcast %19 : vector<1x8xf32> to vector<256x8xf32>
    %254 = arith.mulf %252, %253 : vector<256x8xf32>
    %255 = vector.broadcast %20 : vector<1x8xf32> to vector<256x8xf32>
    %256 = arith.addf %254, %255 : vector<256x8xf32>
    %cst_114 = arith.constant 0.000000e+00 : f32
    %257 = vector.broadcast %cst_114 : f32 to vector<256x8xf32>
    %258 = arith.maximumf %256, %257 : vector<256x8xf32>
    %259 = vector.shape_cast %258 : vector<256x8xf32> to vector<16x16x8xf32>
    %cst_115 = arith.constant 0.000000e+00 : f32
    %260 = vector.broadcast %cst_115 : f32 to vector<1x16x8xf32>
    %261 = tpu.concatenate %260, %259, %260 in 0 : vector<1x16x8xf32>, vector<16x16x8xf32>, vector<1x16x8xf32> -> vector<18x16x8xf32>
    %cst_116 = arith.constant 0.000000e+00 : f32
    %262 = vector.broadcast %cst_116 : f32 to vector<256x4xf32>
    %263 = vector.extract_strided_slice %261 {offsets = [0, 0, 0], sizes = [16, 16, 8], strides = [1, 1, 1]} : vector<18x16x8xf32> to vector<16x16x8xf32>
    %264 = vector.shape_cast %263 : vector<16x16x8xf32> to vector<256x8xf32>
    %265 = vector.extract_strided_slice %21 {offsets = [0, 0, 0], sizes = [1, 8, 4], strides = [1, 1, 1]} : vector<3x8x4xf32> to vector<1x8x4xf32>
    %266 = vector.shape_cast %265 : vector<1x8x4xf32> to vector<8x4xf32>
    %cst_117 = arith.constant dense<0.000000e+00> : vector<256x4xf32>
    %267 = tpu.matmul %264, %266, %cst_117 {dimension_numbers = #tpu.dot_dimension_numbers<[1], [0], [0], [1], [0, 0, 1, 1], [], []>} : vector<256x8xf32>, vector<8x4xf32>, vector<256x4xf32> -> vector<256x4xf32>
    %268 = arith.addf %262, %267 : vector<256x4xf32>
    %269 = vector.extract_strided_slice %261 {offsets = [1, 0, 0], sizes = [16, 16, 8], strides = [1, 1, 1]} : vector<18x16x8xf32> to vector<16x16x8xf32>
    %270 = vector.shape_cast %269 : vector<16x16x8xf32> to vector<256x8xf32>
    %271 = vector.extract_strided_slice %21 {offsets = [1, 0, 0], sizes = [1, 8, 4], strides = [1, 1, 1]} : vector<3x8x4xf32> to vector<1x8x4xf32>
    %272 = vector.shape_cast %271 : vector<1x8x4xf32> to vector<8x4xf32>
    %cst_118 = arith.constant dense<0.000000e+00> : vector<256x4xf32>
    %273 = tpu.matmul %270, %272, %cst_118 {dimension_numbers = #tpu.dot_dimension_numbers<[1], [0], [0], [1], [0, 0, 1, 1], [], []>} : vector<256x8xf32>, vector<8x4xf32>, vector<256x4xf32> -> vector<256x4xf32>
    %274 = arith.addf %268, %273 : vector<256x4xf32>
    %275 = vector.extract_strided_slice %261 {offsets = [2, 0, 0], sizes = [16, 16, 8], strides = [1, 1, 1]} : vector<18x16x8xf32> to vector<16x16x8xf32>
    %276 = vector.shape_cast %275 : vector<16x16x8xf32> to vector<256x8xf32>
    %277 = vector.extract_strided_slice %21 {offsets = [2, 0, 0], sizes = [1, 8, 4], strides = [1, 1, 1]} : vector<3x8x4xf32> to vector<1x8x4xf32>
    %278 = vector.shape_cast %277 : vector<1x8x4xf32> to vector<8x4xf32>
    %cst_119 = arith.constant dense<0.000000e+00> : vector<256x4xf32>
    %279 = tpu.matmul %276, %278, %cst_119 {dimension_numbers = #tpu.dot_dimension_numbers<[1], [0], [0], [1], [0, 0, 1, 1], [], []>} : vector<256x8xf32>, vector<8x4xf32>, vector<256x4xf32> -> vector<256x4xf32>
    %280 = arith.addf %274, %279 : vector<256x4xf32>
    %281 = vector.broadcast %22 : vector<1x4xf32> to vector<256x4xf32>
    %282 = arith.mulf %280, %281 : vector<256x4xf32>
    %283 = vector.broadcast %23 : vector<1x4xf32> to vector<256x4xf32>
    %284 = arith.addf %282, %283 : vector<256x4xf32>
    %cst_120 = arith.constant 0.000000e+00 : f32
    %285 = vector.broadcast %cst_120 : f32 to vector<256x4xf32>
    %286 = arith.maximumf %284, %285 : vector<256x4xf32>
    %287 = vector.shape_cast %286 : vector<256x4xf32> to vector<16x16x4xf32>
    %288 = vector.shape_cast %31 : vector<16x16x4xf32> to vector<256x4xf32>
    %cst_121 = arith.constant dense<0.000000e+00> : vector<256x4xf32>
    %289 = tpu.matmul %288, %3, %cst_121 {dimension_numbers = #tpu.dot_dimension_numbers<[1], [0], [0], [1], [0, 0, 1, 1], [], []>} : vector<256x4xf32>, vector<4x4xf32>, vector<256x4xf32> -> vector<256x4xf32>
    %290 = vector.broadcast %4 : vector<1x4xf32> to vector<256x4xf32>
    %291 = arith.mulf %289, %290 : vector<256x4xf32>
    %292 = vector.broadcast %5 : vector<1x4xf32> to vector<256x4xf32>
    %293 = arith.addf %291, %292 : vector<256x4xf32>
    %294 = vector.shape_cast %293 : vector<256x4xf32> to vector<16x16x4xf32>
    %295 = arith.addf %287, %294 : vector<16x16x4xf32>
    %cst_122 = arith.constant 0.000000e+00 : f32
    %296 = vector.broadcast %cst_122 : f32 to vector<16x16x4xf32>
    %297 = arith.maximumf %295, %296 : vector<16x16x4xf32>
    %cst_123 = arith.constant 0.000000e+00 : f32
    %298 = vector.broadcast %cst_123 : f32 to vector<16x1x4xf32>
    %299 = tpu.concatenate %298, %231, %298 in 1 : vector<16x1x4xf32>, vector<16x16x4xf32>, vector<16x1x4xf32> -> vector<16x18x4xf32>
    %cst_124 = arith.constant 0.000000e+00 : f32
    %300 = vector.broadcast %cst_124 : f32 to vector<1x18x4xf32>
    %301 = tpu.concatenate %300, %299, %300 in 0 : vector<1x18x4xf32>, vector<16x18x4xf32>, vector<1x18x4xf32> -> vector<18x18x4xf32>
    %cst_125 = arith.constant 0.000000e+00 : f32
    %302 = vector.broadcast %cst_125 : f32 to vector<16x16x4xf32>
    %303 = vector.extract_strided_slice %301 {offsets = [0, 0, 0], sizes = [16, 16, 4], strides = [1, 1, 1]} : vector<18x18x4xf32> to vector<16x16x4xf32>
    %304 = arith.addf %302, %303 : vector<16x16x4xf32>
    %305 = vector.extract_strided_slice %301 {offsets = [0, 1, 0], sizes = [16, 16, 4], strides = [1, 1, 1]} : vector<18x18x4xf32> to vector<16x16x4xf32>
    %306 = arith.addf %304, %305 : vector<16x16x4xf32>
    %307 = vector.extract_strided_slice %301 {offsets = [0, 2, 0], sizes = [16, 16, 4], strides = [1, 1, 1]} : vector<18x18x4xf32> to vector<16x16x4xf32>
    %308 = arith.addf %306, %307 : vector<16x16x4xf32>
    %309 = vector.extract_strided_slice %301 {offsets = [1, 0, 0], sizes = [16, 16, 4], strides = [1, 1, 1]} : vector<18x18x4xf32> to vector<16x16x4xf32>
    %310 = arith.addf %308, %309 : vector<16x16x4xf32>
    %311 = vector.extract_strided_slice %301 {offsets = [1, 1, 0], sizes = [16, 16, 4], strides = [1, 1, 1]} : vector<18x18x4xf32> to vector<16x16x4xf32>
    %312 = arith.addf %310, %311 : vector<16x16x4xf32>
    %313 = vector.extract_strided_slice %301 {offsets = [1, 2, 0], sizes = [16, 16, 4], strides = [1, 1, 1]} : vector<18x18x4xf32> to vector<16x16x4xf32>
    %314 = arith.addf %312, %313 : vector<16x16x4xf32>
    %315 = vector.extract_strided_slice %301 {offsets = [2, 0, 0], sizes = [16, 16, 4], strides = [1, 1, 1]} : vector<18x18x4xf32> to vector<16x16x4xf32>
    %316 = arith.addf %314, %315 : vector<16x16x4xf32>
    %317 = vector.extract_strided_slice %301 {offsets = [2, 1, 0], sizes = [16, 16, 4], strides = [1, 1, 1]} : vector<18x18x4xf32> to vector<16x16x4xf32>
    %318 = arith.addf %316, %317 : vector<16x16x4xf32>
    %319 = vector.extract_strided_slice %301 {offsets = [2, 2, 0], sizes = [16, 16, 4], strides = [1, 1, 1]} : vector<18x18x4xf32> to vector<16x16x4xf32>
    %320 = arith.addf %318, %319 : vector<16x16x4xf32>
    %cst_126 = arith.constant 0.111111112 : f32
    %321 = vector.broadcast %cst_126 : f32 to vector<16x16x4xf32>
    %322 = arith.mulf %320, %321 : vector<16x16x4xf32>
    %cst_127 = arith.constant 0.000000e+00 : f32
    %323 = vector.broadcast %cst_127 : f32 to vector<16x1x4xf32>
    %324 = tpu.concatenate %323, %31, %323 in 1 : vector<16x1x4xf32>, vector<16x16x4xf32>, vector<16x1x4xf32> -> vector<16x18x4xf32>
    %cst_128 = arith.constant 0.000000e+00 : f32
    %325 = vector.broadcast %cst_128 : f32 to vector<256x8xf32>
    %326 = vector.extract_strided_slice %324 {offsets = [0, 0, 0], sizes = [16, 16, 4], strides = [1, 1, 1]} : vector<16x18x4xf32> to vector<16x16x4xf32>
    %327 = vector.shape_cast %326 : vector<16x16x4xf32> to vector<256x4xf32>
    %328 = vector.extract_strided_slice %24 {offsets = [0, 0, 0], sizes = [1, 4, 8], strides = [1, 1, 1]} : vector<3x4x8xf32> to vector<1x4x8xf32>
    %329 = vector.shape_cast %328 : vector<1x4x8xf32> to vector<4x8xf32>
    %cst_129 = arith.constant dense<0.000000e+00> : vector<256x8xf32>
    %330 = tpu.matmul %327, %329, %cst_129 {dimension_numbers = #tpu.dot_dimension_numbers<[1], [0], [0], [1], [0, 0, 1, 1], [], []>} : vector<256x4xf32>, vector<4x8xf32>, vector<256x8xf32> -> vector<256x8xf32>
    %331 = arith.addf %325, %330 : vector<256x8xf32>
    %332 = vector.extract_strided_slice %324 {offsets = [0, 1, 0], sizes = [16, 16, 4], strides = [1, 1, 1]} : vector<16x18x4xf32> to vector<16x16x4xf32>
    %333 = vector.shape_cast %332 : vector<16x16x4xf32> to vector<256x4xf32>
    %334 = vector.extract_strided_slice %24 {offsets = [1, 0, 0], sizes = [1, 4, 8], strides = [1, 1, 1]} : vector<3x4x8xf32> to vector<1x4x8xf32>
    %335 = vector.shape_cast %334 : vector<1x4x8xf32> to vector<4x8xf32>
    %cst_130 = arith.constant dense<0.000000e+00> : vector<256x8xf32>
    %336 = tpu.matmul %333, %335, %cst_130 {dimension_numbers = #tpu.dot_dimension_numbers<[1], [0], [0], [1], [0, 0, 1, 1], [], []>} : vector<256x4xf32>, vector<4x8xf32>, vector<256x8xf32> -> vector<256x8xf32>
    %337 = arith.addf %331, %336 : vector<256x8xf32>
    %338 = vector.extract_strided_slice %324 {offsets = [0, 2, 0], sizes = [16, 16, 4], strides = [1, 1, 1]} : vector<16x18x4xf32> to vector<16x16x4xf32>
    %339 = vector.shape_cast %338 : vector<16x16x4xf32> to vector<256x4xf32>
    %340 = vector.extract_strided_slice %24 {offsets = [2, 0, 0], sizes = [1, 4, 8], strides = [1, 1, 1]} : vector<3x4x8xf32> to vector<1x4x8xf32>
    %341 = vector.shape_cast %340 : vector<1x4x8xf32> to vector<4x8xf32>
    %cst_131 = arith.constant dense<0.000000e+00> : vector<256x8xf32>
    %342 = tpu.matmul %339, %341, %cst_131 {dimension_numbers = #tpu.dot_dimension_numbers<[1], [0], [0], [1], [0, 0, 1, 1], [], []>} : vector<256x4xf32>, vector<4x8xf32>, vector<256x8xf32> -> vector<256x8xf32>
    %343 = arith.addf %337, %342 : vector<256x8xf32>
    %344 = vector.broadcast %25 : vector<1x8xf32> to vector<256x8xf32>
    %345 = arith.mulf %343, %344 : vector<256x8xf32>
    %346 = vector.broadcast %26 : vector<1x8xf32> to vector<256x8xf32>
    %347 = arith.addf %345, %346 : vector<256x8xf32>
    %cst_132 = arith.constant 0.000000e+00 : f32
    %348 = vector.broadcast %cst_132 : f32 to vector<256x8xf32>
    %349 = arith.maximumf %347, %348 : vector<256x8xf32>
    %350 = vector.shape_cast %349 : vector<256x8xf32> to vector<16x16x8xf32>
    %cst_133 = arith.constant 0.000000e+00 : f32
    %351 = vector.broadcast %cst_133 : f32 to vector<1x16x8xf32>
    %352 = tpu.concatenate %351, %350, %351 in 0 : vector<1x16x8xf32>, vector<16x16x8xf32>, vector<1x16x8xf32> -> vector<18x16x8xf32>
    %cst_134 = arith.constant 0.000000e+00 : f32
    %353 = vector.broadcast %cst_134 : f32 to vector<256x4xf32>
    %354 = vector.extract_strided_slice %352 {offsets = [0, 0, 0], sizes = [16, 16, 8], strides = [1, 1, 1]} : vector<18x16x8xf32> to vector<16x16x8xf32>
    %355 = vector.shape_cast %354 : vector<16x16x8xf32> to vector<256x8xf32>
    %356 = vector.extract_strided_slice %27 {offsets = [0, 0, 0], sizes = [1, 8, 4], strides = [1, 1, 1]} : vector<3x8x4xf32> to vector<1x8x4xf32>
    %357 = vector.shape_cast %356 : vector<1x8x4xf32> to vector<8x4xf32>
    %cst_135 = arith.constant dense<0.000000e+00> : vector<256x4xf32>
    %358 = tpu.matmul %355, %357, %cst_135 {dimension_numbers = #tpu.dot_dimension_numbers<[1], [0], [0], [1], [0, 0, 1, 1], [], []>} : vector<256x8xf32>, vector<8x4xf32>, vector<256x4xf32> -> vector<256x4xf32>
    %359 = arith.addf %353, %358 : vector<256x4xf32>
    %360 = vector.extract_strided_slice %352 {offsets = [1, 0, 0], sizes = [16, 16, 8], strides = [1, 1, 1]} : vector<18x16x8xf32> to vector<16x16x8xf32>
    %361 = vector.shape_cast %360 : vector<16x16x8xf32> to vector<256x8xf32>
    %362 = vector.extract_strided_slice %27 {offsets = [1, 0, 0], sizes = [1, 8, 4], strides = [1, 1, 1]} : vector<3x8x4xf32> to vector<1x8x4xf32>
    %363 = vector.shape_cast %362 : vector<1x8x4xf32> to vector<8x4xf32>
    %cst_136 = arith.constant dense<0.000000e+00> : vector<256x4xf32>
    %364 = tpu.matmul %361, %363, %cst_136 {dimension_numbers = #tpu.dot_dimension_numbers<[1], [0], [0], [1], [0, 0, 1, 1], [], []>} : vector<256x8xf32>, vector<8x4xf32>, vector<256x4xf32> -> vector<256x4xf32>
    %365 = arith.addf %359, %364 : vector<256x4xf32>
    %366 = vector.extract_strided_slice %352 {offsets = [2, 0, 0], sizes = [16, 16, 8], strides = [1, 1, 1]} : vector<18x16x8xf32> to vector<16x16x8xf32>
    %367 = vector.shape_cast %366 : vector<16x16x8xf32> to vector<256x8xf32>
    %368 = vector.extract_strided_slice %27 {offsets = [2, 0, 0], sizes = [1, 8, 4], strides = [1, 1, 1]} : vector<3x8x4xf32> to vector<1x8x4xf32>
    %369 = vector.shape_cast %368 : vector<1x8x4xf32> to vector<8x4xf32>
    %cst_137 = arith.constant dense<0.000000e+00> : vector<256x4xf32>
    %370 = tpu.matmul %367, %369, %cst_137 {dimension_numbers = #tpu.dot_dimension_numbers<[1], [0], [0], [1], [0, 0, 1, 1], [], []>} : vector<256x8xf32>, vector<8x4xf32>, vector<256x4xf32> -> vector<256x4xf32>
    %371 = arith.addf %365, %370 : vector<256x4xf32>
    %372 = vector.broadcast %28 : vector<1x4xf32> to vector<256x4xf32>
    %373 = arith.mulf %371, %372 : vector<256x4xf32>
    %374 = vector.broadcast %29 : vector<1x4xf32> to vector<256x4xf32>
    %375 = arith.addf %373, %374 : vector<256x4xf32>
    %cst_138 = arith.constant 0.000000e+00 : f32
    %376 = vector.broadcast %cst_138 : f32 to vector<256x4xf32>
    %377 = arith.maximumf %375, %376 : vector<256x4xf32>
    %378 = vector.shape_cast %377 : vector<256x4xf32> to vector<16x16x4xf32>
    %379 = arith.addf %322, %378 : vector<16x16x4xf32>
    %cst_139 = arith.constant 0.000000e+00 : f32
    %380 = vector.broadcast %cst_139 : f32 to vector<16x16x4xf32>
    %381 = arith.maximumf %379, %380 : vector<16x16x4xf32>
    %c0_140 = arith.constant 0 : index
    %c0_141 = arith.constant 0 : index
    %c0_142 = arith.constant 0 : index
    %c0_143 = arith.constant 0 : index
    %382 = vector.load %arg32[%c0_140, %c0_141, %c0_142, %c0_143] : memref<1x16x16x12xf32, #tpu.memory_space<vmem>>, vector<1x16x16x4xf32>
    %383 = vector.shape_cast %382 : vector<1x16x16x4xf32> to vector<16x16x4xf32>
    %384 = vector.shape_cast %92 : vector<16x16x4xf32> to vector<1x16x16x4xf32>
    tpu.vector_store %arg32[%c0_140, %c0_141, %c0_142, %c0_143], %384 {strides = array<i32>} : memref<1x16x16x12xf32, #tpu.memory_space<vmem>>, vector<1x16x16x4xf32>,
    %c0_144 = arith.constant 0 : index
    %c0_145 = arith.constant 0 : index
    %c0_146 = arith.constant 0 : index
    %c4 = arith.constant 4 : index
    %385 = vector.load %arg32[%c0_144, %c0_145, %c0_146, %c4] : memref<1x16x16x12xf32, #tpu.memory_space<vmem>>, vector<1x16x16x4xf32>
    %386 = vector.shape_cast %385 : vector<1x16x16x4xf32> to vector<16x16x4xf32>
    %387 = vector.shape_cast %297 : vector<16x16x4xf32> to vector<1x16x16x4xf32>
    tpu.vector_store %arg32[%c0_144, %c0_145, %c0_146, %c4], %387 {strides = array<i32>} : memref<1x16x16x12xf32, #tpu.memory_space<vmem>>, vector<1x16x16x4xf32>,
    %c0_147 = arith.constant 0 : index
    %c0_148 = arith.constant 0 : index
    %c0_149 = arith.constant 0 : index
    %c8 = arith.constant 8 : index
    %388 = vector.load %arg32[%c0_147, %c0_148, %c0_149, %c8] : memref<1x16x16x12xf32, #tpu.memory_space<vmem>>, vector<1x16x16x4xf32>
    %389 = vector.shape_cast %388 : vector<1x16x16x4xf32> to vector<16x16x4xf32>
    %390 = vector.shape_cast %381 : vector<16x16x4xf32> to vector<1x16x16x4xf32>
    tpu.vector_store %arg32[%c0_147, %c0_148, %c0_149, %c8], %390 {strides = array<i32>} : memref<1x16x16x12xf32, #tpu.memory_space<vmem>>, vector<1x16x16x4xf32>,
    return
  }
  func.func @transform_0(%arg0: i32) -> (i32, i32, i32, i32) {
    %c0_i32 = arith.constant 0 : i32
    %c0_i32_0 = arith.constant 0 : i32
    %c0_i32_1 = arith.constant 0 : i32
    %c0_i32_2 = arith.constant 0 : i32
    return %arg0, %c0_i32, %c0_i32_0, %c0_i32_1 : i32, i32, i32, i32
  }
  func.func @transform_1(%arg0: i32) -> (i32, i32) {
    %c0_i32 = arith.constant 0 : i32
    %c0_i32_0 = arith.constant 0 : i32
    %c0_i32_1 = arith.constant 0 : i32
    return %c0_i32, %c0_i32_0 : i32, i32
  }
  func.func @transform_2(%arg0: i32) -> (i32, i32) {
    %c0_i32 = arith.constant 0 : i32
    %c0_i32_0 = arith.constant 0 : i32
    %c0_i32_1 = arith.constant 0 : i32
    return %c0_i32, %c0_i32_0 : i32, i32
  }
  func.func @transform_3(%arg0: i32) -> (i32, i32) {
    %c0_i32 = arith.constant 0 : i32
    %c0_i32_0 = arith.constant 0 : i32
    %c0_i32_1 = arith.constant 0 : i32
    return %c0_i32, %c0_i32_0 : i32, i32
  }
  func.func @transform_4(%arg0: i32) -> (i32, i32) {
    %c0_i32 = arith.constant 0 : i32
    %c0_i32_0 = arith.constant 0 : i32
    %c0_i32_1 = arith.constant 0 : i32
    return %c0_i32, %c0_i32_0 : i32, i32
  }
  func.func @transform_5(%arg0: i32) -> (i32, i32) {
    %c0_i32 = arith.constant 0 : i32
    %c0_i32_0 = arith.constant 0 : i32
    %c0_i32_1 = arith.constant 0 : i32
    return %c0_i32, %c0_i32_0 : i32, i32
  }
  func.func @transform_6(%arg0: i32) -> (i32, i32) {
    %c0_i32 = arith.constant 0 : i32
    %c0_i32_0 = arith.constant 0 : i32
    %c0_i32_1 = arith.constant 0 : i32
    return %c0_i32, %c0_i32_0 : i32, i32
  }
  func.func @transform_7(%arg0: i32) -> (i32, i32, i32) {
    %c0_i32 = arith.constant 0 : i32
    %c0_i32_0 = arith.constant 0 : i32
    %c0_i32_1 = arith.constant 0 : i32
    %c0_i32_2 = arith.constant 0 : i32
    return %c0_i32, %c0_i32_0, %c0_i32_1 : i32, i32, i32
  }
  func.func @transform_8(%arg0: i32) -> (i32, i32) {
    %c0_i32 = arith.constant 0 : i32
    %c0_i32_0 = arith.constant 0 : i32
    %c0_i32_1 = arith.constant 0 : i32
    return %c0_i32, %c0_i32_0 : i32, i32
  }
  func.func @transform_9(%arg0: i32) -> (i32, i32) {
    %c0_i32 = arith.constant 0 : i32
    %c0_i32_0 = arith.constant 0 : i32
    %c0_i32_1 = arith.constant 0 : i32
    return %c0_i32, %c0_i32_0 : i32, i32
  }
  func.func @transform_10(%arg0: i32) -> (i32, i32, i32) {
    %c0_i32 = arith.constant 0 : i32
    %c0_i32_0 = arith.constant 0 : i32
    %c0_i32_1 = arith.constant 0 : i32
    %c0_i32_2 = arith.constant 0 : i32
    return %c0_i32, %c0_i32_0, %c0_i32_1 : i32, i32, i32
  }
  func.func @transform_11(%arg0: i32) -> (i32, i32) {
    %c0_i32 = arith.constant 0 : i32
    %c0_i32_0 = arith.constant 0 : i32
    %c0_i32_1 = arith.constant 0 : i32
    return %c0_i32, %c0_i32_0 : i32, i32
  }
  func.func @transform_12(%arg0: i32) -> (i32, i32) {
    %c0_i32 = arith.constant 0 : i32
    %c0_i32_0 = arith.constant 0 : i32
    %c0_i32_1 = arith.constant 0 : i32
    return %c0_i32, %c0_i32_0 : i32, i32
  }
  func.func @transform_13(%arg0: i32) -> (i32, i32, i32) {
    %c0_i32 = arith.constant 0 : i32
    %c0_i32_0 = arith.constant 0 : i32
    %c0_i32_1 = arith.constant 0 : i32
    %c0_i32_2 = arith.constant 0 : i32
    return %c0_i32, %c0_i32_0, %c0_i32_1 : i32, i32, i32
  }
  func.func @transform_14(%arg0: i32) -> (i32, i32) {
    %c0_i32 = arith.constant 0 : i32
    %c0_i32_0 = arith.constant 0 : i32
    %c0_i32_1 = arith.constant 0 : i32
    return %c0_i32, %c0_i32_0 : i32, i32
  }
  func.func @transform_15(%arg0: i32) -> (i32, i32) {
    %c0_i32 = arith.constant 0 : i32
    %c0_i32_0 = arith.constant 0 : i32
    %c0_i32_1 = arith.constant 0 : i32
    return %c0_i32, %c0_i32_0 : i32, i32
  }
  func.func @transform_16(%arg0: i32) -> (i32, i32, i32) {
    %c0_i32 = arith.constant 0 : i32
    %c0_i32_0 = arith.constant 0 : i32
    %c0_i32_1 = arith.constant 0 : i32
    %c0_i32_2 = arith.constant 0 : i32
    return %c0_i32, %c0_i32_0, %c0_i32_1 : i32, i32, i32
  }
  func.func @transform_17(%arg0: i32) -> (i32, i32) {
    %c0_i32 = arith.constant 0 : i32
    %c0_i32_0 = arith.constant 0 : i32
    %c0_i32_1 = arith.constant 0 : i32
    return %c0_i32, %c0_i32_0 : i32, i32
  }
  func.func @transform_18(%arg0: i32) -> (i32, i32) {
    %c0_i32 = arith.constant 0 : i32
    %c0_i32_0 = arith.constant 0 : i32
    %c0_i32_1 = arith.constant 0 : i32
    return %c0_i32, %c0_i32_0 : i32, i32
  }
  func.func @transform_19(%arg0: i32) -> (i32, i32, i32) {
    %c0_i32 = arith.constant 0 : i32
    %c0_i32_0 = arith.constant 0 : i32
    %c0_i32_1 = arith.constant 0 : i32
    %c0_i32_2 = arith.constant 0 : i32
    return %c0_i32, %c0_i32_0, %c0_i32_1 : i32, i32, i32
  }
  func.func @transform_20(%arg0: i32) -> (i32, i32) {
    %c0_i32 = arith.constant 0 : i32
    %c0_i32_0 = arith.constant 0 : i32
    %c0_i32_1 = arith.constant 0 : i32
    return %c0_i32, %c0_i32_0 : i32, i32
  }
  func.func @transform_21(%arg0: i32) -> (i32, i32) {
    %c0_i32 = arith.constant 0 : i32
    %c0_i32_0 = arith.constant 0 : i32
    %c0_i32_1 = arith.constant 0 : i32
    return %c0_i32, %c0_i32_0 : i32, i32
  }
  func.func @transform_22(%arg0: i32) -> (i32, i32, i32) {
    %c0_i32 = arith.constant 0 : i32
    %c0_i32_0 = arith.constant 0 : i32
    %c0_i32_1 = arith.constant 0 : i32
    %c0_i32_2 = arith.constant 0 : i32
    return %c0_i32, %c0_i32_0, %c0_i32_1 : i32, i32, i32
  }
  func.func @transform_23(%arg0: i32) -> (i32, i32) {
    %c0_i32 = arith.constant 0 : i32
    %c0_i32_0 = arith.constant 0 : i32
    %c0_i32_1 = arith.constant 0 : i32
    return %c0_i32, %c0_i32_0 : i32, i32
  }
  func.func @transform_24(%arg0: i32) -> (i32, i32) {
    %c0_i32 = arith.constant 0 : i32
    %c0_i32_0 = arith.constant 0 : i32
    %c0_i32_1 = arith.constant 0 : i32
    return %c0_i32, %c0_i32_0 : i32, i32
  }
  func.func @transform_25(%arg0: i32) -> (i32, i32, i32) {
    %c0_i32 = arith.constant 0 : i32
    %c0_i32_0 = arith.constant 0 : i32
    %c0_i32_1 = arith.constant 0 : i32
    %c0_i32_2 = arith.constant 0 : i32
    return %c0_i32, %c0_i32_0, %c0_i32_1 : i32, i32, i32
  }
  func.func @transform_26(%arg0: i32) -> (i32, i32) {
    %c0_i32 = arith.constant 0 : i32
    %c0_i32_0 = arith.constant 0 : i32
    %c0_i32_1 = arith.constant 0 : i32
    return %c0_i32, %c0_i32_0 : i32, i32
  }
  func.func @transform_27(%arg0: i32) -> (i32, i32) {
    %c0_i32 = arith.constant 0 : i32
    %c0_i32_0 = arith.constant 0 : i32
    %c0_i32_1 = arith.constant 0 : i32
    return %c0_i32, %c0_i32_0 : i32, i32
  }
  func.func @transform_28(%arg0: i32) -> (i32, i32, i32) {
    %c0_i32 = arith.constant 0 : i32
    %c0_i32_0 = arith.constant 0 : i32
    %c0_i32_1 = arith.constant 0 : i32
    %c0_i32_2 = arith.constant 0 : i32
    return %c0_i32, %c0_i32_0, %c0_i32_1 : i32, i32, i32
  }
  func.func @transform_29(%arg0: i32) -> (i32, i32) {
    %c0_i32 = arith.constant 0 : i32
    %c0_i32_0 = arith.constant 0 : i32
    %c0_i32_1 = arith.constant 0 : i32
    return %c0_i32, %c0_i32_0 : i32, i32
  }
  func.func @transform_30(%arg0: i32) -> (i32, i32) {
    %c0_i32 = arith.constant 0 : i32
    %c0_i32_0 = arith.constant 0 : i32
    %c0_i32_1 = arith.constant 0 : i32
    return %c0_i32, %c0_i32_0 : i32, i32
  }
  func.func @transform_31(%arg0: i32) -> (i32, i32, i32, i32) {
    %c0_i32 = arith.constant 0 : i32
    %c0_i32_0 = arith.constant 0 : i32
    %c0_i32_1 = arith.constant 0 : i32
    %c0_i32_2 = arith.constant 0 : i32
    return %arg0, %c0_i32, %c0_i32_0, %c0_i32_1 : i32, i32, i32, i32
  }
}

</mosaic_0001>

<llo_original>
// kernel: normal_cell_pallas.1
$region0: #{normal_cell_pallas.1}
  #allocation0 [shape = 'u32[]', space=smem, size = 0x4, offset = 0x4, fixed_abs, tag = 'smem constant byte address 0x4 - core index']
  #allocation1 [shape = 'u32[72,128]{1,0:T(1,128)}', space=vmem, size = 0x9000, scoped, tag = 'internal scratch']
  %s0 = inlined_call_operand.smem [shape: u32[32], index: -1, kind: input, shape index: {}]
  %s1 = sld [smem:[%s0]]
  %s2 = scalar_lea.smem %s0, 1
  %s3 = sld [smem:[%s2]]
  %s4 = scalar_lea.smem %s0, 2
  %s5 = sld [smem:[%s4]]
  %s6 = scalar_lea.smem %s0, 3
  %s7 = sld [smem:[%s6]]
  %s8 = scalar_lea.smem %s0, 4
  %s9 = sld [smem:[%s8]]
  %s10 = scalar_lea.smem %s0, 5
  %s11 = sld [smem:[%s10]]
  %s12 = scalar_lea.smem %s0, 6
  %s13 = sld [smem:[%s12]]
  %s14 = scalar_lea.smem %s0, 7
  %s15 = sld [smem:[%s14]]
  %s16 = scalar_lea.smem %s0, 8
  %s17 = sld [smem:[%s16]]
  %s18 = scalar_lea.smem %s0, 9
  %s19 = sld [smem:[%s18]]
  %s20 = scalar_lea.smem %s0, 10
  %s21 = sld [smem:[%s20]]
  %s22 = scalar_lea.smem %s0, 11
  %s23 = sld [smem:[%s22]]
  %s24 = scalar_lea.smem %s0, 12
  %s25 = sld [smem:[%s24]]
  %s26 = scalar_lea.smem %s0, 13
  %s27 = sld [smem:[%s26]]
  %s28 = scalar_lea.smem %s0, 14
  %s29 = sld [smem:[%s28]]
  %s30 = scalar_lea.smem %s0, 15
  %s31 = sld [smem:[%s30]]
  %s32 = scalar_lea.smem %s0, 16
  %s33 = sld [smem:[%s32]]
  %s34 = scalar_lea.smem %s0, 17
  %s35 = sld [smem:[%s34]]
  %s36 = scalar_lea.smem %s0, 18
  %s37 = sld [smem:[%s36]]
  %s38 = scalar_lea.smem %s0, 19
  %s39 = sld [smem:[%s38]]
  %s40 = scalar_lea.smem %s0, 20
  %s41 = sld [smem:[%s40]]
  %s42 = scalar_lea.smem %s0, 21
  %s43 = sld [smem:[%s42]]
  %s44 = scalar_lea.smem %s0, 22
  %s45 = sld [smem:[%s44]]
  %s46 = scalar_lea.smem %s0, 23
  %s47 = sld [smem:[%s46]]
  %s48 = scalar_lea.smem %s0, 24
  %s49 = sld [smem:[%s48]]
  %s50 = scalar_lea.smem %s0, 25
  %s51 = sld [smem:[%s50]]
  %s52 = scalar_lea.smem %s0, 26
  %s53 = sld [smem:[%s52]]
  %s54 = scalar_lea.smem %s0, 27
  %s55 = sld [smem:[%s54]]
  %s56 = scalar_lea.smem %s0, 28
  %s57 = sld [smem:[%s56]]
  %s58 = scalar_lea.smem %s0, 29
  %s59 = sld [smem:[%s58]]
  %s60 = scalar_lea.smem %s0, 30
  %s61 = sld [smem:[%s60]]
  %s62 = scalar_lea.smem %s0, 31
  %s63 = sld [smem:[%s62]]
  %s64 = sld [smem:[#allocation0]]
  $region157: #{normal_cell_pallas.1} parent=0
    _
  %s66 = ssub.s32 1, %s64
  %s67 = scalar_select 0, %s66, %s64
  loop: start=0, step=1, limit=4
  $region2: #{normal_cell_pallas.1} parent=0 // loop_pre_header
    _
  $region3: #{normal_cell_pallas.1} parent=0 // loop_header
    %s69 = sphi 0, %s73
    %p70 = scmp.ge.s32.totalorder %s69, 4
    %s79 = sphi 0, %s81
    %s82 = sphi 0, %s79
    %s83 = sphi 0, %s82
    %s99 = sphi 0, %s83
    %s103 = sphi 0, %s103
    %s105 = sphi 0, %s103
    %s106 = sphi 0, %s105
    %s120 = sphi 0, %s106
    %s124 = sphi 0, %s124
    %s126 = sphi 0, %s124
    %s127 = sphi 0, %s126
    %s141 = sphi 0, %s127
    %s145 = sphi 0, %s145
    %s147 = sphi 0, %s145
    %s148 = sphi 0, %s147
    %s162 = sphi 0, %s148
    %s166 = sphi 0, %s166
    %s168 = sphi 0, %s166
    %s169 = sphi 0, %s168
    %s183 = sphi 0, %s169
    %s187 = sphi 0, %s187
    %s189 = sphi 0, %s187
    %s190 = sphi 0, %s189
    %s204 = sphi 0, %s190
    %s208 = sphi 0, %s208
    %s210 = sphi 0, %s208
    %s211 = sphi 0, %s210
    %s225 = sphi 0, %s211
    %s229 = sphi 0, %s229
    %s231 = sphi 0, %s229
    %s232 = sphi 0, %s231
    %s246 = sphi 0, %s232
    %s250 = sphi 0, %s250
    %s252 = sphi 0, %s250
    %s253 = sphi 0, %s252
    %s267 = sphi 0, %s253
    %s271 = sphi 0, %s271
    %s273 = sphi 0, %s271
    %s274 = sphi 0, %s273
    %s288 = sphi 0, %s274
    %s292 = sphi 0, %s292
    %s294 = sphi 0, %s292
    %s295 = sphi 0, %s294
    %s309 = sphi 0, %s295
    %s313 = sphi 0, %s313
    %s315 = sphi 0, %s313
    %s316 = sphi 0, %s315
    %s330 = sphi 0, %s316
    %s334 = sphi 0, %s334
    %s336 = sphi 0, %s334
    %s337 = sphi 0, %s336
    %s351 = sphi 0, %s337
    %s355 = sphi 0, %s355
    %s357 = sphi 0, %s355
    %s358 = sphi 0, %s357
    %s372 = sphi 0, %s358
    %s376 = sphi 0, %s376
    %s378 = sphi 0, %s376
    %s379 = sphi 0, %s378
    %s393 = sphi 0, %s379
    %s397 = sphi 0, %s397
    %s399 = sphi 0, %s397
    %s400 = sphi 0, %s399
    %s414 = sphi 0, %s400
    %s418 = sphi 0, %s418
    %s420 = sphi 0, %s418
    %s421 = sphi 0, %s420
    %s435 = sphi 0, %s421
    %s439 = sphi 0, %s439
    %s441 = sphi 0, %s439
    %s442 = sphi 0, %s441
    %s456 = sphi 0, %s442
    %s460 = sphi 0, %s460
    %s462 = sphi 0, %s460
    %s463 = sphi 0, %s462
    %s477 = sphi 0, %s463
    %s481 = sphi 0, %s481
    %s483 = sphi 0, %s481
    %s484 = sphi 0, %s483
    %s498 = sphi 0, %s484
    %s502 = sphi 0, %s502
    %s504 = sphi 0, %s502
    %s505 = sphi 0, %s504
    %s519 = sphi 0, %s505
    %s523 = sphi 0, %s523
    %s525 = sphi 0, %s523
    %s526 = sphi 0, %s525
    %s540 = sphi 0, %s526
    %s544 = sphi 0, %s544
    %s546 = sphi 0, %s544
    %s547 = sphi 0, %s546
    %s561 = sphi 0, %s547
    %s565 = sphi 0, %s565
    %s567 = sphi 0, %s565
    %s568 = sphi 0, %s567
    %s582 = sphi 0, %s568
    %s586 = sphi 0, %s586
    %s588 = sphi 0, %s586
    %s589 = sphi 0, %s588
    %s603 = sphi 0, %s589
    %s607 = sphi 0, %s607
    %s609 = sphi 0, %s607
    %s610 = sphi 0, %s609
    %s624 = sphi 0, %s610
    %s628 = sphi 0, %s628
    %s630 = sphi 0, %s628
    %s631 = sphi 0, %s630
    %s645 = sphi 0, %s631
    %s649 = sphi 0, %s649
    %s651 = sphi 0, %s649
    %s652 = sphi 0, %s651
    %s666 = sphi 0, %s652
    %s670 = sphi 0, %s670
    %s672 = sphi 0, %s670
    %s673 = sphi 0, %s672
    %s687 = sphi 0, %s673
    %s691 = sphi 0, %s691
    %s693 = sphi 0, %s691
    %s694 = sphi 0, %s693
    %s708 = sphi 0, %s694
    %s712 = sphi 0, %s712
    %s714 = sphi 0, %s712
    %s715 = sphi 0, %s714
    %s729 = sphi 0, %s715
    %s735 = sphi 0, %s737
    %s738 = sphi 0, %s735
    %s739 = sphi 0, %s738
    %s755 = sphi 0, %s739
  $region4: #{normal_cell_pallas.1} parent=0 // loop_header_branch
    %72 = sbr.rel (%p70) target = $region8
  $region5: #{normal_cell_pallas.1} parent=0 // loop_body
    %s74 = ssub.s32 %s69, 1
    %s75 = ssub.s32 %s69, 2
    %s76 = sadd.s32 %s69, 1
    %s77 = ssub.s32 %s69, %s76
    %p78 = scmp.eq.s32.totalorder %s77, 0
    %s80 = sadd.s32 %s79, 1
    %s81 = scalar_select %p78, %s79, %s80
    %p84 = pneg %p78
    %p85 = scmp.eq.s32.totalorder %s69, 1
    %p86 = por %p84, %p85
    %p87 = scmp.ne.s32.totalorder %s79, %s82
    %p88 = scmp.eq.s32.totalorder %s69, 0
    %p89 = por %p87, %p88
    %p90 = scmp.ne.s32.totalorder %s79, %s82
    %p91 = scmp.eq.s32.totalorder %s74, 1
    %p92 = por %p90, %p91
    %p93 = scmp.ne.s32.totalorder %s82, %s83
    %p94 = scmp.eq.s32.totalorder %s74, 0
    %p95 = por %p93, %p94
    %p96 = scmp.ne.s32.totalorder %s82, %s83
    %p97 = scmp.eq.s32.totalorder %s75, 1
    %p98 = por %p96, %p97
    %p100 = scmp.ne.s32.totalorder %s83, %s99
    %p101 = scmp.eq.s32.totalorder %s75, 0
    %p102 = por %p100, %p101
    %s104 = sadd.s32 %s103, 1
    %p107 = scmp.eq.s32.totalorder %s69, 1
    %p108 = scmp.ne.s32.totalorder %s103, %s105
    %p109 = scmp.eq.s32.totalorder %s69, 0
    %p110 = por %p108, %p109
    %p111 = scmp.ne.s32.totalorder %s103, %s105
    %p112 = scmp.eq.s32.totalorder %s74, 1
    %p113 = por %p111, %p112
    %p114 = scmp.ne.s32.totalorder %s105, %s106
    %p115 = scmp.eq.s32.totalorder %s74, 0
    %p116 = por %p114, %p115
    %p117 = scmp.ne.s32.totalorder %s105, %s106
    %p118 = scmp.eq.s32.totalorder %s75, 1
    %p119 = por %p117, %p118
    %p121 = scmp.ne.s32.totalorder %s106, %s120
    %p122 = scmp.eq.s32.totalorder %s75, 0
    %p123 = por %p121, %p122
    %s125 = sadd.s32 %s124, 1
    %p128 = scmp.eq.s32.totalorder %s69, 1
    %p129 = scmp.ne.s32.totalorder %s124, %s126
    %p130 = scmp.eq.s32.totalorder %s69, 0
    %p131 = por %p129, %p130
    %p132 = scmp.ne.s32.totalorder %s124, %s126
    %p133 = scmp.eq.s32.totalorder %s74, 1
    %p134 = por %p132, %p133
    %p135 = scmp.ne.s32.totalorder %s126, %s127
    %p136 = scmp.eq.s32.totalorder %s74, 0
    %p137 = por %p135, %p136
    %p138 = scmp.ne.s32.totalorder %s126, %s127
    %p139 = scmp.eq.s32.totalorder %s75, 1
    %p140 = por %p138, %p139
    %p142 = scmp.ne.s32.totalorder %s127, %s141
    %p143 = scmp.eq.s32.totalorder %s75, 0
    %p144 = por %p142, %p143
    %s146 = sadd.s32 %s145, 1
    %p149 = scmp.eq.s32.totalorder %s69, 1
    %p150 = scmp.ne.s32.totalorder %s145, %s147
    %p151 = scmp.eq.s32.totalorder %s69, 0
    %p152 = por %p150, %p151
    %p153 = scmp.ne.s32.totalorder %s145, %s147
    %p154 = scmp.eq.s32.totalorder %s74, 1
    %p155 = por %p153, %p154
    %p156 = scmp.ne.s32.totalorder %s147, %s148
    %p157 = scmp.eq.s32.totalorder %s74, 0
    %p158 = por %p156, %p157
    %p159 = scmp.ne.s32.totalorder %s147, %s148
    %p160 = scmp.eq.s32.totalorder %s75, 1
    %p161 = por %p159, %p160
    %p163 = scmp.ne.s32.totalorder %s148, %s162
    %p164 = scmp.eq.s32.totalorder %s75, 0
    %p165 = por %p163, %p164
    %s167 = sadd.s32 %s166, 1
    %p170 = scmp.eq.s32.totalorder %s69, 1
    %p171 = scmp.ne.s32.totalorder %s166, %s168
    %p172 = scmp.eq.s32.totalorder %s69, 0
    %p173 = por %p171, %p172
    %p174 = scmp.ne.s32.totalorder %s166, %s168
    %p175 = scmp.eq.s32.totalorder %s74, 1
    %p176 = por %p174, %p175
    %p177 = scmp.ne.s32.totalorder %s168, %s169
    %p178 = scmp.eq.s32.totalorder %s74, 0
    %p179 = por %p177, %p178
    %p180 = scmp.ne.s32.totalorder %s168, %s169
    %p181 = scmp.eq.s32.totalorder %s75, 1
    %p182 = por %p180, %p181
    %p184 = scmp.ne.s32.totalorder %s169, %s183
    %p185 = scmp.eq.s32.totalorder %s75, 0
    %p186 = por %p184, %p185
    %s188 = sadd.s32 %s187, 1
    %p191 = scmp.eq.s32.totalorder %s69, 1
    %p192 = scmp.ne.s32.totalorder %s187, %s189
    %p193 = scmp.eq.s32.totalorder %s69, 0
    %p194 = por %p192, %p193
    %p195 = scmp.ne.s32.totalorder %s187, %s189
    %p196 = scmp.eq.s32.totalorder %s74, 1
    %p197 = por %p195, %p196
    %p198 = scmp.ne.s32.totalorder %s189, %s190
    %p199 = scmp.eq.s32.totalorder %s74, 0
    %p200 = por %p198, %p199
    %p201 = scmp.ne.s32.totalorder %s189, %s190
    %p202 = scmp.eq.s32.totalorder %s75, 1
    %p203 = por %p201, %p202
    %p205 = scmp.ne.s32.totalorder %s190, %s204
    %p206 = scmp.eq.s32.totalorder %s75, 0
    %p207 = por %p205, %p206
    %s209 = sadd.s32 %s208, 1
    %p212 = scmp.eq.s32.totalorder %s69, 1
    %p213 = scmp.ne.s32.totalorder %s208, %s210
    %p214 = scmp.eq.s32.totalorder %s69, 0
    %p215 = por %p213, %p214
    %p216 = scmp.ne.s32.totalorder %s208, %s210
    %p217 = scmp.eq.s32.totalorder %s74, 1
    %p218 = por %p216, %p217
    %p219 = scmp.ne.s32.totalorder %s210, %s211
    %p220 = scmp.eq.s32.totalorder %s74, 0
    %p221 = por %p219, %p220
    %p222 = scmp.ne.s32.totalorder %s210, %s211
    %p223 = scmp.eq.s32.totalorder %s75, 1
    %p224 = por %p222, %p223
    %p226 = scmp.ne.s32.totalorder %s211, %s225
    %p227 = scmp.eq.s32.totalorder %s75, 0
    %p228 = por %p226, %p227
    %s230 = sadd.s32 %s229, 1
    %p233 = scmp.eq.s32.totalorder %s69, 1
    %p234 = scmp.ne.s32.totalorder %s229, %s231
    %p235 = scmp.eq.s32.totalorder %s69, 0
    %p236 = por %p234, %p235
    %p237 = scmp.ne.s32.totalorder %s229, %s231
    %p238 = scmp.eq.s32.totalorder %s74, 1
    %p239 = por %p237, %p238
    %p240 = scmp.ne.s32.totalorder %s231, %s232
    %p241 = scmp.eq.s32.totalorder %s74, 0
    %p242 = por %p240, %p241
    %p243 = scmp.ne.s32.totalorder %s231, %s232
    %p244 = scmp.eq.s32.totalorder %s75, 1
    %p245 = por %p243, %p244
    %p247 = scmp.ne.s32.totalorder %s232, %s246
    %p248 = scmp.eq.s32.totalorder %s75, 0
    %p249 = por %p247, %p248
    %s251 = sadd.s32 %s250, 1
    %p254 = scmp.eq.s32.totalorder %s69, 1
    %p255 = scmp.ne.s32.totalorder %s250, %s252
    %p256 = scmp.eq.s32.totalorder %s69, 0
    %p257 = por %p255, %p256
    %p258 = scmp.ne.s32.totalorder %s250, %s252
    %p259 = scmp.eq.s32.totalorder %s74, 1
    %p260 = por %p258, %p259
    %p261 = scmp.ne.s32.totalorder %s252, %s253
    %p262 = scmp.eq.s32.totalorder %s74, 0
    %p263 = por %p261, %p262
    %p264 = scmp.ne.s32.totalorder %s252, %s253
    %p265 = scmp.eq.s32.totalorder %s75, 1
    %p266 = por %p264, %p265
    %p268 = scmp.ne.s32.totalorder %s253, %s267
    %p269 = scmp.eq.s32.totalorder %s75, 0
    %p270 = por %p268, %p269
    %s272 = sadd.s32 %s271, 1
    %p275 = scmp.eq.s32.totalorder %s69, 1
    %p276 = scmp.ne.s32.totalorder %s271, %s273
    %p277 = scmp.eq.s32.totalorder %s69, 0
    %p278 = por %p276, %p277
    %p279 = scmp.ne.s32.totalorder %s271, %s273
    %p280 = scmp.eq.s32.totalorder %s74, 1
    %p281 = por %p279, %p280
    %p282 = scmp.ne.s32.totalorder %s273, %s274
    %p283 = scmp.eq.s32.totalorder %s74, 0
    %p284 = por %p282, %p283
    %p285 = scmp.ne.s32.totalorder %s273, %s274
    %p286 = scmp.eq.s32.totalorder %s75, 1
    %p287 = por %p285, %p286
    %p289 = scmp.ne.s32.totalorder %s274, %s288
    %p290 = scmp.eq.s32.totalorder %s75, 0
    %p291 = por %p289, %p290
    %s293 = sadd.s32 %s292, 1
    %p296 = scmp.eq.s32.totalorder %s69, 1
    %p297 = scmp.ne.s32.totalorder %s292, %s294
    %p298 = scmp.eq.s32.totalorder %s69, 0
    %p299 = por %p297, %p298
    %p300 = scmp.ne.s32.totalorder %s292, %s294
    %p301 = scmp.eq.s32.totalorder %s74, 1
    %p302 = por %p300, %p301
    %p303 = scmp.ne.s32.totalorder %s294, %s295
    %p304 = scmp.eq.s32.totalorder %s74, 0
    %p305 = por %p303, %p304
    %p306 = scmp.ne.s32.totalorder %s294, %s295
    %p307 = scmp.eq.s32.totalorder %s75, 1
    %p308 = por %p306, %p307
    %p310 = scmp.ne.s32.totalorder %s295, %s309
    %p311 = scmp.eq.s32.totalorder %s75, 0
    %p312 = por %p310, %p311
    %s314 = sadd.s32 %s313, 1
    %p317 = scmp.eq.s32.totalorder %s69, 1
    %p318 = scmp.ne.s32.totalorder %s313, %s315
    %p319 = scmp.eq.s32.totalorder %s69, 0
    %p320 = por %p318, %p319
    %p321 = scmp.ne.s32.totalorder %s313, %s315
    %p322 = scmp.eq.s32.totalorder %s74, 1
    %p323 = por %p321, %p322
    %p324 = scmp.ne.s32.totalorder %s315, %s316
    %p325 = scmp.eq.s32.totalorder %s74, 0
    %p326 = por %p324, %p325
    %p327 = scmp.ne.s32.totalorder %s315, %s316
    %p328 = scmp.eq.s32.totalorder %s75, 1
    %p329 = por %p327, %p328
    %p331 = scmp.ne.s32.totalorder %s316, %s330
    %p332 = scmp.eq.s32.totalorder %s75, 0
    %p333 = por %p331, %p332
    %s335 = sadd.s32 %s334, 1
    %p338 = scmp.eq.s32.totalorder %s69, 1
    %p339 = scmp.ne.s32.totalorder %s334, %s336
    %p340 = scmp.eq.s32.totalorder %s69, 0
    %p341 = por %p339, %p340
    %p342 = scmp.ne.s32.totalorder %s334, %s336
    %p343 = scmp.eq.s32.totalorder %s74, 1
    %p344 = por %p342, %p343
    %p345 = scmp.ne.s32.totalorder %s336, %s337
    %p346 = scmp.eq.s32.totalorder %s74, 0
    %p347 = por %p345, %p346
    %p348 = scmp.ne.s32.totalorder %s336, %s337
    %p349 = scmp.eq.s32.totalorder %s75, 1
    %p350 = por %p348, %p349
    %p352 = scmp.ne.s32.totalorder %s337, %s351
    %p353 = scmp.eq.s32.totalorder %s75, 0
    %p354 = por %p352, %p353
    %s356 = sadd.s32 %s355, 1
    %p359 = scmp.eq.s32.totalorder %s69, 1
    %p360 = scmp.ne.s32.totalorder %s355, %s357
    %p361 = scmp.eq.s32.totalorder %s69, 0
    %p362 = por %p360, %p361
    %p363 = scmp.ne.s32.totalorder %s355, %s357
    %p364 = scmp.eq.s32.totalorder %s74, 1
    %p365 = por %p363, %p364
    %p366 = scmp.ne.s32.totalorder %s357, %s358
    %p367 = scmp.eq.s32.totalorder %s74, 0
    %p368 = por %p366, %p367
    %p369 = scmp.ne.s32.totalorder %s357, %s358
    %p370 = scmp.eq.s32.totalorder %s75, 1
    %p371 = por %p369, %p370
    %p373 = scmp.ne.s32.totalorder %s358, %s372
    %p374 = scmp.eq.s32.totalorder %s75, 0
    %p375 = por %p373, %p374
    %s377 = sadd.s32 %s376, 1
    %p380 = scmp.eq.s32.totalorder %s69, 1
    %p381 = scmp.ne.s32.totalorder %s376, %s378
    %p382 = scmp.eq.s32.totalorder %s69, 0
    %p383 = por %p381, %p382
    %p384 = scmp.ne.s32.totalorder %s376, %s378
    %p385 = scmp.eq.s32.totalorder %s74, 1
    %p386 = por %p384, %p385
    %p387 = scmp.ne.s32.totalorder %s378, %s379
    %p388 = scmp.eq.s32.totalorder %s74, 0
    %p389 = por %p387, %p388
    %p390 = scmp.ne.s32.totalorder %s378, %s379
    %p391 = scmp.eq.s32.totalorder %s75, 1
    %p392 = por %p390, %p391
    %p394 = scmp.ne.s32.totalorder %s379, %s393
    %p395 = scmp.eq.s32.totalorder %s75, 0
    %p396 = por %p394, %p395
    %s398 = sadd.s32 %s397, 1
    %p401 = scmp.eq.s32.totalorder %s69, 1
    %p402 = scmp.ne.s32.totalorder %s397, %s399
    %p403 = scmp.eq.s32.totalorder %s69, 0
    %p404 = por %p402, %p403
    %p405 = scmp.ne.s32.totalorder %s397, %s399
    %p406 = scmp.eq.s32.totalorder %s74, 1
    %p407 = por %p405, %p406
    %p408 = scmp.ne.s32.totalorder %s399, %s400
    %p409 = scmp.eq.s32.totalorder %s74, 0
    %p410 = por %p408, %p409
    %p411 = scmp.ne.s32.totalorder %s399, %s400
    %p412 = scmp.eq.s32.totalorder %s75, 1
    %p413 = por %p411, %p412
    %p415 = scmp.ne.s32.totalorder %s400, %s414
    %p416 = scmp.eq.s32.totalorder %s75, 0
    %p417 = por %p415, %p416
    %s419 = sadd.s32 %s418, 1
    %p422 = scmp.eq.s32.totalorder %s69, 1
    %p423 = scmp.ne.s32.totalorder %s418, %s420
    %p424 = scmp.eq.s32.totalorder %s69, 0
    %p425 = por %p423, %p424
    %p426 = scmp.ne.s32.totalorder %s418, %s420
    %p427 = scmp.eq.s32.totalorder %s74, 1
    %p428 = por %p426, %p427
    %p429 = scmp.ne.s32.totalorder %s420, %s421
    %p430 = scmp.eq.s32.totalorder %s74, 0
    %p431 = por %p429, %p430
    %p432 = scmp.ne.s32.totalorder %s420, %s421
    %p433 = scmp.eq.s32.totalorder %s75, 1
    %p434 = por %p432, %p433
    %p436 = scmp.ne.s32.totalorder %s421, %s435
    %p437 = scmp.eq.s32.totalorder %s75, 0
    %p438 = por %p436, %p437
    %s440 = sadd.s32 %s439, 1
    %p443 = scmp.eq.s32.totalorder %s69, 1
    %p444 = scmp.ne.s32.totalorder %s439, %s441
    %p445 = scmp.eq.s32.totalorder %s69, 0
    %p446 = por %p444, %p445
    %p447 = scmp.ne.s32.totalorder %s439, %s441
    %p448 = scmp.eq.s32.totalorder %s74, 1
    %p449 = por %p447, %p448
    %p450 = scmp.ne.s32.totalorder %s441, %s442
    %p451 = scmp.eq.s32.totalorder %s74, 0
    %p452 = por %p450, %p451
    %p453 = scmp.ne.s32.totalorder %s441, %s442
    %p454 = scmp.eq.s32.totalorder %s75, 1
    %p455 = por %p453, %p454
    %p457 = scmp.ne.s32.totalorder %s442, %s456
    %p458 = scmp.eq.s32.totalorder %s75, 0
    %p459 = por %p457, %p458
    %s461 = sadd.s32 %s460, 1
    %p464 = scmp.eq.s32.totalorder %s69, 1
    %p465 = scmp.ne.s32.totalorder %s460, %s462
    %p466 = scmp.eq.s32.totalorder %s69, 0
    %p467 = por %p465, %p466
    %p468 = scmp.ne.s32.totalorder %s460, %s462
    %p469 = scmp.eq.s32.totalorder %s74, 1
    %p470 = por %p468, %p469
    %p471 = scmp.ne.s32.totalorder %s462, %s463
    %p472 = scmp.eq.s32.totalorder %s74, 0
    %p473 = por %p471, %p472
    %p474 = scmp.ne.s32.totalorder %s462, %s463
    %p475 = scmp.eq.s32.totalorder %s75, 1
    %p476 = por %p474, %p475
    %p478 = scmp.ne.s32.totalorder %s463, %s477
    %p479 = scmp.eq.s32.totalorder %s75, 0
    %p480 = por %p478, %p479
    %s482 = sadd.s32 %s481, 1
    %p485 = scmp.eq.s32.totalorder %s69, 1
    %p486 = scmp.ne.s32.totalorder %s481, %s483
    %p487 = scmp.eq.s32.totalorder %s69, 0
    %p488 = por %p486, %p487
    %p489 = scmp.ne.s32.totalorder %s481, %s483
    %p490 = scmp.eq.s32.totalorder %s74, 1
    %p491 = por %p489, %p490
    %p492 = scmp.ne.s32.totalorder %s483, %s484
    %p493 = scmp.eq.s32.totalorder %s74, 0
    %p494 = por %p492, %p493
    %p495 = scmp.ne.s32.totalorder %s483, %s484
    %p496 = scmp.eq.s32.totalorder %s75, 1
    %p497 = por %p495, %p496
    %p499 = scmp.ne.s32.totalorder %s484, %s498
    %p500 = scmp.eq.s32.totalorder %s75, 0
    %p501 = por %p499, %p500
    %s503 = sadd.s32 %s502, 1
    %p506 = scmp.eq.s32.totalorder %s69, 1
    %p507 = scmp.ne.s32.totalorder %s502, %s504
    %p508 = scmp.eq.s32.totalorder %s69, 0
    %p509 = por %p507, %p508
    %p510 = scmp.ne.s32.totalorder %s502, %s504
    %p511 = scmp.eq.s32.totalorder %s74, 1
    %p512 = por %p510, %p511
    %p513 = scmp.ne.s32.totalorder %s504, %s505
    %p514 = scmp.eq.s32.totalorder %s74, 0
    %p515 = por %p513, %p514
    %p516 = scmp.ne.s32.totalorder %s504, %s505
    %p517 = scmp.eq.s32.totalorder %s75, 1
    %p518 = por %p516, %p517
    %p520 = scmp.ne.s32.totalorder %s505, %s519
    %p521 = scmp.eq.s32.totalorder %s75, 0
    %p522 = por %p520, %p521
    %s524 = sadd.s32 %s523, 1
    %p527 = scmp.eq.s32.totalorder %s69, 1
    %p528 = scmp.ne.s32.totalorder %s523, %s525
    %p529 = scmp.eq.s32.totalorder %s69, 0
    %p530 = por %p528, %p529
    %p531 = scmp.ne.s32.totalorder %s523, %s525
    %p532 = scmp.eq.s32.totalorder %s74, 1
    %p533 = por %p531, %p532
    %p534 = scmp.ne.s32.totalorder %s525, %s526
    %p535 = scmp.eq.s32.totalorder %s74, 0
    %p536 = por %p534, %p535
    %p537 = scmp.ne.s32.totalorder %s525, %s526
    %p538 = scmp.eq.s32.totalorder %s75, 1
    %p539 = por %p537, %p538
    %p541 = scmp.ne.s32.totalorder %s526, %s540
    %p542 = scmp.eq.s32.totalorder %s75, 0
    %p543 = por %p541, %p542
    %s545 = sadd.s32 %s544, 1
    %p548 = scmp.eq.s32.totalorder %s69, 1
    %p549 = scmp.ne.s32.totalorder %s544, %s546
    %p550 = scmp.eq.s32.totalorder %s69, 0
    %p551 = por %p549, %p550
    %p552 = scmp.ne.s32.totalorder %s544, %s546
    %p553 = scmp.eq.s32.totalorder %s74, 1
    %p554 = por %p552, %p553
    %p555 = scmp.ne.s32.totalorder %s546, %s547
    %p556 = scmp.eq.s32.totalorder %s74, 0
    %p557 = por %p555, %p556
    %p558 = scmp.ne.s32.totalorder %s546, %s547
    %p559 = scmp.eq.s32.totalorder %s75, 1
    %p560 = por %p558, %p559
    %p562 = scmp.ne.s32.totalorder %s547, %s561
    %p563 = scmp.eq.s32.totalorder %s75, 0
    %p564 = por %p562, %p563
    %s566 = sadd.s32 %s565, 1
    %p569 = scmp.eq.s32.totalorder %s69, 1
    %p570 = scmp.ne.s32.totalorder %s565, %s567
    %p571 = scmp.eq.s32.totalorder %s69, 0
    %p572 = por %p570, %p571
    %p573 = scmp.ne.s32.totalorder %s565, %s567
    %p574 = scmp.eq.s32.totalorder %s74, 1
    %p575 = por %p573, %p574
    %p576 = scmp.ne.s32.totalorder %s567, %s568
    %p577 = scmp.eq.s32.totalorder %s74, 0
    %p578 = por %p576, %p577
    %p579 = scmp.ne.s32.totalorder %s567, %s568
    %p580 = scmp.eq.s32.totalorder %s75, 1
    %p581 = por %p579, %p580
    %p583 = scmp.ne.s32.totalorder %s568, %s582
    %p584 = scmp.eq.s32.totalorder %s75, 0
    %p585 = por %p583, %p584
    %s587 = sadd.s32 %s586, 1
    %p590 = scmp.eq.s32.totalorder %s69, 1
    %p591 = scmp.ne.s32.totalorder %s586, %s588
    %p592 = scmp.eq.s32.totalorder %s69, 0
    %p593 = por %p591, %p592
    %p594 = scmp.ne.s32.totalorder %s586, %s588
    %p595 = scmp.eq.s32.totalorder %s74, 1
    %p596 = por %p594, %p595
    %p597 = scmp.ne.s32.totalorder %s588, %s589
    %p598 = scmp.eq.s32.totalorder %s74, 0
    %p599 = por %p597, %p598
    %p600 = scmp.ne.s32.totalorder %s588, %s589
    %p601 = scmp.eq.s32.totalorder %s75, 1
    %p602 = por %p600, %p601
    %p604 = scmp.ne.s32.totalorder %s589, %s603
    %p605 = scmp.eq.s32.totalorder %s75, 0
    %p606 = por %p604, %p605
    %s608 = sadd.s32 %s607, 1
    %p611 = scmp.eq.s32.totalorder %s69, 1
    %p612 = scmp.ne.s32.totalorder %s607, %s609
    %p613 = scmp.eq.s32.totalorder %s69, 0
    %p614 = por %p612, %p613
    %p615 = scmp.ne.s32.totalorder %s607, %s609
    %p616 = scmp.eq.s32.totalorder %s74, 1
    %p617 = por %p615, %p616
    %p618 = scmp.ne.s32.totalorder %s609, %s610
    %p619 = scmp.eq.s32.totalorder %s74, 0
    %p620 = por %p618, %p619
    %p621 = scmp.ne.s32.totalorder %s609, %s610
    %p622 = scmp.eq.s32.totalorder %s75, 1
    %p623 = por %p621, %p622
    %p625 = scmp.ne.s32.totalorder %s610, %s624
    %p626 = scmp.eq.s32.totalorder %s75, 0
    %p627 = por %p625, %p626
    %s629 = sadd.s32 %s628, 1
    %p632 = scmp.eq.s32.totalorder %s69, 1
    %p633 = scmp.ne.s32.totalorder %s628, %s630
    %p634 = scmp.eq.s32.totalorder %s69, 0
    %p635 = por %p633, %p634
    %p636 = scmp.ne.s32.totalorder %s628, %s630
    %p637 = scmp.eq.s32.totalorder %s74, 1
    %p638 = por %p636, %p637
    %p639 = scmp.ne.s32.totalorder %s630, %s631
    %p640 = scmp.eq.s32.totalorder %s74, 0
    %p641 = por %p639, %p640
    %p642 = scmp.ne.s32.totalorder %s630, %s631
    %p643 = scmp.eq.s32.totalorder %s75, 1
    %p644 = por %p642, %p643
    %p646 = scmp.ne.s32.totalorder %s631, %s645
    %p647 = scmp.eq.s32.totalorder %s75, 0
    %p648 = por %p646, %p647
    %s650 = sadd.s32 %s649, 1
    %p653 = scmp.eq.s32.totalorder %s69, 1
    %p654 = scmp.ne.s32.totalorder %s649, %s651
    %p655 = scmp.eq.s32.totalorder %s69, 0
    %p656 = por %p654, %p655
    %p657 = scmp.ne.s32.totalorder %s649, %s651
    %p658 = scmp.eq.s32.totalorder %s74, 1
    %p659 = por %p657, %p658
    %p660 = scmp.ne.s32.totalorder %s651, %s652
    %p661 = scmp.eq.s32.totalorder %s74, 0
    %p662 = por %p660, %p661
    %p663 = scmp.ne.s32.totalorder %s651, %s652
    %p664 = scmp.eq.s32.totalorder %s75, 1
    %p665 = por %p663, %p664
    %p667 = scmp.ne.s32.totalorder %s652, %s666
    %p668 = scmp.eq.s32.totalorder %s75, 0
    %p669 = por %p667, %p668
    %s671 = sadd.s32 %s670, 1
    %p674 = scmp.eq.s32.totalorder %s69, 1
    %p675 = scmp.ne.s32.totalorder %s670, %s672
    %p676 = scmp.eq.s32.totalorder %s69, 0
    %p677 = por %p675, %p676
    %p678 = scmp.ne.s32.totalorder %s670, %s672
    %p679 = scmp.eq.s32.totalorder %s74, 1
    %p680 = por %p678, %p679
    %p681 = scmp.ne.s32.totalorder %s672, %s673
    %p682 = scmp.eq.s32.totalorder %s74, 0
    %p683 = por %p681, %p682
    %p684 = scmp.ne.s32.totalorder %s672, %s673
    %p685 = scmp.eq.s32.totalorder %s75, 1
    %p686 = por %p684, %p685
    %p688 = scmp.ne.s32.totalorder %s673, %s687
    %p689 = scmp.eq.s32.totalorder %s75, 0
    %p690 = por %p688, %p689
    %s692 = sadd.s32 %s691, 1
    %p695 = scmp.eq.s32.totalorder %s69, 1
    %p696 = scmp.ne.s32.totalorder %s691, %s693
    %p697 = scmp.eq.s32.totalorder %s69, 0
    %p698 = por %p696, %p697
    %p699 = scmp.ne.s32.totalorder %s691, %s693
    %p700 = scmp.eq.s32.totalorder %s74, 1
    %p701 = por %p699, %p700
    %p702 = scmp.ne.s32.totalorder %s693, %s694
    %p703 = scmp.eq.s32.totalorder %s74, 0
    %p704 = por %p702, %p703
    %p705 = scmp.ne.s32.totalorder %s693, %s694
    %p706 = scmp.eq.s32.totalorder %s75, 1
    %p707 = por %p705, %p706
    %p709 = scmp.ne.s32.totalorder %s694, %s708
    %p710 = scmp.eq.s32.totalorder %s75, 0
    %p711 = por %p709, %p710
    %s713 = sadd.s32 %s712, 1
    %p716 = scmp.eq.s32.totalorder %s69, 1
    %p717 = scmp.ne.s32.totalorder %s712, %s714
    %p718 = scmp.eq.s32.totalorder %s69, 0
    %p719 = por %p717, %p718
    %p720 = scmp.ne.s32.totalorder %s712, %s714
    %p721 = scmp.eq.s32.totalorder %s74, 1
    %p722 = por %p720, %p721
    %p723 = scmp.ne.s32.totalorder %s714, %s715
    %p724 = scmp.eq.s32.totalorder %s74, 0
    %p725 = por %p723, %p724
    %p726 = scmp.ne.s32.totalorder %s714, %s715
    %p727 = scmp.eq.s32.totalorder %s75, 1
    %p728 = por %p726, %p727
    %p730 = scmp.ne.s32.totalorder %s715, %s729
    %p731 = scmp.eq.s32.totalorder %s75, 0
    %p732 = por %p730, %p731
    %s733 = ssub.s32 %s69, %s76
    %p734 = scmp.eq.s32.totalorder %s733, 0
    %s736 = sadd.s32 %s735, 1
    %s737 = scalar_select %p734, %s735, %s736
    %p740 = pneg %p734
    %p741 = scmp.eq.s32.totalorder %s69, 1
    %p742 = por %p740, %p741
    %p743 = scmp.ne.s32.totalorder %s735, %s738
    %p744 = scmp.eq.s32.totalorder %s69, 0
    %p745 = por %p743, %p744
    %p746 = scmp.ne.s32.totalorder %s735, %s738
    %p747 = scmp.eq.s32.totalorder %s74, 1
    %p748 = por %p746, %p747
    %p749 = scmp.ne.s32.totalorder %s738, %s739
    %p750 = scmp.eq.s32.totalorder %s74, 0
    %p751 = por %p749, %p750
    %p752 = scmp.ne.s32.totalorder %s738, %s739
    %p753 = scmp.eq.s32.totalorder %s75, 1
    %p754 = por %p752, %p753
    %p756 = scmp.ne.s32.totalorder %s739, %s755
    %p757 = scmp.eq.s32.totalorder %s75, 0
    %p758 = por %p756, %p757
    %p759 = scmp.le.s32.totalorder 1, %s69
    %p760 = scmp.lt.s32.totalorder %s69, 3
    %p761 = pnand %p759, %p760
    %p762 = pneg %p761
    // Predicated region
    $region9: #{normal_cell_pallas.1} parent=5 // pred_check
      _
    $region10: #{normal_cell_pallas.1} parent=5 // pred_check_branch
      %764 = sbr.rel (%p761) target = $region12
    $region11: #{normal_cell_pallas.1} parent=5 // pred_region
      %s765 = ssub.s32 %s69, 1
      // Predicated region
      $region13: #{normal_cell_pallas.1} parent=11 // pred_check
        %p766 = pneg %p116
      $region14: #{normal_cell_pallas.1} parent=11 // pred_check_branch
        %768 = sbr.rel (%p766) target = $region16
      $region15: #{normal_cell_pallas.1} parent=11 // pred_region
        _
      $region16: #{normal_cell_pallas.1} parent=11 // pred_fallthru
        _
      // Predicated region
      $region17: #{normal_cell_pallas.1} parent=11 // pred_check
        %p769 = pneg %p137
      $region18: #{normal_cell_pallas.1} parent=11 // pred_check_branch
        %771 = sbr.rel (%p769) target = $region20
      $region19: #{normal_cell_pallas.1} parent=11 // pred_region
        _
      $region20: #{normal_cell_pallas.1} parent=11 // pred_fallthru
        _
      // Predicated region
      $region21: #{normal_cell_pallas.1} parent=11 // pred_check
        %p772 = pneg %p158
      $region22: #{normal_cell_pallas.1} parent=11 // pred_check_branch
        %774 = sbr.rel (%p772) target = $region24
      $region23: #{normal_cell_pallas.1} parent=11 // pred_region
        _
      $region24: #{normal_cell_pallas.1} parent=11 // pred_fallthru
        _
      // Predicated region
      $region25: #{normal_cell_pallas.1} parent=11 // pred_check
        %p775 = pneg %p179
      $region26: #{normal_cell_pallas.1} parent=11 // pred_check_branch
        %777 = sbr.rel (%p775) target = $region28
      $region27: #{normal_cell_pallas.1} parent=11 // pred_region
        _
      $region28: #{normal_cell_pallas.1} parent=11 // pred_fallthru
        _
      // Predicated region
      $region29: #{normal_cell_pallas.1} parent=11 // pred_check
        %p778 = pneg %p200
      $region30: #{normal_cell_pallas.1} parent=11 // pred_check_branch
        %780 = sbr.rel (%p778) target = $region32
      $region31: #{normal_cell_pallas.1} parent=11 // pred_region
        _
      $region32: #{normal_cell_pallas.1} parent=11 // pred_fallthru
        _
      // Predicated region
      $region33: #{normal_cell_pallas.1} parent=11 // pred_check
        %p781 = pneg %p221
      $region34: #{normal_cell_pallas.1} parent=11 // pred_check_branch
        %783 = sbr.rel (%p781) target = $region36
      $region35: #{normal_cell_pallas.1} parent=11 // pred_region
        _
      $region36: #{normal_cell_pallas.1} parent=11 // pred_fallthru
        _
      // Predicated region
      $region37: #{normal_cell_pallas.1} parent=11 // pred_check
        %p784 = pneg %p242
      $region38: #{normal_cell_pallas.1} parent=11 // pred_check_branch
        %786 = sbr.rel (%p784) target = $region40
      $region39: #{normal_cell_pallas.1} parent=11 // pred_region
        _
      $region40: #{normal_cell_pallas.1} parent=11 // pred_fallthru
        _
      // Predicated region
      $region41: #{normal_cell_pallas.1} parent=11 // pred_check
        %p787 = pneg %p263
      $region42: #{normal_cell_pallas.1} parent=11 // pred_check_branch
        %789 = sbr.rel (%p787) target = $region44
      $region43: #{normal_cell_pallas.1} parent=11 // pred_region
        _
      $region44: #{normal_cell_pallas.1} parent=11 // pred_fallthru
        _
      // Predicated region
      $region45: #{normal_cell_pallas.1} parent=11 // pred_check
        %p790 = pneg %p284
      $region46: #{normal_cell_pallas.1} parent=11 // pred_check_branch
        %792 = sbr.rel (%p790) target = $region48
      $region47: #{normal_cell_pallas.1} parent=11 // pred_region
        _
      $region48: #{normal_cell_pallas.1} parent=11 // pred_fallthru
        _
      // Predicated region
      $region49: #{normal_cell_pallas.1} parent=11 // pred_check
        %p793 = pneg %p305
      $region50: #{normal_cell_pallas.1} parent=11 // pred_check_branch
        %795 = sbr.rel (%p793) target = $region52
      $region51: #{normal_cell_pallas.1} parent=11 // pred_region
        _
      $region52: #{normal_cell_pallas.1} parent=11 // pred_fallthru
        _
      // Predicated region
      $region53: #{normal_cell_pallas.1} parent=11 // pred_check
        %p796 = pneg %p326
      $region54: #{normal_cell_pallas.1} parent=11 // pred_check_branch
        %798 = sbr.rel (%p796) target = $region56
      $region55: #{normal_cell_pallas.1} parent=11 // pred_region
        _
      $region56: #{normal_cell_pallas.1} parent=11 // pred_fallthru
        _
      // Predicated region
      $region57: #{normal_cell_pallas.1} parent=11 // pred_check
        %p799 = pneg %p347
      $region58: #{normal_cell_pallas.1} parent=11 // pred_check_branch
        %801 = sbr.rel (%p799) target = $region60
      $region59: #{normal_cell_pallas.1} parent=11 // pred_region
        _
      $region60: #{normal_cell_pallas.1} parent=11 // pred_fallthru
        _
      // Predicated region
      $region61: #{normal_cell_pallas.1} parent=11 // pred_check
        %p802 = pneg %p368
      $region62: #{normal_cell_pallas.1} parent=11 // pred_check_branch
        %804 = sbr.rel (%p802) target = $region64
      $region63: #{normal_cell_pallas.1} parent=11 // pred_region
        _
      $region64: #{normal_cell_pallas.1} parent=11 // pred_fallthru
        _
      // Predicated region
      $region65: #{normal_cell_pallas.1} parent=11 // pred_check
        %p805 = pneg %p389
      $region66: #{normal_cell_pallas.1} parent=11 // pred_check_branch
        %807 = sbr.rel (%p805) target = $region68
      $region67: #{normal_cell_pallas.1} parent=11 // pred_region
        _
      $region68: #{normal_cell_pallas.1} parent=11 // pred_fallthru
        _
      // Predicated region
      $region69: #{normal_cell_pallas.1} parent=11 // pred_check
        %p808 = pneg %p410
      $region70: #{normal_cell_pallas.1} parent=11 // pred_check_branch
        %810 = sbr.rel (%p808) target = $region72
      $region71: #{normal_cell_pallas.1} parent=11 // pred_region
        _
      $region72: #{normal_cell_pallas.1} parent=11 // pred_fallthru
        _
      // Predicated region
      $region73: #{normal_cell_pallas.1} parent=11 // pred_check
        %p811 = pneg %p431
      $region74: #{normal_cell_pallas.1} parent=11 // pred_check_branch
        %813 = sbr.rel (%p811) target = $region76
      $region75: #{normal_cell_pallas.1} parent=11 // pred_region
        _
      $region76: #{normal_cell_pallas.1} parent=11 // pred_fallthru
        _
      // Predicated region
      $region77: #{normal_cell_pallas.1} parent=11 // pred_check
        %p814 = pneg %p452
      $region78: #{normal_cell_pallas.1} parent=11 // pred_check_branch
        %816 = sbr.rel (%p814) target = $region80
      $region79: #{normal_cell_pallas.1} parent=11 // pred_region
        _
      $region80: #{normal_cell_pallas.1} parent=11 // pred_fallthru
        _
      // Predicated region
      $region81: #{normal_cell_pallas.1} parent=11 // pred_check
        %p817 = pneg %p473
      $region82: #{normal_cell_pallas.1} parent=11 // pred_check_branch
        %819 = sbr.rel (%p817) target = $region84
      $region83: #{normal_cell_pallas.1} parent=11 // pred_region
        _
      $region84: #{normal_cell_pallas.1} parent=11 // pred_fallthru
        _
      // Predicated region
      $region85: #{normal_cell_pallas.1} parent=11 // pred_check
        %p820 = pneg %p494
      $region86: #{normal_cell_pallas.1} parent=11 // pred_check_branch
        %822 = sbr.rel (%p820) target = $region88
      $region87: #{normal_cell_pallas.1} parent=11 // pred_region
        _
      $region88: #{normal_cell_pallas.1} parent=11 // pred_fallthru
        _
      // Predicated region
      $region89: #{normal_cell_pallas.1} parent=11 // pred_check
        %p823 = pneg %p515
      $region90: #{normal_cell_pallas.1} parent=11 // pred_check_branch
        %825 = sbr.rel (%p823) target = $region92
      $region91: #{normal_cell_pallas.1} parent=11 // pred_region
        _
      $region92: #{normal_cell_pallas.1} parent=11 // pred_fallthru
        _
      // Predicated region
      $region93: #{normal_cell_pallas.1} parent=11 // pred_check
        %p826 = pneg %p536
      $region94: #{normal_cell_pallas.1} parent=11 // pred_check_branch
        %828 = sbr.rel (%p826) target = $region96
      $region95: #{normal_cell_pallas.1} parent=11 // pred_region
        _
      $region96: #{normal_cell_pallas.1} parent=11 // pred_fallthru
        _
      // Predicated region
      $region97: #{normal_cell_pallas.1} parent=11 // pred_check
        %p829 = pneg %p557
      $region98: #{normal_cell_pallas.1} parent=11 // pred_check_branch
        %831 = sbr.rel (%p829) target = $region100
      $region99: #{normal_cell_pallas.1} parent=11 // pred_region
        _
      $region100: #{normal_cell_pallas.1} parent=11 // pred_fallthru
        _
      // Predicated region
      $region101: #{normal_cell_pallas.1} parent=11 // pred_check
        %p832 = pneg %p578
      $region102: #{normal_cell_pallas.1} parent=11 // pred_check_branch
        %834 = sbr.rel (%p832) target = $region104
      $region103: #{normal_cell_pallas.1} parent=11 // pred_region
        _
      $region104: #{normal_cell_pallas.1} parent=11 // pred_fallthru
        _
      // Predicated region
      $region105: #{normal_cell_pallas.1} parent=11 // pred_check
        %p835 = pneg %p599
      $region106: #{normal_cell_pallas.1} parent=11 // pred_check_branch
        %837 = sbr.rel (%p835) target = $region108
      $region107: #{normal_cell_pallas.1} parent=11 // pred_region
        _
      $region108: #{normal_cell_pallas.1} parent=11 // pred_fallthru
        _
      // Predicated region
      $region109: #{normal_cell_pallas.1} parent=11 // pred_check
        %p838 = pneg %p620
      $region110: #{normal_cell_pallas.1} parent=11 // pred_check_branch
        %840 = sbr.rel (%p838) target = $region112
      $region111: #{normal_cell_pallas.1} parent=11 // pred_region
        _
      $region112: #{normal_cell_pallas.1} parent=11 // pred_fallthru
        _
      // Predicated region
      $region113: #{normal_cell_pallas.1} parent=11 // pred_check
        %p841 = pneg %p641
      $region114: #{normal_cell_pallas.1} parent=11 // pred_check_branch
        %843 = sbr.rel (%p841) target = $region116
      $region115: #{normal_cell_pallas.1} parent=11 // pred_region
        _
      $region116: #{normal_cell_pallas.1} parent=11 // pred_fallthru
        _
      // Predicated region
      $region117: #{normal_cell_pallas.1} parent=11 // pred_check
        %p844 = pneg %p662
      $region118: #{normal_cell_pallas.1} parent=11 // pred_check_branch
        %846 = sbr.rel (%p844) target = $region120
      $region119: #{normal_cell_pallas.1} parent=11 // pred_region
        _
      $region120: #{normal_cell_pallas.1} parent=11 // pred_fallthru
        _
      // Predicated region
      $region121: #{normal_cell_pallas.1} parent=11 // pred_check
        %p847 = pneg %p683
      $region122: #{normal_cell_pallas.1} parent=11 // pred_check_branch
        %849 = sbr.rel (%p847) target = $region124
      $region123: #{normal_cell_pallas.1} parent=11 // pred_region
        _
      $region124: #{normal_cell_pallas.1} parent=11 // pred_fallthru
        _
      // Predicated region
      $region125: #{normal_cell_pallas.1} parent=11 // pred_check
        %p850 = pneg %p704
      $region126: #{normal_cell_pallas.1} parent=11 // pred_check_branch
        %852 = sbr.rel (%p850) target = $region128
      $region127: #{normal_cell_pallas.1} parent=11 // pred_region
        _
      $region128: #{normal_cell_pallas.1} parent=11 // pred_fallthru
        _
      // Predicated region
      $region129: #{normal_cell_pallas.1} parent=11 // pred_check
        %p853 = pneg %p725
      $region130: #{normal_cell_pallas.1} parent=11 // pred_check_branch
        %855 = sbr.rel (%p853) target = $region132
      $region131: #{normal_cell_pallas.1} parent=11 // pred_region
        _
      $region132: #{normal_cell_pallas.1} parent=11 // pred_fallthru
        _
    $region12: #{normal_cell_pallas.1} parent=5 // pred_fallthru
      _
    %p856 = scmp.lt.s32.totalorder %s69, 2
    // Predicated region
    $region133: #{normal_cell_pallas.1} parent=5 // pred_check
      %p857 = pneg %p856
    $region134: #{normal_cell_pallas.1} parent=5 // pred_check_branch
      %859 = sbr.rel (%p857) target = $region136
    $region135: #{normal_cell_pallas.1} parent=5 // pred_region
      // Predicated region
      $region137: #{normal_cell_pallas.1} parent=135 // pred_check
        %p860 = pneg %p89
      $region138: #{normal_cell_pallas.1} parent=135 // pred_check_branch
        %862 = sbr.rel (%p860) target = $region140
      $region139: #{normal_cell_pallas.1} parent=135 // pred_region
        %p863 = scmp.lt.s32.totalorder %s69, 1
        %s864 = scalar_select %p863, %s69, 1
        %s865 = smul.addr %s864, 32
        %s866 = smul.addr %s865, 8
        %s867 = scalar_lea.vmem %s1, %s866
      $region140: #{normal_cell_pallas.1} parent=135 // pred_fallthru
        _
    $region136: #{normal_cell_pallas.1} parent=5 // pred_fallthru
      _
    %p868 = scmp.le.s32.totalorder 1, %s69
    %p869 = scmp.lt.s32.totalorder %s69, 3
    %p870 = pnand %p868, %p869
    %p871 = pneg %p870
    // Predicated region
    $region141: #{normal_cell_pallas.1} parent=5 // pred_check
      _
    $region142: #{normal_cell_pallas.1} parent=5 // pred_check_branch
      %873 = sbr.rel (%p870) target = $region144
    $region143: #{normal_cell_pallas.1} parent=5 // pred_region
      %s874 = ssub.s32 %s69, 1
      %p875 = scmp.lt.s32.totalorder %s74, 1
      %s876 = scalar_select %p875, %s74, 1
      %s877 = smul.addr %s876, 32
      %s878 = smul.addr %s877, 8
      %s879 = scalar_lea.vmem %s1, %s878
      %p880 = pneg %p95
      %p881 = pneg %p92
      %p882 = pneg %p116
      %p883 = pneg %p113
      %p884 = pneg %p137
      %p885 = pneg %p134
      %p886 = pneg %p158
      %p887 = pneg %p155
      %p888 = pneg %p179
      %p889 = pneg %p176
      %p890 = pneg %p200
      %p891 = pneg %p197
      %p892 = pneg %p221
      %p893 = pneg %p218
      %p894 = pneg %p242
      %p895 = pneg %p239
      %p896 = pneg %p263
      %p897 = pneg %p260
      %p898 = pneg %p284
      %p899 = pneg %p281
      %p900 = pneg %p305
      %p901 = pneg %p302
      %p902 = pneg %p326
      %p903 = pneg %p323
      %p904 = pneg %p347
      %p905 = pneg %p344
      %p906 = pneg %p368
      %p907 = pneg %p365
      %p908 = pneg %p389
      %p909 = pneg %p386
      %p910 = pneg %p410
      %p911 = pneg %p407
      %p912 = pneg %p431
      %p913 = pneg %p428
      %p914 = pneg %p452
      %p915 = pneg %p449
      %p916 = pneg %p473
      %p917 = pneg %p470
      %p918 = pneg %p494
      %p919 = pneg %p491
      %p920 = pneg %p515
      %p921 = pneg %p512
      %p922 = pneg %p536
      %p923 = pneg %p533
      %p924 = pneg %p557
      %p925 = pneg %p554
      %p926 = pneg %p578
      %p927 = pneg %p575
      %p928 = pneg %p599
      %p929 = pneg %p596
      %p930 = pneg %p620
      %p931 = pneg %p617
      %p932 = pneg %p641
      %p933 = pneg %p638
      %p934 = pneg %p662
      %p935 = pneg %p659
      %p936 = pneg %p683
      %p937 = pneg %p680
      %p938 = pneg %p704
      %p939 = pneg %p701
      %p940 = pneg %p725
      %p941 = pneg %p722
      %p942 = pneg %p751
      %p943 = pneg %p748
      %p944 = scmp.lt.s32.totalorder %s74, 1
      %s945 = scalar_select %p944, %s74, 1
      %s946 = smul.addr %s945, 32
      %s947 = smul.addr %s946, 8
      %s948 = scalar_lea.vmem %s63, %s947
      %p949 = scmp.lt.s32.totalorder %s74, 1
      %s950 = scalar_select %p949, %s74, 1
      %s951 = smul.addr %s950, 32
      %s952 = smul.addr %s951, 8
      %s953 = scalar_lea.vmem %s1, %s952
      %p954 = scmp.lt.s32.totalorder %s74, 1
      %s955 = scalar_select %p954, %s74, 1
      %s956 = smul.addr %s955, 32
      %s957 = smul.addr %s956, 8
      %s958 = scalar_lea.vmem %s63, %s957
      %v959 = vld [vmem:[%s3] sm:$0xf]
      %v960 = vld [vmem:[%s5] sm:$0x1]
      %v961 = vld [vmem:[%s7] sm:$0x1]
      %v962 = vld [vmem:[%s9] sm:$0xf]
      %v963 = vld [vmem:[%s11] sm:$0x1]
      %v964 = vld [vmem:[%s13] sm:$0x1]
      %v965 = vld [vmem:[%s15] sm:$0xf]
      %v966 = vld [vmem:[%s15 + $0x4] sm:$0xf]
      %v967 = vld [vmem:[%s15 + $0x8] sm:$0xf]
      %v968 = vld [vmem:[%s17] sm:$0x1]
      %v969 = vld [vmem:[%s19] sm:$0x1]
      %v970 = vld [vmem:[%s21] sm:$0xff]
      %v971 = vld [vmem:[%s21 + $0x8] sm:$0xff]
      %v972 = vld [vmem:[%s21 + $0x10] sm:$0xff]
      %v973 = vld [vmem:[%s23] sm:$0x1]
      %v974 = vld [vmem:[%s25] sm:$0x1]
      %v975 = vld [vmem:[%s27] sm:$0xf]
      %v976 = vld [vmem:[%s27 + $0x4] sm:$0xf]
      %v977 = vld [vmem:[%s27 + $0x8] sm:$0xf]
      %v978 = vld [vmem:[%s27 + $0xc] sm:$0xf]
      %v979 = vld [vmem:[%s27 + $0x10] sm:$0xf]
      %v980 = vld [vmem:[%s29] sm:$0x1]
      %v981 = vld [vmem:[%s31] sm:$0x1]
      %v982 = vld [vmem:[%s33] sm:$0xff]
      %v983 = vld [vmem:[%s33 + $0x8] sm:$0xff]
      %v984 = vld [vmem:[%s33 + $0x10] sm:$0xff]
      %v985 = vld [vmem:[%s33 + $0x18] sm:$0xff]
      %v986 = vld [vmem:[%s33 + $0x20] sm:$0xff]
      %v987 = vld [vmem:[%s35] sm:$0x1]
      %v988 = vld [vmem:[%s37] sm:$0x1]
      %v989 = vld [vmem:[%s39] sm:$0xf]
      %v990 = vld [vmem:[%s39 + $0x4] sm:$0xf]
      %v991 = vld [vmem:[%s39 + $0x8] sm:$0xf]
      %v992 = vld [vmem:[%s41] sm:$0x1]
      %v993 = vld [vmem:[%s43] sm:$0x1]
      %v994 = vld [vmem:[%s45] sm:$0xff]
      %v995 = vld [vmem:[%s45 + $0x8] sm:$0xff]
      %v996 = vld [vmem:[%s45 + $0x10] sm:$0xff]
      %v997 = vld [vmem:[%s47] sm:$0x1]
      %v998 = vld [vmem:[%s49] sm:$0x1]
      %v999 = vld [vmem:[%s51] sm:$0xf]
      %v1000 = vld [vmem:[%s51 + $0x4] sm:$0xf]
      %v1001 = vld [vmem:[%s51 + $0x8] sm:$0xf]
      %v1002 = vld [vmem:[%s53] sm:$0x1]
      %v1003 = vld [vmem:[%s55] sm:$0x1]
      %v1004 = vld [vmem:[%s57] sm:$0xff]
      %v1005 = vld [vmem:[%s57 + $0x8] sm:$0xff]
      %v1006 = vld [vmem:[%s57 + $0x10] sm:$0xff]
      %v1007 = vld [vmem:[%s59] sm:$0x1]
      %v1008 = vld [vmem:[%s61] sm:$0x1]
      %v1009 = vld [vmem:[%s953] sm:$0xff]
      %v1010 = vld [vmem:[%s953 + $0x8] sm:$0xff]
      %v1011 = vld [vmem:[%s953 + $0x10] sm:$0xff]
      %v1012 = vld [vmem:[%s953 + $0x18] sm:$0xff]
      %v1013 = vld [vmem:[%s953 + $0x20] sm:$0xff]
      %v1014 = vld [vmem:[%s953 + $0x28] sm:$0xff]
      %v1015 = vld [vmem:[%s953 + $0x30] sm:$0xff]
      %v1016 = vld [vmem:[%s953 + $0x38] sm:$0xff]
      %v1017 = vld [vmem:[%s953 + $0x40] sm:$0xff]
      %v1018 = vld [vmem:[%s953 + $0x48] sm:$0xff]
      %v1019 = vld [vmem:[%s953 + $0x50] sm:$0xff]
      %v1020 = vld [vmem:[%s953 + $0x58] sm:$0xff]
      %v1021 = vld [vmem:[%s953 + $0x60] sm:$0xff]
      %v1022 = vld [vmem:[%s953 + $0x68] sm:$0xff]
      %v1023 = vld [vmem:[%s953 + $0x70] sm:$0xff]
      %v1024 = vld [vmem:[%s953 + $0x78] sm:$0xff]
      %v1025 = vld [vmem:[%s953 + $0x80] sm:$0xff]
      %v1026 = vld [vmem:[%s953 + $0x88] sm:$0xff]
      %v1027 = vld [vmem:[%s953 + $0x90] sm:$0xff]
      %v1028 = vld [vmem:[%s953 + $0x98] sm:$0xff]
      %v1029 = vld [vmem:[%s953 + $0xa0] sm:$0xff]
      %v1030 = vld [vmem:[%s953 + $0xa8] sm:$0xff]
      %v1031 = vld [vmem:[%s953 + $0xb0] sm:$0xff]
      %v1032 = vld [vmem:[%s953 + $0xb8] sm:$0xff]
      %v1033 = vld [vmem:[%s953 + $0xc0] sm:$0xff]
      %v1034 = vld [vmem:[%s953 + $0xc8] sm:$0xff]
      %v1035 = vld [vmem:[%s953 + $0xd0] sm:$0xff]
      %v1036 = vld [vmem:[%s953 + $0xd8] sm:$0xff]
      %v1037 = vld [vmem:[%s953 + $0xe0] sm:$0xff]
      %v1038 = vld [vmem:[%s953 + $0xe8] sm:$0xff]
      %v1039 = vld [vmem:[%s953 + $0xf0] sm:$0xff]
      %v1040 = vld [vmem:[%s953 + $0xf8] sm:$0xff]
      %vm1073 = vcmask 1040384
      %v1074 = vrot.slane %v1009, 7
      %v1075 = vrot.slane %v1010, 7
      %v1076 = vsel %vm1073, %v1074, %v1075
      %v1077 = vrot.slane %v1011, 7
      %v1078 = vrot.slane %v1012, 7
      %v1079 = vsel %vm1073, %v1077, %v1078
      %v1080 = vrot.slane %v1013, 7
      %v1081 = vrot.slane %v1014, 7
      %v1082 = vsel %vm1073, %v1080, %v1081
      %v1083 = vrot.slane %v1015, 7
      %v1084 = vrot.slane %v1016, 7
      %v1085 = vsel %vm1073, %v1083, %v1084
      %v1086 = vrot.slane %v1017, 7
      %v1087 = vrot.slane %v1018, 7
      %v1088 = vsel %vm1073, %v1086, %v1087
      %v1089 = vrot.slane %v1019, 7
      %v1090 = vrot.slane %v1020, 7
      %v1091 = vsel %vm1073, %v1089, %v1090
      %v1092 = vrot.slane %v1021, 7
      %v1093 = vrot.slane %v1022, 7
      %v1094 = vsel %vm1073, %v1092, %v1093
      %v1095 = vrot.slane %v1023, 7
      %v1096 = vrot.slane %v1024, 7
      %v1097 = vsel %vm1073, %v1095, %v1096
      %v1098 = vrot.slane %v1025, 7
      %v1099 = vrot.slane %v1026, 7
      %v1100 = vsel %vm1073, %v1098, %v1099
      %v1101 = vrot.slane %v1027, 7
      %v1102 = vrot.slane %v1028, 7
      %v1103 = vsel %vm1073, %v1101, %v1102
      %v1104 = vrot.slane %v1029, 7
      %v1105 = vrot.slane %v1030, 7
      %v1106 = vsel %vm1073, %v1104, %v1105
      %v1107 = vrot.slane %v1031, 7
      %v1108 = vrot.slane %v1032, 7
      %v1109 = vsel %vm1073, %v1107, %v1108
      %v1110 = vrot.slane %v1033, 7
      %v1111 = vrot.slane %v1034, 7
      %v1112 = vsel %vm1073, %v1110, %v1111
      %v1113 = vrot.slane %v1035, 7
      %v1114 = vrot.slane %v1036, 7
      %v1115 = vsel %vm1073, %v1113, %v1114
      %v1116 = vrot.slane %v1037, 7
      %v1117 = vrot.slane %v1038, 7
      %v1118 = vsel %vm1073, %v1116, %v1117
      %v1119 = vrot.slane %v1039, 7
      %v1120 = vrot.slane %v1040, 7
      %v1121 = vsel %vm1073, %v1119, %v1120
      %v1170 = vsel %vm1073, 0.0, %v1074
      %v1171 = vsel %vm1073, 0.0, %v1077
      %v1172 = vsel %vm1073, 0.0, %v1080
      %v1173 = vsel %vm1073, 0.0, %v1083
      %v1174 = vsel %vm1073, 0.0, %v1086
      %v1175 = vsel %vm1073, 0.0, %v1089
      %v1176 = vsel %vm1073, 0.0, %v1092
      %v1177 = vsel %vm1073, 0.0, %v1095
      %v1178 = vsel %vm1073, 0.0, %v1098
      %v1179 = vsel %vm1073, 0.0, %v1101
      %v1180 = vsel %vm1073, 0.0, %v1104
      %v1181 = vsel %vm1073, 0.0, %v1107
      %v1182 = vsel %vm1073, 0.0, %v1110
      %v1183 = vsel %vm1073, 0.0, %v1113
      %v1184 = vsel %vm1073, 0.0, %v1116
      %v1185 = vsel %vm1073, 0.0, %v1119
      %v1186 = vsel %vm1073, %v1075, 0.0
      %v1187 = vsel %vm1073, %v1078, 0.0
      %v1188 = vsel %vm1073, %v1081, 0.0
      %v1189 = vsel %vm1073, %v1084, 0.0
      %v1190 = vsel %vm1073, %v1087, 0.0
      %v1191 = vsel %vm1073, %v1090, 0.0
      %v1192 = vsel %vm1073, %v1093, 0.0
      %v1193 = vsel %vm1073, %v1096, 0.0
      %v1194 = vsel %vm1073, %v1099, 0.0
      %v1195 = vsel %vm1073, %v1102, 0.0
      %v1196 = vsel %vm1073, %v1105, 0.0
      %v1197 = vsel %vm1073, %v1108, 0.0
      %v1198 = vsel %vm1073, %v1111, 0.0
      %v1199 = vsel %vm1073, %v1114, 0.0
      %v1200 = vsel %vm1073, %v1117, 0.0
      %v1201 = vsel %vm1073, %v1120, 0.0
      %v1202 = vadd.f32 %v1170, 0.0
      %v1203 = vadd.f32 %v1076, 0.0
      %v1204 = vadd.f32 %v1171, 0.0
      %v1205 = vadd.f32 %v1079, 0.0
      %v1206 = vadd.f32 %v1172, 0.0
      %v1207 = vadd.f32 %v1082, 0.0
      %v1208 = vadd.f32 %v1173, 0.0
      %v1209 = vadd.f32 %v1085, 0.0
      %v1210 = vadd.f32 %v1174, 0.0
      %v1211 = vadd.f32 %v1088, 0.0
      %v1212 = vadd.f32 %v1175, 0.0
      %v1213 = vadd.f32 %v1091, 0.0
      %v1214 = vadd.f32 %v1176, 0.0
      %v1215 = vadd.f32 %v1094, 0.0
      %v1216 = vadd.f32 %v1177, 0.0
      %v1217 = vadd.f32 %v1097, 0.0
      %v1218 = vadd.f32 %v1178, 0.0
      %v1219 = vadd.f32 %v1100, 0.0
      %v1220 = vadd.f32 %v1179, 0.0
      %v1221 = vadd.f32 %v1103, 0.0
      %v1222 = vadd.f32 %v1180, 0.0
      %v1223 = vadd.f32 %v1106, 0.0
      %v1224 = vadd.f32 %v1181, 0.0
      %v1225 = vadd.f32 %v1109, 0.0
      %v1226 = vadd.f32 %v1182, 0.0
      %v1227 = vadd.f32 %v1112, 0.0
      %v1228 = vadd.f32 %v1183, 0.0
      %v1229 = vadd.f32 %v1115, 0.0
      %v1230 = vadd.f32 %v1184, 0.0
      %v1231 = vadd.f32 %v1118, 0.0
      %vm1263 = vcmask 1046528
      %v1264 = vrot.slane 0.0, 1
      %v1265 = vsel %vm1263, %v1264, %v1264
      %v1266 = vrot.slane %v1170, 1
      %v1267 = vrot.slane %v1076, 1
      %v1268 = vsel %vm1263, %v1266, %v1267
      %v1269 = vrot.slane %v1186, 1
      %v1270 = vsel %vm1263, %v1267, %v1269
      %v1271 = vrot.slane %v1171, 1
      %v1272 = vrot.slane %v1079, 1
      %v1273 = vsel %vm1263, %v1271, %v1272
      %v1274 = vrot.slane %v1187, 1
      %v1275 = vsel %vm1263, %v1272, %v1274
      %v1276 = vrot.slane %v1172, 1
      %v1277 = vrot.slane %v1082, 1
      %v1278 = vsel %vm1263, %v1276, %v1277
      %v1279 = vrot.slane %v1188, 1
      %v1280 = vsel %vm1263, %v1277, %v1279
      %v1281 = vrot.slane %v1173, 1
      %v1282 = vrot.slane %v1085, 1
      %v1283 = vsel %vm1263, %v1281, %v1282
      %v1284 = vrot.slane %v1189, 1
      %v1285 = vsel %vm1263, %v1282, %v1284
      %v1286 = vrot.slane %v1174, 1
      %v1287 = vrot.slane %v1088, 1
      %v1288 = vsel %vm1263, %v1286, %v1287
      %v1289 = vrot.slane %v1190, 1
      %v1290 = vsel %vm1263, %v1287, %v1289
      %v1291 = vrot.slane %v1175, 1
      %v1292 = vrot.slane %v1091, 1
      %v1293 = vsel %vm1263, %v1291, %v1292
      %v1294 = vrot.slane %v1191, 1
      %v1295 = vsel %vm1263, %v1292, %v1294
      %v1296 = vrot.slane %v1176, 1
      %v1297 = vrot.slane %v1094, 1
      %v1298 = vsel %vm1263, %v1296, %v1297
      %v1299 = vrot.slane %v1192, 1
      %v1300 = vsel %vm1263, %v1297, %v1299
      %v1301 = vrot.slane %v1177, 1
      %v1302 = vrot.slane %v1097, 1
      %v1303 = vsel %vm1263, %v1301, %v1302
      %v1304 = vrot.slane %v1193, 1
      %v1305 = vsel %vm1263, %v1302, %v1304
      %v1306 = vrot.slane %v1178, 1
      %v1307 = vrot.slane %v1100, 1
      %v1308 = vsel %vm1263, %v1306, %v1307
      %v1309 = vrot.slane %v1194, 1
      %v1310 = vsel %vm1263, %v1307, %v1309
      %v1311 = vrot.slane %v1179, 1
      %v1312 = vrot.slane %v1103, 1
      %v1313 = vsel %vm1263, %v1311, %v1312
      %v1314 = vrot.slane %v1195, 1
      %v1315 = vsel %vm1263, %v1312, %v1314
      %v1316 = vrot.slane %v1180, 1
      %v1317 = vrot.slane %v1106, 1
      %v1318 = vsel %vm1263, %v1316, %v1317
      %v1319 = vrot.slane %v1196, 1
      %v1320 = vsel %vm1263, %v1317, %v1319
      %v1321 = vrot.slane %v1181, 1
      %v1322 = vrot.slane %v1109, 1
      %v1323 = vsel %vm1263, %v1321, %v1322
      %v1324 = vrot.slane %v1197, 1
      %v1325 = vsel %vm1263, %v1322, %v1324
      %v1326 = vrot.slane %v1182, 1
      %v1327 = vrot.slane %v1112, 1
      %v1328 = vsel %vm1263, %v1326, %v1327
      %v1329 = vrot.slane %v1198, 1
      %v1330 = vsel %vm1263, %v1327, %v1329
      %v1331 = vrot.slane %v1183, 1
      %v1332 = vrot.slane %v1115, 1
      %v1333 = vsel %vm1263, %v1331, %v1332
      %v1334 = vrot.slane %v1199, 1
      %v1335 = vsel %vm1263, %v1332, %v1334
      %v1336 = vrot.slane %v1184, 1
      %v1337 = vrot.slane %v1118, 1
      %v1338 = vsel %vm1263, %v1336, %v1337
      %v1339 = vrot.slane %v1200, 1
      %v1340 = vsel %vm1263, %v1337, %v1339
      %v1372 = vadd.f32 %v1265, 0.0
      %v1373 = vadd.f32 %v1202, %v1268
      %v1374 = vadd.f32 %v1203, %v1270
      %v1375 = vadd.f32 %v1204, %v1273
      %v1376 = vadd.f32 %v1205, %v1275
      %v1377 = vadd.f32 %v1206, %v1278
      %v1378 = vadd.f32 %v1207, %v1280
      %v1379 = vadd.f32 %v1208, %v1283
      %v1380 = vadd.f32 %v1209, %v1285
      %v1381 = vadd.f32 %v1210, %v1288
      %v1382 = vadd.f32 %v1211, %v1290
      %v1383 = vadd.f32 %v1212, %v1293
      %v1384 = vadd.f32 %v1213, %v1295
      %v1385 = vadd.f32 %v1214, %v1298
      %v1386 = vadd.f32 %v1215, %v1300
      %v1387 = vadd.f32 %v1216, %v1303
      %v1388 = vadd.f32 %v1217, %v1305
      %v1389 = vadd.f32 %v1218, %v1308
      %v1390 = vadd.f32 %v1219, %v1310
      %v1391 = vadd.f32 %v1220, %v1313
      %v1392 = vadd.f32 %v1221, %v1315
      %v1393 = vadd.f32 %v1222, %v1318
      %v1394 = vadd.f32 %v1223, %v1320
      %v1395 = vadd.f32 %v1224, %v1323
      %v1396 = vadd.f32 %v1225, %v1325
      %v1397 = vadd.f32 %v1226, %v1328
      %v1398 = vadd.f32 %v1227, %v1330
      %v1399 = vadd.f32 %v1228, %v1333
      %v1400 = vadd.f32 %v1229, %v1335
      %v1401 = vadd.f32 %v1230, %v1338
      %v1402 = vadd.f32 %v1231, %v1340
      %vm1403 = vcmask 1045504
      %v1404 = vrot.slane 0.0, 2
      %v1405 = vsel %vm1403, %v1404, %v1404
      %v1406 = vrot.slane %v1170, 2
      %v1407 = vrot.slane %v1076, 2
      %v1408 = vsel %vm1403, %v1406, %v1407
      %v1409 = vrot.slane %v1186, 2
      %v1410 = vsel %vm1403, %v1407, %v1409
      %v1411 = vrot.slane %v1171, 2
      %v1412 = vrot.slane %v1079, 2
      %v1413 = vsel %vm1403, %v1411, %v1412
      %v1414 = vrot.slane %v1187, 2
      %v1415 = vsel %vm1403, %v1412, %v1414
      %v1416 = vrot.slane %v1172, 2
      %v1417 = vrot.slane %v1082, 2
      %v1418 = vsel %vm1403, %v1416, %v1417
      %v1419 = vrot.slane %v1188, 2
      %v1420 = vsel %vm1403, %v1417, %v1419
      %v1421 = vrot.slane %v1173, 2
      %v1422 = vrot.slane %v1085, 2
      %v1423 = vsel %vm1403, %v1421, %v1422
      %v1424 = vrot.slane %v1189, 2
      %v1425 = vsel %vm1403, %v1422, %v1424
      %v1426 = vrot.slane %v1174, 2
      %v1427 = vrot.slane %v1088, 2
      %v1428 = vsel %vm1403, %v1426, %v1427
      %v1429 = vrot.slane %v1190, 2
      %v1430 = vsel %vm1403, %v1427, %v1429
      %v1431 = vrot.slane %v1175, 2
      %v1432 = vrot.slane %v1091, 2
      %v1433 = vsel %vm1403, %v1431, %v1432
      %v1434 = vrot.slane %v1191, 2
      %v1435 = vsel %vm1403, %v1432, %v1434
      %v1436 = vrot.slane %v1176, 2
      %v1437 = vrot.slane %v1094, 2
      %v1438 = vsel %vm1403, %v1436, %v1437
      %v1439 = vrot.slane %v1192, 2
      %v1440 = vsel %vm1403, %v1437, %v1439
      %v1441 = vrot.slane %v1177, 2
      %v1442 = vrot.slane %v1097, 2
      %v1443 = vsel %vm1403, %v1441, %v1442
      %v1444 = vrot.slane %v1193, 2
      %v1445 = vsel %vm1403, %v1442, %v1444
      %v1446 = vrot.slane %v1178, 2
      %v1447 = vrot.slane %v1100, 2
      %v1448 = vsel %vm1403, %v1446, %v1447
      %v1449 = vrot.slane %v1194, 2
      %v1450 = vsel %vm1403, %v1447, %v1449
      %v1451 = vrot.slane %v1179, 2
      %v1452 = vrot.slane %v1103, 2
      %v1453 = vsel %vm1403, %v1451, %v1452
      %v1454 = vrot.slane %v1195, 2
      %v1455 = vsel %vm1403, %v1452, %v1454
      %v1456 = vrot.slane %v1180, 2
      %v1457 = vrot.slane %v1106, 2
      %v1458 = vsel %vm1403, %v1456, %v1457
      %v1459 = vrot.slane %v1196, 2
      %v1460 = vsel %vm1403, %v1457, %v1459
      %v1461 = vrot.slane %v1181, 2
      %v1462 = vrot.slane %v1109, 2
      %v1463 = vsel %vm1403, %v1461, %v1462
      %v1464 = vrot.slane %v1197, 2
      %v1465 = vsel %vm1403, %v1462, %v1464
      %v1466 = vrot.slane %v1182, 2
      %v1467 = vrot.slane %v1112, 2
      %v1468 = vsel %vm1403, %v1466, %v1467
      %v1469 = vrot.slane %v1198, 2
      %v1470 = vsel %vm1403, %v1467, %v1469
      %v1471 = vrot.slane %v1183, 2
      %v1472 = vrot.slane %v1115, 2
      %v1473 = vsel %vm1403, %v1471, %v1472
      %v1474 = vrot.slane %v1199, 2
      %v1475 = vsel %vm1403, %v1472, %v1474
      %v1476 = vrot.slane %v1184, 2
      %v1477 = vrot.slane %v1118, 2
      %v1478 = vsel %vm1403, %v1476, %v1477
      %v1479 = vrot.slane %v1200, 2
      %v1480 = vsel %vm1403, %v1477, %v1479
      %v1512 = vadd.f32 %v1372, %v1405
      %v1513 = vadd.f32 %v1373, %v1408
      %v1514 = vadd.f32 %v1374, %v1410
      %v1515 = vadd.f32 %v1375, %v1413
      %v1516 = vadd.f32 %v1376, %v1415
      %v1517 = vadd.f32 %v1377, %v1418
      %v1518 = vadd.f32 %v1378, %v1420
      %v1519 = vadd.f32 %v1379, %v1423
      %v1520 = vadd.f32 %v1380, %v1425
      %v1521 = vadd.f32 %v1381, %v1428
      %v1522 = vadd.f32 %v1382, %v1430
      %v1523 = vadd.f32 %v1383, %v1433
      %v1524 = vadd.f32 %v1384, %v1435
      %v1525 = vadd.f32 %v1385, %v1438
      %v1526 = vadd.f32 %v1386, %v1440
      %v1527 = vadd.f32 %v1387, %v1443
      %v1528 = vadd.f32 %v1388, %v1445
      %v1529 = vadd.f32 %v1389, %v1448
      %v1530 = vadd.f32 %v1390, %v1450
      %v1531 = vadd.f32 %v1391, %v1453
      %v1532 = vadd.f32 %v1392, %v1455
      %v1533 = vadd.f32 %v1393, %v1458
      %v1534 = vadd.f32 %v1394, %v1460
      %v1535 = vadd.f32 %v1395, %v1463
      %v1536 = vadd.f32 %v1396, %v1465
      %v1537 = vadd.f32 %v1397, %v1468
      %v1538 = vadd.f32 %v1398, %v1470
      %v1539 = vadd.f32 %v1399, %v1473
      %v1540 = vadd.f32 %v1400, %v1475
      %v1541 = vadd.f32 %v1401, %v1478
      %v1542 = vadd.f32 %v1402, %v1480
      %v1543 = vadd.f32 %v1512, %v1170
      %v1544 = vadd.f32 %v1512, %v1076
      %v1545 = vadd.f32 %v1513, %v1171
      %v1546 = vadd.f32 %v1514, %v1079
      %v1547 = vadd.f32 %v1515, %v1172
      %v1548 = vadd.f32 %v1516, %v1082
      %v1549 = vadd.f32 %v1517, %v1173
      %v1550 = vadd.f32 %v1518, %v1085
      %v1551 = vadd.f32 %v1519, %v1174
      %v1552 = vadd.f32 %v1520, %v1088
      %v1553 = vadd.f32 %v1521, %v1175
      %v1554 = vadd.f32 %v1522, %v1091
      %v1555 = vadd.f32 %v1523, %v1176
      %v1556 = vadd.f32 %v1524, %v1094
      %v1557 = vadd.f32 %v1525, %v1177
      %v1558 = vadd.f32 %v1526, %v1097
      %v1559 = vadd.f32 %v1527, %v1178
      %v1560 = vadd.f32 %v1528, %v1100
      %v1561 = vadd.f32 %v1529, %v1179
      %v1562 = vadd.f32 %v1530, %v1103
      %v1563 = vadd.f32 %v1531, %v1180
      %v1564 = vadd.f32 %v1532, %v1106
      %v1565 = vadd.f32 %v1533, %v1181
      %v1566 = vadd.f32 %v1534, %v1109
      %v1567 = vadd.f32 %v1535, %v1182
      %v1568 = vadd.f32 %v1536, %v1112
      %v1569 = vadd.f32 %v1537, %v1183
      %v1570 = vadd.f32 %v1538, %v1115
      %v1571 = vadd.f32 %v1539, %v1184
      %v1572 = vadd.f32 %v1540, %v1118
      %v1573 = vadd.f32 %v1541, %v1185
      %v1574 = vadd.f32 %v1542, %v1121
      %v1577 = vrot.slane %v1185, 1
      %v1578 = vrot.slane %v1121, 1
      %v1579 = vsel %vm1263, %v1577, %v1578
      %v1580 = vrot.slane %v1201, 1
      %v1581 = vsel %vm1263, %v1578, %v1580
      %v1584 = vadd.f32 %v1543, %v1268
      %v1585 = vadd.f32 %v1544, %v1270
      %v1586 = vadd.f32 %v1545, %v1273
      %v1587 = vadd.f32 %v1546, %v1275
      %v1588 = vadd.f32 %v1547, %v1278
      %v1589 = vadd.f32 %v1548, %v1280
      %v1590 = vadd.f32 %v1549, %v1283
      %v1591 = vadd.f32 %v1550, %v1285
      %v1592 = vadd.f32 %v1551, %v1288
      %v1593 = vadd.f32 %v1552, %v1290
      %v1594 = vadd.f32 %v1553, %v1293
      %v1595 = vadd.f32 %v1554, %v1295
      %v1596 = vadd.f32 %v1555, %v1298
      %v1597 = vadd.f32 %v1556, %v1300
      %v1598 = vadd.f32 %v1557, %v1303
      %v1599 = vadd.f32 %v1558, %v1305
      %v1600 = vadd.f32 %v1559, %v1308
      %v1601 = vadd.f32 %v1560, %v1310
      %v1602 = vadd.f32 %v1561, %v1313
      %v1603 = vadd.f32 %v1562, %v1315
      %v1604 = vadd.f32 %v1563, %v1318
      %v1605 = vadd.f32 %v1564, %v1320
      %v1606 = vadd.f32 %v1565, %v1323
      %v1607 = vadd.f32 %v1566, %v1325
      %v1608 = vadd.f32 %v1567, %v1328
      %v1609 = vadd.f32 %v1568, %v1330
      %v1610 = vadd.f32 %v1569, %v1333
      %v1611 = vadd.f32 %v1570, %v1335
      %v1612 = vadd.f32 %v1571, %v1338
      %v1613 = vadd.f32 %v1572, %v1340
      %v1614 = vadd.f32 %v1573, %v1579
      %v1615 = vadd.f32 %v1574, %v1581
      %v1616 = vrot.slane %v1185, 2
      %v1617 = vrot.slane %v1121, 2
      %v1618 = vsel %vm1403, %v1616, %v1617
      %v1619 = vrot.slane %v1201, 2
      %v1620 = vsel %vm1403, %v1617, %v1619
      %v1623 = vadd.f32 %v1584, %v1408
      %v1624 = vadd.f32 %v1585, %v1410
      %v1625 = vadd.f32 %v1586, %v1413
      %v1626 = vadd.f32 %v1587, %v1415
      %v1627 = vadd.f32 %v1588, %v1418
      %v1628 = vadd.f32 %v1589, %v1420
      %v1629 = vadd.f32 %v1590, %v1423
      %v1630 = vadd.f32 %v1591, %v1425
      %v1631 = vadd.f32 %v1592, %v1428
      %v1632 = vadd.f32 %v1593, %v1430
      %v1633 = vadd.f32 %v1594, %v1433
      %v1634 = vadd.f32 %v1595, %v1435
      %v1635 = vadd.f32 %v1596, %v1438
      %v1636 = vadd.f32 %v1597, %v1440
      %v1637 = vadd.f32 %v1598, %v1443
      %v1638 = vadd.f32 %v1599, %v1445
      %v1639 = vadd.f32 %v1600, %v1448
      %v1640 = vadd.f32 %v1601, %v1450
      %v1641 = vadd.f32 %v1602, %v1453
      %v1642 = vadd.f32 %v1603, %v1455
      %v1643 = vadd.f32 %v1604, %v1458
      %v1644 = vadd.f32 %v1605, %v1460
      %v1645 = vadd.f32 %v1606, %v1463
      %v1646 = vadd.f32 %v1607, %v1465
      %v1647 = vadd.f32 %v1608, %v1468
      %v1648 = vadd.f32 %v1609, %v1470
      %v1649 = vadd.f32 %v1610, %v1473
      %v1650 = vadd.f32 %v1611, %v1475
      %v1651 = vadd.f32 %v1612, %v1478
      %v1652 = vadd.f32 %v1613, %v1480
      %v1653 = vadd.f32 %v1614, %v1618
      %v1654 = vadd.f32 %v1615, %v1620
      %v1655 = vadd.f32 %v1623, %v1171
      %v1656 = vadd.f32 %v1624, %v1079
      %v1657 = vadd.f32 %v1625, %v1172
      %v1658 = vadd.f32 %v1626, %v1082
      %v1659 = vadd.f32 %v1627, %v1173
      %v1660 = vadd.f32 %v1628, %v1085
      %v1661 = vadd.f32 %v1629, %v1174
      %v1662 = vadd.f32 %v1630, %v1088
      %v1663 = vadd.f32 %v1631, %v1175
      %v1664 = vadd.f32 %v1632, %v1091
      %v1665 = vadd.f32 %v1633, %v1176
      %v1666 = vadd.f32 %v1634, %v1094
      %v1667 = vadd.f32 %v1635, %v1177
      %v1668 = vadd.f32 %v1636, %v1097
      %v1669 = vadd.f32 %v1637, %v1178
      %v1670 = vadd.f32 %v1638, %v1100
      %v1671 = vadd.f32 %v1639, %v1179
      %v1672 = vadd.f32 %v1640, %v1103
      %v1673 = vadd.f32 %v1641, %v1180
      %v1674 = vadd.f32 %v1642, %v1106
      %v1675 = vadd.f32 %v1643, %v1181
      %v1676 = vadd.f32 %v1644, %v1109
      %v1677 = vadd.f32 %v1645, %v1182
      %v1678 = vadd.f32 %v1646, %v1112
      %v1679 = vadd.f32 %v1647, %v1183
      %v1680 = vadd.f32 %v1648, %v1115
      %v1681 = vadd.f32 %v1649, %v1184
      %v1682 = vadd.f32 %v1650, %v1118
      %v1683 = vadd.f32 %v1651, %v1185
      %v1684 = vadd.f32 %v1652, %v1121
      %v1685 = vadd.f32 %v1653, 0.0
      %v1686 = vadd.f32 %v1654, 0.0
      %v1687 = vadd.f32 %v1655, %v1273
      %v1688 = vadd.f32 %v1656, %v1275
      %v1689 = vadd.f32 %v1657, %v1278
      %v1690 = vadd.f32 %v1658, %v1280
      %v1691 = vadd.f32 %v1659, %v1283
      %v1692 = vadd.f32 %v1660, %v1285
      %v1693 = vadd.f32 %v1661, %v1288
      %v1694 = vadd.f32 %v1662, %v1290
      %v1695 = vadd.f32 %v1663, %v1293
      %v1696 = vadd.f32 %v1664, %v1295
      %v1697 = vadd.f32 %v1665, %v1298
      %v1698 = vadd.f32 %v1666, %v1300
      %v1699 = vadd.f32 %v1667, %v1303
      %v1700 = vadd.f32 %v1668, %v1305
      %v1701 = vadd.f32 %v1669, %v1308
      %v1702 = vadd.f32 %v1670, %v1310
      %v1703 = vadd.f32 %v1671, %v1313
      %v1704 = vadd.f32 %v1672, %v1315
      %v1705 = vadd.f32 %v1673, %v1318
      %v1706 = vadd.f32 %v1674, %v1320
      %v1707 = vadd.f32 %v1675, %v1323
      %v1708 = vadd.f32 %v1676, %v1325
      %v1709 = vadd.f32 %v1677, %v1328
      %v1710 = vadd.f32 %v1678, %v1330
      %v1711 = vadd.f32 %v1679, %v1333
      %v1712 = vadd.f32 %v1680, %v1335
      %v1713 = vadd.f32 %v1681, %v1338
      %v1714 = vadd.f32 %v1682, %v1340
      %v1715 = vadd.f32 %v1683, %v1579
      %v1716 = vadd.f32 %v1684, %v1581
      %v1717 = vadd.f32 %v1685, %v1265
      %v1718 = vadd.f32 %v1686, %v1265
      %v1719 = vadd.f32 %v1687, %v1413
      %v1720 = vadd.f32 %v1688, %v1415
      %v1721 = vadd.f32 %v1689, %v1418
      %v1722 = vadd.f32 %v1690, %v1420
      %v1723 = vadd.f32 %v1691, %v1423
      %v1724 = vadd.f32 %v1692, %v1425
      %v1725 = vadd.f32 %v1693, %v1428
      %v1726 = vadd.f32 %v1694, %v1430
      %v1727 = vadd.f32 %v1695, %v1433
      %v1728 = vadd.f32 %v1696, %v1435
      %v1729 = vadd.f32 %v1697, %v1438
      %v1730 = vadd.f32 %v1698, %v1440
      %v1731 = vadd.f32 %v1699, %v1443
      %v1732 = vadd.f32 %v1700, %v1445
      %v1733 = vadd.f32 %v1701, %v1448
      %v1734 = vadd.f32 %v1702, %v1450
      %v1735 = vadd.f32 %v1703, %v1453
      %v1736 = vadd.f32 %v1704, %v1455
      %v1737 = vadd.f32 %v1705, %v1458
      %v1738 = vadd.f32 %v1706, %v1460
      %v1739 = vadd.f32 %v1707, %v1463
      %v1740 = vadd.f32 %v1708, %v1465
      %v1741 = vadd.f32 %v1709, %v1468
      %v1742 = vadd.f32 %v1710, %v1470
      %v1743 = vadd.f32 %v1711, %v1473
      %v1744 = vadd.f32 %v1712, %v1475
      %v1745 = vadd.f32 %v1713, %v1478
      %v1746 = vadd.f32 %v1714, %v1480
      %v1747 = vadd.f32 %v1715, %v1618
      %v1748 = vadd.f32 %v1716, %v1620
      %v1749 = vadd.f32 %v1717, %v1405
      %v1750 = vadd.f32 %v1718, %v1405
      %v1751 = vmul.f32 %v1719, 0.11111111
      %v1752 = vmul.f32 %v1720, 0.11111111
      %v1753 = vmul.f32 %v1721, 0.11111111
      %v1754 = vmul.f32 %v1722, 0.11111111
      %v1755 = vmul.f32 %v1723, 0.11111111
      %v1756 = vmul.f32 %v1724, 0.11111111
      %v1757 = vmul.f32 %v1725, 0.11111111
      %v1758 = vmul.f32 %v1726, 0.11111111
      %v1759 = vmul.f32 %v1727, 0.11111111
      %v1760 = vmul.f32 %v1728, 0.11111111
      %v1761 = vmul.f32 %v1729, 0.11111111
      %v1762 = vmul.f32 %v1730, 0.11111111
      %v1763 = vmul.f32 %v1731, 0.11111111
      %v1764 = vmul.f32 %v1732, 0.11111111
      %v1765 = vmul.f32 %v1733, 0.11111111
      %v1766 = vmul.f32 %v1734, 0.11111111
      %v1767 = vmul.f32 %v1735, 0.11111111
      %v1768 = vmul.f32 %v1736, 0.11111111
      %v1769 = vmul.f32 %v1737, 0.11111111
      %v1770 = vmul.f32 %v1738, 0.11111111
      %v1771 = vmul.f32 %v1739, 0.11111111
      %v1772 = vmul.f32 %v1740, 0.11111111
      %v1773 = vmul.f32 %v1741, 0.11111111
      %v1774 = vmul.f32 %v1742, 0.11111111
      %v1775 = vmul.f32 %v1743, 0.11111111
      %v1776 = vmul.f32 %v1744, 0.11111111
      %v1777 = vmul.f32 %v1745, 0.11111111
      %v1778 = vmul.f32 %v1746, 0.11111111
      %v1779 = vmul.f32 %v1747, 0.11111111
      %v1780 = vmul.f32 %v1748, 0.11111111
      %v1781 = vmul.f32 %v1749, 0.11111111
      %v1782 = vmul.f32 %v1750, 0.11111111
      %v1783 = vsel %vm1073, -3.4028235e+38, %v1074
      %v1784 = vsel %vm1073, -3.4028235e+38, %v1077
      %v1785 = vsel %vm1073, -3.4028235e+38, %v1080
      %v1786 = vsel %vm1073, -3.4028235e+38, %v1083
      %v1787 = vsel %vm1073, -3.4028235e+38, %v1086
      %v1788 = vsel %vm1073, -3.4028235e+38, %v1089
      %v1789 = vsel %vm1073, -3.4028235e+38, %v1092
      %v1790 = vsel %vm1073, -3.4028235e+38, %v1095
      %v1791 = vsel %vm1073, -3.4028235e+38, %v1098
      %v1792 = vsel %vm1073, -3.4028235e+38, %v1101
      %v1793 = vsel %vm1073, -3.4028235e+38, %v1104
      %v1794 = vsel %vm1073, -3.4028235e+38, %v1107
      %v1795 = vsel %vm1073, -3.4028235e+38, %v1110
      %v1796 = vsel %vm1073, -3.4028235e+38, %v1113
      %v1797 = vsel %vm1073, -3.4028235e+38, %v1116
      %v1798 = vsel %vm1073, -3.4028235e+38, %v1119
      %v1799 = vsel %vm1073, %v1075, -3.4028235e+38
      %v1800 = vsel %vm1073, %v1078, -3.4028235e+38
      %v1801 = vsel %vm1073, %v1081, -3.4028235e+38
      %v1802 = vsel %vm1073, %v1084, -3.4028235e+38
      %v1803 = vsel %vm1073, %v1087, -3.4028235e+38
      %v1804 = vsel %vm1073, %v1090, -3.4028235e+38
      %v1805 = vsel %vm1073, %v1093, -3.4028235e+38
      %v1806 = vsel %vm1073, %v1096, -3.4028235e+38
      %v1807 = vsel %vm1073, %v1099, -3.4028235e+38
      %v1808 = vsel %vm1073, %v1102, -3.4028235e+38
      %v1809 = vsel %vm1073, %v1105, -3.4028235e+38
      %v1810 = vsel %vm1073, %v1108, -3.4028235e+38
      %v1811 = vsel %vm1073, %v1111, -3.4028235e+38
      %v1812 = vsel %vm1073, %v1114, -3.4028235e+38
      %v1813 = vsel %vm1073, %v1117, -3.4028235e+38
      %v1814 = vsel %vm1073, %v1120, -3.4028235e+38
      %v1815 = vmax.f32 %v1783, -3.4028235e+38
      %v1816 = vmax.f32 %v1076, -3.4028235e+38
      %v1817 = vmax.f32 %v1784, -3.4028235e+38
      %v1818 = vmax.f32 %v1079, -3.4028235e+38
      %v1819 = vmax.f32 %v1785, -3.4028235e+38
      %v1820 = vmax.f32 %v1082, -3.4028235e+38
      %v1821 = vmax.f32 %v1786, -3.4028235e+38
      %v1822 = vmax.f32 %v1085, -3.4028235e+38
      %v1823 = vmax.f32 %v1787, -3.4028235e+38
      %v1824 = vmax.f32 %v1088, -3.4028235e+38
      %v1825 = vmax.f32 %v1788, -3.4028235e+38
      %v1826 = vmax.f32 %v1091, -3.4028235e+38
      %v1827 = vmax.f32 %v1789, -3.4028235e+38
      %v1828 = vmax.f32 %v1094, -3.4028235e+38
      %v1829 = vmax.f32 %v1790, -3.4028235e+38
      %v1830 = vmax.f32 %v1097, -3.4028235e+38
      %v1831 = vmax.f32 %v1791, -3.4028235e+38
      %v1832 = vmax.f32 %v1100, -3.4028235e+38
      %v1833 = vmax.f32 %v1792, -3.4028235e+38
      %v1834 = vmax.f32 %v1103, -3.4028235e+38
      %v1835 = vmax.f32 %v1793, -3.4028235e+38
      %v1836 = vmax.f32 %v1106, -3.4028235e+38
      %v1837 = vmax.f32 %v1794, -3.4028235e+38
      %v1838 = vmax.f32 %v1109, -3.4028235e+38
      %v1839 = vmax.f32 %v1795, -3.4028235e+38
      %v1840 = vmax.f32 %v1112, -3.4028235e+38
      %v1841 = vmax.f32 %v1796, -3.4028235e+38
      %v1842 = vmax.f32 %v1115, -3.4028235e+38
      %v1843 = vmax.f32 %v1797, -3.4028235e+38
      %v1844 = vmax.f32 %v1118, -3.4028235e+38
      %v1876 = vrot.slane -3.4028235e+38, 1
      %v1877 = vsel %vm1263, %v1876, %v1876
      %v1878 = vrot.slane %v1783, 1
      %v1879 = vsel %vm1263, %v1878, %v1267
      %v1880 = vrot.slane %v1799, 1
      %v1881 = vsel %vm1263, %v1267, %v1880
      %v1882 = vrot.slane %v1784, 1
      %v1883 = vsel %vm1263, %v1882, %v1272
      %v1884 = vrot.slane %v1800, 1
      %v1885 = vsel %vm1263, %v1272, %v1884
      %v1886 = vrot.slane %v1785, 1
      %v1887 = vsel %vm1263, %v1886, %v1277
      %v1888 = vrot.slane %v1801, 1
      %v1889 = vsel %vm1263, %v1277, %v1888
      %v1890 = vrot.slane %v1786, 1
      %v1891 = vsel %vm1263, %v1890, %v1282
      %v1892 = vrot.slane %v1802, 1
      %v1893 = vsel %vm1263, %v1282, %v1892
      %v1894 = vrot.slane %v1787, 1
      %v1895 = vsel %vm1263, %v1894, %v1287
      %v1896 = vrot.slane %v1803, 1
      %v1897 = vsel %vm1263, %v1287, %v1896
      %v1898 = vrot.slane %v1788, 1
      %v1899 = vsel %vm1263, %v1898, %v1292
      %v1900 = vrot.slane %v1804, 1
      %v1901 = vsel %vm1263, %v1292, %v1900
      %v1902 = vrot.slane %v1789, 1
      %v1903 = vsel %vm1263, %v1902, %v1297
      %v1904 = vrot.slane %v1805, 1
      %v1905 = vsel %vm1263, %v1297, %v1904
      %v1906 = vrot.slane %v1790, 1
      %v1907 = vsel %vm1263, %v1906, %v1302
      %v1908 = vrot.slane %v1806, 1
      %v1909 = vsel %vm1263, %v1302, %v1908
      %v1910 = vrot.slane %v1791, 1
      %v1911 = vsel %vm1263, %v1910, %v1307
      %v1912 = vrot.slane %v1807, 1
      %v1913 = vsel %vm1263, %v1307, %v1912
      %v1914 = vrot.slane %v1792, 1
      %v1915 = vsel %vm1263, %v1914, %v1312
      %v1916 = vrot.slane %v1808, 1
      %v1917 = vsel %vm1263, %v1312, %v1916
      %v1918 = vrot.slane %v1793, 1
      %v1919 = vsel %vm1263, %v1918, %v1317
      %v1920 = vrot.slane %v1809, 1
      %v1921 = vsel %vm1263, %v1317, %v1920
      %v1922 = vrot.slane %v1794, 1
      %v1923 = vsel %vm1263, %v1922, %v1322
      %v1924 = vrot.slane %v1810, 1
      %v1925 = vsel %vm1263, %v1322, %v1924
      %v1926 = vrot.slane %v1795, 1
      %v1927 = vsel %vm1263, %v1926, %v1327
      %v1928 = vrot.slane %v1811, 1
      %v1929 = vsel %vm1263, %v1327, %v1928
      %v1930 = vrot.slane %v1796, 1
      %v1931 = vsel %vm1263, %v1930, %v1332
      %v1932 = vrot.slane %v1812, 1
      %v1933 = vsel %vm1263, %v1332, %v1932
      %v1934 = vrot.slane %v1797, 1
      %v1935 = vsel %vm1263, %v1934, %v1337
      %v1936 = vrot.slane %v1813, 1
      %v1937 = vsel %vm1263, %v1337, %v1936
      %v1969 = vmax.f32 %v1877, -3.4028235e+38
      %v1970 = vmax.f32 %v1815, %v1879
      %v1971 = vmax.f32 %v1816, %v1881
      %v1972 = vmax.f32 %v1817, %v1883
      %v1973 = vmax.f32 %v1818, %v1885
      %v1974 = vmax.f32 %v1819, %v1887
      %v1975 = vmax.f32 %v1820, %v1889
      %v1976 = vmax.f32 %v1821, %v1891
      %v1977 = vmax.f32 %v1822, %v1893
      %v1978 = vmax.f32 %v1823, %v1895
      %v1979 = vmax.f32 %v1824, %v1897
      %v1980 = vmax.f32 %v1825, %v1899
      %v1981 = vmax.f32 %v1826, %v1901
      %v1982 = vmax.f32 %v1827, %v1903
      %v1983 = vmax.f32 %v1828, %v1905
      %v1984 = vmax.f32 %v1829, %v1907
      %v1985 = vmax.f32 %v1830, %v1909
      %v1986 = vmax.f32 %v1831, %v1911
      %v1987 = vmax.f32 %v1832, %v1913
      %v1988 = vmax.f32 %v1833, %v1915
      %v1989 = vmax.f32 %v1834, %v1917
      %v1990 = vmax.f32 %v1835, %v1919
      %v1991 = vmax.f32 %v1836, %v1921
      %v1992 = vmax.f32 %v1837, %v1923
      %v1993 = vmax.f32 %v1838, %v1925
      %v1994 = vmax.f32 %v1839, %v1927
      %v1995 = vmax.f32 %v1840, %v1929
      %v1996 = vmax.f32 %v1841, %v1931
      %v1997 = vmax.f32 %v1842, %v1933
      %v1998 = vmax.f32 %v1843, %v1935
      %v1999 = vmax.f32 %v1844, %v1937
      %v2000 = vrot.slane -3.4028235e+38, 2
      %v2001 = vsel %vm1403, %v2000, %v2000
      %v2002 = vrot.slane %v1783, 2
      %v2003 = vsel %vm1403, %v2002, %v1407
      %v2004 = vrot.slane %v1799, 2
      %v2005 = vsel %vm1403, %v1407, %v2004
      %v2006 = vrot.slane %v1784, 2
      %v2007 = vsel %vm1403, %v2006, %v1412
      %v2008 = vrot.slane %v1800, 2
      %v2009 = vsel %vm1403, %v1412, %v2008
      %v2010 = vrot.slane %v1785, 2
      %v2011 = vsel %vm1403, %v2010, %v1417
      %v2012 = vrot.slane %v1801, 2
      %v2013 = vsel %vm1403, %v1417, %v2012
      %v2014 = vrot.slane %v1786, 2
      %v2015 = vsel %vm1403, %v2014, %v1422
      %v2016 = vrot.slane %v1802, 2
      %v2017 = vsel %vm1403, %v1422, %v2016
      %v2018 = vrot.slane %v1787, 2
      %v2019 = vsel %vm1403, %v2018, %v1427
      %v2020 = vrot.slane %v1803, 2
      %v2021 = vsel %vm1403, %v1427, %v2020
      %v2022 = vrot.slane %v1788, 2
      %v2023 = vsel %vm1403, %v2022, %v1432
      %v2024 = vrot.slane %v1804, 2
      %v2025 = vsel %vm1403, %v1432, %v2024
      %v2026 = vrot.slane %v1789, 2
      %v2027 = vsel %vm1403, %v2026, %v1437
      %v2028 = vrot.slane %v1805, 2
      %v2029 = vsel %vm1403, %v1437, %v2028
      %v2030 = vrot.slane %v1790, 2
      %v2031 = vsel %vm1403, %v2030, %v1442
      %v2032 = vrot.slane %v1806, 2
      %v2033 = vsel %vm1403, %v1442, %v2032
      %v2034 = vrot.slane %v1791, 2
      %v2035 = vsel %vm1403, %v2034, %v1447
      %v2036 = vrot.slane %v1807, 2
      %v2037 = vsel %vm1403, %v1447, %v2036
      %v2038 = vrot.slane %v1792, 2
      %v2039 = vsel %vm1403, %v2038, %v1452
      %v2040 = vrot.slane %v1808, 2
      %v2041 = vsel %vm1403, %v1452, %v2040
      %v2042 = vrot.slane %v1793, 2
      %v2043 = vsel %vm1403, %v2042, %v1457
      %v2044 = vrot.slane %v1809, 2
      %v2045 = vsel %vm1403, %v1457, %v2044
      %v2046 = vrot.slane %v1794, 2
      %v2047 = vsel %vm1403, %v2046, %v1462
      %v2048 = vrot.slane %v1810, 2
      %v2049 = vsel %vm1403, %v1462, %v2048
      %v2050 = vrot.slane %v1795, 2
      %v2051 = vsel %vm1403, %v2050, %v1467
      %v2052 = vrot.slane %v1811, 2
      %v2053 = vsel %vm1403, %v1467, %v2052
      %v2054 = vrot.slane %v1796, 2
      %v2055 = vsel %vm1403, %v2054, %v1472
      %v2056 = vrot.slane %v1812, 2
      %v2057 = vsel %vm1403, %v1472, %v2056
      %v2058 = vrot.slane %v1797, 2
      %v2059 = vsel %vm1403, %v2058, %v1477
      %v2060 = vrot.slane %v1813, 2
      %v2061 = vsel %vm1403, %v1477, %v2060
      %v2093 = vmax.f32 %v1969, %v2001
      %v2094 = vmax.f32 %v1970, %v2003
      %v2095 = vmax.f32 %v1971, %v2005
      %v2096 = vmax.f32 %v1972, %v2007
      %v2097 = vmax.f32 %v1973, %v2009
      %v2098 = vmax.f32 %v1974, %v2011
      %v2099 = vmax.f32 %v1975, %v2013
      %v2100 = vmax.f32 %v1976, %v2015
      %v2101 = vmax.f32 %v1977, %v2017
      %v2102 = vmax.f32 %v1978, %v2019
      %v2103 = vmax.f32 %v1979, %v2021
      %v2104 = vmax.f32 %v1980, %v2023
      %v2105 = vmax.f32 %v1981, %v2025
      %v2106 = vmax.f32 %v1982, %v2027
      %v2107 = vmax.f32 %v1983, %v2029
      %v2108 = vmax.f32 %v1984, %v2031
      %v2109 = vmax.f32 %v1985, %v2033
      %v2110 = vmax.f32 %v1986, %v2035
      %v2111 = vmax.f32 %v1987, %v2037
      %v2112 = vmax.f32 %v1988, %v2039
      %v2113 = vmax.f32 %v1989, %v2041
      %v2114 = vmax.f32 %v1990, %v2043
      %v2115 = vmax.f32 %v1991, %v2045
      %v2116 = vmax.f32 %v1992, %v2047
      %v2117 = vmax.f32 %v1993, %v2049
      %v2118 = vmax.f32 %v1994, %v2051
      %v2119 = vmax.f32 %v1995, %v2053
      %v2120 = vmax.f32 %v1996, %v2055
      %v2121 = vmax.f32 %v1997, %v2057
      %v2122 = vmax.f32 %v1998, %v2059
      %v2123 = vmax.f32 %v1999, %v2061
      %v2124 = vmax.f32 %v2093, %v1783
      %v2125 = vmax.f32 %v2093, %v1076
      %v2126 = vmax.f32 %v2094, %v1784
      %v2127 = vmax.f32 %v2095, %v1079
      %v2128 = vmax.f32 %v2096, %v1785
      %v2129 = vmax.f32 %v2097, %v1082
      %v2130 = vmax.f32 %v2098, %v1786
      %v2131 = vmax.f32 %v2099, %v1085
      %v2132 = vmax.f32 %v2100, %v1787
      %v2133 = vmax.f32 %v2101, %v1088
      %v2134 = vmax.f32 %v2102, %v1788
      %v2135 = vmax.f32 %v2103, %v1091
      %v2136 = vmax.f32 %v2104, %v1789
      %v2137 = vmax.f32 %v2105, %v1094
      %v2138 = vmax.f32 %v2106, %v1790
      %v2139 = vmax.f32 %v2107, %v1097
      %v2140 = vmax.f32 %v2108, %v1791
      %v2141 = vmax.f32 %v2109, %v1100
      %v2142 = vmax.f32 %v2110, %v1792
      %v2143 = vmax.f32 %v2111, %v1103
      %v2144 = vmax.f32 %v2112, %v1793
      %v2145 = vmax.f32 %v2113, %v1106
      %v2146 = vmax.f32 %v2114, %v1794
      %v2147 = vmax.f32 %v2115, %v1109
      %v2148 = vmax.f32 %v2116, %v1795
      %v2149 = vmax.f32 %v2117, %v1112
      %v2150 = vmax.f32 %v2118, %v1796
      %v2151 = vmax.f32 %v2119, %v1115
      %v2152 = vmax.f32 %v2120, %v1797
      %v2153 = vmax.f32 %v2121, %v1118
      %v2154 = vmax.f32 %v2122, %v1798
      %v2155 = vmax.f32 %v2123, %v1121
      %v2158 = vrot.slane %v1798, 1
      %v2159 = vsel %vm1263, %v2158, %v1578
      %v2160 = vrot.slane %v1814, 1
      %v2161 = vsel %vm1263, %v1578, %v2160
      %v2164 = vmax.f32 %v2124, %v1879
      %v2165 = vmax.f32 %v2125, %v1881
      %v2166 = vmax.f32 %v2126, %v1883
      %v2167 = vmax.f32 %v2127, %v1885
      %v2168 = vmax.f32 %v2128, %v1887
      %v2169 = vmax.f32 %v2129, %v1889
      %v2170 = vmax.f32 %v2130, %v1891
      %v2171 = vmax.f32 %v2131, %v1893
      %v2172 = vmax.f32 %v2132, %v1895
      %v2173 = vmax.f32 %v2133, %v1897
      %v2174 = vmax.f32 %v2134, %v1899
      %v2175 = vmax.f32 %v2135, %v1901
      %v2176 = vmax.f32 %v2136, %v1903
      %v2177 = vmax.f32 %v2137, %v1905
      %v2178 = vmax.f32 %v2138, %v1907
      %v2179 = vmax.f32 %v2139, %v1909
      %v2180 = vmax.f32 %v2140, %v1911
      %v2181 = vmax.f32 %v2141, %v1913
      %v2182 = vmax.f32 %v2142, %v1915
      %v2183 = vmax.f32 %v2143, %v1917
      %v2184 = vmax.f32 %v2144, %v1919
      %v2185 = vmax.f32 %v2145, %v1921
      %v2186 = vmax.f32 %v2146, %v1923
      %v2187 = vmax.f32 %v2147, %v1925
      %v2188 = vmax.f32 %v2148, %v1927
      %v2189 = vmax.f32 %v2149, %v1929
      %v2190 = vmax.f32 %v2150, %v1931
      %v2191 = vmax.f32 %v2151, %v1933
      %v2192 = vmax.f32 %v2152, %v1935
      %v2193 = vmax.f32 %v2153, %v1937
      %v2194 = vmax.f32 %v2154, %v2159
      %v2195 = vmax.f32 %v2155, %v2161
      %v2196 = vrot.slane %v1798, 2
      %v2197 = vsel %vm1403, %v2196, %v1617
      %v2198 = vrot.slane %v1814, 2
      %v2199 = vsel %vm1403, %v1617, %v2198
      %v2202 = vmax.f32 %v2164, %v2003
      %v2203 = vmax.f32 %v2165, %v2005
      %v2204 = vmax.f32 %v2166, %v2007
      %v2205 = vmax.f32 %v2167, %v2009
      %v2206 = vmax.f32 %v2168, %v2011
      %v2207 = vmax.f32 %v2169, %v2013
      %v2208 = vmax.f32 %v2170, %v2015
      %v2209 = vmax.f32 %v2171, %v2017
      %v2210 = vmax.f32 %v2172, %v2019
      %v2211 = vmax.f32 %v2173, %v2021
      %v2212 = vmax.f32 %v2174, %v2023
      %v2213 = vmax.f32 %v2175, %v2025
      %v2214 = vmax.f32 %v2176, %v2027
      %v2215 = vmax.f32 %v2177, %v2029
      %v2216 = vmax.f32 %v2178, %v2031
      %v2217 = vmax.f32 %v2179, %v2033
      %v2218 = vmax.f32 %v2180, %v2035
      %v2219 = vmax.f32 %v2181, %v2037
      %v2220 = vmax.f32 %v2182, %v2039
      %v2221 = vmax.f32 %v2183, %v2041
      %v2222 = vmax.f32 %v2184, %v2043
      %v2223 = vmax.f32 %v2185, %v2045
      %v2224 = vmax.f32 %v2186, %v2047
      %v2225 = vmax.f32 %v2187, %v2049
      %v2226 = vmax.f32 %v2188, %v2051
      %v2227 = vmax.f32 %v2189, %v2053
      %v2228 = vmax.f32 %v2190, %v2055
      %v2229 = vmax.f32 %v2191, %v2057
      %v2230 = vmax.f32 %v2192, %v2059
      %v2231 = vmax.f32 %v2193, %v2061
      %v2232 = vmax.f32 %v2194, %v2197
      %v2233 = vmax.f32 %v2195, %v2199
      %v2234 = vmax.f32 %v2202, %v1784
      %v2235 = vmax.f32 %v2203, %v1079
      %v2236 = vmax.f32 %v2204, %v1785
      %v2237 = vmax.f32 %v2205, %v1082
      %v2238 = vmax.f32 %v2206, %v1786
      %v2239 = vmax.f32 %v2207, %v1085
      %v2240 = vmax.f32 %v2208, %v1787
      %v2241 = vmax.f32 %v2209, %v1088
      %v2242 = vmax.f32 %v2210, %v1788
      %v2243 = vmax.f32 %v2211, %v1091
      %v2244 = vmax.f32 %v2212, %v1789
      %v2245 = vmax.f32 %v2213, %v1094
      %v2246 = vmax.f32 %v2214, %v1790
      %v2247 = vmax.f32 %v2215, %v1097
      %v2248 = vmax.f32 %v2216, %v1791
      %v2249 = vmax.f32 %v2217, %v1100
      %v2250 = vmax.f32 %v2218, %v1792
      %v2251 = vmax.f32 %v2219, %v1103
      %v2252 = vmax.f32 %v2220, %v1793
      %v2253 = vmax.f32 %v2221, %v1106
      %v2254 = vmax.f32 %v2222, %v1794
      %v2255 = vmax.f32 %v2223, %v1109
      %v2256 = vmax.f32 %v2224, %v1795
      %v2257 = vmax.f32 %v2225, %v1112
      %v2258 = vmax.f32 %v2226, %v1796
      %v2259 = vmax.f32 %v2227, %v1115
      %v2260 = vmax.f32 %v2228, %v1797
      %v2261 = vmax.f32 %v2229, %v1118
      %v2262 = vmax.f32 %v2230, %v1798
      %v2263 = vmax.f32 %v2231, %v1121
      %v2264 = vmax.f32 %v2232, -3.4028235e+38
      %v2265 = vmax.f32 %v2233, -3.4028235e+38
      %v2266 = vmax.f32 %v2234, %v1883
      %v2267 = vmax.f32 %v2235, %v1885
      %v2268 = vmax.f32 %v2236, %v1887
      %v2269 = vmax.f32 %v2237, %v1889
      %v2270 = vmax.f32 %v2238, %v1891
      %v2271 = vmax.f32 %v2239, %v1893
      %v2272 = vmax.f32 %v2240, %v1895
      %v2273 = vmax.f32 %v2241, %v1897
      %v2274 = vmax.f32 %v2242, %v1899
      %v2275 = vmax.f32 %v2243, %v1901
      %v2276 = vmax.f32 %v2244, %v1903
      %v2277 = vmax.f32 %v2245, %v1905
      %v2278 = vmax.f32 %v2246, %v1907
      %v2279 = vmax.f32 %v2247, %v1909
      %v2280 = vmax.f32 %v2248, %v1911
      %v2281 = vmax.f32 %v2249, %v1913
      %v2282 = vmax.f32 %v2250, %v1915
      %v2283 = vmax.f32 %v2251, %v1917
      %v2284 = vmax.f32 %v2252, %v1919
      %v2285 = vmax.f32 %v2253, %v1921
      %v2286 = vmax.f32 %v2254, %v1923
      %v2287 = vmax.f32 %v2255, %v1925
      %v2288 = vmax.f32 %v2256, %v1927
      %v2289 = vmax.f32 %v2257, %v1929
      %v2290 = vmax.f32 %v2258, %v1931
      %v2291 = vmax.f32 %v2259, %v1933
      %v2292 = vmax.f32 %v2260, %v1935
      %v2293 = vmax.f32 %v2261, %v1937
      %v2294 = vmax.f32 %v2262, %v2159
      %v2295 = vmax.f32 %v2263, %v2161
      %v2296 = vmax.f32 %v2264, %v1877
      %v2297 = vmax.f32 %v2265, %v1877
      %v2298 = vmax.f32 %v2266, %v2007
      %v2299 = vmax.f32 %v2267, %v2009
      %v2300 = vmax.f32 %v2268, %v2011
      %v2301 = vmax.f32 %v2269, %v2013
      %v2302 = vmax.f32 %v2270, %v2015
      %v2303 = vmax.f32 %v2271, %v2017
      %v2304 = vmax.f32 %v2272, %v2019
      %v2305 = vmax.f32 %v2273, %v2021
      %v2306 = vmax.f32 %v2274, %v2023
      %v2307 = vmax.f32 %v2275, %v2025
      %v2308 = vmax.f32 %v2276, %v2027
      %v2309 = vmax.f32 %v2277, %v2029
      %v2310 = vmax.f32 %v2278, %v2031
      %v2311 = vmax.f32 %v2279, %v2033
      %v2312 = vmax.f32 %v2280, %v2035
      %v2313 = vmax.f32 %v2281, %v2037
      %v2314 = vmax.f32 %v2282, %v2039
      %v2315 = vmax.f32 %v2283, %v2041
      %v2316 = vmax.f32 %v2284, %v2043
      %v2317 = vmax.f32 %v2285, %v2045
      %v2318 = vmax.f32 %v2286, %v2047
      %v2319 = vmax.f32 %v2287, %v2049
      %v2320 = vmax.f32 %v2288, %v2051
      %v2321 = vmax.f32 %v2289, %v2053
      %v2322 = vmax.f32 %v2290, %v2055
      %v2323 = vmax.f32 %v2291, %v2057
      %v2324 = vmax.f32 %v2292, %v2059
      %v2325 = vmax.f32 %v2293, %v2061
      %v2326 = vmax.f32 %v2294, %v2197
      %v2327 = vmax.f32 %v2295, %v2199
      %v2328 = vmax.f32 %v2296, %v2001
      %v2329 = vmax.f32 %v2297, %v2001
      %v2330 = vadd.f32 %v1751, %v2298
      %v2331 = vadd.f32 %v1752, %v2299
      %v2332 = vadd.f32 %v1753, %v2300
      %v2333 = vadd.f32 %v1754, %v2301
      %v2334 = vadd.f32 %v1755, %v2302
      %v2335 = vadd.f32 %v1756, %v2303
      %v2336 = vadd.f32 %v1757, %v2304
      %v2337 = vadd.f32 %v1758, %v2305
      %v2338 = vadd.f32 %v1759, %v2306
      %v2339 = vadd.f32 %v1760, %v2307
      %v2340 = vadd.f32 %v1761, %v2308
      %v2341 = vadd.f32 %v1762, %v2309
      %v2342 = vadd.f32 %v1763, %v2310
      %v2343 = vadd.f32 %v1764, %v2311
      %v2344 = vadd.f32 %v1765, %v2312
      %v2345 = vadd.f32 %v1766, %v2313
      %v2346 = vadd.f32 %v1767, %v2314
      %v2347 = vadd.f32 %v1768, %v2315
      %v2348 = vadd.f32 %v1769, %v2316
      %v2349 = vadd.f32 %v1770, %v2317
      %v2350 = vadd.f32 %v1771, %v2318
      %v2351 = vadd.f32 %v1772, %v2319
      %v2352 = vadd.f32 %v1773, %v2320
      %v2353 = vadd.f32 %v1774, %v2321
      %v2354 = vadd.f32 %v1775, %v2322
      %v2355 = vadd.f32 %v1776, %v2323
      %v2356 = vadd.f32 %v1777, %v2324
      %v2357 = vadd.f32 %v1778, %v2325
      %v2358 = vadd.f32 %v1779, %v2326
      %v2359 = vadd.f32 %v1780, %v2327
      %v2360 = vadd.f32 %v1781, %v2328
      %v2361 = vadd.f32 %v1782, %v2329
      %v2362 = vmax.f32 %v2330, 0.0
      %v2363 = vmax.f32 %v2331, 0.0
      %v2364 = vmax.f32 %v2332, 0.0
      %v2365 = vmax.f32 %v2333, 0.0
      %v2366 = vmax.f32 %v2334, 0.0
      %v2367 = vmax.f32 %v2335, 0.0
      %v2368 = vmax.f32 %v2336, 0.0
      %v2369 = vmax.f32 %v2337, 0.0
      %v2370 = vmax.f32 %v2338, 0.0
      %v2371 = vmax.f32 %v2339, 0.0
      %v2372 = vmax.f32 %v2340, 0.0
      %v2373 = vmax.f32 %v2341, 0.0
      %v2374 = vmax.f32 %v2342, 0.0
      %v2375 = vmax.f32 %v2343, 0.0
      %v2376 = vmax.f32 %v2344, 0.0
      %v2377 = vmax.f32 %v2345, 0.0
      %v2378 = vmax.f32 %v2346, 0.0
      %v2379 = vmax.f32 %v2347, 0.0
      %v2380 = vmax.f32 %v2348, 0.0
      %v2381 = vmax.f32 %v2349, 0.0
      %v2382 = vmax.f32 %v2350, 0.0
      %v2383 = vmax.f32 %v2351, 0.0
      %v2384 = vmax.f32 %v2352, 0.0
      %v2385 = vmax.f32 %v2353, 0.0
      %v2386 = vmax.f32 %v2354, 0.0
      %v2387 = vmax.f32 %v2355, 0.0
      %v2388 = vmax.f32 %v2356, 0.0
      %v2389 = vmax.f32 %v2357, 0.0
      %v2390 = vmax.f32 %v2358, 0.0
      %v2391 = vmax.f32 %v2359, 0.0
      %v2392 = vmax.f32 %v2360, 0.0
      %v2393 = vmax.f32 %v2361, 0.0
      %vm2394 = vcmask 31744
      %v2395 = vsel %vm2394, %v1009, 0
      %v2397 = vsel %vm2394, %v1010, 0
      %v2399 = vsel %vm2394, %v1011, 0
      %v2401 = vsel %vm2394, %v1012, 0
      %v2403 = vsel %vm2394, %v1013, 0
      %v2405 = vsel %vm2394, %v1014, 0
      %v2407 = vsel %vm2394, %v1015, 0
      %v2409 = vsel %vm2394, %v1016, 0
      %v2411 = vsel %vm2394, %v1017, 0
      %v2413 = vsel %vm2394, %v1018, 0
      %v2415 = vsel %vm2394, %v1019, 0
      %v2417 = vsel %vm2394, %v1020, 0
      %v2419 = vsel %vm2394, %v1021, 0
      %v2421 = vsel %vm2394, %v1022, 0
      %v2423 = vsel %vm2394, %v1023, 0
      %v2425 = vsel %vm2394, %v1024, 0
      %v2427 = vsel %vm2394, %v1025, 0
      %v2429 = vsel %vm2394, %v1026, 0
      %v2431 = vsel %vm2394, %v1027, 0
      %v2433 = vsel %vm2394, %v1028, 0
      %v2435 = vsel %vm2394, %v1029, 0
      %v2437 = vsel %vm2394, %v1030, 0
      %v2439 = vsel %vm2394, %v1031, 0
      %v2441 = vsel %vm2394, %v1032, 0
      %v2443 = vsel %vm2394, %v1033, 0
      %v2445 = vsel %vm2394, %v1034, 0
      %v2447 = vsel %vm2394, %v1035, 0
      %v2449 = vsel %vm2394, %v1036, 0
      %v2451 = vsel %vm2394, %v1037, 0
      %v2453 = vsel %vm2394, %v1038, 0
      %v2455 = vsel %vm2394, %v1039, 0
      %v2457 = vsel %vm2394, %v1040, 0
      %vm2459 = vcmask 1043456
      %v2461 = vsel %vm2459, %v959, 0
      %2463 = vmatpush.msra.mxu0 0.0
      %2464 = vmatpush.msra.mxu0 0.0
      %2465 = vmatpush.msra.mxu0 0.0
      %2466 = vmatpush.msra.mxu0 0.0
      %2467 = vmatpush.msra.mxu0 0.0
      %2468 = vmatpush.msra.mxu0 0.0
      %2469 = vmatpush.msra.mxu0 0.0
      %2470 = vmatpush.msra.mxu0 0.0
      %2471 = vmatpush.msra.mxu0 0.0
      %2472 = vmatpush.msra.mxu0 0.0
      %2473 = vmatpush.msra.mxu0 0.0
      %2474 = vmatpush.msra.mxu0 0.0
      %2475 = vmatpush.msra.mxu0 0.0
      %2476 = vmatpush.msra.mxu0 0.0
      %2477 = vmatpush.msra.mxu0 0.0
      %2478 = vmatpush.msra.mxu0 %v2461
      %2479 = vmatmul.f32.gmra.mxu0 %v2395
      %v2480 = vpop.f32.mrf.mxu0
      %v2481 = vadd.f32 0.0, %v2480
      %2482 = vmatmul.f32.gmra.mxu0 %v2397
      %v2483 = vpop.f32.mrf.mxu0
      %v2484 = vadd.f32 0.0, %v2483
      %2485 = vmatmul.f32.gmra.mxu0 %v2399
      %v2486 = vpop.f32.mrf.mxu0
      %v2487 = vadd.f32 0.0, %v2486
      %2488 = vmatmul.f32.gmra.mxu0 %v2401
      %v2489 = vpop.f32.mrf.mxu0
      %v2490 = vadd.f32 0.0, %v2489
      %2491 = vmatmul.f32.gmra.mxu0 %v2403
      %v2492 = vpop.f32.mrf.mxu0
      %v2493 = vadd.f32 0.0, %v2492
      %2494 = vmatmul.f32.gmra.mxu0 %v2405
      %v2495 = vpop.f32.mrf.mxu0
      %v2496 = vadd.f32 0.0, %v2495
      %2497 = vmatmul.f32.gmra.mxu0 %v2407
      %v2498 = vpop.f32.mrf.mxu0
      %v2499 = vadd.f32 0.0, %v2498
      %2500 = vmatmul.f32.gmra.mxu0 %v2409
      %v2501 = vpop.f32.mrf.mxu0
      %v2502 = vadd.f32 0.0, %v2501
      %2503 = vmatmul.f32.gmra.mxu0 %v2411
      %v2504 = vpop.f32.mrf.mxu0
      %v2505 = vadd.f32 0.0, %v2504
      %2506 = vmatmul.f32.gmra.mxu0 %v2413
      %v2507 = vpop.f32.mrf.mxu0
      %v2508 = vadd.f32 0.0, %v2507
      %2509 = vmatmul.f32.gmra.mxu0 %v2415
      %v2510 = vpop.f32.mrf.mxu0
      %v2511 = vadd.f32 0.0, %v2510
      %2512 = vmatmul.f32.gmra.mxu0 %v2417
      %v2513 = vpop.f32.mrf.mxu0
      %v2514 = vadd.f32 0.0, %v2513
      %2515 = vmatmul.f32.gmra.mxu0 %v2419
      %v2516 = vpop.f32.mrf.mxu0
      %v2517 = vadd.f32 0.0, %v2516
      %2518 = vmatmul.f32.gmra.mxu0 %v2421
      %v2519 = vpop.f32.mrf.mxu0
      %v2520 = vadd.f32 0.0, %v2519
      %2521 = vmatmul.f32.gmra.mxu0 %v2423
      %v2522 = vpop.f32.mrf.mxu0
      %v2523 = vadd.f32 0.0, %v2522
      %2524 = vmatmul.f32.gmra.mxu0 %v2425
      %v2525 = vpop.f32.mrf.mxu0
      %v2526 = vadd.f32 0.0, %v2525
      %2527 = vmatmul.f32.gmra.mxu0 %v2427
      %v2528 = vpop.f32.mrf.mxu0
      %v2529 = vadd.f32 0.0, %v2528
      %2530 = vmatmul.f32.gmra.mxu0 %v2429
      %v2531 = vpop.f32.mrf.mxu0
      %v2532 = vadd.f32 0.0, %v2531
      %2533 = vmatmul.f32.gmra.mxu0 %v2431
      %v2534 = vpop.f32.mrf.mxu0
      %v2535 = vadd.f32 0.0, %v2534
      %2536 = vmatmul.f32.gmra.mxu0 %v2433
      %v2537 = vpop.f32.mrf.mxu0
      %v2538 = vadd.f32 0.0, %v2537
      %2539 = vmatmul.f32.gmra.mxu0 %v2435
      %v2540 = vpop.f32.mrf.mxu0
      %v2541 = vadd.f32 0.0, %v2540
      %2542 = vmatmul.f32.gmra.mxu0 %v2437
      %v2543 = vpop.f32.mrf.mxu0
      %v2544 = vadd.f32 0.0, %v2543
      %2545 = vmatmul.f32.gmra.mxu0 %v2439
      %v2546 = vpop.f32.mrf.mxu0
      %v2547 = vadd.f32 0.0, %v2546
      %2548 = vmatmul.f32.gmra.mxu0 %v2441
      %v2549 = vpop.f32.mrf.mxu0
      %v2550 = vadd.f32 0.0, %v2549
      %2551 = vmatmul.f32.gmra.mxu0 %v2443
      %v2552 = vpop.f32.mrf.mxu0
      %v2553 = vadd.f32 0.0, %v2552
      %2554 = vmatmul.f32.gmra.mxu0 %v2445
      %v2555 = vpop.f32.mrf.mxu0
      %v2556 = vadd.f32 0.0, %v2555
      %2557 = vmatmul.f32.gmra.mxu0 %v2447
      %v2558 = vpop.f32.mrf.mxu0
      %v2559 = vadd.f32 0.0, %v2558
      %2560 = vmatmul.f32.gmra.mxu0 %v2449
      %v2561 = vpop.f32.mrf.mxu0
      %v2562 = vadd.f32 0.0, %v2561
      %2563 = vmatmul.f32.gmra.mxu0 %v2451
      %v2564 = vpop.f32.mrf.mxu0
      %v2565 = vadd.f32 0.0, %v2564
      %2566 = vmatmul.f32.gmra.mxu0 %v2453
      %v2567 = vpop.f32.mrf.mxu0
      %v2568 = vadd.f32 0.0, %v2567
      %2569 = vmatmul.f32.gmra.mxu0 %v2455
      %v2570 = vpop.f32.mrf.mxu0
      %v2571 = vadd.f32 0.0, %v2570
      %2572 = vmatmul.f32.gmra.mxu0 %v2457
      %v2573 = vpop.f32.mrf.mxu0
      %v2574 = vadd.f32 0.0, %v2573
      %2575 = vdwg.mxu0
      %v2577 = vperm.slane %v960, 0
      %v2579 = vmul.f32 %v2481, %v2577
      %v2580 = vmul.f32 %v2484, %v2577
      %v2581 = vmul.f32 %v2487, %v2577
      %v2582 = vmul.f32 %v2490, %v2577
      %v2583 = vmul.f32 %v2493, %v2577
      %v2584 = vmul.f32 %v2496, %v2577
      %v2585 = vmul.f32 %v2499, %v2577
      %v2586 = vmul.f32 %v2502, %v2577
      %v2587 = vmul.f32 %v2505, %v2577
      %v2588 = vmul.f32 %v2508, %v2577
      %v2589 = vmul.f32 %v2511, %v2577
      %v2590 = vmul.f32 %v2514, %v2577
      %v2591 = vmul.f32 %v2517, %v2577
      %v2592 = vmul.f32 %v2520, %v2577
      %v2593 = vmul.f32 %v2523, %v2577
      %v2594 = vmul.f32 %v2526, %v2577
      %v2595 = vmul.f32 %v2529, %v2577
      %v2596 = vmul.f32 %v2532, %v2577
      %v2597 = vmul.f32 %v2535, %v2577
      %v2598 = vmul.f32 %v2538, %v2577
      %v2599 = vmul.f32 %v2541, %v2577
      %v2600 = vmul.f32 %v2544, %v2577
      %v2601 = vmul.f32 %v2547, %v2577
      %v2602 = vmul.f32 %v2550, %v2577
      %v2603 = vmul.f32 %v2553, %v2577
      %v2604 = vmul.f32 %v2556, %v2577
      %v2605 = vmul.f32 %v2559, %v2577
      %v2606 = vmul.f32 %v2562, %v2577
      %v2607 = vmul.f32 %v2565, %v2577
      %v2608 = vmul.f32 %v2568, %v2577
      %v2609 = vmul.f32 %v2571, %v2577
      %v2610 = vmul.f32 %v2574, %v2577
      %v2612 = vperm.slane %v961, 0
      %v2614 = vadd.f32 %v2579, %v2612
      %v2615 = vadd.f32 %v2580, %v2612
      %v2616 = vadd.f32 %v2581, %v2612
      %v2617 = vadd.f32 %v2582, %v2612
      %v2618 = vadd.f32 %v2583, %v2612
      %v2619 = vadd.f32 %v2584, %v2612
      %v2620 = vadd.f32 %v2585, %v2612
      %v2621 = vadd.f32 %v2586, %v2612
      %v2622 = vadd.f32 %v2587, %v2612
      %v2623 = vadd.f32 %v2588, %v2612
      %v2624 = vadd.f32 %v2589, %v2612
      %v2625 = vadd.f32 %v2590, %v2612
      %v2626 = vadd.f32 %v2591, %v2612
      %v2627 = vadd.f32 %v2592, %v2612
      %v2628 = vadd.f32 %v2593, %v2612
      %v2629 = vadd.f32 %v2594, %v2612
      %v2630 = vadd.f32 %v2595, %v2612
      %v2631 = vadd.f32 %v2596, %v2612
      %v2632 = vadd.f32 %v2597, %v2612
      %v2633 = vadd.f32 %v2598, %v2612
      %v2634 = vadd.f32 %v2599, %v2612
      %v2635 = vadd.f32 %v2600, %v2612
      %v2636 = vadd.f32 %v2601, %v2612
      %v2637 = vadd.f32 %v2602, %v2612
      %v2638 = vadd.f32 %v2603, %v2612
      %v2639 = vadd.f32 %v2604, %v2612
      %v2640 = vadd.f32 %v2605, %v2612
      %v2641 = vadd.f32 %v2606, %v2612
      %v2642 = vadd.f32 %v2607, %v2612
      %v2643 = vadd.f32 %v2608, %v2612
      %v2644 = vadd.f32 %v2609, %v2612
      %v2645 = vadd.f32 %v2610, %v2612
      %v2646 = vadd.f32 %v2614, %v1751
      %v2647 = vadd.f32 %v2615, %v1752
      %v2648 = vadd.f32 %v2616, %v1753
      %v2649 = vadd.f32 %v2617, %v1754
      %v2650 = vadd.f32 %v2618, %v1755
      %v2651 = vadd.f32 %v2619, %v1756
      %v2652 = vadd.f32 %v2620, %v1757
      %v2653 = vadd.f32 %v2621, %v1758
      %v2654 = vadd.f32 %v2622, %v1759
      %v2655 = vadd.f32 %v2623, %v1760
      %v2656 = vadd.f32 %v2624, %v1761
      %v2657 = vadd.f32 %v2625, %v1762
      %v2658 = vadd.f32 %v2626, %v1763
      %v2659 = vadd.f32 %v2627, %v1764
      %v2660 = vadd.f32 %v2628, %v1765
      %v2661 = vadd.f32 %v2629, %v1766
      %v2662 = vadd.f32 %v2630, %v1767
      %v2663 = vadd.f32 %v2631, %v1768
      %v2664 = vadd.f32 %v2632, %v1769
      %v2665 = vadd.f32 %v2633, %v1770
      %v2666 = vadd.f32 %v2634, %v1771
      %v2667 = vadd.f32 %v2635, %v1772
      %v2668 = vadd.f32 %v2636, %v1773
      %v2669 = vadd.f32 %v2637, %v1774
      %v2670 = vadd.f32 %v2638, %v1775
      %v2671 = vadd.f32 %v2639, %v1776
      %v2672 = vadd.f32 %v2640, %v1777
      %v2673 = vadd.f32 %v2641, %v1778
      %v2674 = vadd.f32 %v2642, %v1779
      %v2675 = vadd.f32 %v2643, %v1780
      %v2676 = vadd.f32 %v2644, %v1781
      %v2677 = vadd.f32 %v2645, %v1782
      %v2678 = vmax.f32 %v2646, 0.0
      %v2679 = vmax.f32 %v2647, 0.0
      %v2680 = vmax.f32 %v2648, 0.0
      %v2681 = vmax.f32 %v2649, 0.0
      %v2682 = vmax.f32 %v2650, 0.0
      %v2683 = vmax.f32 %v2651, 0.0
      %v2684 = vmax.f32 %v2652, 0.0
      %v2685 = vmax.f32 %v2653, 0.0
      %v2686 = vmax.f32 %v2654, 0.0
      %v2687 = vmax.f32 %v2655, 0.0
      %v2688 = vmax.f32 %v2656, 0.0
      %v2689 = vmax.f32 %v2657, 0.0
      %v2690 = vmax.f32 %v2658, 0.0
      %v2691 = vmax.f32 %v2659, 0.0
      %v2692 = vmax.f32 %v2660, 0.0
      %v2693 = vmax.f32 %v2661, 0.0
      %v2694 = vmax.f32 %v2662, 0.0
      %v2695 = vmax.f32 %v2663, 0.0
      %v2696 = vmax.f32 %v2664, 0.0
      %v2697 = vmax.f32 %v2665, 0.0
      %v2698 = vmax.f32 %v2666, 0.0
      %v2699 = vmax.f32 %v2667, 0.0
      %v2700 = vmax.f32 %v2668, 0.0
      %v2701 = vmax.f32 %v2669, 0.0
      %v2702 = vmax.f32 %v2670, 0.0
      %v2703 = vmax.f32 %v2671, 0.0
      %v2704 = vmax.f32 %v2672, 0.0
      %v2705 = vmax.f32 %v2673, 0.0
      %v2706 = vmax.f32 %v2674, 0.0
      %v2707 = vmax.f32 %v2675, 0.0
      %v2708 = vmax.f32 %v2676, 0.0
      %v2709 = vmax.f32 %v2677, 0.0
      %vm2742 = vcmask 1041408
      %v2743 = vrot.slane %v2362, 6
      %v2744 = vrot.slane %v2363, 6
      %v2745 = vsel %vm2742, %v2743, %v2744
      %v2746 = vrot.slane %v2364, 6
      %v2747 = vrot.slane %v2365, 6
      %v2748 = vsel %vm2742, %v2746, %v2747
      %v2749 = vrot.slane %v2366, 6
      %v2750 = vrot.slane %v2367, 6
      %v2751 = vsel %vm2742, %v2749, %v2750
      %v2752 = vrot.slane %v2368, 6
      %v2753 = vrot.slane %v2369, 6
      %v2754 = vsel %vm2742, %v2752, %v2753
      %v2755 = vrot.slane %v2370, 6
      %v2756 = vrot.slane %v2371, 6
      %v2757 = vsel %vm2742, %v2755, %v2756
      %v2758 = vrot.slane %v2372, 6
      %v2759 = vrot.slane %v2373, 6
      %v2760 = vsel %vm2742, %v2758, %v2759
      %v2761 = vrot.slane %v2374, 6
      %v2762 = vrot.slane %v2375, 6
      %v2763 = vsel %vm2742, %v2761, %v2762
      %v2764 = vrot.slane %v2376, 6
      %v2765 = vrot.slane %v2377, 6
      %v2766 = vsel %vm2742, %v2764, %v2765
      %v2767 = vrot.slane %v2378, 6
      %v2768 = vrot.slane %v2379, 6
      %v2769 = vsel %vm2742, %v2767, %v2768
      %v2770 = vrot.slane %v2380, 6
      %v2771 = vrot.slane %v2381, 6
      %v2772 = vsel %vm2742, %v2770, %v2771
      %v2773 = vrot.slane %v2382, 6
      %v2774 = vrot.slane %v2383, 6
      %v2775 = vsel %vm2742, %v2773, %v2774
      %v2776 = vrot.slane %v2384, 6
      %v2777 = vrot.slane %v2385, 6
      %v2778 = vsel %vm2742, %v2776, %v2777
      %v2779 = vrot.slane %v2386, 6
      %v2780 = vrot.slane %v2387, 6
      %v2781 = vsel %vm2742, %v2779, %v2780
      %v2782 = vrot.slane %v2388, 6
      %v2783 = vrot.slane %v2389, 6
      %v2784 = vsel %vm2742, %v2782, %v2783
      %v2785 = vrot.slane %v2390, 6
      %v2786 = vrot.slane %v2391, 6
      %v2787 = vsel %vm2742, %v2785, %v2786
      %v2788 = vrot.slane %v2392, 6
      %v2789 = vrot.slane %v2393, 6
      %v2790 = vsel %vm2742, %v2788, %v2789
      %v2823 = vsel %vm2742, 0.0, %v2743
      %v2824 = vsel %vm2742, 0.0, %v2746
      %v2825 = vsel %vm2742, 0.0, %v2749
      %v2826 = vsel %vm2742, 0.0, %v2752
      %v2827 = vsel %vm2742, 0.0, %v2755
      %v2828 = vsel %vm2742, 0.0, %v2758
      %v2829 = vsel %vm2742, 0.0, %v2761
      %v2830 = vsel %vm2742, 0.0, %v2764
      %v2831 = vsel %vm2742, 0.0, %v2767
      %v2832 = vsel %vm2742, 0.0, %v2770
      %v2833 = vsel %vm2742, 0.0, %v2773
      %v2834 = vsel %vm2742, 0.0, %v2776
      %v2835 = vsel %vm2742, 0.0, %v2779
      %v2836 = vsel %vm2742, 0.0, %v2782
      %v2837 = vsel %vm2742, 0.0, %v2785
      %v2838 = vsel %vm2742, 0.0, %v2788
      %v2839 = vsel %vm2742, %v2744, 0.0
      %v2840 = vsel %vm2742, %v2747, 0.0
      %v2841 = vsel %vm2742, %v2750, 0.0
      %v2842 = vsel %vm2742, %v2753, 0.0
      %v2843 = vsel %vm2742, %v2756, 0.0
      %v2844 = vsel %vm2742, %v2759, 0.0
      %v2845 = vsel %vm2742, %v2762, 0.0
      %v2846 = vsel %vm2742, %v2765, 0.0
      %v2847 = vsel %vm2742, %v2768, 0.0
      %v2848 = vsel %vm2742, %v2771, 0.0
      %v2849 = vsel %vm2742, %v2774, 0.0
      %v2850 = vsel %vm2742, %v2777, 0.0
      %v2851 = vsel %vm2742, %v2780, 0.0
      %v2852 = vsel %vm2742, %v2783, 0.0
      %v2853 = vsel %vm2742, %v2786, 0.0
      %v2854 = vsel %vm2742, %v2789, 0.0
      %v2887 = vrot.slane %v2823, 1
      %v2888 = vrot.slane %v2745, 1
      %v2889 = vsel %vm1263, %v2887, %v2888
      %v2890 = vrot.slane %v2839, 1
      %v2891 = vsel %vm1263, %v2888, %v2890
      %v2892 = vrot.slane %v2824, 1
      %v2893 = vrot.slane %v2748, 1
      %v2894 = vsel %vm1263, %v2892, %v2893
      %v2895 = vrot.slane %v2840, 1
      %v2896 = vsel %vm1263, %v2893, %v2895
      %v2897 = vrot.slane %v2825, 1
      %v2898 = vrot.slane %v2751, 1
      %v2899 = vsel %vm1263, %v2897, %v2898
      %v2900 = vrot.slane %v2841, 1
      %v2901 = vsel %vm1263, %v2898, %v2900
      %v2902 = vrot.slane %v2826, 1
      %v2903 = vrot.slane %v2754, 1
      %v2904 = vsel %vm1263, %v2902, %v2903
      %v2905 = vrot.slane %v2842, 1
      %v2906 = vsel %vm1263, %v2903, %v2905
      %v2907 = vrot.slane %v2827, 1
      %v2908 = vrot.slane %v2757, 1
      %v2909 = vsel %vm1263, %v2907, %v2908
      %v2910 = vrot.slane %v2843, 1
      %v2911 = vsel %vm1263, %v2908, %v2910
      %v2912 = vrot.slane %v2828, 1
      %v2913 = vrot.slane %v2760, 1
      %v2914 = vsel %vm1263, %v2912, %v2913
      %v2915 = vrot.slane %v2844, 1
      %v2916 = vsel %vm1263, %v2913, %v2915
      %v2917 = vrot.slane %v2829, 1
      %v2918 = vrot.slane %v2763, 1
      %v2919 = vsel %vm1263, %v2917, %v2918
      %v2920 = vrot.slane %v2845, 1
      %v2921 = vsel %vm1263, %v2918, %v2920
      %v2922 = vrot.slane %v2830, 1
      %v2923 = vrot.slane %v2766, 1
      %v2924 = vsel %vm1263, %v2922, %v2923
      %v2925 = vrot.slane %v2846, 1
      %v2926 = vsel %vm1263, %v2923, %v2925
      %v2927 = vrot.slane %v2831, 1
      %v2928 = vrot.slane %v2769, 1
      %v2929 = vsel %vm1263, %v2927, %v2928
      %v2930 = vrot.slane %v2847, 1
      %v2931 = vsel %vm1263, %v2928, %v2930
      %v2932 = vrot.slane %v2832, 1
      %v2933 = vrot.slane %v2772, 1
      %v2934 = vsel %vm1263, %v2932, %v2933
      %v2935 = vrot.slane %v2848, 1
      %v2936 = vsel %vm1263, %v2933, %v2935
      %v2937 = vrot.slane %v2833, 1
      %v2938 = vrot.slane %v2775, 1
      %v2939 = vsel %vm1263, %v2937, %v2938
      %v2940 = vrot.slane %v2849, 1
      %v2941 = vsel %vm1263, %v2938, %v2940
      %v2942 = vrot.slane %v2834, 1
      %v2943 = vrot.slane %v2778, 1
      %v2944 = vsel %vm1263, %v2942, %v2943
      %v2945 = vrot.slane %v2850, 1
      %v2946 = vsel %vm1263, %v2943, %v2945
      %v2947 = vrot.slane %v2835, 1
      %v2948 = vrot.slane %v2781, 1
      %v2949 = vsel %vm1263, %v2947, %v2948
      %v2950 = vrot.slane %v2851, 1
      %v2951 = vsel %vm1263, %v2948, %v2950
      %v2952 = vrot.slane %v2836, 1
      %v2953 = vrot.slane %v2784, 1
      %v2954 = vsel %vm1263, %v2952, %v2953
      %v2955 = vrot.slane %v2852, 1
      %v2956 = vsel %vm1263, %v2953, %v2955
      %v2957 = vrot.slane %v2837, 1
      %v2958 = vrot.slane %v2787, 1
      %v2959 = vsel %vm1263, %v2957, %v2958
      %v2960 = vrot.slane %v2853, 1
      %v2961 = vsel %vm1263, %v2958, %v2960
      %v2962 = vrot.slane %v2838, 1
      %v2963 = vrot.slane %v2790, 1
      %v2964 = vsel %vm1263, %v2962, %v2963
      %v2965 = vrot.slane %v2854, 1
      %v2966 = vsel %vm1263, %v2963, %v2965
      %v2967 = vsel %vm2394, %v2889, 0
      %v2969 = vsel %vm2394, %v2891, 0
      %v2971 = vsel %vm2394, %v2894, 0
      %v2973 = vsel %vm2394, %v2896, 0
      %v2975 = vsel %vm2394, %v2899, 0
      %v2977 = vsel %vm2394, %v2901, 0
      %v2979 = vsel %vm2394, %v2904, 0
      %v2981 = vsel %vm2394, %v2906, 0
      %v2983 = vsel %vm2394, %v2909, 0
      %v2985 = vsel %vm2394, %v2911, 0
      %v2987 = vsel %vm2394, %v2914, 0
      %v2989 = vsel %vm2394, %v2916, 0
      %v2991 = vsel %vm2394, %v2919, 0
      %v2993 = vsel %vm2394, %v2921, 0
      %v2995 = vsel %vm2394, %v2924, 0
      %v2997 = vsel %vm2394, %v2926, 0
      %v2999 = vsel %vm2394, %v2929, 0
      %v3001 = vsel %vm2394, %v2931, 0
      %v3003 = vsel %vm2394, %v2934, 0
      %v3005 = vsel %vm2394, %v2936, 0
      %v3007 = vsel %vm2394, %v2939, 0
      %v3009 = vsel %vm2394, %v2941, 0
      %v3011 = vsel %vm2394, %v2944, 0
      %v3013 = vsel %vm2394, %v2946, 0
      %v3015 = vsel %vm2394, %v2949, 0
      %v3017 = vsel %vm2394, %v2951, 0
      %v3019 = vsel %vm2394, %v2954, 0
      %v3021 = vsel %vm2394, %v2956, 0
      %v3023 = vsel %vm2394, %v2959, 0
      %v3025 = vsel %vm2394, %v2961, 0
      %v3027 = vsel %vm2394, %v2964, 0
      %v3029 = vsel %vm2394, %v2966, 0
      %v3032 = vsel %vm2459, %v976, 0
      %3034 = vmatpush.msra.mxu0 0.0
      %3035 = vmatpush.msra.mxu0 0.0
      %3036 = vmatpush.msra.mxu0 0.0
      %3037 = vmatpush.msra.mxu0 0.0
      %3038 = vmatpush.msra.mxu0 0.0
      %3039 = vmatpush.msra.mxu0 0.0
      %3040 = vmatpush.msra.mxu0 0.0
      %3041 = vmatpush.msra.mxu0 0.0
      %3042 = vmatpush.msra.mxu0 0.0
      %3043 = vmatpush.msra.mxu0 0.0
      %3044 = vmatpush.msra.mxu0 0.0
      %3045 = vmatpush.msra.mxu0 0.0
      %3046 = vmatpush.msra.mxu0 0.0
      %3047 = vmatpush.msra.mxu0 0.0
      %3048 = vmatpush.msra.mxu0 0.0
      %3049 = vmatpush.msra.mxu0 %v3032
      %3050 = vmatmul.f32.gmra.mxu0 %v2967
      %v3051 = vpop.f32.mrf.mxu0
      %v3052 = vadd.f32 0.0, %v3051
      %3053 = vmatmul.f32.gmra.mxu0 %v2969
      %v3054 = vpop.f32.mrf.mxu0
      %v3055 = vadd.f32 0.0, %v3054
      %3056 = vmatmul.f32.gmra.mxu0 %v2971
      %v3057 = vpop.f32.mrf.mxu0
      %v3058 = vadd.f32 0.0, %v3057
      %3059 = vmatmul.f32.gmra.mxu0 %v2973
      %v3060 = vpop.f32.mrf.mxu0
      %v3061 = vadd.f32 0.0, %v3060
      %3062 = vmatmul.f32.gmra.mxu0 %v2975
      %v3063 = vpop.f32.mrf.mxu0
      %v3064 = vadd.f32 0.0, %v3063
      %3065 = vmatmul.f32.gmra.mxu0 %v2977
      %v3066 = vpop.f32.mrf.mxu0
      %v3067 = vadd.f32 0.0, %v3066
      %3068 = vmatmul.f32.gmra.mxu0 %v2979
      %v3069 = vpop.f32.mrf.mxu0
      %v3070 = vadd.f32 0.0, %v3069
      %3071 = vmatmul.f32.gmra.mxu0 %v2981
      %v3072 = vpop.f32.mrf.mxu0
      %v3073 = vadd.f32 0.0, %v3072
      %3074 = vmatmul.f32.gmra.mxu0 %v2983
      %v3075 = vpop.f32.mrf.mxu0
      %v3076 = vadd.f32 0.0, %v3075
      %3077 = vmatmul.f32.gmra.mxu0 %v2985
      %v3078 = vpop.f32.mrf.mxu0
      %v3079 = vadd.f32 0.0, %v3078
      %3080 = vmatmul.f32.gmra.mxu0 %v2987
      %v3081 = vpop.f32.mrf.mxu0
      %v3082 = vadd.f32 0.0, %v3081
      %3083 = vmatmul.f32.gmra.mxu0 %v2989
      %v3084 = vpop.f32.mrf.mxu0
      %v3085 = vadd.f32 0.0, %v3084
      %3086 = vmatmul.f32.gmra.mxu0 %v2991
      %v3087 = vpop.f32.mrf.mxu0
      %v3088 = vadd.f32 0.0, %v3087
      %3089 = vmatmul.f32.gmra.mxu0 %v2993
      %v3090 = vpop.f32.mrf.mxu0
      %v3091 = vadd.f32 0.0, %v3090
      %3092 = vmatmul.f32.gmra.mxu0 %v2995
      %v3093 = vpop.f32.mrf.mxu0
      %v3094 = vadd.f32 0.0, %v3093
      %3095 = vmatmul.f32.gmra.mxu0 %v2997
      %v3096 = vpop.f32.mrf.mxu0
      %v3097 = vadd.f32 0.0, %v3096
      %3098 = vmatmul.f32.gmra.mxu0 %v2999
      %v3099 = vpop.f32.mrf.mxu0
      %v3100 = vadd.f32 0.0, %v3099
      %3101 = vmatmul.f32.gmra.mxu0 %v3001
      %v3102 = vpop.f32.mrf.mxu0
      %v3103 = vadd.f32 0.0, %v3102
      %3104 = vmatmul.f32.gmra.mxu0 %v3003
      %v3105 = vpop.f32.mrf.mxu0
      %v3106 = vadd.f32 0.0, %v3105
      %3107 = vmatmul.f32.gmra.mxu0 %v3005
      %v3108 = vpop.f32.mrf.mxu0
      %v3109 = vadd.f32 0.0, %v3108
      %3110 = vmatmul.f32.gmra.mxu0 %v3007
      %v3111 = vpop.f32.mrf.mxu0
      %v3112 = vadd.f32 0.0, %v3111
      %3113 = vmatmul.f32.gmra.mxu0 %v3009
      %v3114 = vpop.f32.mrf.mxu0
      %v3115 = vadd.f32 0.0, %v3114
      %3116 = vmatmul.f32.gmra.mxu0 %v3011
      %v3117 = vpop.f32.mrf.mxu0
      %v3118 = vadd.f32 0.0, %v3117
      %3119 = vmatmul.f32.gmra.mxu0 %v3013
      %v3120 = vpop.f32.mrf.mxu0
      %v3121 = vadd.f32 0.0, %v3120
      %3122 = vmatmul.f32.gmra.mxu0 %v3015
      %v3123 = vpop.f32.mrf.mxu0
      %v3124 = vadd.f32 0.0, %v3123
      %3125 = vmatmul.f32.gmra.mxu0 %v3017
      %v3126 = vpop.f32.mrf.mxu0
      %v3127 = vadd.f32 0.0, %v3126
      %3128 = vmatmul.f32.gmra.mxu0 %v3019
      %v3129 = vpop.f32.mrf.mxu0
      %v3130 = vadd.f32 0.0, %v3129
      %3131 = vmatmul.f32.gmra.mxu0 %v3021
      %v3132 = vpop.f32.mrf.mxu0
      %v3133 = vadd.f32 0.0, %v3132
      %3134 = vmatmul.f32.gmra.mxu0 %v3023
      %v3135 = vpop.f32.mrf.mxu0
      %v3136 = vadd.f32 0.0, %v3135
      %3137 = vmatmul.f32.gmra.mxu0 %v3025
      %v3138 = vpop.f32.mrf.mxu0
      %v3139 = vadd.f32 0.0, %v3138
      %3140 = vmatmul.f32.gmra.mxu0 %v3027
      %v3141 = vpop.f32.mrf.mxu0
      %v3142 = vadd.f32 0.0, %v3141
      %3143 = vmatmul.f32.gmra.mxu0 %v3029
      %v3144 = vpop.f32.mrf.mxu0
      %v3145 = vadd.f32 0.0, %v3144
      %3146 = vdwg.mxu0
      %v3147 = vsel %vm2394, %v2823, 0
      %v3149 = vsel %vm2394, %v2745, 0
      %v3151 = vsel %vm2394, %v2824, 0
      %v3153 = vsel %vm2394, %v2748, 0
      %v3155 = vsel %vm2394, %v2825, 0
      %v3157 = vsel %vm2394, %v2751, 0
      %v3159 = vsel %vm2394, %v2826, 0
      %v3161 = vsel %vm2394, %v2754, 0
      %v3163 = vsel %vm2394, %v2827, 0
      %v3165 = vsel %vm2394, %v2757, 0
      %v3167 = vsel %vm2394, %v2828, 0
      %v3169 = vsel %vm2394, %v2760, 0
      %v3171 = vsel %vm2394, %v2829, 0
      %v3173 = vsel %vm2394, %v2763, 0
      %v3175 = vsel %vm2394, %v2830, 0
      %v3177 = vsel %vm2394, %v2766, 0
      %v3179 = vsel %vm2394, %v2831, 0
      %v3181 = vsel %vm2394, %v2769, 0
      %v3183 = vsel %vm2394, %v2832, 0
      %v3185 = vsel %vm2394, %v2772, 0
      %v3187 = vsel %vm2394, %v2833, 0
      %v3189 = vsel %vm2394, %v2775, 0
      %v3191 = vsel %vm2394, %v2834, 0
      %v3193 = vsel %vm2394, %v2778, 0
      %v3195 = vsel %vm2394, %v2835, 0
      %v3197 = vsel %vm2394, %v2781, 0
      %v3199 = vsel %vm2394, %v2836, 0
      %v3201 = vsel %vm2394, %v2784, 0
      %v3203 = vsel %vm2394, %v2837, 0
      %v3205 = vsel %vm2394, %v2787, 0
      %v3207 = vsel %vm2394, %v2838, 0
      %v3209 = vsel %vm2394, %v2790, 0
      %v3212 = vsel %vm2459, %v975, 0
      %3214 = vmatpush.msra.mxu0 0.0
      %3215 = vmatpush.msra.mxu0 0.0
      %3216 = vmatpush.msra.mxu0 0.0
      %3217 = vmatpush.msra.mxu0 0.0
      %3218 = vmatpush.msra.mxu0 0.0
      %3219 = vmatpush.msra.mxu0 0.0
      %3220 = vmatpush.msra.mxu0 0.0
      %3221 = vmatpush.msra.mxu0 0.0
      %3222 = vmatpush.msra.mxu0 0.0
      %3223 = vmatpush.msra.mxu0 0.0
      %3224 = vmatpush.msra.mxu0 0.0
      %3225 = vmatpush.msra.mxu0 0.0
      %3226 = vmatpush.msra.mxu0 0.0
      %3227 = vmatpush.msra.mxu0 0.0
      %3228 = vmatpush.msra.mxu0 0.0
      %3229 = vmatpush.msra.mxu0 %v3212
      %3230 = vmatmul.f32.gmra.mxu0 %v3147
      %v3231 = vpop.f32.mrf.mxu0
      %v3232 = vadd.f32 %v3052, %v3231
      %3233 = vmatmul.f32.gmra.mxu0 %v3149
      %v3234 = vpop.f32.mrf.mxu0
      %v3235 = vadd.f32 %v3055, %v3234
      %3236 = vmatmul.f32.gmra.mxu0 %v3151
      %v3237 = vpop.f32.mrf.mxu0
      %v3238 = vadd.f32 %v3058, %v3237
      %3239 = vmatmul.f32.gmra.mxu0 %v3153
      %v3240 = vpop.f32.mrf.mxu0
      %v3241 = vadd.f32 %v3061, %v3240
      %3242 = vmatmul.f32.gmra.mxu0 %v3155
      %v3243 = vpop.f32.mrf.mxu0
      %v3244 = vadd.f32 %v3064, %v3243
      %3245 = vmatmul.f32.gmra.mxu0 %v3157
      %v3246 = vpop.f32.mrf.mxu0
      %v3247 = vadd.f32 %v3067, %v3246
      %3248 = vmatmul.f32.gmra.mxu0 %v3159
      %v3249 = vpop.f32.mrf.mxu0
      %v3250 = vadd.f32 %v3070, %v3249
      %3251 = vmatmul.f32.gmra.mxu0 %v3161
      %v3252 = vpop.f32.mrf.mxu0
      %v3253 = vadd.f32 %v3073, %v3252
      %3254 = vmatmul.f32.gmra.mxu0 %v3163
      %v3255 = vpop.f32.mrf.mxu0
      %v3256 = vadd.f32 %v3076, %v3255
      %3257 = vmatmul.f32.gmra.mxu0 %v3165
      %v3258 = vpop.f32.mrf.mxu0
      %v3259 = vadd.f32 %v3079, %v3258
      %3260 = vmatmul.f32.gmra.mxu0 %v3167
      %v3261 = vpop.f32.mrf.mxu0
      %v3262 = vadd.f32 %v3082, %v3261
      %3263 = vmatmul.f32.gmra.mxu0 %v3169
      %v3264 = vpop.f32.mrf.mxu0
      %v3265 = vadd.f32 %v3085, %v3264
      %3266 = vmatmul.f32.gmra.mxu0 %v3171
      %v3267 = vpop.f32.mrf.mxu0
      %v3268 = vadd.f32 %v3088, %v3267
      %3269 = vmatmul.f32.gmra.mxu0 %v3173
      %v3270 = vpop.f32.mrf.mxu0
      %v3271 = vadd.f32 %v3091, %v3270
      %3272 = vmatmul.f32.gmra.mxu0 %v3175
      %v3273 = vpop.f32.mrf.mxu0
      %v3274 = vadd.f32 %v3094, %v3273
      %3275 = vmatmul.f32.gmra.mxu0 %v3177
      %v3276 = vpop.f32.mrf.mxu0
      %v3277 = vadd.f32 %v3097, %v3276
      %3278 = vmatmul.f32.gmra.mxu0 %v3179
      %v3279 = vpop.f32.mrf.mxu0
      %v3280 = vadd.f32 %v3100, %v3279
      %3281 = vmatmul.f32.gmra.mxu0 %v3181
      %v3282 = vpop.f32.mrf.mxu0
      %v3283 = vadd.f32 %v3103, %v3282
      %3284 = vmatmul.f32.gmra.mxu0 %v3183
      %v3285 = vpop.f32.mrf.mxu0
      %v3286 = vadd.f32 %v3106, %v3285
      %3287 = vmatmul.f32.gmra.mxu0 %v3185
      %v3288 = vpop.f32.mrf.mxu0
      %v3289 = vadd.f32 %v3109, %v3288
      %3290 = vmatmul.f32.gmra.mxu0 %v3187
      %v3291 = vpop.f32.mrf.mxu0
      %v3292 = vadd.f32 %v3112, %v3291
      %3293 = vmatmul.f32.gmra.mxu0 %v3189
      %v3294 = vpop.f32.mrf.mxu0
      %v3295 = vadd.f32 %v3115, %v3294
      %3296 = vmatmul.f32.gmra.mxu0 %v3191
      %v3297 = vpop.f32.mrf.mxu0
      %v3298 = vadd.f32 %v3118, %v3297
      %3299 = vmatmul.f32.gmra.mxu0 %v3193
      %v3300 = vpop.f32.mrf.mxu0
      %v3301 = vadd.f32 %v3121, %v3300
      %3302 = vmatmul.f32.gmra.mxu0 %v3195
      %v3303 = vpop.f32.mrf.mxu0
      %v3304 = vadd.f32 %v3124, %v3303
      %3305 = vmatmul.f32.gmra.mxu0 %v3197
      %v3306 = vpop.f32.mrf.mxu0
      %v3307 = vadd.f32 %v3127, %v3306
      %3308 = vmatmul.f32.gmra.mxu0 %v3199
      %v3309 = vpop.f32.mrf.mxu0
      %v3310 = vadd.f32 %v3130, %v3309
      %3311 = vmatmul.f32.gmra.mxu0 %v3201
      %v3312 = vpop.f32.mrf.mxu0
      %v3313 = vadd.f32 %v3133, %v3312
      %3314 = vmatmul.f32.gmra.mxu0 %v3203
      %v3315 = vpop.f32.mrf.mxu0
      %v3316 = vadd.f32 %v3136, %v3315
      %3317 = vmatmul.f32.gmra.mxu0 %v3205
      %v3318 = vpop.f32.mrf.mxu0
      %v3319 = vadd.f32 %v3139, %v3318
      %3320 = vmatmul.f32.gmra.mxu0 %v3207
      %v3321 = vpop.f32.mrf.mxu0
      %v3322 = vadd.f32 %v3142, %v3321
      %3323 = vmatmul.f32.gmra.mxu0 %v3209
      %v3324 = vpop.f32.mrf.mxu0
      %v3325 = vadd.f32 %v3145, %v3324
      %3326 = vdwg.mxu0
      %v3327 = vrot.slane %v2823, 2
      %v3328 = vrot.slane %v2745, 2
      %v3329 = vsel %vm1403, %v3327, %v3328
      %v3330 = vrot.slane %v2839, 2
      %v3331 = vsel %vm1403, %v3328, %v3330
      %v3332 = vrot.slane %v2824, 2
      %v3333 = vrot.slane %v2748, 2
      %v3334 = vsel %vm1403, %v3332, %v3333
      %v3335 = vrot.slane %v2840, 2
      %v3336 = vsel %vm1403, %v3333, %v3335
      %v3337 = vrot.slane %v2825, 2
      %v3338 = vrot.slane %v2751, 2
      %v3339 = vsel %vm1403, %v3337, %v3338
      %v3340 = vrot.slane %v2841, 2
      %v3341 = vsel %vm1403, %v3338, %v3340
      %v3342 = vrot.slane %v2826, 2
      %v3343 = vrot.slane %v2754, 2
      %v3344 = vsel %vm1403, %v3342, %v3343
      %v3345 = vrot.slane %v2842, 2
      %v3346 = vsel %vm1403, %v3343, %v3345
      %v3347 = vrot.slane %v2827, 2
      %v3348 = vrot.slane %v2757, 2
      %v3349 = vsel %vm1403, %v3347, %v3348
      %v3350 = vrot.slane %v2843, 2
      %v3351 = vsel %vm1403, %v3348, %v3350
      %v3352 = vrot.slane %v2828, 2
      %v3353 = vrot.slane %v2760, 2
      %v3354 = vsel %vm1403, %v3352, %v3353
      %v3355 = vrot.slane %v2844, 2
      %v3356 = vsel %vm1403, %v3353, %v3355
      %v3357 = vrot.slane %v2829, 2
      %v3358 = vrot.slane %v2763, 2
      %v3359 = vsel %vm1403, %v3357, %v3358
      %v3360 = vrot.slane %v2845, 2
      %v3361 = vsel %vm1403, %v3358, %v3360
      %v3362 = vrot.slane %v2830, 2
      %v3363 = vrot.slane %v2766, 2
      %v3364 = vsel %vm1403, %v3362, %v3363
      %v3365 = vrot.slane %v2846, 2
      %v3366 = vsel %vm1403, %v3363, %v3365
      %v3367 = vrot.slane %v2831, 2
      %v3368 = vrot.slane %v2769, 2
      %v3369 = vsel %vm1403, %v3367, %v3368
      %v3370 = vrot.slane %v2847, 2
      %v3371 = vsel %vm1403, %v3368, %v3370
      %v3372 = vrot.slane %v2832, 2
      %v3373 = vrot.slane %v2772, 2
      %v3374 = vsel %vm1403, %v3372, %v3373
      %v3375 = vrot.slane %v2848, 2
      %v3376 = vsel %vm1403, %v3373, %v3375
      %v3377 = vrot.slane %v2833, 2
      %v3378 = vrot.slane %v2775, 2
      %v3379 = vsel %vm1403, %v3377, %v3378
      %v3380 = vrot.slane %v2849, 2
      %v3381 = vsel %vm1403, %v3378, %v3380
      %v3382 = vrot.slane %v2834, 2
      %v3383 = vrot.slane %v2778, 2
      %v3384 = vsel %vm1403, %v3382, %v3383
      %v3385 = vrot.slane %v2850, 2
      %v3386 = vsel %vm1403, %v3383, %v3385
      %v3387 = vrot.slane %v2835, 2
      %v3388 = vrot.slane %v2781, 2
      %v3389 = vsel %vm1403, %v3387, %v3388
      %v3390 = vrot.slane %v2851, 2
      %v3391 = vsel %vm1403, %v3388, %v3390
      %v3392 = vrot.slane %v2836, 2
      %v3393 = vrot.slane %v2784, 2
      %v3394 = vsel %vm1403, %v3392, %v3393
      %v3395 = vrot.slane %v2852, 2
      %v3396 = vsel %vm1403, %v3393, %v3395
      %v3397 = vrot.slane %v2837, 2
      %v3398 = vrot.slane %v2787, 2
      %v3399 = vsel %vm1403, %v3397, %v3398
      %v3400 = vrot.slane %v2853, 2
      %v3401 = vsel %vm1403, %v3398, %v3400
      %v3402 = vrot.slane %v2838, 2
      %v3403 = vrot.slane %v2790, 2
      %v3404 = vsel %vm1403, %v3402, %v3403
      %v3405 = vrot.slane %v2854, 2
      %v3406 = vsel %vm1403, %v3403, %v3405
      %v3407 = vsel %vm2394, %v3329, 0
      %v3409 = vsel %vm2394, %v3331, 0
      %v3411 = vsel %vm2394, %v3334, 0
      %v3413 = vsel %vm2394, %v3336, 0
      %v3415 = vsel %vm2394, %v3339, 0
      %v3417 = vsel %vm2394, %v3341, 0
      %v3419 = vsel %vm2394, %v3344, 0
      %v3421 = vsel %vm2394, %v3346, 0
      %v3423 = vsel %vm2394, %v3349, 0
      %v3425 = vsel %vm2394, %v3351, 0
      %v3427 = vsel %vm2394, %v3354, 0
      %v3429 = vsel %vm2394, %v3356, 0
      %v3431 = vsel %vm2394, %v3359, 0
      %v3433 = vsel %vm2394, %v3361, 0
      %v3435 = vsel %vm2394, %v3364, 0
      %v3437 = vsel %vm2394, %v3366, 0
      %v3439 = vsel %vm2394, %v3369, 0
      %v3441 = vsel %vm2394, %v3371, 0
      %v3443 = vsel %vm2394, %v3374, 0
      %v3445 = vsel %vm2394, %v3376, 0
      %v3447 = vsel %vm2394, %v3379, 0
      %v3449 = vsel %vm2394, %v3381, 0
      %v3451 = vsel %vm2394, %v3384, 0
      %v3453 = vsel %vm2394, %v3386, 0
      %v3455 = vsel %vm2394, %v3389, 0
      %v3457 = vsel %vm2394, %v3391, 0
      %v3459 = vsel %vm2394, %v3394, 0
      %v3461 = vsel %vm2394, %v3396, 0
      %v3463 = vsel %vm2394, %v3399, 0
      %v3465 = vsel %vm2394, %v3401, 0
      %v3467 = vsel %vm2394, %v3404, 0
      %v3469 = vsel %vm2394, %v3406, 0
      %v3472 = vsel %vm2459, %v977, 0
      %3474 = vmatpush.msra.mxu0 0.0
      %3475 = vmatpush.msra.mxu0 0.0
      %3476 = vmatpush.msra.mxu0 0.0
      %3477 = vmatpush.msra.mxu0 0.0
      %3478 = vmatpush.msra.mxu0 0.0
      %3479 = vmatpush.msra.mxu0 0.0
      %3480 = vmatpush.msra.mxu0 0.0
      %3481 = vmatpush.msra.mxu0 0.0
      %3482 = vmatpush.msra.mxu0 0.0
      %3483 = vmatpush.msra.mxu0 0.0
      %3484 = vmatpush.msra.mxu0 0.0
      %3485 = vmatpush.msra.mxu0 0.0
      %3486 = vmatpush.msra.mxu0 0.0
      %3487 = vmatpush.msra.mxu0 0.0
      %3488 = vmatpush.msra.mxu0 0.0
      %3489 = vmatpush.msra.mxu0 %v3472
      %3490 = vmatmul.f32.gmra.mxu0 %v3407
      %v3491 = vpop.f32.mrf.mxu0
      %v3492 = vadd.f32 0.0, %v3491
      %3493 = vmatmul.f32.gmra.mxu0 %v3409
      %v3494 = vpop.f32.mrf.mxu0
      %v3495 = vadd.f32 0.0, %v3494
      %3496 = vmatmul.f32.gmra.mxu0 %v3411
      %v3497 = vpop.f32.mrf.mxu0
      %v3498 = vadd.f32 0.0, %v3497
      %3499 = vmatmul.f32.gmra.mxu0 %v3413
      %v3500 = vpop.f32.mrf.mxu0
      %v3501 = vadd.f32 0.0, %v3500
      %3502 = vmatmul.f32.gmra.mxu0 %v3415
      %v3503 = vpop.f32.mrf.mxu0
      %v3504 = vadd.f32 0.0, %v3503
      %3505 = vmatmul.f32.gmra.mxu0 %v3417
      %v3506 = vpop.f32.mrf.mxu0
      %v3507 = vadd.f32 0.0, %v3506
      %3508 = vmatmul.f32.gmra.mxu0 %v3419
      %v3509 = vpop.f32.mrf.mxu0
      %v3510 = vadd.f32 0.0, %v3509
      %3511 = vmatmul.f32.gmra.mxu0 %v3421
      %v3512 = vpop.f32.mrf.mxu0
      %v3513 = vadd.f32 0.0, %v3512
      %3514 = vmatmul.f32.gmra.mxu0 %v3423
      %v3515 = vpop.f32.mrf.mxu0
      %v3516 = vadd.f32 0.0, %v3515
      %3517 = vmatmul.f32.gmra.mxu0 %v3425
      %v3518 = vpop.f32.mrf.mxu0
      %v3519 = vadd.f32 0.0, %v3518
      %3520 = vmatmul.f32.gmra.mxu0 %v3427
      %v3521 = vpop.f32.mrf.mxu0
      %v3522 = vadd.f32 0.0, %v3521
      %3523 = vmatmul.f32.gmra.mxu0 %v3429
      %v3524 = vpop.f32.mrf.mxu0
      %v3525 = vadd.f32 0.0, %v3524
      %3526 = vmatmul.f32.gmra.mxu0 %v3431
      %v3527 = vpop.f32.mrf.mxu0
      %v3528 = vadd.f32 0.0, %v3527
      %3529 = vmatmul.f32.gmra.mxu0 %v3433
      %v3530 = vpop.f32.mrf.mxu0
      %v3531 = vadd.f32 0.0, %v3530
      %3532 = vmatmul.f32.gmra.mxu0 %v3435
      %v3533 = vpop.f32.mrf.mxu0
      %v3534 = vadd.f32 0.0, %v3533
      %3535 = vmatmul.f32.gmra.mxu0 %v3437
      %v3536 = vpop.f32.mrf.mxu0
      %v3537 = vadd.f32 0.0, %v3536
      %3538 = vmatmul.f32.gmra.mxu0 %v3439
      %v3539 = vpop.f32.mrf.mxu0
      %v3540 = vadd.f32 0.0, %v3539
      %3541 = vmatmul.f32.gmra.mxu0 %v3441
      %v3542 = vpop.f32.mrf.mxu0
      %v3543 = vadd.f32 0.0, %v3542
      %3544 = vmatmul.f32.gmra.mxu0 %v3443
      %v3545 = vpop.f32.mrf.mxu0
      %v3546 = vadd.f32 0.0, %v3545
      %3547 = vmatmul.f32.gmra.mxu0 %v3445
      %v3548 = vpop.f32.mrf.mxu0
      %v3549 = vadd.f32 0.0, %v3548
      %3550 = vmatmul.f32.gmra.mxu0 %v3447
      %v3551 = vpop.f32.mrf.mxu0
      %v3552 = vadd.f32 0.0, %v3551
      %3553 = vmatmul.f32.gmra.mxu0 %v3449
      %v3554 = vpop.f32.mrf.mxu0
      %v3555 = vadd.f32 0.0, %v3554
      %3556 = vmatmul.f32.gmra.mxu0 %v3451
      %v3557 = vpop.f32.mrf.mxu0
      %v3558 = vadd.f32 0.0, %v3557
      %3559 = vmatmul.f32.gmra.mxu0 %v3453
      %v3560 = vpop.f32.mrf.mxu0
      %v3561 = vadd.f32 0.0, %v3560
      %3562 = vmatmul.f32.gmra.mxu0 %v3455
      %v3563 = vpop.f32.mrf.mxu0
      %v3564 = vadd.f32 0.0, %v3563
      %3565 = vmatmul.f32.gmra.mxu0 %v3457
      %v3566 = vpop.f32.mrf.mxu0
      %v3567 = vadd.f32 0.0, %v3566
      %3568 = vmatmul.f32.gmra.mxu0 %v3459
      %v3569 = vpop.f32.mrf.mxu0
      %v3570 = vadd.f32 0.0, %v3569
      %3571 = vmatmul.f32.gmra.mxu0 %v3461
      %v3572 = vpop.f32.mrf.mxu0
      %v3573 = vadd.f32 0.0, %v3572
      %3574 = vmatmul.f32.gmra.mxu0 %v3463
      %v3575 = vpop.f32.mrf.mxu0
      %v3576 = vadd.f32 0.0, %v3575
      %3577 = vmatmul.f32.gmra.mxu0 %v3465
      %v3578 = vpop.f32.mrf.mxu0
      %v3579 = vadd.f32 0.0, %v3578
      %3580 = vmatmul.f32.gmra.mxu0 %v3467
      %v3581 = vpop.f32.mrf.mxu0
      %v3582 = vadd.f32 0.0, %v3581
      %3583 = vmatmul.f32.gmra.mxu0 %v3469
      %v3584 = vpop.f32.mrf.mxu0
      %v3585 = vadd.f32 0.0, %v3584
      %3586 = vdwg.mxu0
      %v3587 = vadd.f32 %v3232, %v3492
      %v3588 = vadd.f32 %v3235, %v3495
      %v3589 = vadd.f32 %v3238, %v3498
      %v3590 = vadd.f32 %v3241, %v3501
      %v3591 = vadd.f32 %v3244, %v3504
      %v3592 = vadd.f32 %v3247, %v3507
      %v3593 = vadd.f32 %v3250, %v3510
      %v3594 = vadd.f32 %v3253, %v3513
      %v3595 = vadd.f32 %v3256, %v3516
      %v3596 = vadd.f32 %v3259, %v3519
      %v3597 = vadd.f32 %v3262, %v3522
      %v3598 = vadd.f32 %v3265, %v3525
      %v3599 = vadd.f32 %v3268, %v3528
      %v3600 = vadd.f32 %v3271, %v3531
      %v3601 = vadd.f32 %v3274, %v3534
      %v3602 = vadd.f32 %v3277, %v3537
      %v3603 = vadd.f32 %v3280, %v3540
      %v3604 = vadd.f32 %v3283, %v3543
      %v3605 = vadd.f32 %v3286, %v3546
      %v3606 = vadd.f32 %v3289, %v3549
      %v3607 = vadd.f32 %v3292, %v3552
      %v3608 = vadd.f32 %v3295, %v3555
      %v3609 = vadd.f32 %v3298, %v3558
      %v3610 = vadd.f32 %v3301, %v3561
      %v3611 = vadd.f32 %v3304, %v3564
      %v3612 = vadd.f32 %v3307, %v3567
      %v3613 = vadd.f32 %v3310, %v3570
      %v3614 = vadd.f32 %v3313, %v3573
      %v3615 = vadd.f32 %v3316, %v3576
      %v3616 = vadd.f32 %v3319, %v3579
      %v3617 = vadd.f32 %v3322, %v3582
      %v3618 = vadd.f32 %v3325, %v3585
      %vm3619 = vcmask 1044480
      %v3620 = vrot.slane %v2823, 3
      %v3621 = vrot.slane %v2745, 3
      %v3622 = vsel %vm3619, %v3620, %v3621
      %v3623 = vrot.slane %v2839, 3
      %v3624 = vsel %vm3619, %v3621, %v3623
      %v3625 = vrot.slane %v2824, 3
      %v3626 = vrot.slane %v2748, 3
      %v3627 = vsel %vm3619, %v3625, %v3626
      %v3628 = vrot.slane %v2840, 3
      %v3629 = vsel %vm3619, %v3626, %v3628
      %v3630 = vrot.slane %v2825, 3
      %v3631 = vrot.slane %v2751, 3
      %v3632 = vsel %vm3619, %v3630, %v3631
      %v3633 = vrot.slane %v2841, 3
      %v3634 = vsel %vm3619, %v3631, %v3633
      %v3635 = vrot.slane %v2826, 3
      %v3636 = vrot.slane %v2754, 3
      %v3637 = vsel %vm3619, %v3635, %v3636
      %v3638 = vrot.slane %v2842, 3
      %v3639 = vsel %vm3619, %v3636, %v3638
      %v3640 = vrot.slane %v2827, 3
      %v3641 = vrot.slane %v2757, 3
      %v3642 = vsel %vm3619, %v3640, %v3641
      %v3643 = vrot.slane %v2843, 3
      %v3644 = vsel %vm3619, %v3641, %v3643
      %v3645 = vrot.slane %v2828, 3
      %v3646 = vrot.slane %v2760, 3
      %v3647 = vsel %vm3619, %v3645, %v3646
      %v3648 = vrot.slane %v2844, 3
      %v3649 = vsel %vm3619, %v3646, %v3648
      %v3650 = vrot.slane %v2829, 3
      %v3651 = vrot.slane %v2763, 3
      %v3652 = vsel %vm3619, %v3650, %v3651
      %v3653 = vrot.slane %v2845, 3
      %v3654 = vsel %vm3619, %v3651, %v3653
      %v3655 = vrot.slane %v2830, 3
      %v3656 = vrot.slane %v2766, 3
      %v3657 = vsel %vm3619, %v3655, %v3656
      %v3658 = vrot.slane %v2846, 3
      %v3659 = vsel %vm3619, %v3656, %v3658
      %v3660 = vrot.slane %v2831, 3
      %v3661 = vrot.slane %v2769, 3
      %v3662 = vsel %vm3619, %v3660, %v3661
      %v3663 = vrot.slane %v2847, 3
      %v3664 = vsel %vm3619, %v3661, %v3663
      %v3665 = vrot.slane %v2832, 3
      %v3666 = vrot.slane %v2772, 3
      %v3667 = vsel %vm3619, %v3665, %v3666
      %v3668 = vrot.slane %v2848, 3
      %v3669 = vsel %vm3619, %v3666, %v3668
      %v3670 = vrot.slane %v2833, 3
      %v3671 = vrot.slane %v2775, 3
      %v3672 = vsel %vm3619, %v3670, %v3671
      %v3673 = vrot.slane %v2849, 3
      %v3674 = vsel %vm3619, %v3671, %v3673
      %v3675 = vrot.slane %v2834, 3
      %v3676 = vrot.slane %v2778, 3
      %v3677 = vsel %vm3619, %v3675, %v3676
      %v3678 = vrot.slane %v2850, 3
      %v3679 = vsel %vm3619, %v3676, %v3678
      %v3680 = vrot.slane %v2835, 3
      %v3681 = vrot.slane %v2781, 3
      %v3682 = vsel %vm3619, %v3680, %v3681
      %v3683 = vrot.slane %v2851, 3
      %v3684 = vsel %vm3619, %v3681, %v3683
      %v3685 = vrot.slane %v2836, 3
      %v3686 = vrot.slane %v2784, 3
      %v3687 = vsel %vm3619, %v3685, %v3686
      %v3688 = vrot.slane %v2852, 3
      %v3689 = vsel %vm3619, %v3686, %v3688
      %v3690 = vrot.slane %v2837, 3
      %v3691 = vrot.slane %v2787, 3
      %v3692 = vsel %vm3619, %v3690, %v3691
      %v3693 = vrot.slane %v2853, 3
      %v3694 = vsel %vm3619, %v3691, %v3693
      %v3695 = vrot.slane %v2838, 3
      %v3696 = vrot.slane %v2790, 3
      %v3697 = vsel %vm3619, %v3695, %v3696
      %v3698 = vrot.slane %v2854, 3
      %v3699 = vsel %vm3619, %v3696, %v3698
      %v3700 = vsel %vm2394, %v3622, 0
      %v3702 = vsel %vm2394, %v3624, 0
      %v3704 = vsel %vm2394, %v3627, 0
      %v3706 = vsel %vm2394, %v3629, 0
      %v3708 = vsel %vm2394, %v3632, 0
      %v3710 = vsel %vm2394, %v3634, 0
      %v3712 = vsel %vm2394, %v3637, 0
      %v3714 = vsel %vm2394, %v3639, 0
      %v3716 = vsel %vm2394, %v3642, 0
      %v3718 = vsel %vm2394, %v3644, 0
      %v3720 = vsel %vm2394, %v3647, 0
      %v3722 = vsel %vm2394, %v3649, 0
      %v3724 = vsel %vm2394, %v3652, 0
      %v3726 = vsel %vm2394, %v3654, 0
      %v3728 = vsel %vm2394, %v3657, 0
      %v3730 = vsel %vm2394, %v3659, 0
      %v3732 = vsel %vm2394, %v3662, 0
      %v3734 = vsel %vm2394, %v3664, 0
      %v3736 = vsel %vm2394, %v3667, 0
      %v3738 = vsel %vm2394, %v3669, 0
      %v3740 = vsel %vm2394, %v3672, 0
      %v3742 = vsel %vm2394, %v3674, 0
      %v3744 = vsel %vm2394, %v3677, 0
      %v3746 = vsel %vm2394, %v3679, 0
      %v3748 = vsel %vm2394, %v3682, 0
      %v3750 = vsel %vm2394, %v3684, 0
      %v3752 = vsel %vm2394, %v3687, 0
      %v3754 = vsel %vm2394, %v3689, 0
      %v3756 = vsel %vm2394, %v3692, 0
      %v3758 = vsel %vm2394, %v3694, 0
      %v3760 = vsel %vm2394, %v3697, 0
      %v3762 = vsel %vm2394, %v3699, 0
      %v3765 = vsel %vm2459, %v978, 0
      %3767 = vmatpush.msra.mxu0 0.0
      %3768 = vmatpush.msra.mxu0 0.0
      %3769 = vmatpush.msra.mxu0 0.0
      %3770 = vmatpush.msra.mxu0 0.0
      %3771 = vmatpush.msra.mxu0 0.0
      %3772 = vmatpush.msra.mxu0 0.0
      %3773 = vmatpush.msra.mxu0 0.0
      %3774 = vmatpush.msra.mxu0 0.0
      %3775 = vmatpush.msra.mxu0 0.0
      %3776 = vmatpush.msra.mxu0 0.0
      %3777 = vmatpush.msra.mxu0 0.0
      %3778 = vmatpush.msra.mxu0 0.0
      %3779 = vmatpush.msra.mxu0 0.0
      %3780 = vmatpush.msra.mxu0 0.0
      %3781 = vmatpush.msra.mxu0 0.0
      %3782 = vmatpush.msra.mxu0 %v3765
      %3783 = vmatmul.f32.gmra.mxu0 %v3700
      %v3784 = vpop.f32.mrf.mxu0
      %v3785 = vadd.f32 0.0, %v3784
      %3786 = vmatmul.f32.gmra.mxu0 %v3702
      %v3787 = vpop.f32.mrf.mxu0
      %v3788 = vadd.f32 0.0, %v3787
      %3789 = vmatmul.f32.gmra.mxu0 %v3704
      %v3790 = vpop.f32.mrf.mxu0
      %v3791 = vadd.f32 0.0, %v3790
      %3792 = vmatmul.f32.gmra.mxu0 %v3706
      %v3793 = vpop.f32.mrf.mxu0
      %v3794 = vadd.f32 0.0, %v3793
      %3795 = vmatmul.f32.gmra.mxu0 %v3708
      %v3796 = vpop.f32.mrf.mxu0
      %v3797 = vadd.f32 0.0, %v3796
      %3798 = vmatmul.f32.gmra.mxu0 %v3710
      %v3799 = vpop.f32.mrf.mxu0
      %v3800 = vadd.f32 0.0, %v3799
      %3801 = vmatmul.f32.gmra.mxu0 %v3712
      %v3802 = vpop.f32.mrf.mxu0
      %v3803 = vadd.f32 0.0, %v3802
      %3804 = vmatmul.f32.gmra.mxu0 %v3714
      %v3805 = vpop.f32.mrf.mxu0
      %v3806 = vadd.f32 0.0, %v3805
      %3807 = vmatmul.f32.gmra.mxu0 %v3716
      %v3808 = vpop.f32.mrf.mxu0
      %v3809 = vadd.f32 0.0, %v3808
      %3810 = vmatmul.f32.gmra.mxu0 %v3718
      %v3811 = vpop.f32.mrf.mxu0
      %v3812 = vadd.f32 0.0, %v3811
      %3813 = vmatmul.f32.gmra.mxu0 %v3720
      %v3814 = vpop.f32.mrf.mxu0
      %v3815 = vadd.f32 0.0, %v3814
      %3816 = vmatmul.f32.gmra.mxu0 %v3722
      %v3817 = vpop.f32.mrf.mxu0
      %v3818 = vadd.f32 0.0, %v3817
      %3819 = vmatmul.f32.gmra.mxu0 %v3724
      %v3820 = vpop.f32.mrf.mxu0
      %v3821 = vadd.f32 0.0, %v3820
      %3822 = vmatmul.f32.gmra.mxu0 %v3726
      %v3823 = vpop.f32.mrf.mxu0
      %v3824 = vadd.f32 0.0, %v3823
      %3825 = vmatmul.f32.gmra.mxu0 %v3728
      %v3826 = vpop.f32.mrf.mxu0
      %v3827 = vadd.f32 0.0, %v3826
      %3828 = vmatmul.f32.gmra.mxu0 %v3730
      %v3829 = vpop.f32.mrf.mxu0
      %v3830 = vadd.f32 0.0, %v3829
      %3831 = vmatmul.f32.gmra.mxu0 %v3732
      %v3832 = vpop.f32.mrf.mxu0
      %v3833 = vadd.f32 0.0, %v3832
      %3834 = vmatmul.f32.gmra.mxu0 %v3734
      %v3835 = vpop.f32.mrf.mxu0
      %v3836 = vadd.f32 0.0, %v3835
      %3837 = vmatmul.f32.gmra.mxu0 %v3736
      %v3838 = vpop.f32.mrf.mxu0
      %v3839 = vadd.f32 0.0, %v3838
      %3840 = vmatmul.f32.gmra.mxu0 %v3738
      %v3841 = vpop.f32.mrf.mxu0
      %v3842 = vadd.f32 0.0, %v3841
      %3843 = vmatmul.f32.gmra.mxu0 %v3740
      %v3844 = vpop.f32.mrf.mxu0
      %v3845 = vadd.f32 0.0, %v3844
      %3846 = vmatmul.f32.gmra.mxu0 %v3742
      %v3847 = vpop.f32.mrf.mxu0
      %v3848 = vadd.f32 0.0, %v3847
      %3849 = vmatmul.f32.gmra.mxu0 %v3744
      %v3850 = vpop.f32.mrf.mxu0
      %v3851 = vadd.f32 0.0, %v3850
      %3852 = vmatmul.f32.gmra.mxu0 %v3746
      %v3853 = vpop.f32.mrf.mxu0
      %v3854 = vadd.f32 0.0, %v3853
      %3855 = vmatmul.f32.gmra.mxu0 %v3748
      %v3856 = vpop.f32.mrf.mxu0
      %v3857 = vadd.f32 0.0, %v3856
      %3858 = vmatmul.f32.gmra.mxu0 %v3750
      %v3859 = vpop.f32.mrf.mxu0
      %v3860 = vadd.f32 0.0, %v3859
      %3861 = vmatmul.f32.gmra.mxu0 %v3752
      %v3862 = vpop.f32.mrf.mxu0
      %v3863 = vadd.f32 0.0, %v3862
      %3864 = vmatmul.f32.gmra.mxu0 %v3754
      %v3865 = vpop.f32.mrf.mxu0
      %v3866 = vadd.f32 0.0, %v3865
      %3867 = vmatmul.f32.gmra.mxu0 %v3756
      %v3868 = vpop.f32.mrf.mxu0
      %v3869 = vadd.f32 0.0, %v3868
      %3870 = vmatmul.f32.gmra.mxu0 %v3758
      %v3871 = vpop.f32.mrf.mxu0
      %v3872 = vadd.f32 0.0, %v3871
      %3873 = vmatmul.f32.gmra.mxu0 %v3760
      %v3874 = vpop.f32.mrf.mxu0
      %v3875 = vadd.f32 0.0, %v3874
      %3876 = vmatmul.f32.gmra.mxu0 %v3762
      %v3877 = vpop.f32.mrf.mxu0
      %v3878 = vadd.f32 0.0, %v3877
      %3879 = vdwg.mxu0
      %v3880 = vadd.f32 %v3587, %v3785
      %v3881 = vadd.f32 %v3588, %v3788
      %v3882 = vadd.f32 %v3589, %v3791
      %v3883 = vadd.f32 %v3590, %v3794
      %v3884 = vadd.f32 %v3591, %v3797
      %v3885 = vadd.f32 %v3592, %v3800
      %v3886 = vadd.f32 %v3593, %v3803
      %v3887 = vadd.f32 %v3594, %v3806
      %v3888 = vadd.f32 %v3595, %v3809
      %v3889 = vadd.f32 %v3596, %v3812
      %v3890 = vadd.f32 %v3597, %v3815
      %v3891 = vadd.f32 %v3598, %v3818
      %v3892 = vadd.f32 %v3599, %v3821
      %v3893 = vadd.f32 %v3600, %v3824
      %v3894 = vadd.f32 %v3601, %v3827
      %v3895 = vadd.f32 %v3602, %v3830
      %v3896 = vadd.f32 %v3603, %v3833
      %v3897 = vadd.f32 %v3604, %v3836
      %v3898 = vadd.f32 %v3605, %v3839
      %v3899 = vadd.f32 %v3606, %v3842
      %v3900 = vadd.f32 %v3607, %v3845
      %v3901 = vadd.f32 %v3608, %v3848
      %v3902 = vadd.f32 %v3609, %v3851
      %v3903 = vadd.f32 %v3610, %v3854
      %v3904 = vadd.f32 %v3611, %v3857
      %v3905 = vadd.f32 %v3612, %v3860
      %v3906 = vadd.f32 %v3613, %v3863
      %v3907 = vadd.f32 %v3614, %v3866
      %v3908 = vadd.f32 %v3615, %v3869
      %v3909 = vadd.f32 %v3616, %v3872
      %v3910 = vadd.f32 %v3617, %v3875
      %v3911 = vadd.f32 %v3618, %v3878
      %v3912 = vrot.slane %v2823, 4
      %v3913 = vrot.slane %v2745, 4
      %v3914 = vsel %vm2459, %v3912, %v3913
      %v3915 = vrot.slane %v2839, 4
      %v3916 = vsel %vm2459, %v3913, %v3915
      %v3917 = vrot.slane %v2824, 4
      %v3918 = vrot.slane %v2748, 4
      %v3919 = vsel %vm2459, %v3917, %v3918
      %v3920 = vrot.slane %v2840, 4
      %v3921 = vsel %vm2459, %v3918, %v3920
      %v3922 = vrot.slane %v2825, 4
      %v3923 = vrot.slane %v2751, 4
      %v3924 = vsel %vm2459, %v3922, %v3923
      %v3925 = vrot.slane %v2841, 4
      %v3926 = vsel %vm2459, %v3923, %v3925
      %v3927 = vrot.slane %v2826, 4
      %v3928 = vrot.slane %v2754, 4
      %v3929 = vsel %vm2459, %v3927, %v3928
      %v3930 = vrot.slane %v2842, 4
      %v3931 = vsel %vm2459, %v3928, %v3930
      %v3932 = vrot.slane %v2827, 4
      %v3933 = vrot.slane %v2757, 4
      %v3934 = vsel %vm2459, %v3932, %v3933
      %v3935 = vrot.slane %v2843, 4
      %v3936 = vsel %vm2459, %v3933, %v3935
      %v3937 = vrot.slane %v2828, 4
      %v3938 = vrot.slane %v2760, 4
      %v3939 = vsel %vm2459, %v3937, %v3938
      %v3940 = vrot.slane %v2844, 4
      %v3941 = vsel %vm2459, %v3938, %v3940
      %v3942 = vrot.slane %v2829, 4
      %v3943 = vrot.slane %v2763, 4
      %v3944 = vsel %vm2459, %v3942, %v3943
      %v3945 = vrot.slane %v2845, 4
      %v3946 = vsel %vm2459, %v3943, %v3945
      %v3947 = vrot.slane %v2830, 4
      %v3948 = vrot.slane %v2766, 4
      %v3949 = vsel %vm2459, %v3947, %v3948
      %v3950 = vrot.slane %v2846, 4
      %v3951 = vsel %vm2459, %v3948, %v3950
      %v3952 = vrot.slane %v2831, 4
      %v3953 = vrot.slane %v2769, 4
      %v3954 = vsel %vm2459, %v3952, %v3953
      %v3955 = vrot.slane %v2847, 4
      %v3956 = vsel %vm2459, %v3953, %v3955
      %v3957 = vrot.slane %v2832, 4
      %v3958 = vrot.slane %v2772, 4
      %v3959 = vsel %vm2459, %v3957, %v3958
      %v3960 = vrot.slane %v2848, 4
      %v3961 = vsel %vm2459, %v3958, %v3960
      %v3962 = vrot.slane %v2833, 4
      %v3963 = vrot.slane %v2775, 4
      %v3964 = vsel %vm2459, %v3962, %v3963
      %v3965 = vrot.slane %v2849, 4
      %v3966 = vsel %vm2459, %v3963, %v3965
      %v3967 = vrot.slane %v2834, 4
      %v3968 = vrot.slane %v2778, 4
      %v3969 = vsel %vm2459, %v3967, %v3968
      %v3970 = vrot.slane %v2850, 4
      %v3971 = vsel %vm2459, %v3968, %v3970
      %v3972 = vrot.slane %v2835, 4
      %v3973 = vrot.slane %v2781, 4
      %v3974 = vsel %vm2459, %v3972, %v3973
      %v3975 = vrot.slane %v2851, 4
      %v3976 = vsel %vm2459, %v3973, %v3975
      %v3977 = vrot.slane %v2836, 4
      %v3978 = vrot.slane %v2784, 4
      %v3979 = vsel %vm2459, %v3977, %v3978
      %v3980 = vrot.slane %v2852, 4
      %v3981 = vsel %vm2459, %v3978, %v3980
      %v3982 = vrot.slane %v2837, 4
      %v3983 = vrot.slane %v2787, 4
      %v3984 = vsel %vm2459, %v3982, %v3983
      %v3985 = vrot.slane %v2853, 4
      %v3986 = vsel %vm2459, %v3983, %v3985
      %v3987 = vrot.slane %v2838, 4
      %v3988 = vrot.slane %v2790, 4
      %v3989 = vsel %vm2459, %v3987, %v3988
      %v3990 = vrot.slane %v2854, 4
      %v3991 = vsel %vm2459, %v3988, %v3990
      %v3992 = vsel %vm2394, %v3914, 0
      %v3994 = vsel %vm2394, %v3916, 0
      %v3996 = vsel %vm2394, %v3919, 0
      %v3998 = vsel %vm2394, %v3921, 0
      %v4000 = vsel %vm2394, %v3924, 0
      %v4002 = vsel %vm2394, %v3926, 0
      %v4004 = vsel %vm2394, %v3929, 0
      %v4006 = vsel %vm2394, %v3931, 0
      %v4008 = vsel %vm2394, %v3934, 0
      %v4010 = vsel %vm2394, %v3936, 0
      %v4012 = vsel %vm2394, %v3939, 0
      %v4014 = vsel %vm2394, %v3941, 0
      %v4016 = vsel %vm2394, %v3944, 0
      %v4018 = vsel %vm2394, %v3946, 0
      %v4020 = vsel %vm2394, %v3949, 0
      %v4022 = vsel %vm2394, %v3951, 0
      %v4024 = vsel %vm2394, %v3954, 0
      %v4026 = vsel %vm2394, %v3956, 0
      %v4028 = vsel %vm2394, %v3959, 0
      %v4030 = vsel %vm2394, %v3961, 0
      %v4032 = vsel %vm2394, %v3964, 0
      %v4034 = vsel %vm2394, %v3966, 0
      %v4036 = vsel %vm2394, %v3969, 0
      %v4038 = vsel %vm2394, %v3971, 0
      %v4040 = vsel %vm2394, %v3974, 0
      %v4042 = vsel %vm2394, %v3976, 0
      %v4044 = vsel %vm2394, %v3979, 0
      %v4046 = vsel %vm2394, %v3981, 0
      %v4048 = vsel %vm2394, %v3984, 0
      %v4050 = vsel %vm2394, %v3986, 0
      %v4052 = vsel %vm2394, %v3989, 0
      %v4054 = vsel %vm2394, %v3991, 0
      %v4057 = vsel %vm2459, %v979, 0
      %4059 = vmatpush.msra.mxu0 0.0
      %4060 = vmatpush.msra.mxu0 0.0
      %4061 = vmatpush.msra.mxu0 0.0
      %4062 = vmatpush.msra.mxu0 0.0
      %4063 = vmatpush.msra.mxu0 0.0
      %4064 = vmatpush.msra.mxu0 0.0
      %4065 = vmatpush.msra.mxu0 0.0
      %4066 = vmatpush.msra.mxu0 0.0
      %4067 = vmatpush.msra.mxu0 0.0
      %4068 = vmatpush.msra.mxu0 0.0
      %4069 = vmatpush.msra.mxu0 0.0
      %4070 = vmatpush.msra.mxu0 0.0
      %4071 = vmatpush.msra.mxu0 0.0
      %4072 = vmatpush.msra.mxu0 0.0
      %4073 = vmatpush.msra.mxu0 0.0
      %4074 = vmatpush.msra.mxu0 %v4057
      %4075 = vmatmul.f32.gmra.mxu0 %v3992
      %v4076 = vpop.f32.mrf.mxu0
      %v4077 = vadd.f32 0.0, %v4076
      %4078 = vmatmul.f32.gmra.mxu0 %v3994
      %v4079 = vpop.f32.mrf.mxu0
      %v4080 = vadd.f32 0.0, %v4079
      %4081 = vmatmul.f32.gmra.mxu0 %v3996
      %v4082 = vpop.f32.mrf.mxu0
      %v4083 = vadd.f32 0.0, %v4082
      %4084 = vmatmul.f32.gmra.mxu0 %v3998
      %v4085 = vpop.f32.mrf.mxu0
      %v4086 = vadd.f32 0.0, %v4085
      %4087 = vmatmul.f32.gmra.mxu0 %v4000
      %v4088 = vpop.f32.mrf.mxu0
      %v4089 = vadd.f32 0.0, %v4088
      %4090 = vmatmul.f32.gmra.mxu0 %v4002
      %v4091 = vpop.f32.mrf.mxu0
      %v4092 = vadd.f32 0.0, %v4091
      %4093 = vmatmul.f32.gmra.mxu0 %v4004
      %v4094 = vpop.f32.mrf.mxu0
      %v4095 = vadd.f32 0.0, %v4094
      %4096 = vmatmul.f32.gmra.mxu0 %v4006
      %v4097 = vpop.f32.mrf.mxu0
      %v4098 = vadd.f32 0.0, %v4097
      %4099 = vmatmul.f32.gmra.mxu0 %v4008
      %v4100 = vpop.f32.mrf.mxu0
      %v4101 = vadd.f32 0.0, %v4100
      %4102 = vmatmul.f32.gmra.mxu0 %v4010
      %v4103 = vpop.f32.mrf.mxu0
      %v4104 = vadd.f32 0.0, %v4103
      %4105 = vmatmul.f32.gmra.mxu0 %v4012
      %v4106 = vpop.f32.mrf.mxu0
      %v4107 = vadd.f32 0.0, %v4106
      %4108 = vmatmul.f32.gmra.mxu0 %v4014
      %v4109 = vpop.f32.mrf.mxu0
      %v4110 = vadd.f32 0.0, %v4109
      %4111 = vmatmul.f32.gmra.mxu0 %v4016
      %v4112 = vpop.f32.mrf.mxu0
      %v4113 = vadd.f32 0.0, %v4112
      %4114 = vmatmul.f32.gmra.mxu0 %v4018
      %v4115 = vpop.f32.mrf.mxu0
      %v4116 = vadd.f32 0.0, %v4115
      %4117 = vmatmul.f32.gmra.mxu0 %v4020
      %v4118 = vpop.f32.mrf.mxu0
      %v4119 = vadd.f32 0.0, %v4118
      %4120 = vmatmul.f32.gmra.mxu0 %v4022
      %v4121 = vpop.f32.mrf.mxu0
      %v4122 = vadd.f32 0.0, %v4121
      %4123 = vmatmul.f32.gmra.mxu0 %v4024
      %v4124 = vpop.f32.mrf.mxu0
      %v4125 = vadd.f32 0.0, %v4124
      %4126 = vmatmul.f32.gmra.mxu0 %v4026
      %v4127 = vpop.f32.mrf.mxu0
      %v4128 = vadd.f32 0.0, %v4127
      %4129 = vmatmul.f32.gmra.mxu0 %v4028
      %v4130 = vpop.f32.mrf.mxu0
      %v4131 = vadd.f32 0.0, %v4130
      %4132 = vmatmul.f32.gmra.mxu0 %v4030
      %v4133 = vpop.f32.mrf.mxu0
      %v4134 = vadd.f32 0.0, %v4133
      %4135 = vmatmul.f32.gmra.mxu0 %v4032
      %v4136 = vpop.f32.mrf.mxu0
      %v4137 = vadd.f32 0.0, %v4136
      %4138 = vmatmul.f32.gmra.mxu0 %v4034
      %v4139 = vpop.f32.mrf.mxu0
      %v4140 = vadd.f32 0.0, %v4139
      %4141 = vmatmul.f32.gmra.mxu0 %v4036
      %v4142 = vpop.f32.mrf.mxu0
      %v4143 = vadd.f32 0.0, %v4142
      %4144 = vmatmul.f32.gmra.mxu0 %v4038
      %v4145 = vpop.f32.mrf.mxu0
      %v4146 = vadd.f32 0.0, %v4145
      %4147 = vmatmul.f32.gmra.mxu0 %v4040
      %v4148 = vpop.f32.mrf.mxu0
      %v4149 = vadd.f32 0.0, %v4148
      %4150 = vmatmul.f32.gmra.mxu0 %v4042
      %v4151 = vpop.f32.mrf.mxu0
      %v4152 = vadd.f32 0.0, %v4151
      %4153 = vmatmul.f32.gmra.mxu0 %v4044
      %v4154 = vpop.f32.mrf.mxu0
      %v4155 = vadd.f32 0.0, %v4154
      %4156 = vmatmul.f32.gmra.mxu0 %v4046
      %v4157 = vpop.f32.mrf.mxu0
      %v4158 = vadd.f32 0.0, %v4157
      %4159 = vmatmul.f32.gmra.mxu0 %v4048
      %v4160 = vpop.f32.mrf.mxu0
      %v4161 = vadd.f32 0.0, %v4160
      %4162 = vmatmul.f32.gmra.mxu0 %v4050
      %v4163 = vpop.f32.mrf.mxu0
      %v4164 = vadd.f32 0.0, %v4163
      %4165 = vmatmul.f32.gmra.mxu0 %v4052
      %v4166 = vpop.f32.mrf.mxu0
      %v4167 = vadd.f32 0.0, %v4166
      %4168 = vmatmul.f32.gmra.mxu0 %v4054
      %v4169 = vpop.f32.mrf.mxu0
      %v4170 = vadd.f32 0.0, %v4169
      %4171 = vdwg.mxu0
      %v4172 = vadd.f32 %v3880, %v4077
      %v4173 = vadd.f32 %v3881, %v4080
      %v4174 = vadd.f32 %v3882, %v4083
      %v4175 = vadd.f32 %v3883, %v4086
      %v4176 = vadd.f32 %v3884, %v4089
      %v4177 = vadd.f32 %v3885, %v4092
      %v4178 = vadd.f32 %v3886, %v4095
      %v4179 = vadd.f32 %v3887, %v4098
      %v4180 = vadd.f32 %v3888, %v4101
      %v4181 = vadd.f32 %v3889, %v4104
      %v4182 = vadd.f32 %v3890, %v4107
      %v4183 = vadd.f32 %v3891, %v4110
      %v4184 = vadd.f32 %v3892, %v4113
      %v4185 = vadd.f32 %v3893, %v4116
      %v4186 = vadd.f32 %v3894, %v4119
      %v4187 = vadd.f32 %v3895, %v4122
      %v4188 = vadd.f32 %v3896, %v4125
      %v4189 = vadd.f32 %v3897, %v4128
      %v4190 = vadd.f32 %v3898, %v4131
      %v4191 = vadd.f32 %v3899, %v4134
      %v4192 = vadd.f32 %v3900, %v4137
      %v4193 = vadd.f32 %v3901, %v4140
      %v4194 = vadd.f32 %v3902, %v4143
      %v4195 = vadd.f32 %v3903, %v4146
      %v4196 = vadd.f32 %v3904, %v4149
      %v4197 = vadd.f32 %v3905, %v4152
      %v4198 = vadd.f32 %v3906, %v4155
      %v4199 = vadd.f32 %v3907, %v4158
      %v4200 = vadd.f32 %v3908, %v4161
      %v4201 = vadd.f32 %v3909, %v4164
      %v4202 = vadd.f32 %v3910, %v4167
      %v4203 = vadd.f32 %v3911, %v4170
      %v4205 = vperm.slane %v980, 0
      %v4207 = vmul.f32 %v4172, %v4205
      %v4208 = vmul.f32 %v4173, %v4205
      %v4209 = vmul.f32 %v4174, %v4205
      %v4210 = vmul.f32 %v4175, %v4205
      %v4211 = vmul.f32 %v4176, %v4205
      %v4212 = vmul.f32 %v4177, %v4205
      %v4213 = vmul.f32 %v4178, %v4205
      %v4214 = vmul.f32 %v4179, %v4205
      %v4215 = vmul.f32 %v4180, %v4205
      %v4216 = vmul.f32 %v4181, %v4205
      %v4217 = vmul.f32 %v4182, %v4205
      %v4218 = vmul.f32 %v4183, %v4205
      %v4219 = vmul.f32 %v4184, %v4205
      %v4220 = vmul.f32 %v4185, %v4205
      %v4221 = vmul.f32 %v4186, %v4205
      %v4222 = vmul.f32 %v4187, %v4205
      %v4223 = vmul.f32 %v4188, %v4205
      %v4224 = vmul.f32 %v4189, %v4205
      %v4225 = vmul.f32 %v4190, %v4205
      %v4226 = vmul.f32 %v4191, %v4205
      %v4227 = vmul.f32 %v4192, %v4205
      %v4228 = vmul.f32 %v4193, %v4205
      %v4229 = vmul.f32 %v4194, %v4205
      %v4230 = vmul.f32 %v4195, %v4205
      %v4231 = vmul.f32 %v4196, %v4205
      %v4232 = vmul.f32 %v4197, %v4205
      %v4233 = vmul.f32 %v4198, %v4205
      %v4234 = vmul.f32 %v4199, %v4205
      %v4235 = vmul.f32 %v4200, %v4205
      %v4236 = vmul.f32 %v4201, %v4205
      %v4237 = vmul.f32 %v4202, %v4205
      %v4238 = vmul.f32 %v4203, %v4205
      %v4240 = vperm.slane %v981, 0
      %v4242 = vadd.f32 %v4207, %v4240
      %v4243 = vadd.f32 %v4208, %v4240
      %v4244 = vadd.f32 %v4209, %v4240
      %v4245 = vadd.f32 %v4210, %v4240
      %v4246 = vadd.f32 %v4211, %v4240
      %v4247 = vadd.f32 %v4212, %v4240
      %v4248 = vadd.f32 %v4213, %v4240
      %v4249 = vadd.f32 %v4214, %v4240
      %v4250 = vadd.f32 %v4215, %v4240
      %v4251 = vadd.f32 %v4216, %v4240
      %v4252 = vadd.f32 %v4217, %v4240
      %v4253 = vadd.f32 %v4218, %v4240
      %v4254 = vadd.f32 %v4219, %v4240
      %v4255 = vadd.f32 %v4220, %v4240
      %v4256 = vadd.f32 %v4221, %v4240
      %v4257 = vadd.f32 %v4222, %v4240
      %v4258 = vadd.f32 %v4223, %v4240
      %v4259 = vadd.f32 %v4224, %v4240
      %v4260 = vadd.f32 %v4225, %v4240
      %v4261 = vadd.f32 %v4226, %v4240
      %v4262 = vadd.f32 %v4227, %v4240
      %v4263 = vadd.f32 %v4228, %v4240
      %v4264 = vadd.f32 %v4229, %v4240
      %v4265 = vadd.f32 %v4230, %v4240
      %v4266 = vadd.f32 %v4231, %v4240
      %v4267 = vadd.f32 %v4232, %v4240
      %v4268 = vadd.f32 %v4233, %v4240
      %v4269 = vadd.f32 %v4234, %v4240
      %v4270 = vadd.f32 %v4235, %v4240
      %v4271 = vadd.f32 %v4236, %v4240
      %v4272 = vadd.f32 %v4237, %v4240
      %v4273 = vadd.f32 %v4238, %v4240
      %v4274 = vmax.f32 %v4242, 0.0
      %v4275 = vmax.f32 %v4243, 0.0
      %v4276 = vmax.f32 %v4244, 0.0
      %v4277 = vmax.f32 %v4245, 0.0
      %v4278 = vmax.f32 %v4246, 0.0
      %v4279 = vmax.f32 %v4247, 0.0
      %v4280 = vmax.f32 %v4248, 0.0
      %v4281 = vmax.f32 %v4249, 0.0
      %v4282 = vmax.f32 %v4250, 0.0
      %v4283 = vmax.f32 %v4251, 0.0
      %v4284 = vmax.f32 %v4252, 0.0
      %v4285 = vmax.f32 %v4253, 0.0
      %v4286 = vmax.f32 %v4254, 0.0
      %v4287 = vmax.f32 %v4255, 0.0
      %v4288 = vmax.f32 %v4256, 0.0
      %v4289 = vmax.f32 %v4257, 0.0
      %v4290 = vmax.f32 %v4258, 0.0
      %v4291 = vmax.f32 %v4259, 0.0
      %v4292 = vmax.f32 %v4260, 0.0
      %v4293 = vmax.f32 %v4261, 0.0
      %v4294 = vmax.f32 %v4262, 0.0
      %v4295 = vmax.f32 %v4263, 0.0
      %v4296 = vmax.f32 %v4264, 0.0
      %v4297 = vmax.f32 %v4265, 0.0
      %v4298 = vmax.f32 %v4266, 0.0
      %v4299 = vmax.f32 %v4267, 0.0
      %v4300 = vmax.f32 %v4268, 0.0
      %v4301 = vmax.f32 %v4269, 0.0
      %v4302 = vmax.f32 %v4270, 0.0
      %v4303 = vmax.f32 %v4271, 0.0
      %v4304 = vmax.f32 %v4272, 0.0
      %v4305 = vmax.f32 %v4273, 0.0
      %vm4306 = vcmask 64512
      %v4307 = vsel %vm4306, 0.0, 0
      %v4310 = vsel %vm4306, %v4274, 0
      %v4313 = vsel %vm4306, %v4275, 0
      %v4316 = vsel %vm4306, %v4276, 0
      %v4319 = vsel %vm4306, %v4277, 0
      %v4322 = vsel %vm4306, %v4278, 0
      %v4325 = vsel %vm4306, %v4279, 0
      %v4328 = vsel %vm4306, %v4280, 0
      %v4331 = vsel %vm4306, %v4281, 0
      %v4334 = vsel %vm4306, %v4282, 0
      %v4337 = vsel %vm4306, %v4283, 0
      %v4340 = vsel %vm4306, %v4284, 0
      %v4343 = vsel %vm4306, %v4285, 0
      %v4346 = vsel %vm4306, %v4286, 0
      %v4349 = vsel %vm4306, %v4287, 0
      %v4352 = vsel %vm4306, %v4288, 0
      %v4355 = vsel %vm4306, %v4289, 0
      %v4358 = vsel %vm4306, %v4290, 0
      %v4361 = vsel %vm4306, %v4291, 0
      %v4364 = vsel %vm4306, %v4292, 0
      %v4367 = vsel %vm4306, %v4293, 0
      %v4370 = vsel %vm4306, %v4294, 0
      %v4373 = vsel %vm4306, %v4295, 0
      %v4376 = vsel %vm4306, %v4296, 0
      %v4379 = vsel %vm4306, %v4297, 0
      %v4382 = vsel %vm4306, %v4298, 0
      %v4385 = vsel %vm4306, %v4299, 0
      %v4388 = vsel %vm4306, %v4300, 0
      %v4391 = vsel %vm4306, %v4301, 0
      %v4394 = vsel %vm4306, %v4302, 0
      %v4397 = vsel %vm4306, %v4303, 0
      %4399 = vmatpush.msra.mxu0 0.0
      %4400 = vmatpush.msra.mxu0 0.0
      %4401 = vmatpush.msra.mxu0 0.0
      %4402 = vmatpush.msra.mxu0 0.0
      %4403 = vmatpush.msra.mxu0 0.0
      %4404 = vmatpush.msra.mxu0 0.0
      %4405 = vmatpush.msra.mxu0 0.0
      %4406 = vmatpush.msra.mxu0 0.0
      %4407 = vmatpush.msra.mxu0 0.0
      %4408 = vmatpush.msra.mxu0 0.0
      %4409 = vmatpush.msra.mxu0 0.0
      %4410 = vmatpush.msra.mxu0 0.0
      %4411 = vmatpush.msra.mxu0 0.0
      %4412 = vmatpush.msra.mxu0 0.0
      %4413 = vmatpush.msra.mxu0 0.0
      %4414 = vmatpush.msra.mxu0 %v983
      %4415 = vmatmul.f32.gmra.mxu0 %v4307
      %v4416 = vpop.f32.mrf.mxu0
      %v4417 = vadd.f32 0.0, %v4416
      %4418 = vmatmul.f32.gmra.mxu0 %v4307
      %v4419 = vpop.f32.mrf.mxu0
      %v4420 = vadd.f32 0.0, %v4419
      %4421 = vmatmul.f32.gmra.mxu0 %v4310
      %v4422 = vpop.f32.mrf.mxu0
      %v4423 = vadd.f32 0.0, %v4422
      %4424 = vmatmul.f32.gmra.mxu0 %v4313
      %v4425 = vpop.f32.mrf.mxu0
      %v4426 = vadd.f32 0.0, %v4425
      %4427 = vmatmul.f32.gmra.mxu0 %v4316
      %v4428 = vpop.f32.mrf.mxu0
      %v4429 = vadd.f32 0.0, %v4428
      %4430 = vmatmul.f32.gmra.mxu0 %v4319
      %v4431 = vpop.f32.mrf.mxu0
      %v4432 = vadd.f32 0.0, %v4431
      %4433 = vmatmul.f32.gmra.mxu0 %v4322
      %v4434 = vpop.f32.mrf.mxu0
      %v4435 = vadd.f32 0.0, %v4434
      %4436 = vmatmul.f32.gmra.mxu0 %v4325
      %v4437 = vpop.f32.mrf.mxu0
      %v4438 = vadd.f32 0.0, %v4437
      %4439 = vmatmul.f32.gmra.mxu0 %v4328
      %v4440 = vpop.f32.mrf.mxu0
      %v4441 = vadd.f32 0.0, %v4440
      %4442 = vmatmul.f32.gmra.mxu0 %v4331
      %v4443 = vpop.f32.mrf.mxu0
      %v4444 = vadd.f32 0.0, %v4443
      %4445 = vmatmul.f32.gmra.mxu0 %v4334
      %v4446 = vpop.f32.mrf.mxu0
      %v4447 = vadd.f32 0.0, %v4446
      %4448 = vmatmul.f32.gmra.mxu0 %v4337
      %v4449 = vpop.f32.mrf.mxu0
      %v4450 = vadd.f32 0.0, %v4449
      %4451 = vmatmul.f32.gmra.mxu0 %v4340
      %v4452 = vpop.f32.mrf.mxu0
      %v4453 = vadd.f32 0.0, %v4452
      %4454 = vmatmul.f32.gmra.mxu0 %v4343
      %v4455 = vpop.f32.mrf.mxu0
      %v4456 = vadd.f32 0.0, %v4455
      %4457 = vmatmul.f32.gmra.mxu0 %v4346
      %v4458 = vpop.f32.mrf.mxu0
      %v4459 = vadd.f32 0.0, %v4458
      %4460 = vmatmul.f32.gmra.mxu0 %v4349
      %v4461 = vpop.f32.mrf.mxu0
      %v4462 = vadd.f32 0.0, %v4461
      %4463 = vmatmul.f32.gmra.mxu0 %v4352
      %v4464 = vpop.f32.mrf.mxu0
      %v4465 = vadd.f32 0.0, %v4464
      %4466 = vmatmul.f32.gmra.mxu0 %v4355
      %v4467 = vpop.f32.mrf.mxu0
      %v4468 = vadd.f32 0.0, %v4467
      %4469 = vmatmul.f32.gmra.mxu0 %v4358
      %v4470 = vpop.f32.mrf.mxu0
      %v4471 = vadd.f32 0.0, %v4470
      %4472 = vmatmul.f32.gmra.mxu0 %v4361
      %v4473 = vpop.f32.mrf.mxu0
      %v4474 = vadd.f32 0.0, %v4473
      %4475 = vmatmul.f32.gmra.mxu0 %v4364
      %v4476 = vpop.f32.mrf.mxu0
      %v4477 = vadd.f32 0.0, %v4476
      %4478 = vmatmul.f32.gmra.mxu0 %v4367
      %v4479 = vpop.f32.mrf.mxu0
      %v4480 = vadd.f32 0.0, %v4479
      %4481 = vmatmul.f32.gmra.mxu0 %v4370
      %v4482 = vpop.f32.mrf.mxu0
      %v4483 = vadd.f32 0.0, %v4482
      %4484 = vmatmul.f32.gmra.mxu0 %v4373
      %v4485 = vpop.f32.mrf.mxu0
      %v4486 = vadd.f32 0.0, %v4485
      %4487 = vmatmul.f32.gmra.mxu0 %v4376
      %v4488 = vpop.f32.mrf.mxu0
      %v4489 = vadd.f32 0.0, %v4488
      %4490 = vmatmul.f32.gmra.mxu0 %v4379
      %v4491 = vpop.f32.mrf.mxu0
      %v4492 = vadd.f32 0.0, %v4491
      %4493 = vmatmul.f32.gmra.mxu0 %v4382
      %v4494 = vpop.f32.mrf.mxu0
      %v4495 = vadd.f32 0.0, %v4494
      %4496 = vmatmul.f32.gmra.mxu0 %v4385
      %v4497 = vpop.f32.mrf.mxu0
      %v4498 = vadd.f32 0.0, %v4497
      %4499 = vmatmul.f32.gmra.mxu0 %v4388
      %v4500 = vpop.f32.mrf.mxu0
      %v4501 = vadd.f32 0.0, %v4500
      %4502 = vmatmul.f32.gmra.mxu0 %v4391
      %v4503 = vpop.f32.mrf.mxu0
      %v4504 = vadd.f32 0.0, %v4503
      %4505 = vmatmul.f32.gmra.mxu0 %v4394
      %v4506 = vpop.f32.mrf.mxu0
      %v4507 = vadd.f32 0.0, %v4506
      %4508 = vmatmul.f32.gmra.mxu0 %v4397
      %v4509 = vpop.f32.mrf.mxu0
      %v4510 = vadd.f32 0.0, %v4509
      %4511 = vdwg.mxu0
      %4512 = vmatpush.msra.mxu0 0.0
      %4513 = vmatpush.msra.mxu0 0.0
      %4514 = vmatpush.msra.mxu0 0.0
      %4515 = vmatpush.msra.mxu0 0.0
      %4516 = vmatpush.msra.mxu0 0.0
      %4517 = vmatpush.msra.mxu0 0.0
      %4518 = vmatpush.msra.mxu0 0.0
      %4519 = vmatpush.msra.mxu0 0.0
      %4520 = vmatpush.msra.mxu0 0.0
      %4521 = vmatpush.msra.mxu0 0.0
      %4522 = vmatpush.msra.mxu0 0.0
      %4523 = vmatpush.msra.mxu0 0.0
      %4524 = vmatpush.msra.mxu0 0.0
      %4525 = vmatpush.msra.mxu0 0.0
      %4526 = vmatpush.msra.mxu0 0.0
      %4527 = vmatpush.msra.mxu0 %v982
      %4528 = vmatmul.f32.gmra.mxu0 %v4307
      %v4529 = vpop.f32.mrf.mxu0
      %v4530 = vadd.f32 %v4417, %v4529
      %4531 = vmatmul.f32.gmra.mxu0 %v4307
      %v4532 = vpop.f32.mrf.mxu0
      %v4533 = vadd.f32 %v4420, %v4532
      %4534 = vmatmul.f32.gmra.mxu0 %v4307
      %v4535 = vpop.f32.mrf.mxu0
      %v4536 = vadd.f32 %v4423, %v4535
      %4537 = vmatmul.f32.gmra.mxu0 %v4307
      %v4538 = vpop.f32.mrf.mxu0
      %v4539 = vadd.f32 %v4426, %v4538
      %4540 = vmatmul.f32.gmra.mxu0 %v4310
      %v4541 = vpop.f32.mrf.mxu0
      %v4542 = vadd.f32 %v4429, %v4541
      %4543 = vmatmul.f32.gmra.mxu0 %v4313
      %v4544 = vpop.f32.mrf.mxu0
      %v4545 = vadd.f32 %v4432, %v4544
      %4546 = vmatmul.f32.gmra.mxu0 %v4316
      %v4547 = vpop.f32.mrf.mxu0
      %v4548 = vadd.f32 %v4435, %v4547
      %4549 = vmatmul.f32.gmra.mxu0 %v4319
      %v4550 = vpop.f32.mrf.mxu0
      %v4551 = vadd.f32 %v4438, %v4550
      %4552 = vmatmul.f32.gmra.mxu0 %v4322
      %v4553 = vpop.f32.mrf.mxu0
      %v4554 = vadd.f32 %v4441, %v4553
      %4555 = vmatmul.f32.gmra.mxu0 %v4325
      %v4556 = vpop.f32.mrf.mxu0
      %v4557 = vadd.f32 %v4444, %v4556
      %4558 = vmatmul.f32.gmra.mxu0 %v4328
      %v4559 = vpop.f32.mrf.mxu0
      %v4560 = vadd.f32 %v4447, %v4559
      %4561 = vmatmul.f32.gmra.mxu0 %v4331
      %v4562 = vpop.f32.mrf.mxu0
      %v4563 = vadd.f32 %v4450, %v4562
      %4564 = vmatmul.f32.gmra.mxu0 %v4334
      %v4565 = vpop.f32.mrf.mxu0
      %v4566 = vadd.f32 %v4453, %v4565
      %4567 = vmatmul.f32.gmra.mxu0 %v4337
      %v4568 = vpop.f32.mrf.mxu0
      %v4569 = vadd.f32 %v4456, %v4568
      %4570 = vmatmul.f32.gmra.mxu0 %v4340
      %v4571 = vpop.f32.mrf.mxu0
      %v4572 = vadd.f32 %v4459, %v4571
      %4573 = vmatmul.f32.gmra.mxu0 %v4343
      %v4574 = vpop.f32.mrf.mxu0
      %v4575 = vadd.f32 %v4462, %v4574
      %4576 = vmatmul.f32.gmra.mxu0 %v4346
      %v4577 = vpop.f32.mrf.mxu0
      %v4578 = vadd.f32 %v4465, %v4577
      %4579 = vmatmul.f32.gmra.mxu0 %v4349
      %v4580 = vpop.f32.mrf.mxu0
      %v4581 = vadd.f32 %v4468, %v4580
      %4582 = vmatmul.f32.gmra.mxu0 %v4352
      %v4583 = vpop.f32.mrf.mxu0
      %v4584 = vadd.f32 %v4471, %v4583
      %4585 = vmatmul.f32.gmra.mxu0 %v4355
      %v4586 = vpop.f32.mrf.mxu0
      %v4587 = vadd.f32 %v4474, %v4586
      %4588 = vmatmul.f32.gmra.mxu0 %v4358
      %v4589 = vpop.f32.mrf.mxu0
      %v4590 = vadd.f32 %v4477, %v4589
      %4591 = vmatmul.f32.gmra.mxu0 %v4361
      %v4592 = vpop.f32.mrf.mxu0
      %v4593 = vadd.f32 %v4480, %v4592
      %4594 = vmatmul.f32.gmra.mxu0 %v4364
      %v4595 = vpop.f32.mrf.mxu0
      %v4596 = vadd.f32 %v4483, %v4595
      %4597 = vmatmul.f32.gmra.mxu0 %v4367
      %v4598 = vpop.f32.mrf.mxu0
      %v4599 = vadd.f32 %v4486, %v4598
      %4600 = vmatmul.f32.gmra.mxu0 %v4370
      %v4601 = vpop.f32.mrf.mxu0
      %v4602 = vadd.f32 %v4489, %v4601
      %4603 = vmatmul.f32.gmra.mxu0 %v4373
      %v4604 = vpop.f32.mrf.mxu0
      %v4605 = vadd.f32 %v4492, %v4604
      %4606 = vmatmul.f32.gmra.mxu0 %v4376
      %v4607 = vpop.f32.mrf.mxu0
      %v4608 = vadd.f32 %v4495, %v4607
      %4609 = vmatmul.f32.gmra.mxu0 %v4379
      %v4610 = vpop.f32.mrf.mxu0
      %v4611 = vadd.f32 %v4498, %v4610
      %4612 = vmatmul.f32.gmra.mxu0 %v4382
      %v4613 = vpop.f32.mrf.mxu0
      %v4614 = vadd.f32 %v4501, %v4613
      %4615 = vmatmul.f32.gmra.mxu0 %v4385
      %v4616 = vpop.f32.mrf.mxu0
      %v4617 = vadd.f32 %v4504, %v4616
      %4618 = vmatmul.f32.gmra.mxu0 %v4388
      %v4619 = vpop.f32.mrf.mxu0
      %v4620 = vadd.f32 %v4507, %v4619
      %4621 = vmatmul.f32.gmra.mxu0 %v4391
      %v4622 = vpop.f32.mrf.mxu0
      %v4623 = vadd.f32 %v4510, %v4622
      %4624 = vdwg.mxu0
      %v4626 = vsel %vm4306, %v4304, 0
      %v4629 = vsel %vm4306, %v4305, 0
      %4631 = vmatpush.msra.mxu0 0.0
      %4632 = vmatpush.msra.mxu0 0.0
      %4633 = vmatpush.msra.mxu0 0.0
      %4634 = vmatpush.msra.mxu0 0.0
      %4635 = vmatpush.msra.mxu0 0.0
      %4636 = vmatpush.msra.mxu0 0.0
      %4637 = vmatpush.msra.mxu0 0.0
      %4638 = vmatpush.msra.mxu0 0.0
      %4639 = vmatpush.msra.mxu0 0.0
      %4640 = vmatpush.msra.mxu0 0.0
      %4641 = vmatpush.msra.mxu0 0.0
      %4642 = vmatpush.msra.mxu0 0.0
      %4643 = vmatpush.msra.mxu0 0.0
      %4644 = vmatpush.msra.mxu0 0.0
      %4645 = vmatpush.msra.mxu0 0.0
      %4646 = vmatpush.msra.mxu0 %v984
      %4647 = vmatmul.f32.gmra.mxu0 %v4310
      %v4648 = vpop.f32.mrf.mxu0
      %v4649 = vadd.f32 0.0, %v4648
      %4650 = vmatmul.f32.gmra.mxu0 %v4313
      %v4651 = vpop.f32.mrf.mxu0
      %v4652 = vadd.f32 0.0, %v4651
      %4653 = vmatmul.f32.gmra.mxu0 %v4316
      %v4654 = vpop.f32.mrf.mxu0
      %v4655 = vadd.f32 0.0, %v4654
      %4656 = vmatmul.f32.gmra.mxu0 %v4319
      %v4657 = vpop.f32.mrf.mxu0
      %v4658 = vadd.f32 0.0, %v4657
      %4659 = vmatmul.f32.gmra.mxu0 %v4322
      %v4660 = vpop.f32.mrf.mxu0
      %v4661 = vadd.f32 0.0, %v4660
      %4662 = vmatmul.f32.gmra.mxu0 %v4325
      %v4663 = vpop.f32.mrf.mxu0
      %v4664 = vadd.f32 0.0, %v4663
      %4665 = vmatmul.f32.gmra.mxu0 %v4328
      %v4666 = vpop.f32.mrf.mxu0
      %v4667 = vadd.f32 0.0, %v4666
      %4668 = vmatmul.f32.gmra.mxu0 %v4331
      %v4669 = vpop.f32.mrf.mxu0
      %v4670 = vadd.f32 0.0, %v4669
      %4671 = vmatmul.f32.gmra.mxu0 %v4334
      %v4672 = vpop.f32.mrf.mxu0
      %v4673 = vadd.f32 0.0, %v4672
      %4674 = vmatmul.f32.gmra.mxu0 %v4337
      %v4675 = vpop.f32.mrf.mxu0
      %v4676 = vadd.f32 0.0, %v4675
      %4677 = vmatmul.f32.gmra.mxu0 %v4340
      %v4678 = vpop.f32.mrf.mxu0
      %v4679 = vadd.f32 0.0, %v4678
      %4680 = vmatmul.f32.gmra.mxu0 %v4343
      %v4681 = vpop.f32.mrf.mxu0
      %v4682 = vadd.f32 0.0, %v4681
      %4683 = vmatmul.f32.gmra.mxu0 %v4346
      %v4684 = vpop.f32.mrf.mxu0
      %v4685 = vadd.f32 0.0, %v4684
      %4686 = vmatmul.f32.gmra.mxu0 %v4349
      %v4687 = vpop.f32.mrf.mxu0
      %v4688 = vadd.f32 0.0, %v4687
      %4689 = vmatmul.f32.gmra.mxu0 %v4352
      %v4690 = vpop.f32.mrf.mxu0
      %v4691 = vadd.f32 0.0, %v4690
      %4692 = vmatmul.f32.gmra.mxu0 %v4355
      %v4693 = vpop.f32.mrf.mxu0
      %v4694 = vadd.f32 0.0, %v4693
      %4695 = vmatmul.f32.gmra.mxu0 %v4358
      %v4696 = vpop.f32.mrf.mxu0
      %v4697 = vadd.f32 0.0, %v4696
      %4698 = vmatmul.f32.gmra.mxu0 %v4361
      %v4699 = vpop.f32.mrf.mxu0
      %v4700 = vadd.f32 0.0, %v4699
      %4701 = vmatmul.f32.gmra.mxu0 %v4364
      %v4702 = vpop.f32.mrf.mxu0
      %v4703 = vadd.f32 0.0, %v4702
      %4704 = vmatmul.f32.gmra.mxu0 %v4367
      %v4705 = vpop.f32.mrf.mxu0
      %v4706 = vadd.f32 0.0, %v4705
      %4707 = vmatmul.f32.gmra.mxu0 %v4370
      %v4708 = vpop.f32.mrf.mxu0
      %v4709 = vadd.f32 0.0, %v4708
      %4710 = vmatmul.f32.gmra.mxu0 %v4373
      %v4711 = vpop.f32.mrf.mxu0
      %v4712 = vadd.f32 0.0, %v4711
      %4713 = vmatmul.f32.gmra.mxu0 %v4376
      %v4714 = vpop.f32.mrf.mxu0
      %v4715 = vadd.f32 0.0, %v4714
      %4716 = vmatmul.f32.gmra.mxu0 %v4379
      %v4717 = vpop.f32.mrf.mxu0
      %v4718 = vadd.f32 0.0, %v4717
      %4719 = vmatmul.f32.gmra.mxu0 %v4382
      %v4720 = vpop.f32.mrf.mxu0
      %v4721 = vadd.f32 0.0, %v4720
      %4722 = vmatmul.f32.gmra.mxu0 %v4385
      %v4723 = vpop.f32.mrf.mxu0
      %v4724 = vadd.f32 0.0, %v4723
      %4725 = vmatmul.f32.gmra.mxu0 %v4388
      %v4726 = vpop.f32.mrf.mxu0
      %v4727 = vadd.f32 0.0, %v4726
      %4728 = vmatmul.f32.gmra.mxu0 %v4391
      %v4729 = vpop.f32.mrf.mxu0
      %v4730 = vadd.f32 0.0, %v4729
      %4731 = vmatmul.f32.gmra.mxu0 %v4394
      %v4732 = vpop.f32.mrf.mxu0
      %v4733 = vadd.f32 0.0, %v4732
      %4734 = vmatmul.f32.gmra.mxu0 %v4397
      %v4735 = vpop.f32.mrf.mxu0
      %v4736 = vadd.f32 0.0, %v4735
      %4737 = vmatmul.f32.gmra.mxu0 %v4626
      %v4738 = vpop.f32.mrf.mxu0
      %v4739 = vadd.f32 0.0, %v4738
      %4740 = vmatmul.f32.gmra.mxu0 %v4629
      %v4741 = vpop.f32.mrf.mxu0
      %v4742 = vadd.f32 0.0, %v4741
      %4743 = vdwg.mxu0
      %v4744 = vadd.f32 %v4530, %v4649
      %v4745 = vadd.f32 %v4533, %v4652
      %v4746 = vadd.f32 %v4536, %v4655
      %v4747 = vadd.f32 %v4539, %v4658
      %v4748 = vadd.f32 %v4542, %v4661
      %v4749 = vadd.f32 %v4545, %v4664
      %v4750 = vadd.f32 %v4548, %v4667
      %v4751 = vadd.f32 %v4551, %v4670
      %v4752 = vadd.f32 %v4554, %v4673
      %v4753 = vadd.f32 %v4557, %v4676
      %v4754 = vadd.f32 %v4560, %v4679
      %v4755 = vadd.f32 %v4563, %v4682
      %v4756 = vadd.f32 %v4566, %v4685
      %v4757 = vadd.f32 %v4569, %v4688
      %v4758 = vadd.f32 %v4572, %v4691
      %v4759 = vadd.f32 %v4575, %v4694
      %v4760 = vadd.f32 %v4578, %v4697
      %v4761 = vadd.f32 %v4581, %v4700
      %v4762 = vadd.f32 %v4584, %v4703
      %v4763 = vadd.f32 %v4587, %v4706
      %v4764 = vadd.f32 %v4590, %v4709
      %v4765 = vadd.f32 %v4593, %v4712
      %v4766 = vadd.f32 %v4596, %v4715
      %v4767 = vadd.f32 %v4599, %v4718
      %v4768 = vadd.f32 %v4602, %v4721
      %v4769 = vadd.f32 %v4605, %v4724
      %v4770 = vadd.f32 %v4608, %v4727
      %v4771 = vadd.f32 %v4611, %v4730
      %v4772 = vadd.f32 %v4614, %v4733
      %v4773 = vadd.f32 %v4617, %v4736
      %v4774 = vadd.f32 %v4620, %v4739
      %v4775 = vadd.f32 %v4623, %v4742
      %4776 = vmatpush.msra.mxu0 0.0
      %4777 = vmatpush.msra.mxu0 0.0
      %4778 = vmatpush.msra.mxu0 0.0
      %4779 = vmatpush.msra.mxu0 0.0
      %4780 = vmatpush.msra.mxu0 0.0
      %4781 = vmatpush.msra.mxu0 0.0
      %4782 = vmatpush.msra.mxu0 0.0
      %4783 = vmatpush.msra.mxu0 0.0
      %4784 = vmatpush.msra.mxu0 0.0
      %4785 = vmatpush.msra.mxu0 0.0
      %4786 = vmatpush.msra.mxu0 0.0
      %4787 = vmatpush.msra.mxu0 0.0
      %4788 = vmatpush.msra.mxu0 0.0
      %4789 = vmatpush.msra.mxu0 0.0
      %4790 = vmatpush.msra.mxu0 0.0
      %4791 = vmatpush.msra.mxu0 %v985
      %4792 = vmatmul.f32.gmra.mxu0 %v4316
      %v4793 = vpop.f32.mrf.mxu0
      %v4794 = vadd.f32 0.0, %v4793
      %4795 = vmatmul.f32.gmra.mxu0 %v4319
      %v4796 = vpop.f32.mrf.mxu0
      %v4797 = vadd.f32 0.0, %v4796
      %4798 = vmatmul.f32.gmra.mxu0 %v4322
      %v4799 = vpop.f32.mrf.mxu0
      %v4800 = vadd.f32 0.0, %v4799
      %4801 = vmatmul.f32.gmra.mxu0 %v4325
      %v4802 = vpop.f32.mrf.mxu0
      %v4803 = vadd.f32 0.0, %v4802
      %4804 = vmatmul.f32.gmra.mxu0 %v4328
      %v4805 = vpop.f32.mrf.mxu0
      %v4806 = vadd.f32 0.0, %v4805
      %4807 = vmatmul.f32.gmra.mxu0 %v4331
      %v4808 = vpop.f32.mrf.mxu0
      %v4809 = vadd.f32 0.0, %v4808
      %4810 = vmatmul.f32.gmra.mxu0 %v4334
      %v4811 = vpop.f32.mrf.mxu0
      %v4812 = vadd.f32 0.0, %v4811
      %4813 = vmatmul.f32.gmra.mxu0 %v4337
      %v4814 = vpop.f32.mrf.mxu0
      %v4815 = vadd.f32 0.0, %v4814
      %4816 = vmatmul.f32.gmra.mxu0 %v4340
      %v4817 = vpop.f32.mrf.mxu0
      %v4818 = vadd.f32 0.0, %v4817
      %4819 = vmatmul.f32.gmra.mxu0 %v4343
      %v4820 = vpop.f32.mrf.mxu0
      %v4821 = vadd.f32 0.0, %v4820
      %4822 = vmatmul.f32.gmra.mxu0 %v4346
      %v4823 = vpop.f32.mrf.mxu0
      %v4824 = vadd.f32 0.0, %v4823
      %4825 = vmatmul.f32.gmra.mxu0 %v4349
      %v4826 = vpop.f32.mrf.mxu0
      %v4827 = vadd.f32 0.0, %v4826
      %4828 = vmatmul.f32.gmra.mxu0 %v4352
      %v4829 = vpop.f32.mrf.mxu0
      %v4830 = vadd.f32 0.0, %v4829
      %4831 = vmatmul.f32.gmra.mxu0 %v4355
      %v4832 = vpop.f32.mrf.mxu0
      %v4833 = vadd.f32 0.0, %v4832
      %4834 = vmatmul.f32.gmra.mxu0 %v4358
      %v4835 = vpop.f32.mrf.mxu0
      %v4836 = vadd.f32 0.0, %v4835
      %4837 = vmatmul.f32.gmra.mxu0 %v4361
      %v4838 = vpop.f32.mrf.mxu0
      %v4839 = vadd.f32 0.0, %v4838
      %4840 = vmatmul.f32.gmra.mxu0 %v4364
      %v4841 = vpop.f32.mrf.mxu0
      %v4842 = vadd.f32 0.0, %v4841
      %4843 = vmatmul.f32.gmra.mxu0 %v4367
      %v4844 = vpop.f32.mrf.mxu0
      %v4845 = vadd.f32 0.0, %v4844
      %4846 = vmatmul.f32.gmra.mxu0 %v4370
      %v4847 = vpop.f32.mrf.mxu0
      %v4848 = vadd.f32 0.0, %v4847
      %4849 = vmatmul.f32.gmra.mxu0 %v4373
      %v4850 = vpop.f32.mrf.mxu0
      %v4851 = vadd.f32 0.0, %v4850
      %4852 = vmatmul.f32.gmra.mxu0 %v4376
      %v4853 = vpop.f32.mrf.mxu0
      %v4854 = vadd.f32 0.0, %v4853
      %4855 = vmatmul.f32.gmra.mxu0 %v4379
      %v4856 = vpop.f32.mrf.mxu0
      %v4857 = vadd.f32 0.0, %v4856
      %4858 = vmatmul.f32.gmra.mxu0 %v4382
      %v4859 = vpop.f32.mrf.mxu0
      %v4860 = vadd.f32 0.0, %v4859
      %4861 = vmatmul.f32.gmra.mxu0 %v4385
      %v4862 = vpop.f32.mrf.mxu0
      %v4863 = vadd.f32 0.0, %v4862
      %4864 = vmatmul.f32.gmra.mxu0 %v4388
      %v4865 = vpop.f32.mrf.mxu0
      %v4866 = vadd.f32 0.0, %v4865
      %4867 = vmatmul.f32.gmra.mxu0 %v4391
      %v4868 = vpop.f32.mrf.mxu0
      %v4869 = vadd.f32 0.0, %v4868
      %4870 = vmatmul.f32.gmra.mxu0 %v4394
      %v4871 = vpop.f32.mrf.mxu0
      %v4872 = vadd.f32 0.0, %v4871
      %4873 = vmatmul.f32.gmra.mxu0 %v4397
      %v4874 = vpop.f32.mrf.mxu0
      %v4875 = vadd.f32 0.0, %v4874
      %4876 = vmatmul.f32.gmra.mxu0 %v4626
      %v4877 = vpop.f32.mrf.mxu0
      %v4878 = vadd.f32 0.0, %v4877
      %4879 = vmatmul.f32.gmra.mxu0 %v4629
      %v4880 = vpop.f32.mrf.mxu0
      %v4881 = vadd.f32 0.0, %v4880
      %4882 = vmatmul.f32.gmra.mxu0 %v4307
      %v4883 = vpop.f32.mrf.mxu0
      %v4884 = vadd.f32 0.0, %v4883
      %4885 = vmatmul.f32.gmra.mxu0 %v4307
      %v4886 = vpop.f32.mrf.mxu0
      %v4887 = vadd.f32 0.0, %v4886
      %4888 = vdwg.mxu0
      %v4889 = vadd.f32 %v4744, %v4794
      %v4890 = vadd.f32 %v4745, %v4797
      %v4891 = vadd.f32 %v4746, %v4800
      %v4892 = vadd.f32 %v4747, %v4803
      %v4893 = vadd.f32 %v4748, %v4806
      %v4894 = vadd.f32 %v4749, %v4809
      %v4895 = vadd.f32 %v4750, %v4812
      %v4896 = vadd.f32 %v4751, %v4815
      %v4897 = vadd.f32 %v4752, %v4818
      %v4898 = vadd.f32 %v4753, %v4821
      %v4899 = vadd.f32 %v4754, %v4824
      %v4900 = vadd.f32 %v4755, %v4827
      %v4901 = vadd.f32 %v4756, %v4830
      %v4902 = vadd.f32 %v4757, %v4833
      %v4903 = vadd.f32 %v4758, %v4836
      %v4904 = vadd.f32 %v4759, %v4839
      %v4905 = vadd.f32 %v4760, %v4842
      %v4906 = vadd.f32 %v4761, %v4845
      %v4907 = vadd.f32 %v4762, %v4848
      %v4908 = vadd.f32 %v4763, %v4851
      %v4909 = vadd.f32 %v4764, %v4854
      %v4910 = vadd.f32 %v4765, %v4857
      %v4911 = vadd.f32 %v4766, %v4860
      %v4912 = vadd.f32 %v4767, %v4863
      %v4913 = vadd.f32 %v4768, %v4866
      %v4914 = vadd.f32 %v4769, %v4869
      %v4915 = vadd.f32 %v4770, %v4872
      %v4916 = vadd.f32 %v4771, %v4875
      %v4917 = vadd.f32 %v4772, %v4878
      %v4918 = vadd.f32 %v4773, %v4881
      %v4919 = vadd.f32 %v4774, %v4884
      %v4920 = vadd.f32 %v4775, %v4887
      %4921 = vmatpush.msra.mxu0 0.0
      %4922 = vmatpush.msra.mxu0 0.0
      %4923 = vmatpush.msra.mxu0 0.0
      %4924 = vmatpush.msra.mxu0 0.0
      %4925 = vmatpush.msra.mxu0 0.0
      %4926 = vmatpush.msra.mxu0 0.0
      %4927 = vmatpush.msra.mxu0 0.0
      %4928 = vmatpush.msra.mxu0 0.0
      %4929 = vmatpush.msra.mxu0 0.0
      %4930 = vmatpush.msra.mxu0 0.0
      %4931 = vmatpush.msra.mxu0 0.0
      %4932 = vmatpush.msra.mxu0 0.0
      %4933 = vmatpush.msra.mxu0 0.0
      %4934 = vmatpush.msra.mxu0 0.0
      %4935 = vmatpush.msra.mxu0 0.0
      %4936 = vmatpush.msra.mxu0 %v986
      %4937 = vmatmul.f32.gmra.mxu0 %v4322
      %v4938 = vpop.f32.mrf.mxu0
      %v4939 = vadd.f32 0.0, %v4938
      %4940 = vmatmul.f32.gmra.mxu0 %v4325
      %v4941 = vpop.f32.mrf.mxu0
      %v4942 = vadd.f32 0.0, %v4941
      %4943 = vmatmul.f32.gmra.mxu0 %v4328
      %v4944 = vpop.f32.mrf.mxu0
      %v4945 = vadd.f32 0.0, %v4944
      %4946 = vmatmul.f32.gmra.mxu0 %v4331
      %v4947 = vpop.f32.mrf.mxu0
      %v4948 = vadd.f32 0.0, %v4947
      %4949 = vmatmul.f32.gmra.mxu0 %v4334
      %v4950 = vpop.f32.mrf.mxu0
      %v4951 = vadd.f32 0.0, %v4950
      %4952 = vmatmul.f32.gmra.mxu0 %v4337
      %v4953 = vpop.f32.mrf.mxu0
      %v4954 = vadd.f32 0.0, %v4953
      %4955 = vmatmul.f32.gmra.mxu0 %v4340
      %v4956 = vpop.f32.mrf.mxu0
      %v4957 = vadd.f32 0.0, %v4956
      %4958 = vmatmul.f32.gmra.mxu0 %v4343
      %v4959 = vpop.f32.mrf.mxu0
      %v4960 = vadd.f32 0.0, %v4959
      %4961 = vmatmul.f32.gmra.mxu0 %v4346
      %v4962 = vpop.f32.mrf.mxu0
      %v4963 = vadd.f32 0.0, %v4962
      %4964 = vmatmul.f32.gmra.mxu0 %v4349
      %v4965 = vpop.f32.mrf.mxu0
      %v4966 = vadd.f32 0.0, %v4965
      %4967 = vmatmul.f32.gmra.mxu0 %v4352
      %v4968 = vpop.f32.mrf.mxu0
      %v4969 = vadd.f32 0.0, %v4968
      %4970 = vmatmul.f32.gmra.mxu0 %v4355
      %v4971 = vpop.f32.mrf.mxu0
      %v4972 = vadd.f32 0.0, %v4971
      %4973 = vmatmul.f32.gmra.mxu0 %v4358
      %v4974 = vpop.f32.mrf.mxu0
      %v4975 = vadd.f32 0.0, %v4974
      %4976 = vmatmul.f32.gmra.mxu0 %v4361
      %v4977 = vpop.f32.mrf.mxu0
      %v4978 = vadd.f32 0.0, %v4977
      %4979 = vmatmul.f32.gmra.mxu0 %v4364
      %v4980 = vpop.f32.mrf.mxu0
      %v4981 = vadd.f32 0.0, %v4980
      %4982 = vmatmul.f32.gmra.mxu0 %v4367
      %v4983 = vpop.f32.mrf.mxu0
      %v4984 = vadd.f32 0.0, %v4983
      %4985 = vmatmul.f32.gmra.mxu0 %v4370
      %v4986 = vpop.f32.mrf.mxu0
      %v4987 = vadd.f32 0.0, %v4986
      %4988 = vmatmul.f32.gmra.mxu0 %v4373
      %v4989 = vpop.f32.mrf.mxu0
      %v4990 = vadd.f32 0.0, %v4989
      %4991 = vmatmul.f32.gmra.mxu0 %v4376
      %v4992 = vpop.f32.mrf.mxu0
      %v4993 = vadd.f32 0.0, %v4992
      %4994 = vmatmul.f32.gmra.mxu0 %v4379
      %v4995 = vpop.f32.mrf.mxu0
      %v4996 = vadd.f32 0.0, %v4995
      %4997 = vmatmul.f32.gmra.mxu0 %v4382
      %v4998 = vpop.f32.mrf.mxu0
      %v4999 = vadd.f32 0.0, %v4998
      %5000 = vmatmul.f32.gmra.mxu0 %v4385
      %v5001 = vpop.f32.mrf.mxu0
      %v5002 = vadd.f32 0.0, %v5001
      %5003 = vmatmul.f32.gmra.mxu0 %v4388
      %v5004 = vpop.f32.mrf.mxu0
      %v5005 = vadd.f32 0.0, %v5004
      %5006 = vmatmul.f32.gmra.mxu0 %v4391
      %v5007 = vpop.f32.mrf.mxu0
      %v5008 = vadd.f32 0.0, %v5007
      %5009 = vmatmul.f32.gmra.mxu0 %v4394
      %v5010 = vpop.f32.mrf.mxu0
      %v5011 = vadd.f32 0.0, %v5010
      %5012 = vmatmul.f32.gmra.mxu0 %v4397
      %v5013 = vpop.f32.mrf.mxu0
      %v5014 = vadd.f32 0.0, %v5013
      %5015 = vmatmul.f32.gmra.mxu0 %v4626
      %v5016 = vpop.f32.mrf.mxu0
      %v5017 = vadd.f32 0.0, %v5016
      %5018 = vmatmul.f32.gmra.mxu0 %v4629
      %v5019 = vpop.f32.mrf.mxu0
      %v5020 = vadd.f32 0.0, %v5019
      %5021 = vmatmul.f32.gmra.mxu0 %v4307
      %v5022 = vpop.f32.mrf.mxu0
      %v5023 = vadd.f32 0.0, %v5022
      %5024 = vmatmul.f32.gmra.mxu0 %v4307
      %v5025 = vpop.f32.mrf.mxu0
      %v5026 = vadd.f32 0.0, %v5025
      %5027 = vmatmul.f32.gmra.mxu0 %v4307
      %v5028 = vpop.f32.mrf.mxu0
      %v5029 = vadd.f32 0.0, %v5028
      %5030 = vmatmul.f32.gmra.mxu0 %v4307
      %v5031 = vpop.f32.mrf.mxu0
      %v5032 = vadd.f32 0.0, %v5031
      %5033 = vdwg.mxu0
      %v5034 = vadd.f32 %v4889, %v4939
      %v5035 = vadd.f32 %v4890, %v4942
      %v5036 = vadd.f32 %v4891, %v4945
      %v5037 = vadd.f32 %v4892, %v4948
      %v5038 = vadd.f32 %v4893, %v4951
      %v5039 = vadd.f32 %v4894, %v4954
      %v5040 = vadd.f32 %v4895, %v4957
      %v5041 = vadd.f32 %v4896, %v4960
      %v5042 = vadd.f32 %v4897, %v4963
      %v5043 = vadd.f32 %v4898, %v4966
      %v5044 = vadd.f32 %v4899, %v4969
      %v5045 = vadd.f32 %v4900, %v4972
      %v5046 = vadd.f32 %v4901, %v4975
      %v5047 = vadd.f32 %v4902, %v4978
      %v5048 = vadd.f32 %v4903, %v4981
      %v5049 = vadd.f32 %v4904, %v4984
      %v5050 = vadd.f32 %v4905, %v4987
      %v5051 = vadd.f32 %v4906, %v4990
      %v5052 = vadd.f32 %v4907, %v4993
      %v5053 = vadd.f32 %v4908, %v4996
      %v5054 = vadd.f32 %v4909, %v4999
      %v5055 = vadd.f32 %v4910, %v5002
      %v5056 = vadd.f32 %v4911, %v5005
      %v5057 = vadd.f32 %v4912, %v5008
      %v5058 = vadd.f32 %v4913, %v5011
      %v5059 = vadd.f32 %v4914, %v5014
      %v5060 = vadd.f32 %v4915, %v5017
      %v5061 = vadd.f32 %v4916, %v5020
      %v5062 = vadd.f32 %v4917, %v5023
      %v5063 = vadd.f32 %v4918, %v5026
      %v5064 = vadd.f32 %v4919, %v5029
      %v5065 = vadd.f32 %v4920, %v5032
      %v5067 = vperm.slane %v987, 0
      %v5069 = vmul.f32 %v5034, %v5067
      %v5070 = vmul.f32 %v5035, %v5067
      %v5071 = vmul.f32 %v5036, %v5067
      %v5072 = vmul.f32 %v5037, %v5067
      %v5073 = vmul.f32 %v5038, %v5067
      %v5074 = vmul.f32 %v5039, %v5067
      %v5075 = vmul.f32 %v5040, %v5067
      %v5076 = vmul.f32 %v5041, %v5067
      %v5077 = vmul.f32 %v5042, %v5067
      %v5078 = vmul.f32 %v5043, %v5067
      %v5079 = vmul.f32 %v5044, %v5067
      %v5080 = vmul.f32 %v5045, %v5067
      %v5081 = vmul.f32 %v5046, %v5067
      %v5082 = vmul.f32 %v5047, %v5067
      %v5083 = vmul.f32 %v5048, %v5067
      %v5084 = vmul.f32 %v5049, %v5067
      %v5085 = vmul.f32 %v5050, %v5067
      %v5086 = vmul.f32 %v5051, %v5067
      %v5087 = vmul.f32 %v5052, %v5067
      %v5088 = vmul.f32 %v5053, %v5067
      %v5089 = vmul.f32 %v5054, %v5067
      %v5090 = vmul.f32 %v5055, %v5067
      %v5091 = vmul.f32 %v5056, %v5067
      %v5092 = vmul.f32 %v5057, %v5067
      %v5093 = vmul.f32 %v5058, %v5067
      %v5094 = vmul.f32 %v5059, %v5067
      %v5095 = vmul.f32 %v5060, %v5067
      %v5096 = vmul.f32 %v5061, %v5067
      %v5097 = vmul.f32 %v5062, %v5067
      %v5098 = vmul.f32 %v5063, %v5067
      %v5099 = vmul.f32 %v5064, %v5067
      %v5100 = vmul.f32 %v5065, %v5067
      %v5102 = vperm.slane %v988, 0
      %v5104 = vadd.f32 %v5069, %v5102
      %v5105 = vadd.f32 %v5070, %v5102
      %v5106 = vadd.f32 %v5071, %v5102
      %v5107 = vadd.f32 %v5072, %v5102
      %v5108 = vadd.f32 %v5073, %v5102
      %v5109 = vadd.f32 %v5074, %v5102
      %v5110 = vadd.f32 %v5075, %v5102
      %v5111 = vadd.f32 %v5076, %v5102
      %v5112 = vadd.f32 %v5077, %v5102
      %v5113 = vadd.f32 %v5078, %v5102
      %v5114 = vadd.f32 %v5079, %v5102
      %v5115 = vadd.f32 %v5080, %v5102
      %v5116 = vadd.f32 %v5081, %v5102
      %v5117 = vadd.f32 %v5082, %v5102
      %v5118 = vadd.f32 %v5083, %v5102
      %v5119 = vadd.f32 %v5084, %v5102
      %v5120 = vadd.f32 %v5085, %v5102
      %v5121 = vadd.f32 %v5086, %v5102
      %v5122 = vadd.f32 %v5087, %v5102
      %v5123 = vadd.f32 %v5088, %v5102
      %v5124 = vadd.f32 %v5089, %v5102
      %v5125 = vadd.f32 %v5090, %v5102
      %v5126 = vadd.f32 %v5091, %v5102
      %v5127 = vadd.f32 %v5092, %v5102
      %v5128 = vadd.f32 %v5093, %v5102
      %v5129 = vadd.f32 %v5094, %v5102
      %v5130 = vadd.f32 %v5095, %v5102
      %v5131 = vadd.f32 %v5096, %v5102
      %v5132 = vadd.f32 %v5097, %v5102
      %v5133 = vadd.f32 %v5098, %v5102
      %v5134 = vadd.f32 %v5099, %v5102
      %v5135 = vadd.f32 %v5100, %v5102
      %v5136 = vmax.f32 %v5104, 0.0
      %v5137 = vmax.f32 %v5105, 0.0
      %v5138 = vmax.f32 %v5106, 0.0
      %v5139 = vmax.f32 %v5107, 0.0
      %v5140 = vmax.f32 %v5108, 0.0
      %v5141 = vmax.f32 %v5109, 0.0
      %v5142 = vmax.f32 %v5110, 0.0
      %v5143 = vmax.f32 %v5111, 0.0
      %v5144 = vmax.f32 %v5112, 0.0
      %v5145 = vmax.f32 %v5113, 0.0
      %v5146 = vmax.f32 %v5114, 0.0
      %v5147 = vmax.f32 %v5115, 0.0
      %v5148 = vmax.f32 %v5116, 0.0
      %v5149 = vmax.f32 %v5117, 0.0
      %v5150 = vmax.f32 %v5118, 0.0
      %v5151 = vmax.f32 %v5119, 0.0
      %v5152 = vmax.f32 %v5120, 0.0
      %v5153 = vmax.f32 %v5121, 0.0
      %v5154 = vmax.f32 %v5122, 0.0
      %v5155 = vmax.f32 %v5123, 0.0
      %v5156 = vmax.f32 %v5124, 0.0
      %v5157 = vmax.f32 %v5125, 0.0
      %v5158 = vmax.f32 %v5126, 0.0
      %v5159 = vmax.f32 %v5127, 0.0
      %v5160 = vmax.f32 %v5128, 0.0
      %v5161 = vmax.f32 %v5129, 0.0
      %v5162 = vmax.f32 %v5130, 0.0
      %v5163 = vmax.f32 %v5131, 0.0
      %v5164 = vmax.f32 %v5132, 0.0
      %v5165 = vmax.f32 %v5133, 0.0
      %v5166 = vmax.f32 %v5134, 0.0
      %v5167 = vmax.f32 %v5135, 0.0
      %v5168 = vsel %vm2394, %v1268, 0
      %v5170 = vsel %vm2394, %v1270, 0
      %v5172 = vsel %vm2394, %v1273, 0
      %v5174 = vsel %vm2394, %v1275, 0
      %v5176 = vsel %vm2394, %v1278, 0
      %v5178 = vsel %vm2394, %v1280, 0
      %v5180 = vsel %vm2394, %v1283, 0
      %v5182 = vsel %vm2394, %v1285, 0
      %v5184 = vsel %vm2394, %v1288, 0
      %v5186 = vsel %vm2394, %v1290, 0
      %v5188 = vsel %vm2394, %v1293, 0
      %v5190 = vsel %vm2394, %v1295, 0
      %v5192 = vsel %vm2394, %v1298, 0
      %v5194 = vsel %vm2394, %v1300, 0
      %v5196 = vsel %vm2394, %v1303, 0
      %v5198 = vsel %vm2394, %v1305, 0
      %v5200 = vsel %vm2394, %v1308, 0
      %v5202 = vsel %vm2394, %v1310, 0
      %v5204 = vsel %vm2394, %v1313, 0
      %v5206 = vsel %vm2394, %v1315, 0
      %v5208 = vsel %vm2394, %v1318, 0
      %v5210 = vsel %vm2394, %v1320, 0
      %v5212 = vsel %vm2394, %v1323, 0
      %v5214 = vsel %vm2394, %v1325, 0
      %v5216 = vsel %vm2394, %v1328, 0
      %v5218 = vsel %vm2394, %v1330, 0
      %v5220 = vsel %vm2394, %v1333, 0
      %v5222 = vsel %vm2394, %v1335, 0
      %v5224 = vsel %vm2394, %v1338, 0
      %v5226 = vsel %vm2394, %v1340, 0
      %v5228 = vsel %vm2394, %v1579, 0
      %v5230 = vsel %vm2394, %v1581, 0
      %v5233 = vsel %vm2459, %v966, 0
      %5235 = vmatpush.msra.mxu0 0.0
      %5236 = vmatpush.msra.mxu0 0.0
      %5237 = vmatpush.msra.mxu0 0.0
      %5238 = vmatpush.msra.mxu0 0.0
      %5239 = vmatpush.msra.mxu0 0.0
      %5240 = vmatpush.msra.mxu0 0.0
      %5241 = vmatpush.msra.mxu0 0.0
      %5242 = vmatpush.msra.mxu0 0.0
      %5243 = vmatpush.msra.mxu0 0.0
      %5244 = vmatpush.msra.mxu0 0.0
      %5245 = vmatpush.msra.mxu0 0.0
      %5246 = vmatpush.msra.mxu0 0.0
      %5247 = vmatpush.msra.mxu0 0.0
      %5248 = vmatpush.msra.mxu0 0.0
      %5249 = vmatpush.msra.mxu0 0.0
      %5250 = vmatpush.msra.mxu0 %v5233
      %5251 = vmatmul.f32.gmra.mxu0 %v5168
      %v5252 = vpop.f32.mrf.mxu0
      %v5253 = vadd.f32 0.0, %v5252
      %5254 = vmatmul.f32.gmra.mxu0 %v5170
      %v5255 = vpop.f32.mrf.mxu0
      %v5256 = vadd.f32 0.0, %v5255
      %5257 = vmatmul.f32.gmra.mxu0 %v5172
      %v5258 = vpop.f32.mrf.mxu0
      %v5259 = vadd.f32 0.0, %v5258
      %5260 = vmatmul.f32.gmra.mxu0 %v5174
      %v5261 = vpop.f32.mrf.mxu0
      %v5262 = vadd.f32 0.0, %v5261
      %5263 = vmatmul.f32.gmra.mxu0 %v5176
      %v5264 = vpop.f32.mrf.mxu0
      %v5265 = vadd.f32 0.0, %v5264
      %5266 = vmatmul.f32.gmra.mxu0 %v5178
      %v5267 = vpop.f32.mrf.mxu0
      %v5268 = vadd.f32 0.0, %v5267
      %5269 = vmatmul.f32.gmra.mxu0 %v5180
      %v5270 = vpop.f32.mrf.mxu0
      %v5271 = vadd.f32 0.0, %v5270
      %5272 = vmatmul.f32.gmra.mxu0 %v5182
      %v5273 = vpop.f32.mrf.mxu0
      %v5274 = vadd.f32 0.0, %v5273
      %5275 = vmatmul.f32.gmra.mxu0 %v5184
      %v5276 = vpop.f32.mrf.mxu0
      %v5277 = vadd.f32 0.0, %v5276
      %5278 = vmatmul.f32.gmra.mxu0 %v5186
      %v5279 = vpop.f32.mrf.mxu0
      %v5280 = vadd.f32 0.0, %v5279
      %5281 = vmatmul.f32.gmra.mxu0 %v5188
      %v5282 = vpop.f32.mrf.mxu0
      %v5283 = vadd.f32 0.0, %v5282
      %5284 = vmatmul.f32.gmra.mxu0 %v5190
      %v5285 = vpop.f32.mrf.mxu0
      %v5286 = vadd.f32 0.0, %v5285
      %5287 = vmatmul.f32.gmra.mxu0 %v5192
      %v5288 = vpop.f32.mrf.mxu0
      %v5289 = vadd.f32 0.0, %v5288
      %5290 = vmatmul.f32.gmra.mxu0 %v5194
      %v5291 = vpop.f32.mrf.mxu0
      %v5292 = vadd.f32 0.0, %v5291
      %5293 = vmatmul.f32.gmra.mxu0 %v5196
      %v5294 = vpop.f32.mrf.mxu0
      %v5295 = vadd.f32 0.0, %v5294
      %5296 = vmatmul.f32.gmra.mxu0 %v5198
      %v5297 = vpop.f32.mrf.mxu0
      %v5298 = vadd.f32 0.0, %v5297
      %5299 = vmatmul.f32.gmra.mxu0 %v5200
      %v5300 = vpop.f32.mrf.mxu0
      %v5301 = vadd.f32 0.0, %v5300
      %5302 = vmatmul.f32.gmra.mxu0 %v5202
      %v5303 = vpop.f32.mrf.mxu0
      %v5304 = vadd.f32 0.0, %v5303
      %5305 = vmatmul.f32.gmra.mxu0 %v5204
      %v5306 = vpop.f32.mrf.mxu0
      %v5307 = vadd.f32 0.0, %v5306
      %5308 = vmatmul.f32.gmra.mxu0 %v5206
      %v5309 = vpop.f32.mrf.mxu0
      %v5310 = vadd.f32 0.0, %v5309
      %5311 = vmatmul.f32.gmra.mxu0 %v5208
      %v5312 = vpop.f32.mrf.mxu0
      %v5313 = vadd.f32 0.0, %v5312
      %5314 = vmatmul.f32.gmra.mxu0 %v5210
      %v5315 = vpop.f32.mrf.mxu0
      %v5316 = vadd.f32 0.0, %v5315
      %5317 = vmatmul.f32.gmra.mxu0 %v5212
      %v5318 = vpop.f32.mrf.mxu0
      %v5319 = vadd.f32 0.0, %v5318
      %5320 = vmatmul.f32.gmra.mxu0 %v5214
      %v5321 = vpop.f32.mrf.mxu0
      %v5322 = vadd.f32 0.0, %v5321
      %5323 = vmatmul.f32.gmra.mxu0 %v5216
      %v5324 = vpop.f32.mrf.mxu0
      %v5325 = vadd.f32 0.0, %v5324
      %5326 = vmatmul.f32.gmra.mxu0 %v5218
      %v5327 = vpop.f32.mrf.mxu0
      %v5328 = vadd.f32 0.0, %v5327
      %5329 = vmatmul.f32.gmra.mxu0 %v5220
      %v5330 = vpop.f32.mrf.mxu0
      %v5331 = vadd.f32 0.0, %v5330
      %5332 = vmatmul.f32.gmra.mxu0 %v5222
      %v5333 = vpop.f32.mrf.mxu0
      %v5334 = vadd.f32 0.0, %v5333
      %5335 = vmatmul.f32.gmra.mxu0 %v5224
      %v5336 = vpop.f32.mrf.mxu0
      %v5337 = vadd.f32 0.0, %v5336
      %5338 = vmatmul.f32.gmra.mxu0 %v5226
      %v5339 = vpop.f32.mrf.mxu0
      %v5340 = vadd.f32 0.0, %v5339
      %5341 = vmatmul.f32.gmra.mxu0 %v5228
      %v5342 = vpop.f32.mrf.mxu0
      %v5343 = vadd.f32 0.0, %v5342
      %5344 = vmatmul.f32.gmra.mxu0 %v5230
      %v5345 = vpop.f32.mrf.mxu0
      %v5346 = vadd.f32 0.0, %v5345
      %5347 = vdwg.mxu0
      %v5348 = vsel %vm2394, %v1170, 0
      %v5350 = vsel %vm2394, %v1076, 0
      %v5352 = vsel %vm2394, %v1171, 0
      %v5354 = vsel %vm2394, %v1079, 0
      %v5356 = vsel %vm2394, %v1172, 0
      %v5358 = vsel %vm2394, %v1082, 0
      %v5360 = vsel %vm2394, %v1173, 0
      %v5362 = vsel %vm2394, %v1085, 0
      %v5364 = vsel %vm2394, %v1174, 0
      %v5366 = vsel %vm2394, %v1088, 0
      %v5368 = vsel %vm2394, %v1175, 0
      %v5370 = vsel %vm2394, %v1091, 0
      %v5372 = vsel %vm2394, %v1176, 0
      %v5374 = vsel %vm2394, %v1094, 0
      %v5376 = vsel %vm2394, %v1177, 0
      %v5378 = vsel %vm2394, %v1097, 0
      %v5380 = vsel %vm2394, %v1178, 0
      %v5382 = vsel %vm2394, %v1100, 0
      %v5384 = vsel %vm2394, %v1179, 0
      %v5386 = vsel %vm2394, %v1103, 0
      %v5388 = vsel %vm2394, %v1180, 0
      %v5390 = vsel %vm2394, %v1106, 0
      %v5392 = vsel %vm2394, %v1181, 0
      %v5394 = vsel %vm2394, %v1109, 0
      %v5396 = vsel %vm2394, %v1182, 0
      %v5398 = vsel %vm2394, %v1112, 0
      %v5400 = vsel %vm2394, %v1183, 0
      %v5402 = vsel %vm2394, %v1115, 0
      %v5404 = vsel %vm2394, %v1184, 0
      %v5406 = vsel %vm2394, %v1118, 0
      %v5408 = vsel %vm2394, %v1185, 0
      %v5410 = vsel %vm2394, %v1121, 0
      %v5413 = vsel %vm2459, %v965, 0
      %5415 = vmatpush.msra.mxu0 0.0
      %5416 = vmatpush.msra.mxu0 0.0
      %5417 = vmatpush.msra.mxu0 0.0
      %5418 = vmatpush.msra.mxu0 0.0
      %5419 = vmatpush.msra.mxu0 0.0
      %5420 = vmatpush.msra.mxu0 0.0
      %5421 = vmatpush.msra.mxu0 0.0
      %5422 = vmatpush.msra.mxu0 0.0
      %5423 = vmatpush.msra.mxu0 0.0
      %5424 = vmatpush.msra.mxu0 0.0
      %5425 = vmatpush.msra.mxu0 0.0
      %5426 = vmatpush.msra.mxu0 0.0
      %5427 = vmatpush.msra.mxu0 0.0
      %5428 = vmatpush.msra.mxu0 0.0
      %5429 = vmatpush.msra.mxu0 0.0
      %5430 = vmatpush.msra.mxu0 %v5413
      %5431 = vmatmul.f32.gmra.mxu0 %v5348
      %v5432 = vpop.f32.mrf.mxu0
      %v5433 = vadd.f32 %v5253, %v5432
      %5434 = vmatmul.f32.gmra.mxu0 %v5350
      %v5435 = vpop.f32.mrf.mxu0
      %v5436 = vadd.f32 %v5256, %v5435
      %5437 = vmatmul.f32.gmra.mxu0 %v5352
      %v5438 = vpop.f32.mrf.mxu0
      %v5439 = vadd.f32 %v5259, %v5438
      %5440 = vmatmul.f32.gmra.mxu0 %v5354
      %v5441 = vpop.f32.mrf.mxu0
      %v5442 = vadd.f32 %v5262, %v5441
      %5443 = vmatmul.f32.gmra.mxu0 %v5356
      %v5444 = vpop.f32.mrf.mxu0
      %v5445 = vadd.f32 %v5265, %v5444
      %5446 = vmatmul.f32.gmra.mxu0 %v5358
      %v5447 = vpop.f32.mrf.mxu0
      %v5448 = vadd.f32 %v5268, %v5447
      %5449 = vmatmul.f32.gmra.mxu0 %v5360
      %v5450 = vpop.f32.mrf.mxu0
      %v5451 = vadd.f32 %v5271, %v5450
      %5452 = vmatmul.f32.gmra.mxu0 %v5362
      %v5453 = vpop.f32.mrf.mxu0
      %v5454 = vadd.f32 %v5274, %v5453
      %5455 = vmatmul.f32.gmra.mxu0 %v5364
      %v5456 = vpop.f32.mrf.mxu0
      %v5457 = vadd.f32 %v5277, %v5456
      %5458 = vmatmul.f32.gmra.mxu0 %v5366
      %v5459 = vpop.f32.mrf.mxu0
      %v5460 = vadd.f32 %v5280, %v5459
      %5461 = vmatmul.f32.gmra.mxu0 %v5368
      %v5462 = vpop.f32.mrf.mxu0
      %v5463 = vadd.f32 %v5283, %v5462
      %5464 = vmatmul.f32.gmra.mxu0 %v5370
      %v5465 = vpop.f32.mrf.mxu0
      %v5466 = vadd.f32 %v5286, %v5465
      %5467 = vmatmul.f32.gmra.mxu0 %v5372
      %v5468 = vpop.f32.mrf.mxu0
      %v5469 = vadd.f32 %v5289, %v5468
      %5470 = vmatmul.f32.gmra.mxu0 %v5374
      %v5471 = vpop.f32.mrf.mxu0
      %v5472 = vadd.f32 %v5292, %v5471
      %5473 = vmatmul.f32.gmra.mxu0 %v5376
      %v5474 = vpop.f32.mrf.mxu0
      %v5475 = vadd.f32 %v5295, %v5474
      %5476 = vmatmul.f32.gmra.mxu0 %v5378
      %v5477 = vpop.f32.mrf.mxu0
      %v5478 = vadd.f32 %v5298, %v5477
      %5479 = vmatmul.f32.gmra.mxu0 %v5380
      %v5480 = vpop.f32.mrf.mxu0
      %v5481 = vadd.f32 %v5301, %v5480
      %5482 = vmatmul.f32.gmra.mxu0 %v5382
      %v5483 = vpop.f32.mrf.mxu0
      %v5484 = vadd.f32 %v5304, %v5483
      %5485 = vmatmul.f32.gmra.mxu0 %v5384
      %v5486 = vpop.f32.mrf.mxu0
      %v5487 = vadd.f32 %v5307, %v5486
      %5488 = vmatmul.f32.gmra.mxu0 %v5386
      %v5489 = vpop.f32.mrf.mxu0
      %v5490 = vadd.f32 %v5310, %v5489
      %5491 = vmatmul.f32.gmra.mxu0 %v5388
      %v5492 = vpop.f32.mrf.mxu0
      %v5493 = vadd.f32 %v5313, %v5492
      %5494 = vmatmul.f32.gmra.mxu0 %v5390
      %v5495 = vpop.f32.mrf.mxu0
      %v5496 = vadd.f32 %v5316, %v5495
      %5497 = vmatmul.f32.gmra.mxu0 %v5392
      %v5498 = vpop.f32.mrf.mxu0
      %v5499 = vadd.f32 %v5319, %v5498
      %5500 = vmatmul.f32.gmra.mxu0 %v5394
      %v5501 = vpop.f32.mrf.mxu0
      %v5502 = vadd.f32 %v5322, %v5501
      %5503 = vmatmul.f32.gmra.mxu0 %v5396
      %v5504 = vpop.f32.mrf.mxu0
      %v5505 = vadd.f32 %v5325, %v5504
      %5506 = vmatmul.f32.gmra.mxu0 %v5398
      %v5507 = vpop.f32.mrf.mxu0
      %v5508 = vadd.f32 %v5328, %v5507
      %5509 = vmatmul.f32.gmra.mxu0 %v5400
      %v5510 = vpop.f32.mrf.mxu0
      %v5511 = vadd.f32 %v5331, %v5510
      %5512 = vmatmul.f32.gmra.mxu0 %v5402
      %v5513 = vpop.f32.mrf.mxu0
      %v5514 = vadd.f32 %v5334, %v5513
      %5515 = vmatmul.f32.gmra.mxu0 %v5404
      %v5516 = vpop.f32.mrf.mxu0
      %v5517 = vadd.f32 %v5337, %v5516
      %5518 = vmatmul.f32.gmra.mxu0 %v5406
      %v5519 = vpop.f32.mrf.mxu0
      %v5520 = vadd.f32 %v5340, %v5519
      %5521 = vmatmul.f32.gmra.mxu0 %v5408
      %v5522 = vpop.f32.mrf.mxu0
      %v5523 = vadd.f32 %v5343, %v5522
      %5524 = vmatmul.f32.gmra.mxu0 %v5410
      %v5525 = vpop.f32.mrf.mxu0
      %v5526 = vadd.f32 %v5346, %v5525
      %5527 = vdwg.mxu0
      %v5528 = vsel %vm2394, %v1408, 0
      %v5530 = vsel %vm2394, %v1410, 0
      %v5532 = vsel %vm2394, %v1413, 0
      %v5534 = vsel %vm2394, %v1415, 0
      %v5536 = vsel %vm2394, %v1418, 0
      %v5538 = vsel %vm2394, %v1420, 0
      %v5540 = vsel %vm2394, %v1423, 0
      %v5542 = vsel %vm2394, %v1425, 0
      %v5544 = vsel %vm2394, %v1428, 0
      %v5546 = vsel %vm2394, %v1430, 0
      %v5548 = vsel %vm2394, %v1433, 0
      %v5550 = vsel %vm2394, %v1435, 0
      %v5552 = vsel %vm2394, %v1438, 0
      %v5554 = vsel %vm2394, %v1440, 0
      %v5556 = vsel %vm2394, %v1443, 0
      %v5558 = vsel %vm2394, %v1445, 0
      %v5560 = vsel %vm2394, %v1448, 0
      %v5562 = vsel %vm2394, %v1450, 0
      %v5564 = vsel %vm2394, %v1453, 0
      %v5566 = vsel %vm2394, %v1455, 0
      %v5568 = vsel %vm2394, %v1458, 0
      %v5570 = vsel %vm2394, %v1460, 0
      %v5572 = vsel %vm2394, %v1463, 0
      %v5574 = vsel %vm2394, %v1465, 0
      %v5576 = vsel %vm2394, %v1468, 0
      %v5578 = vsel %vm2394, %v1470, 0
      %v5580 = vsel %vm2394, %v1473, 0
      %v5582 = vsel %vm2394, %v1475, 0
      %v5584 = vsel %vm2394, %v1478, 0
      %v5586 = vsel %vm2394, %v1480, 0
      %v5588 = vsel %vm2394, %v1618, 0
      %v5590 = vsel %vm2394, %v1620, 0
      %v5593 = vsel %vm2459, %v967, 0
      %5595 = vmatpush.msra.mxu0 0.0
      %5596 = vmatpush.msra.mxu0 0.0
      %5597 = vmatpush.msra.mxu0 0.0
      %5598 = vmatpush.msra.mxu0 0.0
      %5599 = vmatpush.msra.mxu0 0.0
      %5600 = vmatpush.msra.mxu0 0.0
      %5601 = vmatpush.msra.mxu0 0.0
      %5602 = vmatpush.msra.mxu0 0.0
      %5603 = vmatpush.msra.mxu0 0.0
      %5604 = vmatpush.msra.mxu0 0.0
      %5605 = vmatpush.msra.mxu0 0.0
      %5606 = vmatpush.msra.mxu0 0.0
      %5607 = vmatpush.msra.mxu0 0.0
      %5608 = vmatpush.msra.mxu0 0.0
      %5609 = vmatpush.msra.mxu0 0.0
      %5610 = vmatpush.msra.mxu0 %v5593
      %5611 = vmatmul.f32.gmra.mxu0 %v5528
      %v5612 = vpop.f32.mrf.mxu0
      %v5613 = vadd.f32 0.0, %v5612
      %5614 = vmatmul.f32.gmra.mxu0 %v5530
      %v5615 = vpop.f32.mrf.mxu0
      %v5616 = vadd.f32 0.0, %v5615
      %5617 = vmatmul.f32.gmra.mxu0 %v5532
      %v5618 = vpop.f32.mrf.mxu0
      %v5619 = vadd.f32 0.0, %v5618
      %5620 = vmatmul.f32.gmra.mxu0 %v5534
      %v5621 = vpop.f32.mrf.mxu0
      %v5622 = vadd.f32 0.0, %v5621
      %5623 = vmatmul.f32.gmra.mxu0 %v5536
      %v5624 = vpop.f32.mrf.mxu0
      %v5625 = vadd.f32 0.0, %v5624
      %5626 = vmatmul.f32.gmra.mxu0 %v5538
      %v5627 = vpop.f32.mrf.mxu0
      %v5628 = vadd.f32 0.0, %v5627
      %5629 = vmatmul.f32.gmra.mxu0 %v5540
      %v5630 = vpop.f32.mrf.mxu0
      %v5631 = vadd.f32 0.0, %v5630
      %5632 = vmatmul.f32.gmra.mxu0 %v5542
      %v5633 = vpop.f32.mrf.mxu0
      %v5634 = vadd.f32 0.0, %v5633
      %5635 = vmatmul.f32.gmra.mxu0 %v5544
      %v5636 = vpop.f32.mrf.mxu0
      %v5637 = vadd.f32 0.0, %v5636
      %5638 = vmatmul.f32.gmra.mxu0 %v5546
      %v5639 = vpop.f32.mrf.mxu0
      %v5640 = vadd.f32 0.0, %v5639
      %5641 = vmatmul.f32.gmra.mxu0 %v5548
      %v5642 = vpop.f32.mrf.mxu0
      %v5643 = vadd.f32 0.0, %v5642
      %5644 = vmatmul.f32.gmra.mxu0 %v5550
      %v5645 = vpop.f32.mrf.mxu0
      %v5646 = vadd.f32 0.0, %v5645
      %5647 = vmatmul.f32.gmra.mxu0 %v5552
      %v5648 = vpop.f32.mrf.mxu0
      %v5649 = vadd.f32 0.0, %v5648
      %5650 = vmatmul.f32.gmra.mxu0 %v5554
      %v5651 = vpop.f32.mrf.mxu0
      %v5652 = vadd.f32 0.0, %v5651
      %5653 = vmatmul.f32.gmra.mxu0 %v5556
      %v5654 = vpop.f32.mrf.mxu0
      %v5655 = vadd.f32 0.0, %v5654
      %5656 = vmatmul.f32.gmra.mxu0 %v5558
      %v5657 = vpop.f32.mrf.mxu0
      %v5658 = vadd.f32 0.0, %v5657
      %5659 = vmatmul.f32.gmra.mxu0 %v5560
      %v5660 = vpop.f32.mrf.mxu0
      %v5661 = vadd.f32 0.0, %v5660
      %5662 = vmatmul.f32.gmra.mxu0 %v5562
      %v5663 = vpop.f32.mrf.mxu0
      %v5664 = vadd.f32 0.0, %v5663
      %5665 = vmatmul.f32.gmra.mxu0 %v5564
      %v5666 = vpop.f32.mrf.mxu0
      %v5667 = vadd.f32 0.0, %v5666
      %5668 = vmatmul.f32.gmra.mxu0 %v5566
      %v5669 = vpop.f32.mrf.mxu0
      %v5670 = vadd.f32 0.0, %v5669
      %5671 = vmatmul.f32.gmra.mxu0 %v5568
      %v5672 = vpop.f32.mrf.mxu0
      %v5673 = vadd.f32 0.0, %v5672
      %5674 = vmatmul.f32.gmra.mxu0 %v5570
      %v5675 = vpop.f32.mrf.mxu0
      %v5676 = vadd.f32 0.0, %v5675
      %5677 = vmatmul.f32.gmra.mxu0 %v5572
      %v5678 = vpop.f32.mrf.mxu0
      %v5679 = vadd.f32 0.0, %v5678
      %5680 = vmatmul.f32.gmra.mxu0 %v5574
      %v5681 = vpop.f32.mrf.mxu0
      %v5682 = vadd.f32 0.0, %v5681
      %5683 = vmatmul.f32.gmra.mxu0 %v5576
      %v5684 = vpop.f32.mrf.mxu0
      %v5685 = vadd.f32 0.0, %v5684
      %5686 = vmatmul.f32.gmra.mxu0 %v5578
      %v5687 = vpop.f32.mrf.mxu0
      %v5688 = vadd.f32 0.0, %v5687
      %5689 = vmatmul.f32.gmra.mxu0 %v5580
      %v5690 = vpop.f32.mrf.mxu0
      %v5691 = vadd.f32 0.0, %v5690
      %5692 = vmatmul.f32.gmra.mxu0 %v5582
      %v5693 = vpop.f32.mrf.mxu0
      %v5694 = vadd.f32 0.0, %v5693
      %5695 = vmatmul.f32.gmra.mxu0 %v5584
      %v5696 = vpop.f32.mrf.mxu0
      %v5697 = vadd.f32 0.0, %v5696
      %5698 = vmatmul.f32.gmra.mxu0 %v5586
      %v5699 = vpop.f32.mrf.mxu0
      %v5700 = vadd.f32 0.0, %v5699
      %5701 = vmatmul.f32.gmra.mxu0 %v5588
      %v5702 = vpop.f32.mrf.mxu0
      %v5703 = vadd.f32 0.0, %v5702
      %5704 = vmatmul.f32.gmra.mxu0 %v5590
      %v5705 = vpop.f32.mrf.mxu0
      %v5706 = vadd.f32 0.0, %v5705
      %5707 = vdwg.mxu0
      %v5708 = vadd.f32 %v5433, %v5613
      %v5709 = vadd.f32 %v5436, %v5616
      %v5710 = vadd.f32 %v5439, %v5619
      %v5711 = vadd.f32 %v5442, %v5622
      %v5712 = vadd.f32 %v5445, %v5625
      %v5713 = vadd.f32 %v5448, %v5628
      %v5714 = vadd.f32 %v5451, %v5631
      %v5715 = vadd.f32 %v5454, %v5634
      %v5716 = vadd.f32 %v5457, %v5637
      %v5717 = vadd.f32 %v5460, %v5640
      %v5718 = vadd.f32 %v5463, %v5643
      %v5719 = vadd.f32 %v5466, %v5646
      %v5720 = vadd.f32 %v5469, %v5649
      %v5721 = vadd.f32 %v5472, %v5652
      %v5722 = vadd.f32 %v5475, %v5655
      %v5723 = vadd.f32 %v5478, %v5658
      %v5724 = vadd.f32 %v5481, %v5661
      %v5725 = vadd.f32 %v5484, %v5664
      %v5726 = vadd.f32 %v5487, %v5667
      %v5727 = vadd.f32 %v5490, %v5670
      %v5728 = vadd.f32 %v5493, %v5673
      %v5729 = vadd.f32 %v5496, %v5676
      %v5730 = vadd.f32 %v5499, %v5679
      %v5731 = vadd.f32 %v5502, %v5682
      %v5732 = vadd.f32 %v5505, %v5685
      %v5733 = vadd.f32 %v5508, %v5688
      %v5734 = vadd.f32 %v5511, %v5691
      %v5735 = vadd.f32 %v5514, %v5694
      %v5736 = vadd.f32 %v5517, %v5697
      %v5737 = vadd.f32 %v5520, %v5700
      %v5738 = vadd.f32 %v5523, %v5703
      %v5739 = vadd.f32 %v5526, %v5706
      %v5741 = vperm.slane %v968, 0
      %v5743 = vmul.f32 %v5708, %v5741
      %v5744 = vmul.f32 %v5709, %v5741
      %v5745 = vmul.f32 %v5710, %v5741
      %v5746 = vmul.f32 %v5711, %v5741
      %v5747 = vmul.f32 %v5712, %v5741
      %v5748 = vmul.f32 %v5713, %v5741
      %v5749 = vmul.f32 %v5714, %v5741
      %v5750 = vmul.f32 %v5715, %v5741
      %v5751 = vmul.f32 %v5716, %v5741
      %v5752 = vmul.f32 %v5717, %v5741
      %v5753 = vmul.f32 %v5718, %v5741
      %v5754 = vmul.f32 %v5719, %v5741
      %v5755 = vmul.f32 %v5720, %v5741
      %v5756 = vmul.f32 %v5721, %v5741
      %v5757 = vmul.f32 %v5722, %v5741
      %v5758 = vmul.f32 %v5723, %v5741
      %v5759 = vmul.f32 %v5724, %v5741
      %v5760 = vmul.f32 %v5725, %v5741
      %v5761 = vmul.f32 %v5726, %v5741
      %v5762 = vmul.f32 %v5727, %v5741
      %v5763 = vmul.f32 %v5728, %v5741
      %v5764 = vmul.f32 %v5729, %v5741
      %v5765 = vmul.f32 %v5730, %v5741
      %v5766 = vmul.f32 %v5731, %v5741
      %v5767 = vmul.f32 %v5732, %v5741
      %v5768 = vmul.f32 %v5733, %v5741
      %v5769 = vmul.f32 %v5734, %v5741
      %v5770 = vmul.f32 %v5735, %v5741
      %v5771 = vmul.f32 %v5736, %v5741
      %v5772 = vmul.f32 %v5737, %v5741
      %v5773 = vmul.f32 %v5738, %v5741
      %v5774 = vmul.f32 %v5739, %v5741
      %v5776 = vperm.slane %v969, 0
      %v5778 = vadd.f32 %v5743, %v5776
      %v5779 = vadd.f32 %v5744, %v5776
      %v5780 = vadd.f32 %v5745, %v5776
      %v5781 = vadd.f32 %v5746, %v5776
      %v5782 = vadd.f32 %v5747, %v5776
      %v5783 = vadd.f32 %v5748, %v5776
      %v5784 = vadd.f32 %v5749, %v5776
      %v5785 = vadd.f32 %v5750, %v5776
      %v5786 = vadd.f32 %v5751, %v5776
      %v5787 = vadd.f32 %v5752, %v5776
      %v5788 = vadd.f32 %v5753, %v5776
      %v5789 = vadd.f32 %v5754, %v5776
      %v5790 = vadd.f32 %v5755, %v5776
      %v5791 = vadd.f32 %v5756, %v5776
      %v5792 = vadd.f32 %v5757, %v5776
      %v5793 = vadd.f32 %v5758, %v5776
      %v5794 = vadd.f32 %v5759, %v5776
      %v5795 = vadd.f32 %v5760, %v5776
      %v5796 = vadd.f32 %v5761, %v5776
      %v5797 = vadd.f32 %v5762, %v5776
      %v5798 = vadd.f32 %v5763, %v5776
      %v5799 = vadd.f32 %v5764, %v5776
      %v5800 = vadd.f32 %v5765, %v5776
      %v5801 = vadd.f32 %v5766, %v5776
      %v5802 = vadd.f32 %v5767, %v5776
      %v5803 = vadd.f32 %v5768, %v5776
      %v5804 = vadd.f32 %v5769, %v5776
      %v5805 = vadd.f32 %v5770, %v5776
      %v5806 = vadd.f32 %v5771, %v5776
      %v5807 = vadd.f32 %v5772, %v5776
      %v5808 = vadd.f32 %v5773, %v5776
      %v5809 = vadd.f32 %v5774, %v5776
      %v5810 = vmax.f32 %v5778, 0.0
      %v5811 = vmax.f32 %v5779, 0.0
      %v5812 = vmax.f32 %v5780, 0.0
      %v5813 = vmax.f32 %v5781, 0.0
      %v5814 = vmax.f32 %v5782, 0.0
      %v5815 = vmax.f32 %v5783, 0.0
      %v5816 = vmax.f32 %v5784, 0.0
      %v5817 = vmax.f32 %v5785, 0.0
      %v5818 = vmax.f32 %v5786, 0.0
      %v5819 = vmax.f32 %v5787, 0.0
      %v5820 = vmax.f32 %v5788, 0.0
      %v5821 = vmax.f32 %v5789, 0.0
      %v5822 = vmax.f32 %v5790, 0.0
      %v5823 = vmax.f32 %v5791, 0.0
      %v5824 = vmax.f32 %v5792, 0.0
      %v5825 = vmax.f32 %v5793, 0.0
      %v5826 = vmax.f32 %v5794, 0.0
      %v5827 = vmax.f32 %v5795, 0.0
      %v5828 = vmax.f32 %v5796, 0.0
      %v5829 = vmax.f32 %v5797, 0.0
      %v5830 = vmax.f32 %v5798, 0.0
      %v5831 = vmax.f32 %v5799, 0.0
      %v5832 = vmax.f32 %v5800, 0.0
      %v5833 = vmax.f32 %v5801, 0.0
      %v5834 = vmax.f32 %v5802, 0.0
      %v5835 = vmax.f32 %v5803, 0.0
      %v5836 = vmax.f32 %v5804, 0.0
      %v5837 = vmax.f32 %v5805, 0.0
      %v5838 = vmax.f32 %v5806, 0.0
      %v5839 = vmax.f32 %v5807, 0.0
      %v5840 = vmax.f32 %v5808, 0.0
      %v5841 = vmax.f32 %v5809, 0.0
      %v5843 = vsel %vm4306, %v5810, 0
      %v5846 = vsel %vm4306, %v5811, 0
      %v5849 = vsel %vm4306, %v5812, 0
      %v5852 = vsel %vm4306, %v5813, 0
      %v5855 = vsel %vm4306, %v5814, 0
      %v5858 = vsel %vm4306, %v5815, 0
      %v5861 = vsel %vm4306, %v5816, 0
      %v5864 = vsel %vm4306, %v5817, 0
      %v5867 = vsel %vm4306, %v5818, 0
      %v5870 = vsel %vm4306, %v5819, 0
      %v5873 = vsel %vm4306, %v5820, 0
      %v5876 = vsel %vm4306, %v5821, 0
      %v5879 = vsel %vm4306, %v5822, 0
      %v5882 = vsel %vm4306, %v5823, 0
      %v5885 = vsel %vm4306, %v5824, 0
      %v5888 = vsel %vm4306, %v5825, 0
      %v5891 = vsel %vm4306, %v5826, 0
      %v5894 = vsel %vm4306, %v5827, 0
      %v5897 = vsel %vm4306, %v5828, 0
      %v5900 = vsel %vm4306, %v5829, 0
      %v5903 = vsel %vm4306, %v5830, 0
      %v5906 = vsel %vm4306, %v5831, 0
      %v5909 = vsel %vm4306, %v5832, 0
      %v5912 = vsel %vm4306, %v5833, 0
      %v5915 = vsel %vm4306, %v5834, 0
      %v5918 = vsel %vm4306, %v5835, 0
      %v5921 = vsel %vm4306, %v5836, 0
      %v5924 = vsel %vm4306, %v5837, 0
      %v5927 = vsel %vm4306, %v5838, 0
      %v5930 = vsel %vm4306, %v5839, 0
      %v5933 = vsel %vm4306, %v5840, 0
      %v5936 = vsel %vm4306, %v5841, 0
      %5938 = vmatpush.msra.mxu0 0.0
      %5939 = vmatpush.msra.mxu0 0.0
      %5940 = vmatpush.msra.mxu0 0.0
      %5941 = vmatpush.msra.mxu0 0.0
      %5942 = vmatpush.msra.mxu0 0.0
      %5943 = vmatpush.msra.mxu0 0.0
      %5944 = vmatpush.msra.mxu0 0.0
      %5945 = vmatpush.msra.mxu0 0.0
      %5946 = vmatpush.msra.mxu0 0.0
      %5947 = vmatpush.msra.mxu0 0.0
      %5948 = vmatpush.msra.mxu0 0.0
      %5949 = vmatpush.msra.mxu0 0.0
      %5950 = vmatpush.msra.mxu0 0.0
      %5951 = vmatpush.msra.mxu0 0.0
      %5952 = vmatpush.msra.mxu0 0.0
      %5953 = vmatpush.msra.mxu0 %v971
      %5954 = vmatmul.f32.gmra.mxu0 %v5843
      %v5955 = vpop.f32.mrf.mxu0
      %v5956 = vadd.f32 0.0, %v5955
      %5957 = vmatmul.f32.gmra.mxu0 %v5846
      %v5958 = vpop.f32.mrf.mxu0
      %v5959 = vadd.f32 0.0, %v5958
      %5960 = vmatmul.f32.gmra.mxu0 %v5849
      %v5961 = vpop.f32.mrf.mxu0
      %v5962 = vadd.f32 0.0, %v5961
      %5963 = vmatmul.f32.gmra.mxu0 %v5852
      %v5964 = vpop.f32.mrf.mxu0
      %v5965 = vadd.f32 0.0, %v5964
      %5966 = vmatmul.f32.gmra.mxu0 %v5855
      %v5967 = vpop.f32.mrf.mxu0
      %v5968 = vadd.f32 0.0, %v5967
      %5969 = vmatmul.f32.gmra.mxu0 %v5858
      %v5970 = vpop.f32.mrf.mxu0
      %v5971 = vadd.f32 0.0, %v5970
      %5972 = vmatmul.f32.gmra.mxu0 %v5861
      %v5973 = vpop.f32.mrf.mxu0
      %v5974 = vadd.f32 0.0, %v5973
      %5975 = vmatmul.f32.gmra.mxu0 %v5864
      %v5976 = vpop.f32.mrf.mxu0
      %v5977 = vadd.f32 0.0, %v5976
      %5978 = vmatmul.f32.gmra.mxu0 %v5867
      %v5979 = vpop.f32.mrf.mxu0
      %v5980 = vadd.f32 0.0, %v5979
      %5981 = vmatmul.f32.gmra.mxu0 %v5870
      %v5982 = vpop.f32.mrf.mxu0
      %v5983 = vadd.f32 0.0, %v5982
      %5984 = vmatmul.f32.gmra.mxu0 %v5873
      %v5985 = vpop.f32.mrf.mxu0
      %v5986 = vadd.f32 0.0, %v5985
      %5987 = vmatmul.f32.gmra.mxu0 %v5876
      %v5988 = vpop.f32.mrf.mxu0
      %v5989 = vadd.f32 0.0, %v5988
      %5990 = vmatmul.f32.gmra.mxu0 %v5879
      %v5991 = vpop.f32.mrf.mxu0
      %v5992 = vadd.f32 0.0, %v5991
      %5993 = vmatmul.f32.gmra.mxu0 %v5882
      %v5994 = vpop.f32.mrf.mxu0
      %v5995 = vadd.f32 0.0, %v5994
      %5996 = vmatmul.f32.gmra.mxu0 %v5885
      %v5997 = vpop.f32.mrf.mxu0
      %v5998 = vadd.f32 0.0, %v5997
      %5999 = vmatmul.f32.gmra.mxu0 %v5888
      %v6000 = vpop.f32.mrf.mxu0
      %v6001 = vadd.f32 0.0, %v6000
      %6002 = vmatmul.f32.gmra.mxu0 %v5891
      %v6003 = vpop.f32.mrf.mxu0
      %v6004 = vadd.f32 0.0, %v6003
      %6005 = vmatmul.f32.gmra.mxu0 %v5894
      %v6006 = vpop.f32.mrf.mxu0
      %v6007 = vadd.f32 0.0, %v6006
      %6008 = vmatmul.f32.gmra.mxu0 %v5897
      %v6009 = vpop.f32.mrf.mxu0
      %v6010 = vadd.f32 0.0, %v6009
      %6011 = vmatmul.f32.gmra.mxu0 %v5900
      %v6012 = vpop.f32.mrf.mxu0
      %v6013 = vadd.f32 0.0, %v6012
      %6014 = vmatmul.f32.gmra.mxu0 %v5903
      %v6015 = vpop.f32.mrf.mxu0
      %v6016 = vadd.f32 0.0, %v6015
      %6017 = vmatmul.f32.gmra.mxu0 %v5906
      %v6018 = vpop.f32.mrf.mxu0
      %v6019 = vadd.f32 0.0, %v6018
      %6020 = vmatmul.f32.gmra.mxu0 %v5909
      %v6021 = vpop.f32.mrf.mxu0
      %v6022 = vadd.f32 0.0, %v6021
      %6023 = vmatmul.f32.gmra.mxu0 %v5912
      %v6024 = vpop.f32.mrf.mxu0
      %v6025 = vadd.f32 0.0, %v6024
      %6026 = vmatmul.f32.gmra.mxu0 %v5915
      %v6027 = vpop.f32.mrf.mxu0
      %v6028 = vadd.f32 0.0, %v6027
      %6029 = vmatmul.f32.gmra.mxu0 %v5918
      %v6030 = vpop.f32.mrf.mxu0
      %v6031 = vadd.f32 0.0, %v6030
      %6032 = vmatmul.f32.gmra.mxu0 %v5921
      %v6033 = vpop.f32.mrf.mxu0
      %v6034 = vadd.f32 0.0, %v6033
      %6035 = vmatmul.f32.gmra.mxu0 %v5924
      %v6036 = vpop.f32.mrf.mxu0
      %v6037 = vadd.f32 0.0, %v6036
      %6038 = vmatmul.f32.gmra.mxu0 %v5927
      %v6039 = vpop.f32.mrf.mxu0
      %v6040 = vadd.f32 0.0, %v6039
      %6041 = vmatmul.f32.gmra.mxu0 %v5930
      %v6042 = vpop.f32.mrf.mxu0
      %v6043 = vadd.f32 0.0, %v6042
      %6044 = vmatmul.f32.gmra.mxu0 %v5933
      %v6045 = vpop.f32.mrf.mxu0
      %v6046 = vadd.f32 0.0, %v6045
      %6047 = vmatmul.f32.gmra.mxu0 %v5936
      %v6048 = vpop.f32.mrf.mxu0
      %v6049 = vadd.f32 0.0, %v6048
      %6050 = vdwg.mxu0
      %6051 = vmatpush.msra.mxu0 0.0
      %6052 = vmatpush.msra.mxu0 0.0
      %6053 = vmatpush.msra.mxu0 0.0
      %6054 = vmatpush.msra.mxu0 0.0
      %6055 = vmatpush.msra.mxu0 0.0
      %6056 = vmatpush.msra.mxu0 0.0
      %6057 = vmatpush.msra.mxu0 0.0
      %6058 = vmatpush.msra.mxu0 0.0
      %6059 = vmatpush.msra.mxu0 0.0
      %6060 = vmatpush.msra.mxu0 0.0
      %6061 = vmatpush.msra.mxu0 0.0
      %6062 = vmatpush.msra.mxu0 0.0
      %6063 = vmatpush.msra.mxu0 0.0
      %6064 = vmatpush.msra.mxu0 0.0
      %6065 = vmatpush.msra.mxu0 0.0
      %6066 = vmatpush.msra.mxu0 %v970
      %6067 = vmatmul.f32.gmra.mxu0 %v4307
      %v6068 = vpop.f32.mrf.mxu0
      %v6069 = vadd.f32 %v5956, %v6068
      %6070 = vmatmul.f32.gmra.mxu0 %v4307
      %v6071 = vpop.f32.mrf.mxu0
      %v6072 = vadd.f32 %v5959, %v6071
      %6073 = vmatmul.f32.gmra.mxu0 %v5843
      %v6074 = vpop.f32.mrf.mxu0
      %v6075 = vadd.f32 %v5962, %v6074
      %6076 = vmatmul.f32.gmra.mxu0 %v5846
      %v6077 = vpop.f32.mrf.mxu0
      %v6078 = vadd.f32 %v5965, %v6077
      %6079 = vmatmul.f32.gmra.mxu0 %v5849
      %v6080 = vpop.f32.mrf.mxu0
      %v6081 = vadd.f32 %v5968, %v6080
      %6082 = vmatmul.f32.gmra.mxu0 %v5852
      %v6083 = vpop.f32.mrf.mxu0
      %v6084 = vadd.f32 %v5971, %v6083
      %6085 = vmatmul.f32.gmra.mxu0 %v5855
      %v6086 = vpop.f32.mrf.mxu0
      %v6087 = vadd.f32 %v5974, %v6086
      %6088 = vmatmul.f32.gmra.mxu0 %v5858
      %v6089 = vpop.f32.mrf.mxu0
      %v6090 = vadd.f32 %v5977, %v6089
      %6091 = vmatmul.f32.gmra.mxu0 %v5861
      %v6092 = vpop.f32.mrf.mxu0
      %v6093 = vadd.f32 %v5980, %v6092
      %6094 = vmatmul.f32.gmra.mxu0 %v5864
      %v6095 = vpop.f32.mrf.mxu0
      %v6096 = vadd.f32 %v5983, %v6095
      %6097 = vmatmul.f32.gmra.mxu0 %v5867
      %v6098 = vpop.f32.mrf.mxu0
      %v6099 = vadd.f32 %v5986, %v6098
      %6100 = vmatmul.f32.gmra.mxu0 %v5870
      %v6101 = vpop.f32.mrf.mxu0
      %v6102 = vadd.f32 %v5989, %v6101
      %6103 = vmatmul.f32.gmra.mxu0 %v5873
      %v6104 = vpop.f32.mrf.mxu0
      %v6105 = vadd.f32 %v5992, %v6104
      %6106 = vmatmul.f32.gmra.mxu0 %v5876
      %v6107 = vpop.f32.mrf.mxu0
      %v6108 = vadd.f32 %v5995, %v6107
      %6109 = vmatmul.f32.gmra.mxu0 %v5879
      %v6110 = vpop.f32.mrf.mxu0
      %v6111 = vadd.f32 %v5998, %v6110
      %6112 = vmatmul.f32.gmra.mxu0 %v5882
      %v6113 = vpop.f32.mrf.mxu0
      %v6114 = vadd.f32 %v6001, %v6113
      %6115 = vmatmul.f32.gmra.mxu0 %v5885
      %v6116 = vpop.f32.mrf.mxu0
      %v6117 = vadd.f32 %v6004, %v6116
      %6118 = vmatmul.f32.gmra.mxu0 %v5888
      %v6119 = vpop.f32.mrf.mxu0
      %v6120 = vadd.f32 %v6007, %v6119
      %6121 = vmatmul.f32.gmra.mxu0 %v5891
      %v6122 = vpop.f32.mrf.mxu0
      %v6123 = vadd.f32 %v6010, %v6122
      %6124 = vmatmul.f32.gmra.mxu0 %v5894
      %v6125 = vpop.f32.mrf.mxu0
      %v6126 = vadd.f32 %v6013, %v6125
      %6127 = vmatmul.f32.gmra.mxu0 %v5897
      %v6128 = vpop.f32.mrf.mxu0
      %v6129 = vadd.f32 %v6016, %v6128
      %6130 = vmatmul.f32.gmra.mxu0 %v5900
      %v6131 = vpop.f32.mrf.mxu0
      %v6132 = vadd.f32 %v6019, %v6131
      %6133 = vmatmul.f32.gmra.mxu0 %v5903
      %v6134 = vpop.f32.mrf.mxu0
      %v6135 = vadd.f32 %v6022, %v6134
      %6136 = vmatmul.f32.gmra.mxu0 %v5906
      %v6137 = vpop.f32.mrf.mxu0
      %v6138 = vadd.f32 %v6025, %v6137
      %6139 = vmatmul.f32.gmra.mxu0 %v5909
      %v6140 = vpop.f32.mrf.mxu0
      %v6141 = vadd.f32 %v6028, %v6140
      %6142 = vmatmul.f32.gmra.mxu0 %v5912
      %v6143 = vpop.f32.mrf.mxu0
      %v6144 = vadd.f32 %v6031, %v6143
      %6145 = vmatmul.f32.gmra.mxu0 %v5915
      %v6146 = vpop.f32.mrf.mxu0
      %v6147 = vadd.f32 %v6034, %v6146
      %6148 = vmatmul.f32.gmra.mxu0 %v5918
      %v6149 = vpop.f32.mrf.mxu0
      %v6150 = vadd.f32 %v6037, %v6149
      %6151 = vmatmul.f32.gmra.mxu0 %v5921
      %v6152 = vpop.f32.mrf.mxu0
      %v6153 = vadd.f32 %v6040, %v6152
      %6154 = vmatmul.f32.gmra.mxu0 %v5924
      %v6155 = vpop.f32.mrf.mxu0
      %v6156 = vadd.f32 %v6043, %v6155
      %6157 = vmatmul.f32.gmra.mxu0 %v5927
      %v6158 = vpop.f32.mrf.mxu0
      %v6159 = vadd.f32 %v6046, %v6158
      %6160 = vmatmul.f32.gmra.mxu0 %v5930
      %v6161 = vpop.f32.mrf.mxu0
      %v6162 = vadd.f32 %v6049, %v6161
      %6163 = vdwg.mxu0
      %6164 = vmatpush.msra.mxu0 0.0
      %6165 = vmatpush.msra.mxu0 0.0
      %6166 = vmatpush.msra.mxu0 0.0
      %6167 = vmatpush.msra.mxu0 0.0
      %6168 = vmatpush.msra.mxu0 0.0
      %6169 = vmatpush.msra.mxu0 0.0
      %6170 = vmatpush.msra.mxu0 0.0
      %6171 = vmatpush.msra.mxu0 0.0
      %6172 = vmatpush.msra.mxu0 0.0
      %6173 = vmatpush.msra.mxu0 0.0
      %6174 = vmatpush.msra.mxu0 0.0
      %6175 = vmatpush.msra.mxu0 0.0
      %6176 = vmatpush.msra.mxu0 0.0
      %6177 = vmatpush.msra.mxu0 0.0
      %6178 = vmatpush.msra.mxu0 0.0
      %6179 = vmatpush.msra.mxu0 %v972
      %6180 = vmatmul.f32.gmra.mxu0 %v5849
      %v6181 = vpop.f32.mrf.mxu0
      %v6182 = vadd.f32 0.0, %v6181
      %6183 = vmatmul.f32.gmra.mxu0 %v5852
      %v6184 = vpop.f32.mrf.mxu0
      %v6185 = vadd.f32 0.0, %v6184
      %6186 = vmatmul.f32.gmra.mxu0 %v5855
      %v6187 = vpop.f32.mrf.mxu0
      %v6188 = vadd.f32 0.0, %v6187
      %6189 = vmatmul.f32.gmra.mxu0 %v5858
      %v6190 = vpop.f32.mrf.mxu0
      %v6191 = vadd.f32 0.0, %v6190
      %6192 = vmatmul.f32.gmra.mxu0 %v5861
      %v6193 = vpop.f32.mrf.mxu0
      %v6194 = vadd.f32 0.0, %v6193
      %6195 = vmatmul.f32.gmra.mxu0 %v5864
      %v6196 = vpop.f32.mrf.mxu0
      %v6197 = vadd.f32 0.0, %v6196
      %6198 = vmatmul.f32.gmra.mxu0 %v5867
      %v6199 = vpop.f32.mrf.mxu0
      %v6200 = vadd.f32 0.0, %v6199
      %6201 = vmatmul.f32.gmra.mxu0 %v5870
      %v6202 = vpop.f32.mrf.mxu0
      %v6203 = vadd.f32 0.0, %v6202
      %6204 = vmatmul.f32.gmra.mxu0 %v5873
      %v6205 = vpop.f32.mrf.mxu0
      %v6206 = vadd.f32 0.0, %v6205
      %6207 = vmatmul.f32.gmra.mxu0 %v5876
      %v6208 = vpop.f32.mrf.mxu0
      %v6209 = vadd.f32 0.0, %v6208
      %6210 = vmatmul.f32.gmra.mxu0 %v5879
      %v6211 = vpop.f32.mrf.mxu0
      %v6212 = vadd.f32 0.0, %v6211
      %6213 = vmatmul.f32.gmra.mxu0 %v5882
      %v6214 = vpop.f32.mrf.mxu0
      %v6215 = vadd.f32 0.0, %v6214
      %6216 = vmatmul.f32.gmra.mxu0 %v5885
      %v6217 = vpop.f32.mrf.mxu0
      %v6218 = vadd.f32 0.0, %v6217
      %6219 = vmatmul.f32.gmra.mxu0 %v5888
      %v6220 = vpop.f32.mrf.mxu0
      %v6221 = vadd.f32 0.0, %v6220
      %6222 = vmatmul.f32.gmra.mxu0 %v5891
      %v6223 = vpop.f32.mrf.mxu0
      %v6224 = vadd.f32 0.0, %v6223
      %6225 = vmatmul.f32.gmra.mxu0 %v5894
      %v6226 = vpop.f32.mrf.mxu0
      %v6227 = vadd.f32 0.0, %v6226
      %6228 = vmatmul.f32.gmra.mxu0 %v5897
      %v6229 = vpop.f32.mrf.mxu0
      %v6230 = vadd.f32 0.0, %v6229
      %6231 = vmatmul.f32.gmra.mxu0 %v5900
      %v6232 = vpop.f32.mrf.mxu0
      %v6233 = vadd.f32 0.0, %v6232
      %6234 = vmatmul.f32.gmra.mxu0 %v5903
      %v6235 = vpop.f32.mrf.mxu0
      %v6236 = vadd.f32 0.0, %v6235
      %6237 = vmatmul.f32.gmra.mxu0 %v5906
      %v6238 = vpop.f32.mrf.mxu0
      %v6239 = vadd.f32 0.0, %v6238
      %6240 = vmatmul.f32.gmra.mxu0 %v5909
      %v6241 = vpop.f32.mrf.mxu0
      %v6242 = vadd.f32 0.0, %v6241
      %6243 = vmatmul.f32.gmra.mxu0 %v5912
      %v6244 = vpop.f32.mrf.mxu0
      %v6245 = vadd.f32 0.0, %v6244
      %6246 = vmatmul.f32.gmra.mxu0 %v5915
      %v6247 = vpop.f32.mrf.mxu0
      %v6248 = vadd.f32 0.0, %v6247
      %6249 = vmatmul.f32.gmra.mxu0 %v5918
      %v6250 = vpop.f32.mrf.mxu0
      %v6251 = vadd.f32 0.0, %v6250
      %6252 = vmatmul.f32.gmra.mxu0 %v5921
      %v6253 = vpop.f32.mrf.mxu0
      %v6254 = vadd.f32 0.0, %v6253
      %6255 = vmatmul.f32.gmra.mxu0 %v5924
      %v6256 = vpop.f32.mrf.mxu0
      %v6257 = vadd.f32 0.0, %v6256
      %6258 = vmatmul.f32.gmra.mxu0 %v5927
      %v6259 = vpop.f32.mrf.mxu0
      %v6260 = vadd.f32 0.0, %v6259
      %6261 = vmatmul.f32.gmra.mxu0 %v5930
      %v6262 = vpop.f32.mrf.mxu0
      %v6263 = vadd.f32 0.0, %v6262
      %6264 = vmatmul.f32.gmra.mxu0 %v5933
      %v6265 = vpop.f32.mrf.mxu0
      %v6266 = vadd.f32 0.0, %v6265
      %6267 = vmatmul.f32.gmra.mxu0 %v5936
      %v6268 = vpop.f32.mrf.mxu0
      %v6269 = vadd.f32 0.0, %v6268
      %6270 = vmatmul.f32.gmra.mxu0 %v4307
      %v6271 = vpop.f32.mrf.mxu0
      %v6272 = vadd.f32 0.0, %v6271
      %6273 = vmatmul.f32.gmra.mxu0 %v4307
      %v6274 = vpop.f32.mrf.mxu0
      %v6275 = vadd.f32 0.0, %v6274
      %6276 = vdwg.mxu0
      %v6277 = vadd.f32 %v6069, %v6182
      %v6278 = vadd.f32 %v6072, %v6185
      %v6279 = vadd.f32 %v6075, %v6188
      %v6280 = vadd.f32 %v6078, %v6191
      %v6281 = vadd.f32 %v6081, %v6194
      %v6282 = vadd.f32 %v6084, %v6197
      %v6283 = vadd.f32 %v6087, %v6200
      %v6284 = vadd.f32 %v6090, %v6203
      %v6285 = vadd.f32 %v6093, %v6206
      %v6286 = vadd.f32 %v6096, %v6209
      %v6287 = vadd.f32 %v6099, %v6212
      %v6288 = vadd.f32 %v6102, %v6215
      %v6289 = vadd.f32 %v6105, %v6218
      %v6290 = vadd.f32 %v6108, %v6221
      %v6291 = vadd.f32 %v6111, %v6224
      %v6292 = vadd.f32 %v6114, %v6227
      %v6293 = vadd.f32 %v6117, %v6230
      %v6294 = vadd.f32 %v6120, %v6233
      %v6295 = vadd.f32 %v6123, %v6236
      %v6296 = vadd.f32 %v6126, %v6239
      %v6297 = vadd.f32 %v6129, %v6242
      %v6298 = vadd.f32 %v6132, %v6245
      %v6299 = vadd.f32 %v6135, %v6248
      %v6300 = vadd.f32 %v6138, %v6251
      %v6301 = vadd.f32 %v6141, %v6254
      %v6302 = vadd.f32 %v6144, %v6257
      %v6303 = vadd.f32 %v6147, %v6260
      %v6304 = vadd.f32 %v6150, %v6263
      %v6305 = vadd.f32 %v6153, %v6266
      %v6306 = vadd.f32 %v6156, %v6269
      %v6307 = vadd.f32 %v6159, %v6272
      %v6308 = vadd.f32 %v6162, %v6275
      %v6310 = vperm.slane %v973, 0
      %v6312 = vmul.f32 %v6277, %v6310
      %v6313 = vmul.f32 %v6278, %v6310
      %v6314 = vmul.f32 %v6279, %v6310
      %v6315 = vmul.f32 %v6280, %v6310
      %v6316 = vmul.f32 %v6281, %v6310
      %v6317 = vmul.f32 %v6282, %v6310
      %v6318 = vmul.f32 %v6283, %v6310
      %v6319 = vmul.f32 %v6284, %v6310
      %v6320 = vmul.f32 %v6285, %v6310
      %v6321 = vmul.f32 %v6286, %v6310
      %v6322 = vmul.f32 %v6287, %v6310
      %v6323 = vmul.f32 %v6288, %v6310
      %v6324 = vmul.f32 %v6289, %v6310
      %v6325 = vmul.f32 %v6290, %v6310
      %v6326 = vmul.f32 %v6291, %v6310
      %v6327 = vmul.f32 %v6292, %v6310
      %v6328 = vmul.f32 %v6293, %v6310
      %v6329 = vmul.f32 %v6294, %v6310
      %v6330 = vmul.f32 %v6295, %v6310
      %v6331 = vmul.f32 %v6296, %v6310
      %v6332 = vmul.f32 %v6297, %v6310
      %v6333 = vmul.f32 %v6298, %v6310
      %v6334 = vmul.f32 %v6299, %v6310
      %v6335 = vmul.f32 %v6300, %v6310
      %v6336 = vmul.f32 %v6301, %v6310
      %v6337 = vmul.f32 %v6302, %v6310
      %v6338 = vmul.f32 %v6303, %v6310
      %v6339 = vmul.f32 %v6304, %v6310
      %v6340 = vmul.f32 %v6305, %v6310
      %v6341 = vmul.f32 %v6306, %v6310
      %v6342 = vmul.f32 %v6307, %v6310
      %v6343 = vmul.f32 %v6308, %v6310
      %v6345 = vperm.slane %v974, 0
      %v6347 = vadd.f32 %v6312, %v6345
      %v6348 = vadd.f32 %v6313, %v6345
      %v6349 = vadd.f32 %v6314, %v6345
      %v6350 = vadd.f32 %v6315, %v6345
      %v6351 = vadd.f32 %v6316, %v6345
      %v6352 = vadd.f32 %v6317, %v6345
      %v6353 = vadd.f32 %v6318, %v6345
      %v6354 = vadd.f32 %v6319, %v6345
      %v6355 = vadd.f32 %v6320, %v6345
      %v6356 = vadd.f32 %v6321, %v6345
      %v6357 = vadd.f32 %v6322, %v6345
      %v6358 = vadd.f32 %v6323, %v6345
      %v6359 = vadd.f32 %v6324, %v6345
      %v6360 = vadd.f32 %v6325, %v6345
      %v6361 = vadd.f32 %v6326, %v6345
      %v6362 = vadd.f32 %v6327, %v6345
      %v6363 = vadd.f32 %v6328, %v6345
      %v6364 = vadd.f32 %v6329, %v6345
      %v6365 = vadd.f32 %v6330, %v6345
      %v6366 = vadd.f32 %v6331, %v6345
      %v6367 = vadd.f32 %v6332, %v6345
      %v6368 = vadd.f32 %v6333, %v6345
      %v6369 = vadd.f32 %v6334, %v6345
      %v6370 = vadd.f32 %v6335, %v6345
      %v6371 = vadd.f32 %v6336, %v6345
      %v6372 = vadd.f32 %v6337, %v6345
      %v6373 = vadd.f32 %v6338, %v6345
      %v6374 = vadd.f32 %v6339, %v6345
      %v6375 = vadd.f32 %v6340, %v6345
      %v6376 = vadd.f32 %v6341, %v6345
      %v6377 = vadd.f32 %v6342, %v6345
      %v6378 = vadd.f32 %v6343, %v6345
      %v6379 = vmax.f32 %v6347, 0.0
      %v6380 = vmax.f32 %v6348, 0.0
      %v6381 = vmax.f32 %v6349, 0.0
      %v6382 = vmax.f32 %v6350, 0.0
      %v6383 = vmax.f32 %v6351, 0.0
      %v6384 = vmax.f32 %v6352, 0.0
      %v6385 = vmax.f32 %v6353, 0.0
      %v6386 = vmax.f32 %v6354, 0.0
      %v6387 = vmax.f32 %v6355, 0.0
      %v6388 = vmax.f32 %v6356, 0.0
      %v6389 = vmax.f32 %v6357, 0.0
      %v6390 = vmax.f32 %v6358, 0.0
      %v6391 = vmax.f32 %v6359, 0.0
      %v6392 = vmax.f32 %v6360, 0.0
      %v6393 = vmax.f32 %v6361, 0.0
      %v6394 = vmax.f32 %v6362, 0.0
      %v6395 = vmax.f32 %v6363, 0.0
      %v6396 = vmax.f32 %v6364, 0.0
      %v6397 = vmax.f32 %v6365, 0.0
      %v6398 = vmax.f32 %v6366, 0.0
      %v6399 = vmax.f32 %v6367, 0.0
      %v6400 = vmax.f32 %v6368, 0.0
      %v6401 = vmax.f32 %v6369, 0.0
      %v6402 = vmax.f32 %v6370, 0.0
      %v6403 = vmax.f32 %v6371, 0.0
      %v6404 = vmax.f32 %v6372, 0.0
      %v6405 = vmax.f32 %v6373, 0.0
      %v6406 = vmax.f32 %v6374, 0.0
      %v6407 = vmax.f32 %v6375, 0.0
      %v6408 = vmax.f32 %v6376, 0.0
      %v6409 = vmax.f32 %v6377, 0.0
      %v6410 = vmax.f32 %v6378, 0.0
      %v6411 = vadd.f32 %v5136, %v6379
      %v6412 = vadd.f32 %v5137, %v6380
      %v6413 = vadd.f32 %v5138, %v6381
      %v6414 = vadd.f32 %v5139, %v6382
      %v6415 = vadd.f32 %v5140, %v6383
      %v6416 = vadd.f32 %v5141, %v6384
      %v6417 = vadd.f32 %v5142, %v6385
      %v6418 = vadd.f32 %v5143, %v6386
      %v6419 = vadd.f32 %v5144, %v6387
      %v6420 = vadd.f32 %v5145, %v6388
      %v6421 = vadd.f32 %v5146, %v6389
      %v6422 = vadd.f32 %v5147, %v6390
      %v6423 = vadd.f32 %v5148, %v6391
      %v6424 = vadd.f32 %v5149, %v6392
      %v6425 = vadd.f32 %v5150, %v6393
      %v6426 = vadd.f32 %v5151, %v6394
      %v6427 = vadd.f32 %v5152, %v6395
      %v6428 = vadd.f32 %v5153, %v6396
      %v6429 = vadd.f32 %v5154, %v6397
      %v6430 = vadd.f32 %v5155, %v6398
      %v6431 = vadd.f32 %v5156, %v6399
      %v6432 = vadd.f32 %v5157, %v6400
      %v6433 = vadd.f32 %v5158, %v6401
      %v6434 = vadd.f32 %v5159, %v6402
      %v6435 = vadd.f32 %v5160, %v6403
      %v6436 = vadd.f32 %v5161, %v6404
      %v6437 = vadd.f32 %v5162, %v6405
      %v6438 = vadd.f32 %v5163, %v6406
      %v6439 = vadd.f32 %v5164, %v6407
      %v6440 = vadd.f32 %v5165, %v6408
      %v6441 = vadd.f32 %v5166, %v6409
      %v6442 = vadd.f32 %v5167, %v6410
      %v6443 = vmax.f32 %v6411, 0.0
      %v6444 = vmax.f32 %v6412, 0.0
      %v6445 = vmax.f32 %v6413, 0.0
      %v6446 = vmax.f32 %v6414, 0.0
      %v6447 = vmax.f32 %v6415, 0.0
      %v6448 = vmax.f32 %v6416, 0.0
      %v6449 = vmax.f32 %v6417, 0.0
      %v6450 = vmax.f32 %v6418, 0.0
      %v6451 = vmax.f32 %v6419, 0.0
      %v6452 = vmax.f32 %v6420, 0.0
      %v6453 = vmax.f32 %v6421, 0.0
      %v6454 = vmax.f32 %v6422, 0.0
      %v6455 = vmax.f32 %v6423, 0.0
      %v6456 = vmax.f32 %v6424, 0.0
      %v6457 = vmax.f32 %v6425, 0.0
      %v6458 = vmax.f32 %v6426, 0.0
      %v6459 = vmax.f32 %v6427, 0.0
      %v6460 = vmax.f32 %v6428, 0.0
      %v6461 = vmax.f32 %v6429, 0.0
      %v6462 = vmax.f32 %v6430, 0.0
      %v6463 = vmax.f32 %v6431, 0.0
      %v6464 = vmax.f32 %v6432, 0.0
      %v6465 = vmax.f32 %v6433, 0.0
      %v6466 = vmax.f32 %v6434, 0.0
      %v6467 = vmax.f32 %v6435, 0.0
      %v6468 = vmax.f32 %v6436, 0.0
      %v6469 = vmax.f32 %v6437, 0.0
      %v6470 = vmax.f32 %v6438, 0.0
      %v6471 = vmax.f32 %v6439, 0.0
      %v6472 = vmax.f32 %v6440, 0.0
      %v6473 = vmax.f32 %v6441, 0.0
      %v6474 = vmax.f32 %v6442, 0.0
      %v6475 = vrot.slane %v2362, 7
      %v6476 = vrot.slane %v2363, 7
      %v6477 = vsel %vm1073, %v6475, %v6476
      %v6478 = vrot.slane %v2364, 7
      %v6479 = vrot.slane %v2365, 7
      %v6480 = vsel %vm1073, %v6478, %v6479
      %v6481 = vrot.slane %v2366, 7
      %v6482 = vrot.slane %v2367, 7
      %v6483 = vsel %vm1073, %v6481, %v6482
      %v6484 = vrot.slane %v2368, 7
      %v6485 = vrot.slane %v2369, 7
      %v6486 = vsel %vm1073, %v6484, %v6485
      %v6487 = vrot.slane %v2370, 7
      %v6488 = vrot.slane %v2371, 7
      %v6489 = vsel %vm1073, %v6487, %v6488
      %v6490 = vrot.slane %v2372, 7
      %v6491 = vrot.slane %v2373, 7
      %v6492 = vsel %vm1073, %v6490, %v6491
      %v6493 = vrot.slane %v2374, 7
      %v6494 = vrot.slane %v2375, 7
      %v6495 = vsel %vm1073, %v6493, %v6494
      %v6496 = vrot.slane %v2376, 7
      %v6497 = vrot.slane %v2377, 7
      %v6498 = vsel %vm1073, %v6496, %v6497
      %v6499 = vrot.slane %v2378, 7
      %v6500 = vrot.slane %v2379, 7
      %v6501 = vsel %vm1073, %v6499, %v6500
      %v6502 = vrot.slane %v2380, 7
      %v6503 = vrot.slane %v2381, 7
      %v6504 = vsel %vm1073, %v6502, %v6503
      %v6505 = vrot.slane %v2382, 7
      %v6506 = vrot.slane %v2383, 7
      %v6507 = vsel %vm1073, %v6505, %v6506
      %v6508 = vrot.slane %v2384, 7
      %v6509 = vrot.slane %v2385, 7
      %v6510 = vsel %vm1073, %v6508, %v6509
      %v6511 = vrot.slane %v2386, 7
      %v6512 = vrot.slane %v2387, 7
      %v6513 = vsel %vm1073, %v6511, %v6512
      %v6514 = vrot.slane %v2388, 7
      %v6515 = vrot.slane %v2389, 7
      %v6516 = vsel %vm1073, %v6514, %v6515
      %v6517 = vrot.slane %v2390, 7
      %v6518 = vrot.slane %v2391, 7
      %v6519 = vsel %vm1073, %v6517, %v6518
      %v6520 = vrot.slane %v2392, 7
      %v6521 = vrot.slane %v2393, 7
      %v6522 = vsel %vm1073, %v6520, %v6521
      %v6555 = vsel %vm1073, 0.0, %v6475
      %v6556 = vsel %vm1073, 0.0, %v6478
      %v6557 = vsel %vm1073, 0.0, %v6481
      %v6558 = vsel %vm1073, 0.0, %v6484
      %v6559 = vsel %vm1073, 0.0, %v6487
      %v6560 = vsel %vm1073, 0.0, %v6490
      %v6561 = vsel %vm1073, 0.0, %v6493
      %v6562 = vsel %vm1073, 0.0, %v6496
      %v6563 = vsel %vm1073, 0.0, %v6499
      %v6564 = vsel %vm1073, 0.0, %v6502
      %v6565 = vsel %vm1073, 0.0, %v6505
      %v6566 = vsel %vm1073, 0.0, %v6508
      %v6567 = vsel %vm1073, 0.0, %v6511
      %v6568 = vsel %vm1073, 0.0, %v6514
      %v6569 = vsel %vm1073, 0.0, %v6517
      %v6570 = vsel %vm1073, 0.0, %v6520
      %v6571 = vsel %vm1073, %v6476, 0.0
      %v6572 = vsel %vm1073, %v6479, 0.0
      %v6573 = vsel %vm1073, %v6482, 0.0
      %v6574 = vsel %vm1073, %v6485, 0.0
      %v6575 = vsel %vm1073, %v6488, 0.0
      %v6576 = vsel %vm1073, %v6491, 0.0
      %v6577 = vsel %vm1073, %v6494, 0.0
      %v6578 = vsel %vm1073, %v6497, 0.0
      %v6579 = vsel %vm1073, %v6500, 0.0
      %v6580 = vsel %vm1073, %v6503, 0.0
      %v6581 = vsel %vm1073, %v6506, 0.0
      %v6582 = vsel %vm1073, %v6509, 0.0
      %v6583 = vsel %vm1073, %v6512, 0.0
      %v6584 = vsel %vm1073, %v6515, 0.0
      %v6585 = vsel %vm1073, %v6518, 0.0
      %v6586 = vsel %vm1073, %v6521, 0.0
      %v6619 = vrot.slane %v6555, 1
      %v6620 = vrot.slane %v6477, 1
      %v6621 = vsel %vm1263, %v6619, %v6620
      %v6622 = vrot.slane %v6571, 1
      %v6623 = vsel %vm1263, %v6620, %v6622
      %v6624 = vrot.slane %v6556, 1
      %v6625 = vrot.slane %v6480, 1
      %v6626 = vsel %vm1263, %v6624, %v6625
      %v6627 = vrot.slane %v6572, 1
      %v6628 = vsel %vm1263, %v6625, %v6627
      %v6629 = vrot.slane %v6557, 1
      %v6630 = vrot.slane %v6483, 1
      %v6631 = vsel %vm1263, %v6629, %v6630
      %v6632 = vrot.slane %v6573, 1
      %v6633 = vsel %vm1263, %v6630, %v6632
      %v6634 = vrot.slane %v6558, 1
      %v6635 = vrot.slane %v6486, 1
      %v6636 = vsel %vm1263, %v6634, %v6635
      %v6637 = vrot.slane %v6574, 1
      %v6638 = vsel %vm1263, %v6635, %v6637
      %v6639 = vrot.slane %v6559, 1
      %v6640 = vrot.slane %v6489, 1
      %v6641 = vsel %vm1263, %v6639, %v6640
      %v6642 = vrot.slane %v6575, 1
      %v6643 = vsel %vm1263, %v6640, %v6642
      %v6644 = vrot.slane %v6560, 1
      %v6645 = vrot.slane %v6492, 1
      %v6646 = vsel %vm1263, %v6644, %v6645
      %v6647 = vrot.slane %v6576, 1
      %v6648 = vsel %vm1263, %v6645, %v6647
      %v6649 = vrot.slane %v6561, 1
      %v6650 = vrot.slane %v6495, 1
      %v6651 = vsel %vm1263, %v6649, %v6650
      %v6652 = vrot.slane %v6577, 1
      %v6653 = vsel %vm1263, %v6650, %v6652
      %v6654 = vrot.slane %v6562, 1
      %v6655 = vrot.slane %v6498, 1
      %v6656 = vsel %vm1263, %v6654, %v6655
      %v6657 = vrot.slane %v6578, 1
      %v6658 = vsel %vm1263, %v6655, %v6657
      %v6659 = vrot.slane %v6563, 1
      %v6660 = vrot.slane %v6501, 1
      %v6661 = vsel %vm1263, %v6659, %v6660
      %v6662 = vrot.slane %v6579, 1
      %v6663 = vsel %vm1263, %v6660, %v6662
      %v6664 = vrot.slane %v6564, 1
      %v6665 = vrot.slane %v6504, 1
      %v6666 = vsel %vm1263, %v6664, %v6665
      %v6667 = vrot.slane %v6580, 1
      %v6668 = vsel %vm1263, %v6665, %v6667
      %v6669 = vrot.slane %v6565, 1
      %v6670 = vrot.slane %v6507, 1
      %v6671 = vsel %vm1263, %v6669, %v6670
      %v6672 = vrot.slane %v6581, 1
      %v6673 = vsel %vm1263, %v6670, %v6672
      %v6674 = vrot.slane %v6566, 1
      %v6675 = vrot.slane %v6510, 1
      %v6676 = vsel %vm1263, %v6674, %v6675
      %v6677 = vrot.slane %v6582, 1
      %v6678 = vsel %vm1263, %v6675, %v6677
      %v6679 = vrot.slane %v6567, 1
      %v6680 = vrot.slane %v6513, 1
      %v6681 = vsel %vm1263, %v6679, %v6680
      %v6682 = vrot.slane %v6583, 1
      %v6683 = vsel %vm1263, %v6680, %v6682
      %v6684 = vrot.slane %v6568, 1
      %v6685 = vrot.slane %v6516, 1
      %v6686 = vsel %vm1263, %v6684, %v6685
      %v6687 = vrot.slane %v6584, 1
      %v6688 = vsel %vm1263, %v6685, %v6687
      %v6689 = vrot.slane %v6569, 1
      %v6690 = vrot.slane %v6519, 1
      %v6691 = vsel %vm1263, %v6689, %v6690
      %v6692 = vrot.slane %v6585, 1
      %v6693 = vsel %vm1263, %v6690, %v6692
      %v6694 = vrot.slane %v6570, 1
      %v6695 = vrot.slane %v6522, 1
      %v6696 = vsel %vm1263, %v6694, %v6695
      %v6697 = vrot.slane %v6586, 1
      %v6698 = vsel %vm1263, %v6695, %v6697
      %v6699 = vsel %vm2394, %v6621, 0
      %v6701 = vsel %vm2394, %v6623, 0
      %v6703 = vsel %vm2394, %v6626, 0
      %v6705 = vsel %vm2394, %v6628, 0
      %v6707 = vsel %vm2394, %v6631, 0
      %v6709 = vsel %vm2394, %v6633, 0
      %v6711 = vsel %vm2394, %v6636, 0
      %v6713 = vsel %vm2394, %v6638, 0
      %v6715 = vsel %vm2394, %v6641, 0
      %v6717 = vsel %vm2394, %v6643, 0
      %v6719 = vsel %vm2394, %v6646, 0
      %v6721 = vsel %vm2394, %v6648, 0
      %v6723 = vsel %vm2394, %v6651, 0
      %v6725 = vsel %vm2394, %v6653, 0
      %v6727 = vsel %vm2394, %v6656, 0
      %v6729 = vsel %vm2394, %v6658, 0
      %v6731 = vsel %vm2394, %v6661, 0
      %v6733 = vsel %vm2394, %v6663, 0
      %v6735 = vsel %vm2394, %v6666, 0
      %v6737 = vsel %vm2394, %v6668, 0
      %v6739 = vsel %vm2394, %v6671, 0
      %v6741 = vsel %vm2394, %v6673, 0
      %v6743 = vsel %vm2394, %v6676, 0
      %v6745 = vsel %vm2394, %v6678, 0
      %v6747 = vsel %vm2394, %v6681, 0
      %v6749 = vsel %vm2394, %v6683, 0
      %v6751 = vsel %vm2394, %v6686, 0
      %v6753 = vsel %vm2394, %v6688, 0
      %v6755 = vsel %vm2394, %v6691, 0
      %v6757 = vsel %vm2394, %v6693, 0
      %v6759 = vsel %vm2394, %v6696, 0
      %v6761 = vsel %vm2394, %v6698, 0
      %v6764 = vsel %vm2459, %v990, 0
      %6766 = vmatpush.msra.mxu0 0.0
      %6767 = vmatpush.msra.mxu0 0.0
      %6768 = vmatpush.msra.mxu0 0.0
      %6769 = vmatpush.msra.mxu0 0.0
      %6770 = vmatpush.msra.mxu0 0.0
      %6771 = vmatpush.msra.mxu0 0.0
      %6772 = vmatpush.msra.mxu0 0.0
      %6773 = vmatpush.msra.mxu0 0.0
      %6774 = vmatpush.msra.mxu0 0.0
      %6775 = vmatpush.msra.mxu0 0.0
      %6776 = vmatpush.msra.mxu0 0.0
      %6777 = vmatpush.msra.mxu0 0.0
      %6778 = vmatpush.msra.mxu0 0.0
      %6779 = vmatpush.msra.mxu0 0.0
      %6780 = vmatpush.msra.mxu0 0.0
      %6781 = vmatpush.msra.mxu0 %v6764
      %6782 = vmatmul.f32.gmra.mxu0 %v6699
      %v6783 = vpop.f32.mrf.mxu0
      %v6784 = vadd.f32 0.0, %v6783
      %6785 = vmatmul.f32.gmra.mxu0 %v6701
      %v6786 = vpop.f32.mrf.mxu0
      %v6787 = vadd.f32 0.0, %v6786
      %6788 = vmatmul.f32.gmra.mxu0 %v6703
      %v6789 = vpop.f32.mrf.mxu0
      %v6790 = vadd.f32 0.0, %v6789
      %6791 = vmatmul.f32.gmra.mxu0 %v6705
      %v6792 = vpop.f32.mrf.mxu0
      %v6793 = vadd.f32 0.0, %v6792
      %6794 = vmatmul.f32.gmra.mxu0 %v6707
      %v6795 = vpop.f32.mrf.mxu0
      %v6796 = vadd.f32 0.0, %v6795
      %6797 = vmatmul.f32.gmra.mxu0 %v6709
      %v6798 = vpop.f32.mrf.mxu0
      %v6799 = vadd.f32 0.0, %v6798
      %6800 = vmatmul.f32.gmra.mxu0 %v6711
      %v6801 = vpop.f32.mrf.mxu0
      %v6802 = vadd.f32 0.0, %v6801
      %6803 = vmatmul.f32.gmra.mxu0 %v6713
      %v6804 = vpop.f32.mrf.mxu0
      %v6805 = vadd.f32 0.0, %v6804
      %6806 = vmatmul.f32.gmra.mxu0 %v6715
      %v6807 = vpop.f32.mrf.mxu0
      %v6808 = vadd.f32 0.0, %v6807
      %6809 = vmatmul.f32.gmra.mxu0 %v6717
      %v6810 = vpop.f32.mrf.mxu0
      %v6811 = vadd.f32 0.0, %v6810
      %6812 = vmatmul.f32.gmra.mxu0 %v6719
      %v6813 = vpop.f32.mrf.mxu0
      %v6814 = vadd.f32 0.0, %v6813
      %6815 = vmatmul.f32.gmra.mxu0 %v6721
      %v6816 = vpop.f32.mrf.mxu0
      %v6817 = vadd.f32 0.0, %v6816
      %6818 = vmatmul.f32.gmra.mxu0 %v6723
      %v6819 = vpop.f32.mrf.mxu0
      %v6820 = vadd.f32 0.0, %v6819
      %6821 = vmatmul.f32.gmra.mxu0 %v6725
      %v6822 = vpop.f32.mrf.mxu0
      %v6823 = vadd.f32 0.0, %v6822
      %6824 = vmatmul.f32.gmra.mxu0 %v6727
      %v6825 = vpop.f32.mrf.mxu0
      %v6826 = vadd.f32 0.0, %v6825
      %6827 = vmatmul.f32.gmra.mxu0 %v6729
      %v6828 = vpop.f32.mrf.mxu0
      %v6829 = vadd.f32 0.0, %v6828
      %6830 = vmatmul.f32.gmra.mxu0 %v6731
      %v6831 = vpop.f32.mrf.mxu0
      %v6832 = vadd.f32 0.0, %v6831
      %6833 = vmatmul.f32.gmra.mxu0 %v6733
      %v6834 = vpop.f32.mrf.mxu0
      %v6835 = vadd.f32 0.0, %v6834
      %6836 = vmatmul.f32.gmra.mxu0 %v6735
      %v6837 = vpop.f32.mrf.mxu0
      %v6838 = vadd.f32 0.0, %v6837
      %6839 = vmatmul.f32.gmra.mxu0 %v6737
      %v6840 = vpop.f32.mrf.mxu0
      %v6841 = vadd.f32 0.0, %v6840
      %6842 = vmatmul.f32.gmra.mxu0 %v6739
      %v6843 = vpop.f32.mrf.mxu0
      %v6844 = vadd.f32 0.0, %v6843
      %6845 = vmatmul.f32.gmra.mxu0 %v6741
      %v6846 = vpop.f32.mrf.mxu0
      %v6847 = vadd.f32 0.0, %v6846
      %6848 = vmatmul.f32.gmra.mxu0 %v6743
      %v6849 = vpop.f32.mrf.mxu0
      %v6850 = vadd.f32 0.0, %v6849
      %6851 = vmatmul.f32.gmra.mxu0 %v6745
      %v6852 = vpop.f32.mrf.mxu0
      %v6853 = vadd.f32 0.0, %v6852
      %6854 = vmatmul.f32.gmra.mxu0 %v6747
      %v6855 = vpop.f32.mrf.mxu0
      %v6856 = vadd.f32 0.0, %v6855
      %6857 = vmatmul.f32.gmra.mxu0 %v6749
      %v6858 = vpop.f32.mrf.mxu0
      %v6859 = vadd.f32 0.0, %v6858
      %6860 = vmatmul.f32.gmra.mxu0 %v6751
      %v6861 = vpop.f32.mrf.mxu0
      %v6862 = vadd.f32 0.0, %v6861
      %6863 = vmatmul.f32.gmra.mxu0 %v6753
      %v6864 = vpop.f32.mrf.mxu0
      %v6865 = vadd.f32 0.0, %v6864
      %6866 = vmatmul.f32.gmra.mxu0 %v6755
      %v6867 = vpop.f32.mrf.mxu0
      %v6868 = vadd.f32 0.0, %v6867
      %6869 = vmatmul.f32.gmra.mxu0 %v6757
      %v6870 = vpop.f32.mrf.mxu0
      %v6871 = vadd.f32 0.0, %v6870
      %6872 = vmatmul.f32.gmra.mxu0 %v6759
      %v6873 = vpop.f32.mrf.mxu0
      %v6874 = vadd.f32 0.0, %v6873
      %6875 = vmatmul.f32.gmra.mxu0 %v6761
      %v6876 = vpop.f32.mrf.mxu0
      %v6877 = vadd.f32 0.0, %v6876
      %6878 = vdwg.mxu0
      %v6879 = vsel %vm2394, %v6555, 0
      %v6881 = vsel %vm2394, %v6477, 0
      %v6883 = vsel %vm2394, %v6556, 0
      %v6885 = vsel %vm2394, %v6480, 0
      %v6887 = vsel %vm2394, %v6557, 0
      %v6889 = vsel %vm2394, %v6483, 0
      %v6891 = vsel %vm2394, %v6558, 0
      %v6893 = vsel %vm2394, %v6486, 0
      %v6895 = vsel %vm2394, %v6559, 0
      %v6897 = vsel %vm2394, %v6489, 0
      %v6899 = vsel %vm2394, %v6560, 0
      %v6901 = vsel %vm2394, %v6492, 0
      %v6903 = vsel %vm2394, %v6561, 0
      %v6905 = vsel %vm2394, %v6495, 0
      %v6907 = vsel %vm2394, %v6562, 0
      %v6909 = vsel %vm2394, %v6498, 0
      %v6911 = vsel %vm2394, %v6563, 0
      %v6913 = vsel %vm2394, %v6501, 0
      %v6915 = vsel %vm2394, %v6564, 0
      %v6917 = vsel %vm2394, %v6504, 0
      %v6919 = vsel %vm2394, %v6565, 0
      %v6921 = vsel %vm2394, %v6507, 0
      %v6923 = vsel %vm2394, %v6566, 0
      %v6925 = vsel %vm2394, %v6510, 0
      %v6927 = vsel %vm2394, %v6567, 0
      %v6929 = vsel %vm2394, %v6513, 0
      %v6931 = vsel %vm2394, %v6568, 0
      %v6933 = vsel %vm2394, %v6516, 0
      %v6935 = vsel %vm2394, %v6569, 0
      %v6937 = vsel %vm2394, %v6519, 0
      %v6939 = vsel %vm2394, %v6570, 0
      %v6941 = vsel %vm2394, %v6522, 0
      %v6944 = vsel %vm2459, %v989, 0
      %6946 = vmatpush.msra.mxu0 0.0
      %6947 = vmatpush.msra.mxu0 0.0
      %6948 = vmatpush.msra.mxu0 0.0
      %6949 = vmatpush.msra.mxu0 0.0
      %6950 = vmatpush.msra.mxu0 0.0
      %6951 = vmatpush.msra.mxu0 0.0
      %6952 = vmatpush.msra.mxu0 0.0
      %6953 = vmatpush.msra.mxu0 0.0
      %6954 = vmatpush.msra.mxu0 0.0
      %6955 = vmatpush.msra.mxu0 0.0
      %6956 = vmatpush.msra.mxu0 0.0
      %6957 = vmatpush.msra.mxu0 0.0
      %6958 = vmatpush.msra.mxu0 0.0
      %6959 = vmatpush.msra.mxu0 0.0
      %6960 = vmatpush.msra.mxu0 0.0
      %6961 = vmatpush.msra.mxu0 %v6944
      %6962 = vmatmul.f32.gmra.mxu0 %v6879
      %v6963 = vpop.f32.mrf.mxu0
      %v6964 = vadd.f32 %v6784, %v6963
      %6965 = vmatmul.f32.gmra.mxu0 %v6881
      %v6966 = vpop.f32.mrf.mxu0
      %v6967 = vadd.f32 %v6787, %v6966
      %6968 = vmatmul.f32.gmra.mxu0 %v6883
      %v6969 = vpop.f32.mrf.mxu0
      %v6970 = vadd.f32 %v6790, %v6969
      %6971 = vmatmul.f32.gmra.mxu0 %v6885
      %v6972 = vpop.f32.mrf.mxu0
      %v6973 = vadd.f32 %v6793, %v6972
      %6974 = vmatmul.f32.gmra.mxu0 %v6887
      %v6975 = vpop.f32.mrf.mxu0
      %v6976 = vadd.f32 %v6796, %v6975
      %6977 = vmatmul.f32.gmra.mxu0 %v6889
      %v6978 = vpop.f32.mrf.mxu0
      %v6979 = vadd.f32 %v6799, %v6978
      %6980 = vmatmul.f32.gmra.mxu0 %v6891
      %v6981 = vpop.f32.mrf.mxu0
      %v6982 = vadd.f32 %v6802, %v6981
      %6983 = vmatmul.f32.gmra.mxu0 %v6893
      %v6984 = vpop.f32.mrf.mxu0
      %v6985 = vadd.f32 %v6805, %v6984
      %6986 = vmatmul.f32.gmra.mxu0 %v6895
      %v6987 = vpop.f32.mrf.mxu0
      %v6988 = vadd.f32 %v6808, %v6987
      %6989 = vmatmul.f32.gmra.mxu0 %v6897
      %v6990 = vpop.f32.mrf.mxu0
      %v6991 = vadd.f32 %v6811, %v6990
      %6992 = vmatmul.f32.gmra.mxu0 %v6899
      %v6993 = vpop.f32.mrf.mxu0
      %v6994 = vadd.f32 %v6814, %v6993
      %6995 = vmatmul.f32.gmra.mxu0 %v6901
      %v6996 = vpop.f32.mrf.mxu0
      %v6997 = vadd.f32 %v6817, %v6996
      %6998 = vmatmul.f32.gmra.mxu0 %v6903
      %v6999 = vpop.f32.mrf.mxu0
      %v7000 = vadd.f32 %v6820, %v6999
      %7001 = vmatmul.f32.gmra.mxu0 %v6905
      %v7002 = vpop.f32.mrf.mxu0
      %v7003 = vadd.f32 %v6823, %v7002
      %7004 = vmatmul.f32.gmra.mxu0 %v6907
      %v7005 = vpop.f32.mrf.mxu0
      %v7006 = vadd.f32 %v6826, %v7005
      %7007 = vmatmul.f32.gmra.mxu0 %v6909
      %v7008 = vpop.f32.mrf.mxu0
      %v7009 = vadd.f32 %v6829, %v7008
      %7010 = vmatmul.f32.gmra.mxu0 %v6911
      %v7011 = vpop.f32.mrf.mxu0
      %v7012 = vadd.f32 %v6832, %v7011
      %7013 = vmatmul.f32.gmra.mxu0 %v6913
      %v7014 = vpop.f32.mrf.mxu0
      %v7015 = vadd.f32 %v6835, %v7014
      %7016 = vmatmul.f32.gmra.mxu0 %v6915
      %v7017 = vpop.f32.mrf.mxu0
      %v7018 = vadd.f32 %v6838, %v7017
      %7019 = vmatmul.f32.gmra.mxu0 %v6917
      %v7020 = vpop.f32.mrf.mxu0
      %v7021 = vadd.f32 %v6841, %v7020
      %7022 = vmatmul.f32.gmra.mxu0 %v6919
      %v7023 = vpop.f32.mrf.mxu0
      %v7024 = vadd.f32 %v6844, %v7023
      %7025 = vmatmul.f32.gmra.mxu0 %v6921
      %v7026 = vpop.f32.mrf.mxu0
      %v7027 = vadd.f32 %v6847, %v7026
      %7028 = vmatmul.f32.gmra.mxu0 %v6923
      %v7029 = vpop.f32.mrf.mxu0
      %v7030 = vadd.f32 %v6850, %v7029
      %7031 = vmatmul.f32.gmra.mxu0 %v6925
      %v7032 = vpop.f32.mrf.mxu0
      %v7033 = vadd.f32 %v6853, %v7032
      %7034 = vmatmul.f32.gmra.mxu0 %v6927
      %v7035 = vpop.f32.mrf.mxu0
      %v7036 = vadd.f32 %v6856, %v7035
      %7037 = vmatmul.f32.gmra.mxu0 %v6929
      %v7038 = vpop.f32.mrf.mxu0
      %v7039 = vadd.f32 %v6859, %v7038
      %7040 = vmatmul.f32.gmra.mxu0 %v6931
      %v7041 = vpop.f32.mrf.mxu0
      %v7042 = vadd.f32 %v6862, %v7041
      %7043 = vmatmul.f32.gmra.mxu0 %v6933
      %v7044 = vpop.f32.mrf.mxu0
      %v7045 = vadd.f32 %v6865, %v7044
      %7046 = vmatmul.f32.gmra.mxu0 %v6935
      %v7047 = vpop.f32.mrf.mxu0
      %v7048 = vadd.f32 %v6868, %v7047
      %7049 = vmatmul.f32.gmra.mxu0 %v6937
      %v7050 = vpop.f32.mrf.mxu0
      %v7051 = vadd.f32 %v6871, %v7050
      %7052 = vmatmul.f32.gmra.mxu0 %v6939
      %v7053 = vpop.f32.mrf.mxu0
      %v7054 = vadd.f32 %v6874, %v7053
      %7055 = vmatmul.f32.gmra.mxu0 %v6941
      %v7056 = vpop.f32.mrf.mxu0
      %v7057 = vadd.f32 %v6877, %v7056
      %7058 = vdwg.mxu0
      %v7059 = vrot.slane %v6555, 2
      %v7060 = vrot.slane %v6477, 2
      %v7061 = vsel %vm1403, %v7059, %v7060
      %v7062 = vrot.slane %v6571, 2
      %v7063 = vsel %vm1403, %v7060, %v7062
      %v7064 = vrot.slane %v6556, 2
      %v7065 = vrot.slane %v6480, 2
      %v7066 = vsel %vm1403, %v7064, %v7065
      %v7067 = vrot.slane %v6572, 2
      %v7068 = vsel %vm1403, %v7065, %v7067
      %v7069 = vrot.slane %v6557, 2
      %v7070 = vrot.slane %v6483, 2
      %v7071 = vsel %vm1403, %v7069, %v7070
      %v7072 = vrot.slane %v6573, 2
      %v7073 = vsel %vm1403, %v7070, %v7072
      %v7074 = vrot.slane %v6558, 2
      %v7075 = vrot.slane %v6486, 2
      %v7076 = vsel %vm1403, %v7074, %v7075
      %v7077 = vrot.slane %v6574, 2
      %v7078 = vsel %vm1403, %v7075, %v7077
      %v7079 = vrot.slane %v6559, 2
      %v7080 = vrot.slane %v6489, 2
      %v7081 = vsel %vm1403, %v7079, %v7080
      %v7082 = vrot.slane %v6575, 2
      %v7083 = vsel %vm1403, %v7080, %v7082
      %v7084 = vrot.slane %v6560, 2
      %v7085 = vrot.slane %v6492, 2
      %v7086 = vsel %vm1403, %v7084, %v7085
      %v7087 = vrot.slane %v6576, 2
      %v7088 = vsel %vm1403, %v7085, %v7087
      %v7089 = vrot.slane %v6561, 2
      %v7090 = vrot.slane %v6495, 2
      %v7091 = vsel %vm1403, %v7089, %v7090
      %v7092 = vrot.slane %v6577, 2
      %v7093 = vsel %vm1403, %v7090, %v7092
      %v7094 = vrot.slane %v6562, 2
      %v7095 = vrot.slane %v6498, 2
      %v7096 = vsel %vm1403, %v7094, %v7095
      %v7097 = vrot.slane %v6578, 2
      %v7098 = vsel %vm1403, %v7095, %v7097
      %v7099 = vrot.slane %v6563, 2
      %v7100 = vrot.slane %v6501, 2
      %v7101 = vsel %vm1403, %v7099, %v7100
      %v7102 = vrot.slane %v6579, 2
      %v7103 = vsel %vm1403, %v7100, %v7102
      %v7104 = vrot.slane %v6564, 2
      %v7105 = vrot.slane %v6504, 2
      %v7106 = vsel %vm1403, %v7104, %v7105
      %v7107 = vrot.slane %v6580, 2
      %v7108 = vsel %vm1403, %v7105, %v7107
      %v7109 = vrot.slane %v6565, 2
      %v7110 = vrot.slane %v6507, 2
      %v7111 = vsel %vm1403, %v7109, %v7110
      %v7112 = vrot.slane %v6581, 2
      %v7113 = vsel %vm1403, %v7110, %v7112
      %v7114 = vrot.slane %v6566, 2
      %v7115 = vrot.slane %v6510, 2
      %v7116 = vsel %vm1403, %v7114, %v7115
      %v7117 = vrot.slane %v6582, 2
      %v7118 = vsel %vm1403, %v7115, %v7117
      %v7119 = vrot.slane %v6567, 2
      %v7120 = vrot.slane %v6513, 2
      %v7121 = vsel %vm1403, %v7119, %v7120
      %v7122 = vrot.slane %v6583, 2
      %v7123 = vsel %vm1403, %v7120, %v7122
      %v7124 = vrot.slane %v6568, 2
      %v7125 = vrot.slane %v6516, 2
      %v7126 = vsel %vm1403, %v7124, %v7125
      %v7127 = vrot.slane %v6584, 2
      %v7128 = vsel %vm1403, %v7125, %v7127
      %v7129 = vrot.slane %v6569, 2
      %v7130 = vrot.slane %v6519, 2
      %v7131 = vsel %vm1403, %v7129, %v7130
      %v7132 = vrot.slane %v6585, 2
      %v7133 = vsel %vm1403, %v7130, %v7132
      %v7134 = vrot.slane %v6570, 2
      %v7135 = vrot.slane %v6522, 2
      %v7136 = vsel %vm1403, %v7134, %v7135
      %v7137 = vrot.slane %v6586, 2
      %v7138 = vsel %vm1403, %v7135, %v7137
      %v7139 = vsel %vm2394, %v7061, 0
      %v7141 = vsel %vm2394, %v7063, 0
      %v7143 = vsel %vm2394, %v7066, 0
      %v7145 = vsel %vm2394, %v7068, 0
      %v7147 = vsel %vm2394, %v7071, 0
      %v7149 = vsel %vm2394, %v7073, 0
      %v7151 = vsel %vm2394, %v7076, 0
      %v7153 = vsel %vm2394, %v7078, 0
      %v7155 = vsel %vm2394, %v7081, 0
      %v7157 = vsel %vm2394, %v7083, 0
      %v7159 = vsel %vm2394, %v7086, 0
      %v7161 = vsel %vm2394, %v7088, 0
      %v7163 = vsel %vm2394, %v7091, 0
      %v7165 = vsel %vm2394, %v7093, 0
      %v7167 = vsel %vm2394, %v7096, 0
      %v7169 = vsel %vm2394, %v7098, 0
      %v7171 = vsel %vm2394, %v7101, 0
      %v7173 = vsel %vm2394, %v7103, 0
      %v7175 = vsel %vm2394, %v7106, 0
      %v7177 = vsel %vm2394, %v7108, 0
      %v7179 = vsel %vm2394, %v7111, 0
      %v7181 = vsel %vm2394, %v7113, 0
      %v7183 = vsel %vm2394, %v7116, 0
      %v7185 = vsel %vm2394, %v7118, 0
      %v7187 = vsel %vm2394, %v7121, 0
      %v7189 = vsel %vm2394, %v7123, 0
      %v7191 = vsel %vm2394, %v7126, 0
      %v7193 = vsel %vm2394, %v7128, 0
      %v7195 = vsel %vm2394, %v7131, 0
      %v7197 = vsel %vm2394, %v7133, 0
      %v7199 = vsel %vm2394, %v7136, 0
      %v7201 = vsel %vm2394, %v7138, 0
      %v7204 = vsel %vm2459, %v991, 0
      %7206 = vmatpush.msra.mxu0 0.0
      %7207 = vmatpush.msra.mxu0 0.0
      %7208 = vmatpush.msra.mxu0 0.0
      %7209 = vmatpush.msra.mxu0 0.0
      %7210 = vmatpush.msra.mxu0 0.0
      %7211 = vmatpush.msra.mxu0 0.0
      %7212 = vmatpush.msra.mxu0 0.0
      %7213 = vmatpush.msra.mxu0 0.0
      %7214 = vmatpush.msra.mxu0 0.0
      %7215 = vmatpush.msra.mxu0 0.0
      %7216 = vmatpush.msra.mxu0 0.0
      %7217 = vmatpush.msra.mxu0 0.0
      %7218 = vmatpush.msra.mxu0 0.0
      %7219 = vmatpush.msra.mxu0 0.0
      %7220 = vmatpush.msra.mxu0 0.0
      %7221 = vmatpush.msra.mxu0 %v7204
      %7222 = vmatmul.f32.gmra.mxu0 %v7139
      %v7223 = vpop.f32.mrf.mxu0
      %v7224 = vadd.f32 0.0, %v7223
      %7225 = vmatmul.f32.gmra.mxu0 %v7141
      %v7226 = vpop.f32.mrf.mxu0
      %v7227 = vadd.f32 0.0, %v7226
      %7228 = vmatmul.f32.gmra.mxu0 %v7143
      %v7229 = vpop.f32.mrf.mxu0
      %v7230 = vadd.f32 0.0, %v7229
      %7231 = vmatmul.f32.gmra.mxu0 %v7145
      %v7232 = vpop.f32.mrf.mxu0
      %v7233 = vadd.f32 0.0, %v7232
      %7234 = vmatmul.f32.gmra.mxu0 %v7147
      %v7235 = vpop.f32.mrf.mxu0
      %v7236 = vadd.f32 0.0, %v7235
      %7237 = vmatmul.f32.gmra.mxu0 %v7149
      %v7238 = vpop.f32.mrf.mxu0
      %v7239 = vadd.f32 0.0, %v7238
      %7240 = vmatmul.f32.gmra.mxu0 %v7151
      %v7241 = vpop.f32.mrf.mxu0
      %v7242 = vadd.f32 0.0, %v7241
      %7243 = vmatmul.f32.gmra.mxu0 %v7153
      %v7244 = vpop.f32.mrf.mxu0
      %v7245 = vadd.f32 0.0, %v7244
      %7246 = vmatmul.f32.gmra.mxu0 %v7155
      %v7247 = vpop.f32.mrf.mxu0
      %v7248 = vadd.f32 0.0, %v7247
      %7249 = vmatmul.f32.gmra.mxu0 %v7157
      %v7250 = vpop.f32.mrf.mxu0
      %v7251 = vadd.f32 0.0, %v7250
      %7252 = vmatmul.f32.gmra.mxu0 %v7159
      %v7253 = vpop.f32.mrf.mxu0
      %v7254 = vadd.f32 0.0, %v7253
      %7255 = vmatmul.f32.gmra.mxu0 %v7161
      %v7256 = vpop.f32.mrf.mxu0
      %v7257 = vadd.f32 0.0, %v7256
      %7258 = vmatmul.f32.gmra.mxu0 %v7163
      %v7259 = vpop.f32.mrf.mxu0
      %v7260 = vadd.f32 0.0, %v7259
      %7261 = vmatmul.f32.gmra.mxu0 %v7165
      %v7262 = vpop.f32.mrf.mxu0
      %v7263 = vadd.f32 0.0, %v7262
      %7264 = vmatmul.f32.gmra.mxu0 %v7167
      %v7265 = vpop.f32.mrf.mxu0
      %v7266 = vadd.f32 0.0, %v7265
      %7267 = vmatmul.f32.gmra.mxu0 %v7169
      %v7268 = vpop.f32.mrf.mxu0
      %v7269 = vadd.f32 0.0, %v7268
      %7270 = vmatmul.f32.gmra.mxu0 %v7171
      %v7271 = vpop.f32.mrf.mxu0
      %v7272 = vadd.f32 0.0, %v7271
      %7273 = vmatmul.f32.gmra.mxu0 %v7173
      %v7274 = vpop.f32.mrf.mxu0
      %v7275 = vadd.f32 0.0, %v7274
      %7276 = vmatmul.f32.gmra.mxu0 %v7175
      %v7277 = vpop.f32.mrf.mxu0
      %v7278 = vadd.f32 0.0, %v7277
      %7279 = vmatmul.f32.gmra.mxu0 %v7177
      %v7280 = vpop.f32.mrf.mxu0
      %v7281 = vadd.f32 0.0, %v7280
      %7282 = vmatmul.f32.gmra.mxu0 %v7179
      %v7283 = vpop.f32.mrf.mxu0
      %v7284 = vadd.f32 0.0, %v7283
      %7285 = vmatmul.f32.gmra.mxu0 %v7181
      %v7286 = vpop.f32.mrf.mxu0
      %v7287 = vadd.f32 0.0, %v7286
      %7288 = vmatmul.f32.gmra.mxu0 %v7183
      %v7289 = vpop.f32.mrf.mxu0
      %v7290 = vadd.f32 0.0, %v7289
      %7291 = vmatmul.f32.gmra.mxu0 %v7185
      %v7292 = vpop.f32.mrf.mxu0
      %v7293 = vadd.f32 0.0, %v7292
      %7294 = vmatmul.f32.gmra.mxu0 %v7187
      %v7295 = vpop.f32.mrf.mxu0
      %v7296 = vadd.f32 0.0, %v7295
      %7297 = vmatmul.f32.gmra.mxu0 %v7189
      %v7298 = vpop.f32.mrf.mxu0
      %v7299 = vadd.f32 0.0, %v7298
      %7300 = vmatmul.f32.gmra.mxu0 %v7191
      %v7301 = vpop.f32.mrf.mxu0
      %v7302 = vadd.f32 0.0, %v7301
      %7303 = vmatmul.f32.gmra.mxu0 %v7193
      %v7304 = vpop.f32.mrf.mxu0
      %v7305 = vadd.f32 0.0, %v7304
      %7306 = vmatmul.f32.gmra.mxu0 %v7195
      %v7307 = vpop.f32.mrf.mxu0
      %v7308 = vadd.f32 0.0, %v7307
      %7309 = vmatmul.f32.gmra.mxu0 %v7197
      %v7310 = vpop.f32.mrf.mxu0
      %v7311 = vadd.f32 0.0, %v7310
      %7312 = vmatmul.f32.gmra.mxu0 %v7199
      %v7313 = vpop.f32.mrf.mxu0
      %v7314 = vadd.f32 0.0, %v7313
      %7315 = vmatmul.f32.gmra.mxu0 %v7201
      %v7316 = vpop.f32.mrf.mxu0
      %v7317 = vadd.f32 0.0, %v7316
      %7318 = vdwg.mxu0
      %v7319 = vadd.f32 %v6964, %v7224
      %v7320 = vadd.f32 %v6967, %v7227
      %v7321 = vadd.f32 %v6970, %v7230
      %v7322 = vadd.f32 %v6973, %v7233
      %v7323 = vadd.f32 %v6976, %v7236
      %v7324 = vadd.f32 %v6979, %v7239
      %v7325 = vadd.f32 %v6982, %v7242
      %v7326 = vadd.f32 %v6985, %v7245
      %v7327 = vadd.f32 %v6988, %v7248
      %v7328 = vadd.f32 %v6991, %v7251
      %v7329 = vadd.f32 %v6994, %v7254
      %v7330 = vadd.f32 %v6997, %v7257
      %v7331 = vadd.f32 %v7000, %v7260
      %v7332 = vadd.f32 %v7003, %v7263
      %v7333 = vadd.f32 %v7006, %v7266
      %v7334 = vadd.f32 %v7009, %v7269
      %v7335 = vadd.f32 %v7012, %v7272
      %v7336 = vadd.f32 %v7015, %v7275
      %v7337 = vadd.f32 %v7018, %v7278
      %v7338 = vadd.f32 %v7021, %v7281
      %v7339 = vadd.f32 %v7024, %v7284
      %v7340 = vadd.f32 %v7027, %v7287
      %v7341 = vadd.f32 %v7030, %v7290
      %v7342 = vadd.f32 %v7033, %v7293
      %v7343 = vadd.f32 %v7036, %v7296
      %v7344 = vadd.f32 %v7039, %v7299
      %v7345 = vadd.f32 %v7042, %v7302
      %v7346 = vadd.f32 %v7045, %v7305
      %v7347 = vadd.f32 %v7048, %v7308
      %v7348 = vadd.f32 %v7051, %v7311
      %v7349 = vadd.f32 %v7054, %v7314
      %v7350 = vadd.f32 %v7057, %v7317
      %v7352 = vperm.slane %v992, 0
      %v7354 = vmul.f32 %v7319, %v7352
      %v7355 = vmul.f32 %v7320, %v7352
      %v7356 = vmul.f32 %v7321, %v7352
      %v7357 = vmul.f32 %v7322, %v7352
      %v7358 = vmul.f32 %v7323, %v7352
      %v7359 = vmul.f32 %v7324, %v7352
      %v7360 = vmul.f32 %v7325, %v7352
      %v7361 = vmul.f32 %v7326, %v7352
      %v7362 = vmul.f32 %v7327, %v7352
      %v7363 = vmul.f32 %v7328, %v7352
      %v7364 = vmul.f32 %v7329, %v7352
      %v7365 = vmul.f32 %v7330, %v7352
      %v7366 = vmul.f32 %v7331, %v7352
      %v7367 = vmul.f32 %v7332, %v7352
      %v7368 = vmul.f32 %v7333, %v7352
      %v7369 = vmul.f32 %v7334, %v7352
      %v7370 = vmul.f32 %v7335, %v7352
      %v7371 = vmul.f32 %v7336, %v7352
      %v7372 = vmul.f32 %v7337, %v7352
      %v7373 = vmul.f32 %v7338, %v7352
      %v7374 = vmul.f32 %v7339, %v7352
      %v7375 = vmul.f32 %v7340, %v7352
      %v7376 = vmul.f32 %v7341, %v7352
      %v7377 = vmul.f32 %v7342, %v7352
      %v7378 = vmul.f32 %v7343, %v7352
      %v7379 = vmul.f32 %v7344, %v7352
      %v7380 = vmul.f32 %v7345, %v7352
      %v7381 = vmul.f32 %v7346, %v7352
      %v7382 = vmul.f32 %v7347, %v7352
      %v7383 = vmul.f32 %v7348, %v7352
      %v7384 = vmul.f32 %v7349, %v7352
      %v7385 = vmul.f32 %v7350, %v7352
      %v7387 = vperm.slane %v993, 0
      %v7389 = vadd.f32 %v7354, %v7387
      %v7390 = vadd.f32 %v7355, %v7387
      %v7391 = vadd.f32 %v7356, %v7387
      %v7392 = vadd.f32 %v7357, %v7387
      %v7393 = vadd.f32 %v7358, %v7387
      %v7394 = vadd.f32 %v7359, %v7387
      %v7395 = vadd.f32 %v7360, %v7387
      %v7396 = vadd.f32 %v7361, %v7387
      %v7397 = vadd.f32 %v7362, %v7387
      %v7398 = vadd.f32 %v7363, %v7387
      %v7399 = vadd.f32 %v7364, %v7387
      %v7400 = vadd.f32 %v7365, %v7387
      %v7401 = vadd.f32 %v7366, %v7387
      %v7402 = vadd.f32 %v7367, %v7387
      %v7403 = vadd.f32 %v7368, %v7387
      %v7404 = vadd.f32 %v7369, %v7387
      %v7405 = vadd.f32 %v7370, %v7387
      %v7406 = vadd.f32 %v7371, %v7387
      %v7407 = vadd.f32 %v7372, %v7387
      %v7408 = vadd.f32 %v7373, %v7387
      %v7409 = vadd.f32 %v7374, %v7387
      %v7410 = vadd.f32 %v7375, %v7387
      %v7411 = vadd.f32 %v7376, %v7387
      %v7412 = vadd.f32 %v7377, %v7387
      %v7413 = vadd.f32 %v7378, %v7387
      %v7414 = vadd.f32 %v7379, %v7387
      %v7415 = vadd.f32 %v7380, %v7387
      %v7416 = vadd.f32 %v7381, %v7387
      %v7417 = vadd.f32 %v7382, %v7387
      %v7418 = vadd.f32 %v7383, %v7387
      %v7419 = vadd.f32 %v7384, %v7387
      %v7420 = vadd.f32 %v7385, %v7387
      %v7421 = vmax.f32 %v7389, 0.0
      %v7422 = vmax.f32 %v7390, 0.0
      %v7423 = vmax.f32 %v7391, 0.0
      %v7424 = vmax.f32 %v7392, 0.0
      %v7425 = vmax.f32 %v7393, 0.0
      %v7426 = vmax.f32 %v7394, 0.0
      %v7427 = vmax.f32 %v7395, 0.0
      %v7428 = vmax.f32 %v7396, 0.0
      %v7429 = vmax.f32 %v7397, 0.0
      %v7430 = vmax.f32 %v7398, 0.0
      %v7431 = vmax.f32 %v7399, 0.0
      %v7432 = vmax.f32 %v7400, 0.0
      %v7433 = vmax.f32 %v7401, 0.0
      %v7434 = vmax.f32 %v7402, 0.0
      %v7435 = vmax.f32 %v7403, 0.0
      %v7436 = vmax.f32 %v7404, 0.0
      %v7437 = vmax.f32 %v7405, 0.0
      %v7438 = vmax.f32 %v7406, 0.0
      %v7439 = vmax.f32 %v7407, 0.0
      %v7440 = vmax.f32 %v7408, 0.0
      %v7441 = vmax.f32 %v7409, 0.0
      %v7442 = vmax.f32 %v7410, 0.0
      %v7443 = vmax.f32 %v7411, 0.0
      %v7444 = vmax.f32 %v7412, 0.0
      %v7445 = vmax.f32 %v7413, 0.0
      %v7446 = vmax.f32 %v7414, 0.0
      %v7447 = vmax.f32 %v7415, 0.0
      %v7448 = vmax.f32 %v7416, 0.0
      %v7449 = vmax.f32 %v7417, 0.0
      %v7450 = vmax.f32 %v7418, 0.0
      %v7451 = vmax.f32 %v7419, 0.0
      %v7452 = vmax.f32 %v7420, 0.0
      %v7454 = vsel %vm4306, %v7421, 0
      %v7457 = vsel %vm4306, %v7422, 0
      %v7460 = vsel %vm4306, %v7423, 0
      %v7463 = vsel %vm4306, %v7424, 0
      %v7466 = vsel %vm4306, %v7425, 0
      %v7469 = vsel %vm4306, %v7426, 0
      %v7472 = vsel %vm4306, %v7427, 0
      %v7475 = vsel %vm4306, %v7428, 0
      %v7478 = vsel %vm4306, %v7429, 0
      %v7481 = vsel %vm4306, %v7430, 0
      %v7484 = vsel %vm4306, %v7431, 0
      %v7487 = vsel %vm4306, %v7432, 0
      %v7490 = vsel %vm4306, %v7433, 0
      %v7493 = vsel %vm4306, %v7434, 0
      %v7496 = vsel %vm4306, %v7435, 0
      %v7499 = vsel %vm4306, %v7436, 0
      %v7502 = vsel %vm4306, %v7437, 0
      %v7505 = vsel %vm4306, %v7438, 0
      %v7508 = vsel %vm4306, %v7439, 0
      %v7511 = vsel %vm4306, %v7440, 0
      %v7514 = vsel %vm4306, %v7441, 0
      %v7517 = vsel %vm4306, %v7442, 0
      %v7520 = vsel %vm4306, %v7443, 0
      %v7523 = vsel %vm4306, %v7444, 0
      %v7526 = vsel %vm4306, %v7445, 0
      %v7529 = vsel %vm4306, %v7446, 0
      %v7532 = vsel %vm4306, %v7447, 0
      %v7535 = vsel %vm4306, %v7448, 0
      %v7538 = vsel %vm4306, %v7449, 0
      %v7541 = vsel %vm4306, %v7450, 0
      %v7544 = vsel %vm4306, %v7451, 0
      %v7547 = vsel %vm4306, %v7452, 0
      %7549 = vmatpush.msra.mxu0 0.0
      %7550 = vmatpush.msra.mxu0 0.0
      %7551 = vmatpush.msra.mxu0 0.0
      %7552 = vmatpush.msra.mxu0 0.0
      %7553 = vmatpush.msra.mxu0 0.0
      %7554 = vmatpush.msra.mxu0 0.0
      %7555 = vmatpush.msra.mxu0 0.0
      %7556 = vmatpush.msra.mxu0 0.0
      %7557 = vmatpush.msra.mxu0 0.0
      %7558 = vmatpush.msra.mxu0 0.0
      %7559 = vmatpush.msra.mxu0 0.0
      %7560 = vmatpush.msra.mxu0 0.0
      %7561 = vmatpush.msra.mxu0 0.0
      %7562 = vmatpush.msra.mxu0 0.0
      %7563 = vmatpush.msra.mxu0 0.0
      %7564 = vmatpush.msra.mxu0 %v995
      %7565 = vmatmul.f32.gmra.mxu0 %v7454
      %v7566 = vpop.f32.mrf.mxu0
      %v7567 = vadd.f32 0.0, %v7566
      %7568 = vmatmul.f32.gmra.mxu0 %v7457
      %v7569 = vpop.f32.mrf.mxu0
      %v7570 = vadd.f32 0.0, %v7569
      %7571 = vmatmul.f32.gmra.mxu0 %v7460
      %v7572 = vpop.f32.mrf.mxu0
      %v7573 = vadd.f32 0.0, %v7572
      %7574 = vmatmul.f32.gmra.mxu0 %v7463
      %v7575 = vpop.f32.mrf.mxu0
      %v7576 = vadd.f32 0.0, %v7575
      %7577 = vmatmul.f32.gmra.mxu0 %v7466
      %v7578 = vpop.f32.mrf.mxu0
      %v7579 = vadd.f32 0.0, %v7578
      %7580 = vmatmul.f32.gmra.mxu0 %v7469
      %v7581 = vpop.f32.mrf.mxu0
      %v7582 = vadd.f32 0.0, %v7581
      %7583 = vmatmul.f32.gmra.mxu0 %v7472
      %v7584 = vpop.f32.mrf.mxu0
      %v7585 = vadd.f32 0.0, %v7584
      %7586 = vmatmul.f32.gmra.mxu0 %v7475
      %v7587 = vpop.f32.mrf.mxu0
      %v7588 = vadd.f32 0.0, %v7587
      %7589 = vmatmul.f32.gmra.mxu0 %v7478
      %v7590 = vpop.f32.mrf.mxu0
      %v7591 = vadd.f32 0.0, %v7590
      %7592 = vmatmul.f32.gmra.mxu0 %v7481
      %v7593 = vpop.f32.mrf.mxu0
      %v7594 = vadd.f32 0.0, %v7593
      %7595 = vmatmul.f32.gmra.mxu0 %v7484
      %v7596 = vpop.f32.mrf.mxu0
      %v7597 = vadd.f32 0.0, %v7596
      %7598 = vmatmul.f32.gmra.mxu0 %v7487
      %v7599 = vpop.f32.mrf.mxu0
      %v7600 = vadd.f32 0.0, %v7599
      %7601 = vmatmul.f32.gmra.mxu0 %v7490
      %v7602 = vpop.f32.mrf.mxu0
      %v7603 = vadd.f32 0.0, %v7602
      %7604 = vmatmul.f32.gmra.mxu0 %v7493
      %v7605 = vpop.f32.mrf.mxu0
      %v7606 = vadd.f32 0.0, %v7605
      %7607 = vmatmul.f32.gmra.mxu0 %v7496
      %v7608 = vpop.f32.mrf.mxu0
      %v7609 = vadd.f32 0.0, %v7608
      %7610 = vmatmul.f32.gmra.mxu0 %v7499
      %v7611 = vpop.f32.mrf.mxu0
      %v7612 = vadd.f32 0.0, %v7611
      %7613 = vmatmul.f32.gmra.mxu0 %v7502
      %v7614 = vpop.f32.mrf.mxu0
      %v7615 = vadd.f32 0.0, %v7614
      %7616 = vmatmul.f32.gmra.mxu0 %v7505
      %v7617 = vpop.f32.mrf.mxu0
      %v7618 = vadd.f32 0.0, %v7617
      %7619 = vmatmul.f32.gmra.mxu0 %v7508
      %v7620 = vpop.f32.mrf.mxu0
      %v7621 = vadd.f32 0.0, %v7620
      %7622 = vmatmul.f32.gmra.mxu0 %v7511
      %v7623 = vpop.f32.mrf.mxu0
      %v7624 = vadd.f32 0.0, %v7623
      %7625 = vmatmul.f32.gmra.mxu0 %v7514
      %v7626 = vpop.f32.mrf.mxu0
      %v7627 = vadd.f32 0.0, %v7626
      %7628 = vmatmul.f32.gmra.mxu0 %v7517
      %v7629 = vpop.f32.mrf.mxu0
      %v7630 = vadd.f32 0.0, %v7629
      %7631 = vmatmul.f32.gmra.mxu0 %v7520
      %v7632 = vpop.f32.mrf.mxu0
      %v7633 = vadd.f32 0.0, %v7632
      %7634 = vmatmul.f32.gmra.mxu0 %v7523
      %v7635 = vpop.f32.mrf.mxu0
      %v7636 = vadd.f32 0.0, %v7635
      %7637 = vmatmul.f32.gmra.mxu0 %v7526
      %v7638 = vpop.f32.mrf.mxu0
      %v7639 = vadd.f32 0.0, %v7638
      %7640 = vmatmul.f32.gmra.mxu0 %v7529
      %v7641 = vpop.f32.mrf.mxu0
      %v7642 = vadd.f32 0.0, %v7641
      %7643 = vmatmul.f32.gmra.mxu0 %v7532
      %v7644 = vpop.f32.mrf.mxu0
      %v7645 = vadd.f32 0.0, %v7644
      %7646 = vmatmul.f32.gmra.mxu0 %v7535
      %v7647 = vpop.f32.mrf.mxu0
      %v7648 = vadd.f32 0.0, %v7647
      %7649 = vmatmul.f32.gmra.mxu0 %v7538
      %v7650 = vpop.f32.mrf.mxu0
      %v7651 = vadd.f32 0.0, %v7650
      %7652 = vmatmul.f32.gmra.mxu0 %v7541
      %v7653 = vpop.f32.mrf.mxu0
      %v7654 = vadd.f32 0.0, %v7653
      %7655 = vmatmul.f32.gmra.mxu0 %v7544
      %v7656 = vpop.f32.mrf.mxu0
      %v7657 = vadd.f32 0.0, %v7656
      %7658 = vmatmul.f32.gmra.mxu0 %v7547
      %v7659 = vpop.f32.mrf.mxu0
      %v7660 = vadd.f32 0.0, %v7659
      %7661 = vdwg.mxu0
      %7662 = vmatpush.msra.mxu0 0.0
      %7663 = vmatpush.msra.mxu0 0.0
      %7664 = vmatpush.msra.mxu0 0.0
      %7665 = vmatpush.msra.mxu0 0.0
      %7666 = vmatpush.msra.mxu0 0.0
      %7667 = vmatpush.msra.mxu0 0.0
      %7668 = vmatpush.msra.mxu0 0.0
      %7669 = vmatpush.msra.mxu0 0.0
      %7670 = vmatpush.msra.mxu0 0.0
      %7671 = vmatpush.msra.mxu0 0.0
      %7672 = vmatpush.msra.mxu0 0.0
      %7673 = vmatpush.msra.mxu0 0.0
      %7674 = vmatpush.msra.mxu0 0.0
      %7675 = vmatpush.msra.mxu0 0.0
      %7676 = vmatpush.msra.mxu0 0.0
      %7677 = vmatpush.msra.mxu0 %v994
      %7678 = vmatmul.f32.gmra.mxu0 %v4307
      %v7679 = vpop.f32.mrf.mxu0
      %v7680 = vadd.f32 %v7567, %v7679
      %7681 = vmatmul.f32.gmra.mxu0 %v4307
      %v7682 = vpop.f32.mrf.mxu0
      %v7683 = vadd.f32 %v7570, %v7682
      %7684 = vmatmul.f32.gmra.mxu0 %v7454
      %v7685 = vpop.f32.mrf.mxu0
      %v7686 = vadd.f32 %v7573, %v7685
      %7687 = vmatmul.f32.gmra.mxu0 %v7457
      %v7688 = vpop.f32.mrf.mxu0
      %v7689 = vadd.f32 %v7576, %v7688
      %7690 = vmatmul.f32.gmra.mxu0 %v7460
      %v7691 = vpop.f32.mrf.mxu0
      %v7692 = vadd.f32 %v7579, %v7691
      %7693 = vmatmul.f32.gmra.mxu0 %v7463
      %v7694 = vpop.f32.mrf.mxu0
      %v7695 = vadd.f32 %v7582, %v7694
      %7696 = vmatmul.f32.gmra.mxu0 %v7466
      %v7697 = vpop.f32.mrf.mxu0
      %v7698 = vadd.f32 %v7585, %v7697
      %7699 = vmatmul.f32.gmra.mxu0 %v7469
      %v7700 = vpop.f32.mrf.mxu0
      %v7701 = vadd.f32 %v7588, %v7700
      %7702 = vmatmul.f32.gmra.mxu0 %v7472
      %v7703 = vpop.f32.mrf.mxu0
      %v7704 = vadd.f32 %v7591, %v7703
      %7705 = vmatmul.f32.gmra.mxu0 %v7475
      %v7706 = vpop.f32.mrf.mxu0
      %v7707 = vadd.f32 %v7594, %v7706
      %7708 = vmatmul.f32.gmra.mxu0 %v7478
      %v7709 = vpop.f32.mrf.mxu0
      %v7710 = vadd.f32 %v7597, %v7709
      %7711 = vmatmul.f32.gmra.mxu0 %v7481
      %v7712 = vpop.f32.mrf.mxu0
      %v7713 = vadd.f32 %v7600, %v7712
      %7714 = vmatmul.f32.gmra.mxu0 %v7484
      %v7715 = vpop.f32.mrf.mxu0
      %v7716 = vadd.f32 %v7603, %v7715
      %7717 = vmatmul.f32.gmra.mxu0 %v7487
      %v7718 = vpop.f32.mrf.mxu0
      %v7719 = vadd.f32 %v7606, %v7718
      %7720 = vmatmul.f32.gmra.mxu0 %v7490
      %v7721 = vpop.f32.mrf.mxu0
      %v7722 = vadd.f32 %v7609, %v7721
      %7723 = vmatmul.f32.gmra.mxu0 %v7493
      %v7724 = vpop.f32.mrf.mxu0
      %v7725 = vadd.f32 %v7612, %v7724
      %7726 = vmatmul.f32.gmra.mxu0 %v7496
      %v7727 = vpop.f32.mrf.mxu0
      %v7728 = vadd.f32 %v7615, %v7727
      %7729 = vmatmul.f32.gmra.mxu0 %v7499
      %v7730 = vpop.f32.mrf.mxu0
      %v7731 = vadd.f32 %v7618, %v7730
      %7732 = vmatmul.f32.gmra.mxu0 %v7502
      %v7733 = vpop.f32.mrf.mxu0
      %v7734 = vadd.f32 %v7621, %v7733
      %7735 = vmatmul.f32.gmra.mxu0 %v7505
      %v7736 = vpop.f32.mrf.mxu0
      %v7737 = vadd.f32 %v7624, %v7736
      %7738 = vmatmul.f32.gmra.mxu0 %v7508
      %v7739 = vpop.f32.mrf.mxu0
      %v7740 = vadd.f32 %v7627, %v7739
      %7741 = vmatmul.f32.gmra.mxu0 %v7511
      %v7742 = vpop.f32.mrf.mxu0
      %v7743 = vadd.f32 %v7630, %v7742
      %7744 = vmatmul.f32.gmra.mxu0 %v7514
      %v7745 = vpop.f32.mrf.mxu0
      %v7746 = vadd.f32 %v7633, %v7745
      %7747 = vmatmul.f32.gmra.mxu0 %v7517
      %v7748 = vpop.f32.mrf.mxu0
      %v7749 = vadd.f32 %v7636, %v7748
      %7750 = vmatmul.f32.gmra.mxu0 %v7520
      %v7751 = vpop.f32.mrf.mxu0
      %v7752 = vadd.f32 %v7639, %v7751
      %7753 = vmatmul.f32.gmra.mxu0 %v7523
      %v7754 = vpop.f32.mrf.mxu0
      %v7755 = vadd.f32 %v7642, %v7754
      %7756 = vmatmul.f32.gmra.mxu0 %v7526
      %v7757 = vpop.f32.mrf.mxu0
      %v7758 = vadd.f32 %v7645, %v7757
      %7759 = vmatmul.f32.gmra.mxu0 %v7529
      %v7760 = vpop.f32.mrf.mxu0
      %v7761 = vadd.f32 %v7648, %v7760
      %7762 = vmatmul.f32.gmra.mxu0 %v7532
      %v7763 = vpop.f32.mrf.mxu0
      %v7764 = vadd.f32 %v7651, %v7763
      %7765 = vmatmul.f32.gmra.mxu0 %v7535
      %v7766 = vpop.f32.mrf.mxu0
      %v7767 = vadd.f32 %v7654, %v7766
      %7768 = vmatmul.f32.gmra.mxu0 %v7538
      %v7769 = vpop.f32.mrf.mxu0
      %v7770 = vadd.f32 %v7657, %v7769
      %7771 = vmatmul.f32.gmra.mxu0 %v7541
      %v7772 = vpop.f32.mrf.mxu0
      %v7773 = vadd.f32 %v7660, %v7772
      %7774 = vdwg.mxu0
      %7775 = vmatpush.msra.mxu0 0.0
      %7776 = vmatpush.msra.mxu0 0.0
      %7777 = vmatpush.msra.mxu0 0.0
      %7778 = vmatpush.msra.mxu0 0.0
      %7779 = vmatpush.msra.mxu0 0.0
      %7780 = vmatpush.msra.mxu0 0.0
      %7781 = vmatpush.msra.mxu0 0.0
      %7782 = vmatpush.msra.mxu0 0.0
      %7783 = vmatpush.msra.mxu0 0.0
      %7784 = vmatpush.msra.mxu0 0.0
      %7785 = vmatpush.msra.mxu0 0.0
      %7786 = vmatpush.msra.mxu0 0.0
      %7787 = vmatpush.msra.mxu0 0.0
      %7788 = vmatpush.msra.mxu0 0.0
      %7789 = vmatpush.msra.mxu0 0.0
      %7790 = vmatpush.msra.mxu0 %v996
      %7791 = vmatmul.f32.gmra.mxu0 %v7460
      %v7792 = vpop.f32.mrf.mxu0
      %v7793 = vadd.f32 0.0, %v7792
      %7794 = vmatmul.f32.gmra.mxu0 %v7463
      %v7795 = vpop.f32.mrf.mxu0
      %v7796 = vadd.f32 0.0, %v7795
      %7797 = vmatmul.f32.gmra.mxu0 %v7466
      %v7798 = vpop.f32.mrf.mxu0
      %v7799 = vadd.f32 0.0, %v7798
      %7800 = vmatmul.f32.gmra.mxu0 %v7469
      %v7801 = vpop.f32.mrf.mxu0
      %v7802 = vadd.f32 0.0, %v7801
      %7803 = vmatmul.f32.gmra.mxu0 %v7472
      %v7804 = vpop.f32.mrf.mxu0
      %v7805 = vadd.f32 0.0, %v7804
      %7806 = vmatmul.f32.gmra.mxu0 %v7475
      %v7807 = vpop.f32.mrf.mxu0
      %v7808 = vadd.f32 0.0, %v7807
      %7809 = vmatmul.f32.gmra.mxu0 %v7478
      %v7810 = vpop.f32.mrf.mxu0
      %v7811 = vadd.f32 0.0, %v7810
      %7812 = vmatmul.f32.gmra.mxu0 %v7481
      %v7813 = vpop.f32.mrf.mxu0
      %v7814 = vadd.f32 0.0, %v7813
      %7815 = vmatmul.f32.gmra.mxu0 %v7484
      %v7816 = vpop.f32.mrf.mxu0
      %v7817 = vadd.f32 0.0, %v7816
      %7818 = vmatmul.f32.gmra.mxu0 %v7487
      %v7819 = vpop.f32.mrf.mxu0
      %v7820 = vadd.f32 0.0, %v7819
      %7821 = vmatmul.f32.gmra.mxu0 %v7490
      %v7822 = vpop.f32.mrf.mxu0
      %v7823 = vadd.f32 0.0, %v7822
      %7824 = vmatmul.f32.gmra.mxu0 %v7493
      %v7825 = vpop.f32.mrf.mxu0
      %v7826 = vadd.f32 0.0, %v7825
      %7827 = vmatmul.f32.gmra.mxu0 %v7496
      %v7828 = vpop.f32.mrf.mxu0
      %v7829 = vadd.f32 0.0, %v7828
      %7830 = vmatmul.f32.gmra.mxu0 %v7499
      %v7831 = vpop.f32.mrf.mxu0
      %v7832 = vadd.f32 0.0, %v7831
      %7833 = vmatmul.f32.gmra.mxu0 %v7502
      %v7834 = vpop.f32.mrf.mxu0
      %v7835 = vadd.f32 0.0, %v7834
      %7836 = vmatmul.f32.gmra.mxu0 %v7505
      %v7837 = vpop.f32.mrf.mxu0
      %v7838 = vadd.f32 0.0, %v7837
      %7839 = vmatmul.f32.gmra.mxu0 %v7508
      %v7840 = vpop.f32.mrf.mxu0
      %v7841 = vadd.f32 0.0, %v7840
      %7842 = vmatmul.f32.gmra.mxu0 %v7511
      %v7843 = vpop.f32.mrf.mxu0
      %v7844 = vadd.f32 0.0, %v7843
      %7845 = vmatmul.f32.gmra.mxu0 %v7514
      %v7846 = vpop.f32.mrf.mxu0
      %v7847 = vadd.f32 0.0, %v7846
      %7848 = vmatmul.f32.gmra.mxu0 %v7517
      %v7849 = vpop.f32.mrf.mxu0
      %v7850 = vadd.f32 0.0, %v7849
      %7851 = vmatmul.f32.gmra.mxu0 %v7520
      %v7852 = vpop.f32.mrf.mxu0
      %v7853 = vadd.f32 0.0, %v7852
      %7854 = vmatmul.f32.gmra.mxu0 %v7523
      %v7855 = vpop.f32.mrf.mxu0
      %v7856 = vadd.f32 0.0, %v7855
      %7857 = vmatmul.f32.gmra.mxu0 %v7526
      %v7858 = vpop.f32.mrf.mxu0
      %v7859 = vadd.f32 0.0, %v7858
      %7860 = vmatmul.f32.gmra.mxu0 %v7529
      %v7861 = vpop.f32.mrf.mxu0
      %v7862 = vadd.f32 0.0, %v7861
      %7863 = vmatmul.f32.gmra.mxu0 %v7532
      %v7864 = vpop.f32.mrf.mxu0
      %v7865 = vadd.f32 0.0, %v7864
      %7866 = vmatmul.f32.gmra.mxu0 %v7535
      %v7867 = vpop.f32.mrf.mxu0
      %v7868 = vadd.f32 0.0, %v7867
      %7869 = vmatmul.f32.gmra.mxu0 %v7538
      %v7870 = vpop.f32.mrf.mxu0
      %v7871 = vadd.f32 0.0, %v7870
      %7872 = vmatmul.f32.gmra.mxu0 %v7541
      %v7873 = vpop.f32.mrf.mxu0
      %v7874 = vadd.f32 0.0, %v7873
      %7875 = vmatmul.f32.gmra.mxu0 %v7544
      %v7876 = vpop.f32.mrf.mxu0
      %v7877 = vadd.f32 0.0, %v7876
      %7878 = vmatmul.f32.gmra.mxu0 %v7547
      %v7879 = vpop.f32.mrf.mxu0
      %v7880 = vadd.f32 0.0, %v7879
      %7881 = vmatmul.f32.gmra.mxu0 %v4307
      %v7882 = vpop.f32.mrf.mxu0
      %v7883 = vadd.f32 0.0, %v7882
      %7884 = vmatmul.f32.gmra.mxu0 %v4307
      %v7885 = vpop.f32.mrf.mxu0
      %v7886 = vadd.f32 0.0, %v7885
      %7887 = vdwg.mxu0
      %v7888 = vadd.f32 %v7680, %v7793
      %v7889 = vadd.f32 %v7683, %v7796
      %v7890 = vadd.f32 %v7686, %v7799
      %v7891 = vadd.f32 %v7689, %v7802
      %v7892 = vadd.f32 %v7692, %v7805
      %v7893 = vadd.f32 %v7695, %v7808
      %v7894 = vadd.f32 %v7698, %v7811
      %v7895 = vadd.f32 %v7701, %v7814
      %v7896 = vadd.f32 %v7704, %v7817
      %v7897 = vadd.f32 %v7707, %v7820
      %v7898 = vadd.f32 %v7710, %v7823
      %v7899 = vadd.f32 %v7713, %v7826
      %v7900 = vadd.f32 %v7716, %v7829
      %v7901 = vadd.f32 %v7719, %v7832
      %v7902 = vadd.f32 %v7722, %v7835
      %v7903 = vadd.f32 %v7725, %v7838
      %v7904 = vadd.f32 %v7728, %v7841
      %v7905 = vadd.f32 %v7731, %v7844
      %v7906 = vadd.f32 %v7734, %v7847
      %v7907 = vadd.f32 %v7737, %v7850
      %v7908 = vadd.f32 %v7740, %v7853
      %v7909 = vadd.f32 %v7743, %v7856
      %v7910 = vadd.f32 %v7746, %v7859
      %v7911 = vadd.f32 %v7749, %v7862
      %v7912 = vadd.f32 %v7752, %v7865
      %v7913 = vadd.f32 %v7755, %v7868
      %v7914 = vadd.f32 %v7758, %v7871
      %v7915 = vadd.f32 %v7761, %v7874
      %v7916 = vadd.f32 %v7764, %v7877
      %v7917 = vadd.f32 %v7767, %v7880
      %v7918 = vadd.f32 %v7770, %v7883
      %v7919 = vadd.f32 %v7773, %v7886
      %v7921 = vperm.slane %v997, 0
      %v7923 = vmul.f32 %v7888, %v7921
      %v7924 = vmul.f32 %v7889, %v7921
      %v7925 = vmul.f32 %v7890, %v7921
      %v7926 = vmul.f32 %v7891, %v7921
      %v7927 = vmul.f32 %v7892, %v7921
      %v7928 = vmul.f32 %v7893, %v7921
      %v7929 = vmul.f32 %v7894, %v7921
      %v7930 = vmul.f32 %v7895, %v7921
      %v7931 = vmul.f32 %v7896, %v7921
      %v7932 = vmul.f32 %v7897, %v7921
      %v7933 = vmul.f32 %v7898, %v7921
      %v7934 = vmul.f32 %v7899, %v7921
      %v7935 = vmul.f32 %v7900, %v7921
      %v7936 = vmul.f32 %v7901, %v7921
      %v7937 = vmul.f32 %v7902, %v7921
      %v7938 = vmul.f32 %v7903, %v7921
      %v7939 = vmul.f32 %v7904, %v7921
      %v7940 = vmul.f32 %v7905, %v7921
      %v7941 = vmul.f32 %v7906, %v7921
      %v7942 = vmul.f32 %v7907, %v7921
      %v7943 = vmul.f32 %v7908, %v7921
      %v7944 = vmul.f32 %v7909, %v7921
      %v7945 = vmul.f32 %v7910, %v7921
      %v7946 = vmul.f32 %v7911, %v7921
      %v7947 = vmul.f32 %v7912, %v7921
      %v7948 = vmul.f32 %v7913, %v7921
      %v7949 = vmul.f32 %v7914, %v7921
      %v7950 = vmul.f32 %v7915, %v7921
      %v7951 = vmul.f32 %v7916, %v7921
      %v7952 = vmul.f32 %v7917, %v7921
      %v7953 = vmul.f32 %v7918, %v7921
      %v7954 = vmul.f32 %v7919, %v7921
      %v7956 = vperm.slane %v998, 0
      %v7958 = vadd.f32 %v7923, %v7956
      %v7959 = vadd.f32 %v7924, %v7956
      %v7960 = vadd.f32 %v7925, %v7956
      %v7961 = vadd.f32 %v7926, %v7956
      %v7962 = vadd.f32 %v7927, %v7956
      %v7963 = vadd.f32 %v7928, %v7956
      %v7964 = vadd.f32 %v7929, %v7956
      %v7965 = vadd.f32 %v7930, %v7956
      %v7966 = vadd.f32 %v7931, %v7956
      %v7967 = vadd.f32 %v7932, %v7956
      %v7968 = vadd.f32 %v7933, %v7956
      %v7969 = vadd.f32 %v7934, %v7956
      %v7970 = vadd.f32 %v7935, %v7956
      %v7971 = vadd.f32 %v7936, %v7956
      %v7972 = vadd.f32 %v7937, %v7956
      %v7973 = vadd.f32 %v7938, %v7956
      %v7974 = vadd.f32 %v7939, %v7956
      %v7975 = vadd.f32 %v7940, %v7956
      %v7976 = vadd.f32 %v7941, %v7956
      %v7977 = vadd.f32 %v7942, %v7956
      %v7978 = vadd.f32 %v7943, %v7956
      %v7979 = vadd.f32 %v7944, %v7956
      %v7980 = vadd.f32 %v7945, %v7956
      %v7981 = vadd.f32 %v7946, %v7956
      %v7982 = vadd.f32 %v7947, %v7956
      %v7983 = vadd.f32 %v7948, %v7956
      %v7984 = vadd.f32 %v7949, %v7956
      %v7985 = vadd.f32 %v7950, %v7956
      %v7986 = vadd.f32 %v7951, %v7956
      %v7987 = vadd.f32 %v7952, %v7956
      %v7988 = vadd.f32 %v7953, %v7956
      %v7989 = vadd.f32 %v7954, %v7956
      %v7990 = vmax.f32 %v7958, 0.0
      %v7991 = vmax.f32 %v7959, 0.0
      %v7992 = vmax.f32 %v7960, 0.0
      %v7993 = vmax.f32 %v7961, 0.0
      %v7994 = vmax.f32 %v7962, 0.0
      %v7995 = vmax.f32 %v7963, 0.0
      %v7996 = vmax.f32 %v7964, 0.0
      %v7997 = vmax.f32 %v7965, 0.0
      %v7998 = vmax.f32 %v7966, 0.0
      %v7999 = vmax.f32 %v7967, 0.0
      %v8000 = vmax.f32 %v7968, 0.0
      %v8001 = vmax.f32 %v7969, 0.0
      %v8002 = vmax.f32 %v7970, 0.0
      %v8003 = vmax.f32 %v7971, 0.0
      %v8004 = vmax.f32 %v7972, 0.0
      %v8005 = vmax.f32 %v7973, 0.0
      %v8006 = vmax.f32 %v7974, 0.0
      %v8007 = vmax.f32 %v7975, 0.0
      %v8008 = vmax.f32 %v7976, 0.0
      %v8009 = vmax.f32 %v7977, 0.0
      %v8010 = vmax.f32 %v7978, 0.0
      %v8011 = vmax.f32 %v7979, 0.0
      %v8012 = vmax.f32 %v7980, 0.0
      %v8013 = vmax.f32 %v7981, 0.0
      %v8014 = vmax.f32 %v7982, 0.0
      %v8015 = vmax.f32 %v7983, 0.0
      %v8016 = vmax.f32 %v7984, 0.0
      %v8017 = vmax.f32 %v7985, 0.0
      %v8018 = vmax.f32 %v7986, 0.0
      %v8019 = vmax.f32 %v7987, 0.0
      %v8020 = vmax.f32 %v7988, 0.0
      %v8021 = vmax.f32 %v7989, 0.0
      %v8023 = vsel %vm2459, %v962, 0
      %8025 = vmatpush.msra.mxu0 0.0
      %8026 = vmatpush.msra.mxu0 0.0
      %8027 = vmatpush.msra.mxu0 0.0
      %8028 = vmatpush.msra.mxu0 0.0
      %8029 = vmatpush.msra.mxu0 0.0
      %8030 = vmatpush.msra.mxu0 0.0
      %8031 = vmatpush.msra.mxu0 0.0
      %8032 = vmatpush.msra.mxu0 0.0
      %8033 = vmatpush.msra.mxu0 0.0
      %8034 = vmatpush.msra.mxu0 0.0
      %8035 = vmatpush.msra.mxu0 0.0
      %8036 = vmatpush.msra.mxu0 0.0
      %8037 = vmatpush.msra.mxu0 0.0
      %8038 = vmatpush.msra.mxu0 0.0
      %8039 = vmatpush.msra.mxu0 0.0
      %8040 = vmatpush.msra.mxu0 %v8023
      %8041 = vmatmul.f32.gmra.mxu0 %v2395
      %v8042 = vpop.f32.mrf.mxu0
      %v8043 = vadd.f32 0.0, %v8042
      %8044 = vmatmul.f32.gmra.mxu0 %v2397
      %v8045 = vpop.f32.mrf.mxu0
      %v8046 = vadd.f32 0.0, %v8045
      %8047 = vmatmul.f32.gmra.mxu0 %v2399
      %v8048 = vpop.f32.mrf.mxu0
      %v8049 = vadd.f32 0.0, %v8048
      %8050 = vmatmul.f32.gmra.mxu0 %v2401
      %v8051 = vpop.f32.mrf.mxu0
      %v8052 = vadd.f32 0.0, %v8051
      %8053 = vmatmul.f32.gmra.mxu0 %v2403
      %v8054 = vpop.f32.mrf.mxu0
      %v8055 = vadd.f32 0.0, %v8054
      %8056 = vmatmul.f32.gmra.mxu0 %v2405
      %v8057 = vpop.f32.mrf.mxu0
      %v8058 = vadd.f32 0.0, %v8057
      %8059 = vmatmul.f32.gmra.mxu0 %v2407
      %v8060 = vpop.f32.mrf.mxu0
      %v8061 = vadd.f32 0.0, %v8060
      %8062 = vmatmul.f32.gmra.mxu0 %v2409
      %v8063 = vpop.f32.mrf.mxu0
      %v8064 = vadd.f32 0.0, %v8063
      %8065 = vmatmul.f32.gmra.mxu0 %v2411
      %v8066 = vpop.f32.mrf.mxu0
      %v8067 = vadd.f32 0.0, %v8066
      %8068 = vmatmul.f32.gmra.mxu0 %v2413
      %v8069 = vpop.f32.mrf.mxu0
      %v8070 = vadd.f32 0.0, %v8069
      %8071 = vmatmul.f32.gmra.mxu0 %v2415
      %v8072 = vpop.f32.mrf.mxu0
      %v8073 = vadd.f32 0.0, %v8072
      %8074 = vmatmul.f32.gmra.mxu0 %v2417
      %v8075 = vpop.f32.mrf.mxu0
      %v8076 = vadd.f32 0.0, %v8075
      %8077 = vmatmul.f32.gmra.mxu0 %v2419
      %v8078 = vpop.f32.mrf.mxu0
      %v8079 = vadd.f32 0.0, %v8078
      %8080 = vmatmul.f32.gmra.mxu0 %v2421
      %v8081 = vpop.f32.mrf.mxu0
      %v8082 = vadd.f32 0.0, %v8081
      %8083 = vmatmul.f32.gmra.mxu0 %v2423
      %v8084 = vpop.f32.mrf.mxu0
      %v8085 = vadd.f32 0.0, %v8084
      %8086 = vmatmul.f32.gmra.mxu0 %v2425
      %v8087 = vpop.f32.mrf.mxu0
      %v8088 = vadd.f32 0.0, %v8087
      %8089 = vmatmul.f32.gmra.mxu0 %v2427
      %v8090 = vpop.f32.mrf.mxu0
      %v8091 = vadd.f32 0.0, %v8090
      %8092 = vmatmul.f32.gmra.mxu0 %v2429
      %v8093 = vpop.f32.mrf.mxu0
      %v8094 = vadd.f32 0.0, %v8093
      %8095 = vmatmul.f32.gmra.mxu0 %v2431
      %v8096 = vpop.f32.mrf.mxu0
      %v8097 = vadd.f32 0.0, %v8096
      %8098 = vmatmul.f32.gmra.mxu0 %v2433
      %v8099 = vpop.f32.mrf.mxu0
      %v8100 = vadd.f32 0.0, %v8099
      %8101 = vmatmul.f32.gmra.mxu0 %v2435
      %v8102 = vpop.f32.mrf.mxu0
      %v8103 = vadd.f32 0.0, %v8102
      %8104 = vmatmul.f32.gmra.mxu0 %v2437
      %v8105 = vpop.f32.mrf.mxu0
      %v8106 = vadd.f32 0.0, %v8105
      %8107 = vmatmul.f32.gmra.mxu0 %v2439
      %v8108 = vpop.f32.mrf.mxu0
      %v8109 = vadd.f32 0.0, %v8108
      %8110 = vmatmul.f32.gmra.mxu0 %v2441
      %v8111 = vpop.f32.mrf.mxu0
      %v8112 = vadd.f32 0.0, %v8111
      %8113 = vmatmul.f32.gmra.mxu0 %v2443
      %v8114 = vpop.f32.mrf.mxu0
      %v8115 = vadd.f32 0.0, %v8114
      %8116 = vmatmul.f32.gmra.mxu0 %v2445
      %v8117 = vpop.f32.mrf.mxu0
      %v8118 = vadd.f32 0.0, %v8117
      %8119 = vmatmul.f32.gmra.mxu0 %v2447
      %v8120 = vpop.f32.mrf.mxu0
      %v8121 = vadd.f32 0.0, %v8120
      %8122 = vmatmul.f32.gmra.mxu0 %v2449
      %v8123 = vpop.f32.mrf.mxu0
      %v8124 = vadd.f32 0.0, %v8123
      %8125 = vmatmul.f32.gmra.mxu0 %v2451
      %v8126 = vpop.f32.mrf.mxu0
      %v8127 = vadd.f32 0.0, %v8126
      %8128 = vmatmul.f32.gmra.mxu0 %v2453
      %v8129 = vpop.f32.mrf.mxu0
      %v8130 = vadd.f32 0.0, %v8129
      %8131 = vmatmul.f32.gmra.mxu0 %v2455
      %v8132 = vpop.f32.mrf.mxu0
      %v8133 = vadd.f32 0.0, %v8132
      %8134 = vmatmul.f32.gmra.mxu0 %v2457
      %v8135 = vpop.f32.mrf.mxu0
      %v8136 = vadd.f32 0.0, %v8135
      %8137 = vdwg.mxu0
      %v8139 = vperm.slane %v963, 0
      %v8141 = vmul.f32 %v8043, %v8139
      %v8142 = vmul.f32 %v8046, %v8139
      %v8143 = vmul.f32 %v8049, %v8139
      %v8144 = vmul.f32 %v8052, %v8139
      %v8145 = vmul.f32 %v8055, %v8139
      %v8146 = vmul.f32 %v8058, %v8139
      %v8147 = vmul.f32 %v8061, %v8139
      %v8148 = vmul.f32 %v8064, %v8139
      %v8149 = vmul.f32 %v8067, %v8139
      %v8150 = vmul.f32 %v8070, %v8139
      %v8151 = vmul.f32 %v8073, %v8139
      %v8152 = vmul.f32 %v8076, %v8139
      %v8153 = vmul.f32 %v8079, %v8139
      %v8154 = vmul.f32 %v8082, %v8139
      %v8155 = vmul.f32 %v8085, %v8139
      %v8156 = vmul.f32 %v8088, %v8139
      %v8157 = vmul.f32 %v8091, %v8139
      %v8158 = vmul.f32 %v8094, %v8139
      %v8159 = vmul.f32 %v8097, %v8139
      %v8160 = vmul.f32 %v8100, %v8139
      %v8161 = vmul.f32 %v8103, %v8139
      %v8162 = vmul.f32 %v8106, %v8139
      %v8163 = vmul.f32 %v8109, %v8139
      %v8164 = vmul.f32 %v8112, %v8139
      %v8165 = vmul.f32 %v8115, %v8139
      %v8166 = vmul.f32 %v8118, %v8139
      %v8167 = vmul.f32 %v8121, %v8139
      %v8168 = vmul.f32 %v8124, %v8139
      %v8169 = vmul.f32 %v8127, %v8139
      %v8170 = vmul.f32 %v8130, %v8139
      %v8171 = vmul.f32 %v8133, %v8139
      %v8172 = vmul.f32 %v8136, %v8139
      %v8174 = vperm.slane %v964, 0
      %v8176 = vadd.f32 %v8141, %v8174
      %v8177 = vadd.f32 %v8142, %v8174
      %v8178 = vadd.f32 %v8143, %v8174
      %v8179 = vadd.f32 %v8144, %v8174
      %v8180 = vadd.f32 %v8145, %v8174
      %v8181 = vadd.f32 %v8146, %v8174
      %v8182 = vadd.f32 %v8147, %v8174
      %v8183 = vadd.f32 %v8148, %v8174
      %v8184 = vadd.f32 %v8149, %v8174
      %v8185 = vadd.f32 %v8150, %v8174
      %v8186 = vadd.f32 %v8151, %v8174
      %v8187 = vadd.f32 %v8152, %v8174
      %v8188 = vadd.f32 %v8153, %v8174
      %v8189 = vadd.f32 %v8154, %v8174
      %v8190 = vadd.f32 %v8155, %v8174
      %v8191 = vadd.f32 %v8156, %v8174
      %v8192 = vadd.f32 %v8157, %v8174
      %v8193 = vadd.f32 %v8158, %v8174
      %v8194 = vadd.f32 %v8159, %v8174
      %v8195 = vadd.f32 %v8160, %v8174
      %v8196 = vadd.f32 %v8161, %v8174
      %v8197 = vadd.f32 %v8162, %v8174
      %v8198 = vadd.f32 %v8163, %v8174
      %v8199 = vadd.f32 %v8164, %v8174
      %v8200 = vadd.f32 %v8165, %v8174
      %v8201 = vadd.f32 %v8166, %v8174
      %v8202 = vadd.f32 %v8167, %v8174
      %v8203 = vadd.f32 %v8168, %v8174
      %v8204 = vadd.f32 %v8169, %v8174
      %v8205 = vadd.f32 %v8170, %v8174
      %v8206 = vadd.f32 %v8171, %v8174
      %v8207 = vadd.f32 %v8172, %v8174
      %v8208 = vadd.f32 %v7990, %v8176
      %v8209 = vadd.f32 %v7991, %v8177
      %v8210 = vadd.f32 %v7992, %v8178
      %v8211 = vadd.f32 %v7993, %v8179
      %v8212 = vadd.f32 %v7994, %v8180
      %v8213 = vadd.f32 %v7995, %v8181
      %v8214 = vadd.f32 %v7996, %v8182
      %v8215 = vadd.f32 %v7997, %v8183
      %v8216 = vadd.f32 %v7998, %v8184
      %v8217 = vadd.f32 %v7999, %v8185
      %v8218 = vadd.f32 %v8000, %v8186
      %v8219 = vadd.f32 %v8001, %v8187
      %v8220 = vadd.f32 %v8002, %v8188
      %v8221 = vadd.f32 %v8003, %v8189
      %v8222 = vadd.f32 %v8004, %v8190
      %v8223 = vadd.f32 %v8005, %v8191
      %v8224 = vadd.f32 %v8006, %v8192
      %v8225 = vadd.f32 %v8007, %v8193
      %v8226 = vadd.f32 %v8008, %v8194
      %v8227 = vadd.f32 %v8009, %v8195
      %v8228 = vadd.f32 %v8010, %v8196
      %v8229 = vadd.f32 %v8011, %v8197
      %v8230 = vadd.f32 %v8012, %v8198
      %v8231 = vadd.f32 %v8013, %v8199
      %v8232 = vadd.f32 %v8014, %v8200
      %v8233 = vadd.f32 %v8015, %v8201
      %v8234 = vadd.f32 %v8016, %v8202
      %v8235 = vadd.f32 %v8017, %v8203
      %v8236 = vadd.f32 %v8018, %v8204
      %v8237 = vadd.f32 %v8019, %v8205
      %v8238 = vadd.f32 %v8020, %v8206
      %v8239 = vadd.f32 %v8021, %v8207
      %v8240 = vmax.f32 %v8208, 0.0
      %v8241 = vmax.f32 %v8209, 0.0
      %v8242 = vmax.f32 %v8210, 0.0
      %v8243 = vmax.f32 %v8211, 0.0
      %v8244 = vmax.f32 %v8212, 0.0
      %v8245 = vmax.f32 %v8213, 0.0
      %v8246 = vmax.f32 %v8214, 0.0
      %v8247 = vmax.f32 %v8215, 0.0
      %v8248 = vmax.f32 %v8216, 0.0
      %v8249 = vmax.f32 %v8217, 0.0
      %v8250 = vmax.f32 %v8218, 0.0
      %v8251 = vmax.f32 %v8219, 0.0
      %v8252 = vmax.f32 %v8220, 0.0
      %v8253 = vmax.f32 %v8221, 0.0
      %v8254 = vmax.f32 %v8222, 0.0
      %v8255 = vmax.f32 %v8223, 0.0
      %v8256 = vmax.f32 %v8224, 0.0
      %v8257 = vmax.f32 %v8225, 0.0
      %v8258 = vmax.f32 %v8226, 0.0
      %v8259 = vmax.f32 %v8227, 0.0
      %v8260 = vmax.f32 %v8228, 0.0
      %v8261 = vmax.f32 %v8229, 0.0
      %v8262 = vmax.f32 %v8230, 0.0
      %v8263 = vmax.f32 %v8231, 0.0
      %v8264 = vmax.f32 %v8232, 0.0
      %v8265 = vmax.f32 %v8233, 0.0
      %v8266 = vmax.f32 %v8234, 0.0
      %v8267 = vmax.f32 %v8235, 0.0
      %v8268 = vmax.f32 %v8236, 0.0
      %v8269 = vmax.f32 %v8237, 0.0
      %v8270 = vmax.f32 %v8238, 0.0
      %v8271 = vmax.f32 %v8239, 0.0
      %v8304 = vrot.slane %v6443, 7
      %v8305 = vrot.slane %v6444, 7
      %v8306 = vsel %vm1073, %v8304, %v8305
      %v8307 = vrot.slane %v6445, 7
      %v8308 = vrot.slane %v6446, 7
      %v8309 = vsel %vm1073, %v8307, %v8308
      %v8310 = vrot.slane %v6447, 7
      %v8311 = vrot.slane %v6448, 7
      %v8312 = vsel %vm1073, %v8310, %v8311
      %v8313 = vrot.slane %v6449, 7
      %v8314 = vrot.slane %v6450, 7
      %v8315 = vsel %vm1073, %v8313, %v8314
      %v8316 = vrot.slane %v6451, 7
      %v8317 = vrot.slane %v6452, 7
      %v8318 = vsel %vm1073, %v8316, %v8317
      %v8319 = vrot.slane %v6453, 7
      %v8320 = vrot.slane %v6454, 7
      %v8321 = vsel %vm1073, %v8319, %v8320
      %v8322 = vrot.slane %v6455, 7
      %v8323 = vrot.slane %v6456, 7
      %v8324 = vsel %vm1073, %v8322, %v8323
      %v8325 = vrot.slane %v6457, 7
      %v8326 = vrot.slane %v6458, 7
      %v8327 = vsel %vm1073, %v8325, %v8326
      %v8328 = vrot.slane %v6459, 7
      %v8329 = vrot.slane %v6460, 7
      %v8330 = vsel %vm1073, %v8328, %v8329
      %v8331 = vrot.slane %v6461, 7
      %v8332 = vrot.slane %v6462, 7
      %v8333 = vsel %vm1073, %v8331, %v8332
      %v8334 = vrot.slane %v6463, 7
      %v8335 = vrot.slane %v6464, 7
      %v8336 = vsel %vm1073, %v8334, %v8335
      %v8337 = vrot.slane %v6465, 7
      %v8338 = vrot.slane %v6466, 7
      %v8339 = vsel %vm1073, %v8337, %v8338
      %v8340 = vrot.slane %v6467, 7
      %v8341 = vrot.slane %v6468, 7
      %v8342 = vsel %vm1073, %v8340, %v8341
      %v8343 = vrot.slane %v6469, 7
      %v8344 = vrot.slane %v6470, 7
      %v8345 = vsel %vm1073, %v8343, %v8344
      %v8346 = vrot.slane %v6471, 7
      %v8347 = vrot.slane %v6472, 7
      %v8348 = vsel %vm1073, %v8346, %v8347
      %v8349 = vrot.slane %v6473, 7
      %v8350 = vrot.slane %v6474, 7
      %v8351 = vsel %vm1073, %v8349, %v8350
      %v8400 = vsel %vm1073, 0.0, %v8304
      %v8401 = vsel %vm1073, 0.0, %v8307
      %v8402 = vsel %vm1073, 0.0, %v8310
      %v8403 = vsel %vm1073, 0.0, %v8313
      %v8404 = vsel %vm1073, 0.0, %v8316
      %v8405 = vsel %vm1073, 0.0, %v8319
      %v8406 = vsel %vm1073, 0.0, %v8322
      %v8407 = vsel %vm1073, 0.0, %v8325
      %v8408 = vsel %vm1073, 0.0, %v8328
      %v8409 = vsel %vm1073, 0.0, %v8331
      %v8410 = vsel %vm1073, 0.0, %v8334
      %v8411 = vsel %vm1073, 0.0, %v8337
      %v8412 = vsel %vm1073, 0.0, %v8340
      %v8413 = vsel %vm1073, 0.0, %v8343
      %v8414 = vsel %vm1073, 0.0, %v8346
      %v8415 = vsel %vm1073, 0.0, %v8349
      %v8416 = vsel %vm1073, %v8305, 0.0
      %v8417 = vsel %vm1073, %v8308, 0.0
      %v8418 = vsel %vm1073, %v8311, 0.0
      %v8419 = vsel %vm1073, %v8314, 0.0
      %v8420 = vsel %vm1073, %v8317, 0.0
      %v8421 = vsel %vm1073, %v8320, 0.0
      %v8422 = vsel %vm1073, %v8323, 0.0
      %v8423 = vsel %vm1073, %v8326, 0.0
      %v8424 = vsel %vm1073, %v8329, 0.0
      %v8425 = vsel %vm1073, %v8332, 0.0
      %v8426 = vsel %vm1073, %v8335, 0.0
      %v8427 = vsel %vm1073, %v8338, 0.0
      %v8428 = vsel %vm1073, %v8341, 0.0
      %v8429 = vsel %vm1073, %v8344, 0.0
      %v8430 = vsel %vm1073, %v8347, 0.0
      %v8431 = vsel %vm1073, %v8350, 0.0
      %v8432 = vadd.f32 %v8400, 0.0
      %v8433 = vadd.f32 %v8306, 0.0
      %v8434 = vadd.f32 %v8401, 0.0
      %v8435 = vadd.f32 %v8309, 0.0
      %v8436 = vadd.f32 %v8402, 0.0
      %v8437 = vadd.f32 %v8312, 0.0
      %v8438 = vadd.f32 %v8403, 0.0
      %v8439 = vadd.f32 %v8315, 0.0
      %v8440 = vadd.f32 %v8404, 0.0
      %v8441 = vadd.f32 %v8318, 0.0
      %v8442 = vadd.f32 %v8405, 0.0
      %v8443 = vadd.f32 %v8321, 0.0
      %v8444 = vadd.f32 %v8406, 0.0
      %v8445 = vadd.f32 %v8324, 0.0
      %v8446 = vadd.f32 %v8407, 0.0
      %v8447 = vadd.f32 %v8327, 0.0
      %v8448 = vadd.f32 %v8408, 0.0
      %v8449 = vadd.f32 %v8330, 0.0
      %v8450 = vadd.f32 %v8409, 0.0
      %v8451 = vadd.f32 %v8333, 0.0
      %v8452 = vadd.f32 %v8410, 0.0
      %v8453 = vadd.f32 %v8336, 0.0
      %v8454 = vadd.f32 %v8411, 0.0
      %v8455 = vadd.f32 %v8339, 0.0
      %v8456 = vadd.f32 %v8412, 0.0
      %v8457 = vadd.f32 %v8342, 0.0
      %v8458 = vadd.f32 %v8413, 0.0
      %v8459 = vadd.f32 %v8345, 0.0
      %v8460 = vadd.f32 %v8414, 0.0
      %v8461 = vadd.f32 %v8348, 0.0
      %v8492 = vrot.slane %v8400, 1
      %v8493 = vrot.slane %v8306, 1
      %v8494 = vsel %vm1263, %v8492, %v8493
      %v8495 = vrot.slane %v8416, 1
      %v8496 = vsel %vm1263, %v8493, %v8495
      %v8497 = vrot.slane %v8401, 1
      %v8498 = vrot.slane %v8309, 1
      %v8499 = vsel %vm1263, %v8497, %v8498
      %v8500 = vrot.slane %v8417, 1
      %v8501 = vsel %vm1263, %v8498, %v8500
      %v8502 = vrot.slane %v8402, 1
      %v8503 = vrot.slane %v8312, 1
      %v8504 = vsel %vm1263, %v8502, %v8503
      %v8505 = vrot.slane %v8418, 1
      %v8506 = vsel %vm1263, %v8503, %v8505
      %v8507 = vrot.slane %v8403, 1
      %v8508 = vrot.slane %v8315, 1
      %v8509 = vsel %vm1263, %v8507, %v8508
      %v8510 = vrot.slane %v8419, 1
      %v8511 = vsel %vm1263, %v8508, %v8510
      %v8512 = vrot.slane %v8404, 1
      %v8513 = vrot.slane %v8318, 1
      %v8514 = vsel %vm1263, %v8512, %v8513
      %v8515 = vrot.slane %v8420, 1
      %v8516 = vsel %vm1263, %v8513, %v8515
      %v8517 = vrot.slane %v8405, 1
      %v8518 = vrot.slane %v8321, 1
      %v8519 = vsel %vm1263, %v8517, %v8518
      %v8520 = vrot.slane %v8421, 1
      %v8521 = vsel %vm1263, %v8518, %v8520
      %v8522 = vrot.slane %v8406, 1
      %v8523 = vrot.slane %v8324, 1
      %v8524 = vsel %vm1263, %v8522, %v8523
      %v8525 = vrot.slane %v8422, 1
      %v8526 = vsel %vm1263, %v8523, %v8525
      %v8527 = vrot.slane %v8407, 1
      %v8528 = vrot.slane %v8327, 1
      %v8529 = vsel %vm1263, %v8527, %v8528
      %v8530 = vrot.slane %v8423, 1
      %v8531 = vsel %vm1263, %v8528, %v8530
      %v8532 = vrot.slane %v8408, 1
      %v8533 = vrot.slane %v8330, 1
      %v8534 = vsel %vm1263, %v8532, %v8533
      %v8535 = vrot.slane %v8424, 1
      %v8536 = vsel %vm1263, %v8533, %v8535
      %v8537 = vrot.slane %v8409, 1
      %v8538 = vrot.slane %v8333, 1
      %v8539 = vsel %vm1263, %v8537, %v8538
      %v8540 = vrot.slane %v8425, 1
      %v8541 = vsel %vm1263, %v8538, %v8540
      %v8542 = vrot.slane %v8410, 1
      %v8543 = vrot.slane %v8336, 1
      %v8544 = vsel %vm1263, %v8542, %v8543
      %v8545 = vrot.slane %v8426, 1
      %v8546 = vsel %vm1263, %v8543, %v8545
      %v8547 = vrot.slane %v8411, 1
      %v8548 = vrot.slane %v8339, 1
      %v8549 = vsel %vm1263, %v8547, %v8548
      %v8550 = vrot.slane %v8427, 1
      %v8551 = vsel %vm1263, %v8548, %v8550
      %v8552 = vrot.slane %v8412, 1
      %v8553 = vrot.slane %v8342, 1
      %v8554 = vsel %vm1263, %v8552, %v8553
      %v8555 = vrot.slane %v8428, 1
      %v8556 = vsel %vm1263, %v8553, %v8555
      %v8557 = vrot.slane %v8413, 1
      %v8558 = vrot.slane %v8345, 1
      %v8559 = vsel %vm1263, %v8557, %v8558
      %v8560 = vrot.slane %v8429, 1
      %v8561 = vsel %vm1263, %v8558, %v8560
      %v8562 = vrot.slane %v8414, 1
      %v8563 = vrot.slane %v8348, 1
      %v8564 = vsel %vm1263, %v8562, %v8563
      %v8565 = vrot.slane %v8430, 1
      %v8566 = vsel %vm1263, %v8563, %v8565
      %v8597 = vadd.f32 %v8432, %v8494
      %v8598 = vadd.f32 %v8433, %v8496
      %v8599 = vadd.f32 %v8434, %v8499
      %v8600 = vadd.f32 %v8435, %v8501
      %v8601 = vadd.f32 %v8436, %v8504
      %v8602 = vadd.f32 %v8437, %v8506
      %v8603 = vadd.f32 %v8438, %v8509
      %v8604 = vadd.f32 %v8439, %v8511
      %v8605 = vadd.f32 %v8440, %v8514
      %v8606 = vadd.f32 %v8441, %v8516
      %v8607 = vadd.f32 %v8442, %v8519
      %v8608 = vadd.f32 %v8443, %v8521
      %v8609 = vadd.f32 %v8444, %v8524
      %v8610 = vadd.f32 %v8445, %v8526
      %v8611 = vadd.f32 %v8446, %v8529
      %v8612 = vadd.f32 %v8447, %v8531
      %v8613 = vadd.f32 %v8448, %v8534
      %v8614 = vadd.f32 %v8449, %v8536
      %v8615 = vadd.f32 %v8450, %v8539
      %v8616 = vadd.f32 %v8451, %v8541
      %v8617 = vadd.f32 %v8452, %v8544
      %v8618 = vadd.f32 %v8453, %v8546
      %v8619 = vadd.f32 %v8454, %v8549
      %v8620 = vadd.f32 %v8455, %v8551
      %v8621 = vadd.f32 %v8456, %v8554
      %v8622 = vadd.f32 %v8457, %v8556
      %v8623 = vadd.f32 %v8458, %v8559
      %v8624 = vadd.f32 %v8459, %v8561
      %v8625 = vadd.f32 %v8460, %v8564
      %v8626 = vadd.f32 %v8461, %v8566
      %v8627 = vrot.slane %v8400, 2
      %v8628 = vrot.slane %v8306, 2
      %v8629 = vsel %vm1403, %v8627, %v8628
      %v8630 = vrot.slane %v8416, 2
      %v8631 = vsel %vm1403, %v8628, %v8630
      %v8632 = vrot.slane %v8401, 2
      %v8633 = vrot.slane %v8309, 2
      %v8634 = vsel %vm1403, %v8632, %v8633
      %v8635 = vrot.slane %v8417, 2
      %v8636 = vsel %vm1403, %v8633, %v8635
      %v8637 = vrot.slane %v8402, 2
      %v8638 = vrot.slane %v8312, 2
      %v8639 = vsel %vm1403, %v8637, %v8638
      %v8640 = vrot.slane %v8418, 2
      %v8641 = vsel %vm1403, %v8638, %v8640
      %v8642 = vrot.slane %v8403, 2
      %v8643 = vrot.slane %v8315, 2
      %v8644 = vsel %vm1403, %v8642, %v8643
      %v8645 = vrot.slane %v8419, 2
      %v8646 = vsel %vm1403, %v8643, %v8645
      %v8647 = vrot.slane %v8404, 2
      %v8648 = vrot.slane %v8318, 2
      %v8649 = vsel %vm1403, %v8647, %v8648
      %v8650 = vrot.slane %v8420, 2
      %v8651 = vsel %vm1403, %v8648, %v8650
      %v8652 = vrot.slane %v8405, 2
      %v8653 = vrot.slane %v8321, 2
      %v8654 = vsel %vm1403, %v8652, %v8653
      %v8655 = vrot.slane %v8421, 2
      %v8656 = vsel %vm1403, %v8653, %v8655
      %v8657 = vrot.slane %v8406, 2
      %v8658 = vrot.slane %v8324, 2
      %v8659 = vsel %vm1403, %v8657, %v8658
      %v8660 = vrot.slane %v8422, 2
      %v8661 = vsel %vm1403, %v8658, %v8660
      %v8662 = vrot.slane %v8407, 2
      %v8663 = vrot.slane %v8327, 2
      %v8664 = vsel %vm1403, %v8662, %v8663
      %v8665 = vrot.slane %v8423, 2
      %v8666 = vsel %vm1403, %v8663, %v8665
      %v8667 = vrot.slane %v8408, 2
      %v8668 = vrot.slane %v8330, 2
      %v8669 = vsel %vm1403, %v8667, %v8668
      %v8670 = vrot.slane %v8424, 2
      %v8671 = vsel %vm1403, %v8668, %v8670
      %v8672 = vrot.slane %v8409, 2
      %v8673 = vrot.slane %v8333, 2
      %v8674 = vsel %vm1403, %v8672, %v8673
      %v8675 = vrot.slane %v8425, 2
      %v8676 = vsel %vm1403, %v8673, %v8675
      %v8677 = vrot.slane %v8410, 2
      %v8678 = vrot.slane %v8336, 2
      %v8679 = vsel %vm1403, %v8677, %v8678
      %v8680 = vrot.slane %v8426, 2
      %v8681 = vsel %vm1403, %v8678, %v8680
      %v8682 = vrot.slane %v8411, 2
      %v8683 = vrot.slane %v8339, 2
      %v8684 = vsel %vm1403, %v8682, %v8683
      %v8685 = vrot.slane %v8427, 2
      %v8686 = vsel %vm1403, %v8683, %v8685
      %v8687 = vrot.slane %v8412, 2
      %v8688 = vrot.slane %v8342, 2
      %v8689 = vsel %vm1403, %v8687, %v8688
      %v8690 = vrot.slane %v8428, 2
      %v8691 = vsel %vm1403, %v8688, %v8690
      %v8692 = vrot.slane %v8413, 2
      %v8693 = vrot.slane %v8345, 2
      %v8694 = vsel %vm1403, %v8692, %v8693
      %v8695 = vrot.slane %v8429, 2
      %v8696 = vsel %vm1403, %v8693, %v8695
      %v8697 = vrot.slane %v8414, 2
      %v8698 = vrot.slane %v8348, 2
      %v8699 = vsel %vm1403, %v8697, %v8698
      %v8700 = vrot.slane %v8430, 2
      %v8701 = vsel %vm1403, %v8698, %v8700
      %v8732 = vadd.f32 %v8597, %v8629
      %v8733 = vadd.f32 %v8598, %v8631
      %v8734 = vadd.f32 %v8599, %v8634
      %v8735 = vadd.f32 %v8600, %v8636
      %v8736 = vadd.f32 %v8601, %v8639
      %v8737 = vadd.f32 %v8602, %v8641
      %v8738 = vadd.f32 %v8603, %v8644
      %v8739 = vadd.f32 %v8604, %v8646
      %v8740 = vadd.f32 %v8605, %v8649
      %v8741 = vadd.f32 %v8606, %v8651
      %v8742 = vadd.f32 %v8607, %v8654
      %v8743 = vadd.f32 %v8608, %v8656
      %v8744 = vadd.f32 %v8609, %v8659
      %v8745 = vadd.f32 %v8610, %v8661
      %v8746 = vadd.f32 %v8611, %v8664
      %v8747 = vadd.f32 %v8612, %v8666
      %v8748 = vadd.f32 %v8613, %v8669
      %v8749 = vadd.f32 %v8614, %v8671
      %v8750 = vadd.f32 %v8615, %v8674
      %v8751 = vadd.f32 %v8616, %v8676
      %v8752 = vadd.f32 %v8617, %v8679
      %v8753 = vadd.f32 %v8618, %v8681
      %v8754 = vadd.f32 %v8619, %v8684
      %v8755 = vadd.f32 %v8620, %v8686
      %v8756 = vadd.f32 %v8621, %v8689
      %v8757 = vadd.f32 %v8622, %v8691
      %v8758 = vadd.f32 %v8623, %v8694
      %v8759 = vadd.f32 %v8624, %v8696
      %v8760 = vadd.f32 %v8625, %v8699
      %v8761 = vadd.f32 %v8626, %v8701
      %v8762 = vadd.f32 %v1512, %v8400
      %v8763 = vadd.f32 %v1512, %v8306
      %v8764 = vadd.f32 %v8732, %v8401
      %v8765 = vadd.f32 %v8733, %v8309
      %v8766 = vadd.f32 %v8734, %v8402
      %v8767 = vadd.f32 %v8735, %v8312
      %v8768 = vadd.f32 %v8736, %v8403
      %v8769 = vadd.f32 %v8737, %v8315
      %v8770 = vadd.f32 %v8738, %v8404
      %v8771 = vadd.f32 %v8739, %v8318
      %v8772 = vadd.f32 %v8740, %v8405
      %v8773 = vadd.f32 %v8741, %v8321
      %v8774 = vadd.f32 %v8742, %v8406
      %v8775 = vadd.f32 %v8743, %v8324
      %v8776 = vadd.f32 %v8744, %v8407
      %v8777 = vadd.f32 %v8745, %v8327
      %v8778 = vadd.f32 %v8746, %v8408
      %v8779 = vadd.f32 %v8747, %v8330
      %v8780 = vadd.f32 %v8748, %v8409
      %v8781 = vadd.f32 %v8749, %v8333
      %v8782 = vadd.f32 %v8750, %v8410
      %v8783 = vadd.f32 %v8751, %v8336
      %v8784 = vadd.f32 %v8752, %v8411
      %v8785 = vadd.f32 %v8753, %v8339
      %v8786 = vadd.f32 %v8754, %v8412
      %v8787 = vadd.f32 %v8755, %v8342
      %v8788 = vadd.f32 %v8756, %v8413
      %v8789 = vadd.f32 %v8757, %v8345
      %v8790 = vadd.f32 %v8758, %v8414
      %v8791 = vadd.f32 %v8759, %v8348
      %v8792 = vadd.f32 %v8760, %v8415
      %v8793 = vadd.f32 %v8761, %v8351
      %v8796 = vrot.slane %v8415, 1
      %v8797 = vrot.slane %v8351, 1
      %v8798 = vsel %vm1263, %v8796, %v8797
      %v8799 = vrot.slane %v8431, 1
      %v8800 = vsel %vm1263, %v8797, %v8799
      %v8803 = vadd.f32 %v8762, %v8494
      %v8804 = vadd.f32 %v8763, %v8496
      %v8805 = vadd.f32 %v8764, %v8499
      %v8806 = vadd.f32 %v8765, %v8501
      %v8807 = vadd.f32 %v8766, %v8504
      %v8808 = vadd.f32 %v8767, %v8506
      %v8809 = vadd.f32 %v8768, %v8509
      %v8810 = vadd.f32 %v8769, %v8511
      %v8811 = vadd.f32 %v8770, %v8514
      %v8812 = vadd.f32 %v8771, %v8516
      %v8813 = vadd.f32 %v8772, %v8519
      %v8814 = vadd.f32 %v8773, %v8521
      %v8815 = vadd.f32 %v8774, %v8524
      %v8816 = vadd.f32 %v8775, %v8526
      %v8817 = vadd.f32 %v8776, %v8529
      %v8818 = vadd.f32 %v8777, %v8531
      %v8819 = vadd.f32 %v8778, %v8534
      %v8820 = vadd.f32 %v8779, %v8536
      %v8821 = vadd.f32 %v8780, %v8539
      %v8822 = vadd.f32 %v8781, %v8541
      %v8823 = vadd.f32 %v8782, %v8544
      %v8824 = vadd.f32 %v8783, %v8546
      %v8825 = vadd.f32 %v8784, %v8549
      %v8826 = vadd.f32 %v8785, %v8551
      %v8827 = vadd.f32 %v8786, %v8554
      %v8828 = vadd.f32 %v8787, %v8556
      %v8829 = vadd.f32 %v8788, %v8559
      %v8830 = vadd.f32 %v8789, %v8561
      %v8831 = vadd.f32 %v8790, %v8564
      %v8832 = vadd.f32 %v8791, %v8566
      %v8833 = vadd.f32 %v8792, %v8798
      %v8834 = vadd.f32 %v8793, %v8800
      %v8835 = vrot.slane %v8415, 2
      %v8836 = vrot.slane %v8351, 2
      %v8837 = vsel %vm1403, %v8835, %v8836
      %v8838 = vrot.slane %v8431, 2
      %v8839 = vsel %vm1403, %v8836, %v8838
      %v8842 = vadd.f32 %v8803, %v8629
      %v8843 = vadd.f32 %v8804, %v8631
      %v8844 = vadd.f32 %v8805, %v8634
      %v8845 = vadd.f32 %v8806, %v8636
      %v8846 = vadd.f32 %v8807, %v8639
      %v8847 = vadd.f32 %v8808, %v8641
      %v8848 = vadd.f32 %v8809, %v8644
      %v8849 = vadd.f32 %v8810, %v8646
      %v8850 = vadd.f32 %v8811, %v8649
      %v8851 = vadd.f32 %v8812, %v8651
      %v8852 = vadd.f32 %v8813, %v8654
      %v8853 = vadd.f32 %v8814, %v8656
      %v8854 = vadd.f32 %v8815, %v8659
      %v8855 = vadd.f32 %v8816, %v8661
      %v8856 = vadd.f32 %v8817, %v8664
      %v8857 = vadd.f32 %v8818, %v8666
      %v8858 = vadd.f32 %v8819, %v8669
      %v8859 = vadd.f32 %v8820, %v8671
      %v8860 = vadd.f32 %v8821, %v8674
      %v8861 = vadd.f32 %v8822, %v8676
      %v8862 = vadd.f32 %v8823, %v8679
      %v8863 = vadd.f32 %v8824, %v8681
      %v8864 = vadd.f32 %v8825, %v8684
      %v8865 = vadd.f32 %v8826, %v8686
      %v8866 = vadd.f32 %v8827, %v8689
      %v8867 = vadd.f32 %v8828, %v8691
      %v8868 = vadd.f32 %v8829, %v8694
      %v8869 = vadd.f32 %v8830, %v8696
      %v8870 = vadd.f32 %v8831, %v8699
      %v8871 = vadd.f32 %v8832, %v8701
      %v8872 = vadd.f32 %v8833, %v8837
      %v8873 = vadd.f32 %v8834, %v8839
      %v8874 = vadd.f32 %v8842, %v8401
      %v8875 = vadd.f32 %v8843, %v8309
      %v8876 = vadd.f32 %v8844, %v8402
      %v8877 = vadd.f32 %v8845, %v8312
      %v8878 = vadd.f32 %v8846, %v8403
      %v8879 = vadd.f32 %v8847, %v8315
      %v8880 = vadd.f32 %v8848, %v8404
      %v8881 = vadd.f32 %v8849, %v8318
      %v8882 = vadd.f32 %v8850, %v8405
      %v8883 = vadd.f32 %v8851, %v8321
      %v8884 = vadd.f32 %v8852, %v8406
      %v8885 = vadd.f32 %v8853, %v8324
      %v8886 = vadd.f32 %v8854, %v8407
      %v8887 = vadd.f32 %v8855, %v8327
      %v8888 = vadd.f32 %v8856, %v8408
      %v8889 = vadd.f32 %v8857, %v8330
      %v8890 = vadd.f32 %v8858, %v8409
      %v8891 = vadd.f32 %v8859, %v8333
      %v8892 = vadd.f32 %v8860, %v8410
      %v8893 = vadd.f32 %v8861, %v8336
      %v8894 = vadd.f32 %v8862, %v8411
      %v8895 = vadd.f32 %v8863, %v8339
      %v8896 = vadd.f32 %v8864, %v8412
      %v8897 = vadd.f32 %v8865, %v8342
      %v8898 = vadd.f32 %v8866, %v8413
      %v8899 = vadd.f32 %v8867, %v8345
      %v8900 = vadd.f32 %v8868, %v8414
      %v8901 = vadd.f32 %v8869, %v8348
      %v8902 = vadd.f32 %v8870, %v8415
      %v8903 = vadd.f32 %v8871, %v8351
      %v8904 = vadd.f32 %v8872, 0.0
      %v8905 = vadd.f32 %v8873, 0.0
      %v8906 = vadd.f32 %v8874, %v8499
      %v8907 = vadd.f32 %v8875, %v8501
      %v8908 = vadd.f32 %v8876, %v8504
      %v8909 = vadd.f32 %v8877, %v8506
      %v8910 = vadd.f32 %v8878, %v8509
      %v8911 = vadd.f32 %v8879, %v8511
      %v8912 = vadd.f32 %v8880, %v8514
      %v8913 = vadd.f32 %v8881, %v8516
      %v8914 = vadd.f32 %v8882, %v8519
      %v8915 = vadd.f32 %v8883, %v8521
      %v8916 = vadd.f32 %v8884, %v8524
      %v8917 = vadd.f32 %v8885, %v8526
      %v8918 = vadd.f32 %v8886, %v8529
      %v8919 = vadd.f32 %v8887, %v8531
      %v8920 = vadd.f32 %v8888, %v8534
      %v8921 = vadd.f32 %v8889, %v8536
      %v8922 = vadd.f32 %v8890, %v8539
      %v8923 = vadd.f32 %v8891, %v8541
      %v8924 = vadd.f32 %v8892, %v8544
      %v8925 = vadd.f32 %v8893, %v8546
      %v8926 = vadd.f32 %v8894, %v8549
      %v8927 = vadd.f32 %v8895, %v8551
      %v8928 = vadd.f32 %v8896, %v8554
      %v8929 = vadd.f32 %v8897, %v8556
      %v8930 = vadd.f32 %v8898, %v8559
      %v8931 = vadd.f32 %v8899, %v8561
      %v8932 = vadd.f32 %v8900, %v8564
      %v8933 = vadd.f32 %v8901, %v8566
      %v8934 = vadd.f32 %v8902, %v8798
      %v8935 = vadd.f32 %v8903, %v8800
      %v8936 = vadd.f32 %v8904, %v1265
      %v8937 = vadd.f32 %v8905, %v1265
      %v8938 = vadd.f32 %v8906, %v8634
      %v8939 = vadd.f32 %v8907, %v8636
      %v8940 = vadd.f32 %v8908, %v8639
      %v8941 = vadd.f32 %v8909, %v8641
      %v8942 = vadd.f32 %v8910, %v8644
      %v8943 = vadd.f32 %v8911, %v8646
      %v8944 = vadd.f32 %v8912, %v8649
      %v8945 = vadd.f32 %v8913, %v8651
      %v8946 = vadd.f32 %v8914, %v8654
      %v8947 = vadd.f32 %v8915, %v8656
      %v8948 = vadd.f32 %v8916, %v8659
      %v8949 = vadd.f32 %v8917, %v8661
      %v8950 = vadd.f32 %v8918, %v8664
      %v8951 = vadd.f32 %v8919, %v8666
      %v8952 = vadd.f32 %v8920, %v8669
      %v8953 = vadd.f32 %v8921, %v8671
      %v8954 = vadd.f32 %v8922, %v8674
      %v8955 = vadd.f32 %v8923, %v8676
      %v8956 = vadd.f32 %v8924, %v8679
      %v8957 = vadd.f32 %v8925, %v8681
      %v8958 = vadd.f32 %v8926, %v8684
      %v8959 = vadd.f32 %v8927, %v8686
      %v8960 = vadd.f32 %v8928, %v8689
      %v8961 = vadd.f32 %v8929, %v8691
      %v8962 = vadd.f32 %v8930, %v8694
      %v8963 = vadd.f32 %v8931, %v8696
      %v8964 = vadd.f32 %v8932, %v8699
      %v8965 = vadd.f32 %v8933, %v8701
      %v8966 = vadd.f32 %v8934, %v8837
      %v8967 = vadd.f32 %v8935, %v8839
      %v8968 = vadd.f32 %v8936, %v1405
      %v8969 = vadd.f32 %v8937, %v1405
      %v8970 = vmul.f32 %v8938, 0.11111111
      %v8971 = vmul.f32 %v8939, 0.11111111
      %v8972 = vmul.f32 %v8940, 0.11111111
      %v8973 = vmul.f32 %v8941, 0.11111111
      %v8974 = vmul.f32 %v8942, 0.11111111
      %v8975 = vmul.f32 %v8943, 0.11111111
      %v8976 = vmul.f32 %v8944, 0.11111111
      %v8977 = vmul.f32 %v8945, 0.11111111
      %v8978 = vmul.f32 %v8946, 0.11111111
      %v8979 = vmul.f32 %v8947, 0.11111111
      %v8980 = vmul.f32 %v8948, 0.11111111
      %v8981 = vmul.f32 %v8949, 0.11111111
      %v8982 = vmul.f32 %v8950, 0.11111111
      %v8983 = vmul.f32 %v8951, 0.11111111
      %v8984 = vmul.f32 %v8952, 0.11111111
      %v8985 = vmul.f32 %v8953, 0.11111111
      %v8986 = vmul.f32 %v8954, 0.11111111
      %v8987 = vmul.f32 %v8955, 0.11111111
      %v8988 = vmul.f32 %v8956, 0.11111111
      %v8989 = vmul.f32 %v8957, 0.11111111
      %v8990 = vmul.f32 %v8958, 0.11111111
      %v8991 = vmul.f32 %v8959, 0.11111111
      %v8992 = vmul.f32 %v8960, 0.11111111
      %v8993 = vmul.f32 %v8961, 0.11111111
      %v8994 = vmul.f32 %v8962, 0.11111111
      %v8995 = vmul.f32 %v8963, 0.11111111
      %v8996 = vmul.f32 %v8964, 0.11111111
      %v8997 = vmul.f32 %v8965, 0.11111111
      %v8998 = vmul.f32 %v8966, 0.11111111
      %v8999 = vmul.f32 %v8967, 0.11111111
      %v9000 = vmul.f32 %v8968, 0.11111111
      %v9001 = vmul.f32 %v8969, 0.11111111
      %v9003 = vsel %vm2459, %v1000, 0
      %9005 = vmatpush.msra.mxu0 0.0
      %9006 = vmatpush.msra.mxu0 0.0
      %9007 = vmatpush.msra.mxu0 0.0
      %9008 = vmatpush.msra.mxu0 0.0
      %9009 = vmatpush.msra.mxu0 0.0
      %9010 = vmatpush.msra.mxu0 0.0
      %9011 = vmatpush.msra.mxu0 0.0
      %9012 = vmatpush.msra.mxu0 0.0
      %9013 = vmatpush.msra.mxu0 0.0
      %9014 = vmatpush.msra.mxu0 0.0
      %9015 = vmatpush.msra.mxu0 0.0
      %9016 = vmatpush.msra.mxu0 0.0
      %9017 = vmatpush.msra.mxu0 0.0
      %9018 = vmatpush.msra.mxu0 0.0
      %9019 = vmatpush.msra.mxu0 0.0
      %9020 = vmatpush.msra.mxu0 %v9003
      %9021 = vmatmul.f32.gmra.mxu0 %v5168
      %v9022 = vpop.f32.mrf.mxu0
      %v9023 = vadd.f32 0.0, %v9022
      %9024 = vmatmul.f32.gmra.mxu0 %v5170
      %v9025 = vpop.f32.mrf.mxu0
      %v9026 = vadd.f32 0.0, %v9025
      %9027 = vmatmul.f32.gmra.mxu0 %v5172
      %v9028 = vpop.f32.mrf.mxu0
      %v9029 = vadd.f32 0.0, %v9028
      %9030 = vmatmul.f32.gmra.mxu0 %v5174
      %v9031 = vpop.f32.mrf.mxu0
      %v9032 = vadd.f32 0.0, %v9031
      %9033 = vmatmul.f32.gmra.mxu0 %v5176
      %v9034 = vpop.f32.mrf.mxu0
      %v9035 = vadd.f32 0.0, %v9034
      %9036 = vmatmul.f32.gmra.mxu0 %v5178
      %v9037 = vpop.f32.mrf.mxu0
      %v9038 = vadd.f32 0.0, %v9037
      %9039 = vmatmul.f32.gmra.mxu0 %v5180
      %v9040 = vpop.f32.mrf.mxu0
      %v9041 = vadd.f32 0.0, %v9040
      %9042 = vmatmul.f32.gmra.mxu0 %v5182
      %v9043 = vpop.f32.mrf.mxu0
      %v9044 = vadd.f32 0.0, %v9043
      %9045 = vmatmul.f32.gmra.mxu0 %v5184
      %v9046 = vpop.f32.mrf.mxu0
      %v9047 = vadd.f32 0.0, %v9046
      %9048 = vmatmul.f32.gmra.mxu0 %v5186
      %v9049 = vpop.f32.mrf.mxu0
      %v9050 = vadd.f32 0.0, %v9049
      %9051 = vmatmul.f32.gmra.mxu0 %v5188
      %v9052 = vpop.f32.mrf.mxu0
      %v9053 = vadd.f32 0.0, %v9052
      %9054 = vmatmul.f32.gmra.mxu0 %v5190
      %v9055 = vpop.f32.mrf.mxu0
      %v9056 = vadd.f32 0.0, %v9055
      %9057 = vmatmul.f32.gmra.mxu0 %v5192
      %v9058 = vpop.f32.mrf.mxu0
      %v9059 = vadd.f32 0.0, %v9058
      %9060 = vmatmul.f32.gmra.mxu0 %v5194
      %v9061 = vpop.f32.mrf.mxu0
      %v9062 = vadd.f32 0.0, %v9061
      %9063 = vmatmul.f32.gmra.mxu0 %v5196
      %v9064 = vpop.f32.mrf.mxu0
      %v9065 = vadd.f32 0.0, %v9064
      %9066 = vmatmul.f32.gmra.mxu0 %v5198
      %v9067 = vpop.f32.mrf.mxu0
      %v9068 = vadd.f32 0.0, %v9067
      %9069 = vmatmul.f32.gmra.mxu0 %v5200
      %v9070 = vpop.f32.mrf.mxu0
      %v9071 = vadd.f32 0.0, %v9070
      %9072 = vmatmul.f32.gmra.mxu0 %v5202
      %v9073 = vpop.f32.mrf.mxu0
      %v9074 = vadd.f32 0.0, %v9073
      %9075 = vmatmul.f32.gmra.mxu0 %v5204
      %v9076 = vpop.f32.mrf.mxu0
      %v9077 = vadd.f32 0.0, %v9076
      %9078 = vmatmul.f32.gmra.mxu0 %v5206
      %v9079 = vpop.f32.mrf.mxu0
      %v9080 = vadd.f32 0.0, %v9079
      %9081 = vmatmul.f32.gmra.mxu0 %v5208
      %v9082 = vpop.f32.mrf.mxu0
      %v9083 = vadd.f32 0.0, %v9082
      %9084 = vmatmul.f32.gmra.mxu0 %v5210
      %v9085 = vpop.f32.mrf.mxu0
      %v9086 = vadd.f32 0.0, %v9085
      %9087 = vmatmul.f32.gmra.mxu0 %v5212
      %v9088 = vpop.f32.mrf.mxu0
      %v9089 = vadd.f32 0.0, %v9088
      %9090 = vmatmul.f32.gmra.mxu0 %v5214
      %v9091 = vpop.f32.mrf.mxu0
      %v9092 = vadd.f32 0.0, %v9091
      %9093 = vmatmul.f32.gmra.mxu0 %v5216
      %v9094 = vpop.f32.mrf.mxu0
      %v9095 = vadd.f32 0.0, %v9094
      %9096 = vmatmul.f32.gmra.mxu0 %v5218
      %v9097 = vpop.f32.mrf.mxu0
      %v9098 = vadd.f32 0.0, %v9097
      %9099 = vmatmul.f32.gmra.mxu0 %v5220
      %v9100 = vpop.f32.mrf.mxu0
      %v9101 = vadd.f32 0.0, %v9100
      %9102 = vmatmul.f32.gmra.mxu0 %v5222
      %v9103 = vpop.f32.mrf.mxu0
      %v9104 = vadd.f32 0.0, %v9103
      %9105 = vmatmul.f32.gmra.mxu0 %v5224
      %v9106 = vpop.f32.mrf.mxu0
      %v9107 = vadd.f32 0.0, %v9106
      %9108 = vmatmul.f32.gmra.mxu0 %v5226
      %v9109 = vpop.f32.mrf.mxu0
      %v9110 = vadd.f32 0.0, %v9109
      %9111 = vmatmul.f32.gmra.mxu0 %v5228
      %v9112 = vpop.f32.mrf.mxu0
      %v9113 = vadd.f32 0.0, %v9112
      %9114 = vmatmul.f32.gmra.mxu0 %v5230
      %v9115 = vpop.f32.mrf.mxu0
      %v9116 = vadd.f32 0.0, %v9115
      %9117 = vdwg.mxu0
      %v9119 = vsel %vm2459, %v999, 0
      %9121 = vmatpush.msra.mxu0 0.0
      %9122 = vmatpush.msra.mxu0 0.0
      %9123 = vmatpush.msra.mxu0 0.0
      %9124 = vmatpush.msra.mxu0 0.0
      %9125 = vmatpush.msra.mxu0 0.0
      %9126 = vmatpush.msra.mxu0 0.0
      %9127 = vmatpush.msra.mxu0 0.0
      %9128 = vmatpush.msra.mxu0 0.0
      %9129 = vmatpush.msra.mxu0 0.0
      %9130 = vmatpush.msra.mxu0 0.0
      %9131 = vmatpush.msra.mxu0 0.0
      %9132 = vmatpush.msra.mxu0 0.0
      %9133 = vmatpush.msra.mxu0 0.0
      %9134 = vmatpush.msra.mxu0 0.0
      %9135 = vmatpush.msra.mxu0 0.0
      %9136 = vmatpush.msra.mxu0 %v9119
      %9137 = vmatmul.f32.gmra.mxu0 %v5348
      %v9138 = vpop.f32.mrf.mxu0
      %v9139 = vadd.f32 %v9023, %v9138
      %9140 = vmatmul.f32.gmra.mxu0 %v5350
      %v9141 = vpop.f32.mrf.mxu0
      %v9142 = vadd.f32 %v9026, %v9141
      %9143 = vmatmul.f32.gmra.mxu0 %v5352
      %v9144 = vpop.f32.mrf.mxu0
      %v9145 = vadd.f32 %v9029, %v9144
      %9146 = vmatmul.f32.gmra.mxu0 %v5354
      %v9147 = vpop.f32.mrf.mxu0
      %v9148 = vadd.f32 %v9032, %v9147
      %9149 = vmatmul.f32.gmra.mxu0 %v5356
      %v9150 = vpop.f32.mrf.mxu0
      %v9151 = vadd.f32 %v9035, %v9150
      %9152 = vmatmul.f32.gmra.mxu0 %v5358
      %v9153 = vpop.f32.mrf.mxu0
      %v9154 = vadd.f32 %v9038, %v9153
      %9155 = vmatmul.f32.gmra.mxu0 %v5360
      %v9156 = vpop.f32.mrf.mxu0
      %v9157 = vadd.f32 %v9041, %v9156
      %9158 = vmatmul.f32.gmra.mxu0 %v5362
      %v9159 = vpop.f32.mrf.mxu0
      %v9160 = vadd.f32 %v9044, %v9159
      %9161 = vmatmul.f32.gmra.mxu0 %v5364
      %v9162 = vpop.f32.mrf.mxu0
      %v9163 = vadd.f32 %v9047, %v9162
      %9164 = vmatmul.f32.gmra.mxu0 %v5366
      %v9165 = vpop.f32.mrf.mxu0
      %v9166 = vadd.f32 %v9050, %v9165
      %9167 = vmatmul.f32.gmra.mxu0 %v5368
      %v9168 = vpop.f32.mrf.mxu0
      %v9169 = vadd.f32 %v9053, %v9168
      %9170 = vmatmul.f32.gmra.mxu0 %v5370
      %v9171 = vpop.f32.mrf.mxu0
      %v9172 = vadd.f32 %v9056, %v9171
      %9173 = vmatmul.f32.gmra.mxu0 %v5372
      %v9174 = vpop.f32.mrf.mxu0
      %v9175 = vadd.f32 %v9059, %v9174
      %9176 = vmatmul.f32.gmra.mxu0 %v5374
      %v9177 = vpop.f32.mrf.mxu0
      %v9178 = vadd.f32 %v9062, %v9177
      %9179 = vmatmul.f32.gmra.mxu0 %v5376
      %v9180 = vpop.f32.mrf.mxu0
      %v9181 = vadd.f32 %v9065, %v9180
      %9182 = vmatmul.f32.gmra.mxu0 %v5378
      %v9183 = vpop.f32.mrf.mxu0
      %v9184 = vadd.f32 %v9068, %v9183
      %9185 = vmatmul.f32.gmra.mxu0 %v5380
      %v9186 = vpop.f32.mrf.mxu0
      %v9187 = vadd.f32 %v9071, %v9186
      %9188 = vmatmul.f32.gmra.mxu0 %v5382
      %v9189 = vpop.f32.mrf.mxu0
      %v9190 = vadd.f32 %v9074, %v9189
      %9191 = vmatmul.f32.gmra.mxu0 %v5384
      %v9192 = vpop.f32.mrf.mxu0
      %v9193 = vadd.f32 %v9077, %v9192
      %9194 = vmatmul.f32.gmra.mxu0 %v5386
      %v9195 = vpop.f32.mrf.mxu0
      %v9196 = vadd.f32 %v9080, %v9195
      %9197 = vmatmul.f32.gmra.mxu0 %v5388
      %v9198 = vpop.f32.mrf.mxu0
      %v9199 = vadd.f32 %v9083, %v9198
      %9200 = vmatmul.f32.gmra.mxu0 %v5390
      %v9201 = vpop.f32.mrf.mxu0
      %v9202 = vadd.f32 %v9086, %v9201
      %9203 = vmatmul.f32.gmra.mxu0 %v5392
      %v9204 = vpop.f32.mrf.mxu0
      %v9205 = vadd.f32 %v9089, %v9204
      %9206 = vmatmul.f32.gmra.mxu0 %v5394
      %v9207 = vpop.f32.mrf.mxu0
      %v9208 = vadd.f32 %v9092, %v9207
      %9209 = vmatmul.f32.gmra.mxu0 %v5396
      %v9210 = vpop.f32.mrf.mxu0
      %v9211 = vadd.f32 %v9095, %v9210
      %9212 = vmatmul.f32.gmra.mxu0 %v5398
      %v9213 = vpop.f32.mrf.mxu0
      %v9214 = vadd.f32 %v9098, %v9213
      %9215 = vmatmul.f32.gmra.mxu0 %v5400
      %v9216 = vpop.f32.mrf.mxu0
      %v9217 = vadd.f32 %v9101, %v9216
      %9218 = vmatmul.f32.gmra.mxu0 %v5402
      %v9219 = vpop.f32.mrf.mxu0
      %v9220 = vadd.f32 %v9104, %v9219
      %9221 = vmatmul.f32.gmra.mxu0 %v5404
      %v9222 = vpop.f32.mrf.mxu0
      %v9223 = vadd.f32 %v9107, %v9222
      %9224 = vmatmul.f32.gmra.mxu0 %v5406
      %v9225 = vpop.f32.mrf.mxu0
      %v9226 = vadd.f32 %v9110, %v9225
      %9227 = vmatmul.f32.gmra.mxu0 %v5408
      %v9228 = vpop.f32.mrf.mxu0
      %v9229 = vadd.f32 %v9113, %v9228
      %9230 = vmatmul.f32.gmra.mxu0 %v5410
      %v9231 = vpop.f32.mrf.mxu0
      %v9232 = vadd.f32 %v9116, %v9231
      %9233 = vdwg.mxu0
      %v9235 = vsel %vm2459, %v1001, 0
      %9237 = vmatpush.msra.mxu0 0.0
      %9238 = vmatpush.msra.mxu0 0.0
      %9239 = vmatpush.msra.mxu0 0.0
      %9240 = vmatpush.msra.mxu0 0.0
      %9241 = vmatpush.msra.mxu0 0.0
      %9242 = vmatpush.msra.mxu0 0.0
      %9243 = vmatpush.msra.mxu0 0.0
      %9244 = vmatpush.msra.mxu0 0.0
      %9245 = vmatpush.msra.mxu0 0.0
      %9246 = vmatpush.msra.mxu0 0.0
      %9247 = vmatpush.msra.mxu0 0.0
      %9248 = vmatpush.msra.mxu0 0.0
      %9249 = vmatpush.msra.mxu0 0.0
      %9250 = vmatpush.msra.mxu0 0.0
      %9251 = vmatpush.msra.mxu0 0.0
      %9252 = vmatpush.msra.mxu0 %v9235
      %9253 = vmatmul.f32.gmra.mxu0 %v5528
      %v9254 = vpop.f32.mrf.mxu0
      %v9255 = vadd.f32 0.0, %v9254
      %9256 = vmatmul.f32.gmra.mxu0 %v5530
      %v9257 = vpop.f32.mrf.mxu0
      %v9258 = vadd.f32 0.0, %v9257
      %9259 = vmatmul.f32.gmra.mxu0 %v5532
      %v9260 = vpop.f32.mrf.mxu0
      %v9261 = vadd.f32 0.0, %v9260
      %9262 = vmatmul.f32.gmra.mxu0 %v5534
      %v9263 = vpop.f32.mrf.mxu0
      %v9264 = vadd.f32 0.0, %v9263
      %9265 = vmatmul.f32.gmra.mxu0 %v5536
      %v9266 = vpop.f32.mrf.mxu0
      %v9267 = vadd.f32 0.0, %v9266
      %9268 = vmatmul.f32.gmra.mxu0 %v5538
      %v9269 = vpop.f32.mrf.mxu0
      %v9270 = vadd.f32 0.0, %v9269
      %9271 = vmatmul.f32.gmra.mxu0 %v5540
      %v9272 = vpop.f32.mrf.mxu0
      %v9273 = vadd.f32 0.0, %v9272
      %9274 = vmatmul.f32.gmra.mxu0 %v5542
      %v9275 = vpop.f32.mrf.mxu0
      %v9276 = vadd.f32 0.0, %v9275
      %9277 = vmatmul.f32.gmra.mxu0 %v5544
      %v9278 = vpop.f32.mrf.mxu0
      %v9279 = vadd.f32 0.0, %v9278
      %9280 = vmatmul.f32.gmra.mxu0 %v5546
      %v9281 = vpop.f32.mrf.mxu0
      %v9282 = vadd.f32 0.0, %v9281
      %9283 = vmatmul.f32.gmra.mxu0 %v5548
      %v9284 = vpop.f32.mrf.mxu0
      %v9285 = vadd.f32 0.0, %v9284
      %9286 = vmatmul.f32.gmra.mxu0 %v5550
      %v9287 = vpop.f32.mrf.mxu0
      %v9288 = vadd.f32 0.0, %v9287
      %9289 = vmatmul.f32.gmra.mxu0 %v5552
      %v9290 = vpop.f32.mrf.mxu0
      %v9291 = vadd.f32 0.0, %v9290
      %9292 = vmatmul.f32.gmra.mxu0 %v5554
      %v9293 = vpop.f32.mrf.mxu0
      %v9294 = vadd.f32 0.0, %v9293
      %9295 = vmatmul.f32.gmra.mxu0 %v5556
      %v9296 = vpop.f32.mrf.mxu0
      %v9297 = vadd.f32 0.0, %v9296
      %9298 = vmatmul.f32.gmra.mxu0 %v5558
      %v9299 = vpop.f32.mrf.mxu0
      %v9300 = vadd.f32 0.0, %v9299
      %9301 = vmatmul.f32.gmra.mxu0 %v5560
      %v9302 = vpop.f32.mrf.mxu0
      %v9303 = vadd.f32 0.0, %v9302
      %9304 = vmatmul.f32.gmra.mxu0 %v5562
      %v9305 = vpop.f32.mrf.mxu0
      %v9306 = vadd.f32 0.0, %v9305
      %9307 = vmatmul.f32.gmra.mxu0 %v5564
      %v9308 = vpop.f32.mrf.mxu0
      %v9309 = vadd.f32 0.0, %v9308
      %9310 = vmatmul.f32.gmra.mxu0 %v5566
      %v9311 = vpop.f32.mrf.mxu0
      %v9312 = vadd.f32 0.0, %v9311
      %9313 = vmatmul.f32.gmra.mxu0 %v5568
      %v9314 = vpop.f32.mrf.mxu0
      %v9315 = vadd.f32 0.0, %v9314
      %9316 = vmatmul.f32.gmra.mxu0 %v5570
      %v9317 = vpop.f32.mrf.mxu0
      %v9318 = vadd.f32 0.0, %v9317
      %9319 = vmatmul.f32.gmra.mxu0 %v5572
      %v9320 = vpop.f32.mrf.mxu0
      %v9321 = vadd.f32 0.0, %v9320
      %9322 = vmatmul.f32.gmra.mxu0 %v5574
      %v9323 = vpop.f32.mrf.mxu0
      %v9324 = vadd.f32 0.0, %v9323
      %9325 = vmatmul.f32.gmra.mxu0 %v5576
      %v9326 = vpop.f32.mrf.mxu0
      %v9327 = vadd.f32 0.0, %v9326
      %9328 = vmatmul.f32.gmra.mxu0 %v5578
      %v9329 = vpop.f32.mrf.mxu0
      %v9330 = vadd.f32 0.0, %v9329
      %9331 = vmatmul.f32.gmra.mxu0 %v5580
      %v9332 = vpop.f32.mrf.mxu0
      %v9333 = vadd.f32 0.0, %v9332
      %9334 = vmatmul.f32.gmra.mxu0 %v5582
      %v9335 = vpop.f32.mrf.mxu0
      %v9336 = vadd.f32 0.0, %v9335
      %9337 = vmatmul.f32.gmra.mxu0 %v5584
      %v9338 = vpop.f32.mrf.mxu0
      %v9339 = vadd.f32 0.0, %v9338
      %9340 = vmatmul.f32.gmra.mxu0 %v5586
      %v9341 = vpop.f32.mrf.mxu0
      %v9342 = vadd.f32 0.0, %v9341
      %9343 = vmatmul.f32.gmra.mxu0 %v5588
      %v9344 = vpop.f32.mrf.mxu0
      %v9345 = vadd.f32 0.0, %v9344
      %9346 = vmatmul.f32.gmra.mxu0 %v5590
      %v9347 = vpop.f32.mrf.mxu0
      %v9348 = vadd.f32 0.0, %v9347
      %9349 = vdwg.mxu0
      %v9350 = vadd.f32 %v9139, %v9255
      %v9351 = vadd.f32 %v9142, %v9258
      %v9352 = vadd.f32 %v9145, %v9261
      %v9353 = vadd.f32 %v9148, %v9264
      %v9354 = vadd.f32 %v9151, %v9267
      %v9355 = vadd.f32 %v9154, %v9270
      %v9356 = vadd.f32 %v9157, %v9273
      %v9357 = vadd.f32 %v9160, %v9276
      %v9358 = vadd.f32 %v9163, %v9279
      %v9359 = vadd.f32 %v9166, %v9282
      %v9360 = vadd.f32 %v9169, %v9285
      %v9361 = vadd.f32 %v9172, %v9288
      %v9362 = vadd.f32 %v9175, %v9291
      %v9363 = vadd.f32 %v9178, %v9294
      %v9364 = vadd.f32 %v9181, %v9297
      %v9365 = vadd.f32 %v9184, %v9300
      %v9366 = vadd.f32 %v9187, %v9303
      %v9367 = vadd.f32 %v9190, %v9306
      %v9368 = vadd.f32 %v9193, %v9309
      %v9369 = vadd.f32 %v9196, %v9312
      %v9370 = vadd.f32 %v9199, %v9315
      %v9371 = vadd.f32 %v9202, %v9318
      %v9372 = vadd.f32 %v9205, %v9321
      %v9373 = vadd.f32 %v9208, %v9324
      %v9374 = vadd.f32 %v9211, %v9327
      %v9375 = vadd.f32 %v9214, %v9330
      %v9376 = vadd.f32 %v9217, %v9333
      %v9377 = vadd.f32 %v9220, %v9336
      %v9378 = vadd.f32 %v9223, %v9339
      %v9379 = vadd.f32 %v9226, %v9342
      %v9380 = vadd.f32 %v9229, %v9345
      %v9381 = vadd.f32 %v9232, %v9348
      %v9383 = vperm.slane %v1002, 0
      %v9385 = vmul.f32 %v9350, %v9383
      %v9386 = vmul.f32 %v9351, %v9383
      %v9387 = vmul.f32 %v9352, %v9383
      %v9388 = vmul.f32 %v9353, %v9383
      %v9389 = vmul.f32 %v9354, %v9383
      %v9390 = vmul.f32 %v9355, %v9383
      %v9391 = vmul.f32 %v9356, %v9383
      %v9392 = vmul.f32 %v9357, %v9383
      %v9393 = vmul.f32 %v9358, %v9383
      %v9394 = vmul.f32 %v9359, %v9383
      %v9395 = vmul.f32 %v9360, %v9383
      %v9396 = vmul.f32 %v9361, %v9383
      %v9397 = vmul.f32 %v9362, %v9383
      %v9398 = vmul.f32 %v9363, %v9383
      %v9399 = vmul.f32 %v9364, %v9383
      %v9400 = vmul.f32 %v9365, %v9383
      %v9401 = vmul.f32 %v9366, %v9383
      %v9402 = vmul.f32 %v9367, %v9383
      %v9403 = vmul.f32 %v9368, %v9383
      %v9404 = vmul.f32 %v9369, %v9383
      %v9405 = vmul.f32 %v9370, %v9383
      %v9406 = vmul.f32 %v9371, %v9383
      %v9407 = vmul.f32 %v9372, %v9383
      %v9408 = vmul.f32 %v9373, %v9383
      %v9409 = vmul.f32 %v9374, %v9383
      %v9410 = vmul.f32 %v9375, %v9383
      %v9411 = vmul.f32 %v9376, %v9383
      %v9412 = vmul.f32 %v9377, %v9383
      %v9413 = vmul.f32 %v9378, %v9383
      %v9414 = vmul.f32 %v9379, %v9383
      %v9415 = vmul.f32 %v9380, %v9383
      %v9416 = vmul.f32 %v9381, %v9383
      %v9418 = vperm.slane %v1003, 0
      %v9420 = vadd.f32 %v9385, %v9418
      %v9421 = vadd.f32 %v9386, %v9418
      %v9422 = vadd.f32 %v9387, %v9418
      %v9423 = vadd.f32 %v9388, %v9418
      %v9424 = vadd.f32 %v9389, %v9418
      %v9425 = vadd.f32 %v9390, %v9418
      %v9426 = vadd.f32 %v9391, %v9418
      %v9427 = vadd.f32 %v9392, %v9418
      %v9428 = vadd.f32 %v9393, %v9418
      %v9429 = vadd.f32 %v9394, %v9418
      %v9430 = vadd.f32 %v9395, %v9418
      %v9431 = vadd.f32 %v9396, %v9418
      %v9432 = vadd.f32 %v9397, %v9418
      %v9433 = vadd.f32 %v9398, %v9418
      %v9434 = vadd.f32 %v9399, %v9418
      %v9435 = vadd.f32 %v9400, %v9418
      %v9436 = vadd.f32 %v9401, %v9418
      %v9437 = vadd.f32 %v9402, %v9418
      %v9438 = vadd.f32 %v9403, %v9418
      %v9439 = vadd.f32 %v9404, %v9418
      %v9440 = vadd.f32 %v9405, %v9418
      %v9441 = vadd.f32 %v9406, %v9418
      %v9442 = vadd.f32 %v9407, %v9418
      %v9443 = vadd.f32 %v9408, %v9418
      %v9444 = vadd.f32 %v9409, %v9418
      %v9445 = vadd.f32 %v9410, %v9418
      %v9446 = vadd.f32 %v9411, %v9418
      %v9447 = vadd.f32 %v9412, %v9418
      %v9448 = vadd.f32 %v9413, %v9418
      %v9449 = vadd.f32 %v9414, %v9418
      %v9450 = vadd.f32 %v9415, %v9418
      %v9451 = vadd.f32 %v9416, %v9418
      %v9452 = vmax.f32 %v9420, 0.0
      %v9453 = vmax.f32 %v9421, 0.0
      %v9454 = vmax.f32 %v9422, 0.0
      %v9455 = vmax.f32 %v9423, 0.0
      %v9456 = vmax.f32 %v9424, 0.0
      %v9457 = vmax.f32 %v9425, 0.0
      %v9458 = vmax.f32 %v9426, 0.0
      %v9459 = vmax.f32 %v9427, 0.0
      %v9460 = vmax.f32 %v9428, 0.0
      %v9461 = vmax.f32 %v9429, 0.0
      %v9462 = vmax.f32 %v9430, 0.0
      %v9463 = vmax.f32 %v9431, 0.0
      %v9464 = vmax.f32 %v9432, 0.0
      %v9465 = vmax.f32 %v9433, 0.0
      %v9466 = vmax.f32 %v9434, 0.0
      %v9467 = vmax.f32 %v9435, 0.0
      %v9468 = vmax.f32 %v9436, 0.0
      %v9469 = vmax.f32 %v9437, 0.0
      %v9470 = vmax.f32 %v9438, 0.0
      %v9471 = vmax.f32 %v9439, 0.0
      %v9472 = vmax.f32 %v9440, 0.0
      %v9473 = vmax.f32 %v9441, 0.0
      %v9474 = vmax.f32 %v9442, 0.0
      %v9475 = vmax.f32 %v9443, 0.0
      %v9476 = vmax.f32 %v9444, 0.0
      %v9477 = vmax.f32 %v9445, 0.0
      %v9478 = vmax.f32 %v9446, 0.0
      %v9479 = vmax.f32 %v9447, 0.0
      %v9480 = vmax.f32 %v9448, 0.0
      %v9481 = vmax.f32 %v9449, 0.0
      %v9482 = vmax.f32 %v9450, 0.0
      %v9483 = vmax.f32 %v9451, 0.0
      %v9485 = vsel %vm4306, %v9452, 0
      %v9488 = vsel %vm4306, %v9453, 0
      %v9491 = vsel %vm4306, %v9454, 0
      %v9494 = vsel %vm4306, %v9455, 0
      %v9497 = vsel %vm4306, %v9456, 0
      %v9500 = vsel %vm4306, %v9457, 0
      %v9503 = vsel %vm4306, %v9458, 0
      %v9506 = vsel %vm4306, %v9459, 0
      %v9509 = vsel %vm4306, %v9460, 0
      %v9512 = vsel %vm4306, %v9461, 0
      %v9515 = vsel %vm4306, %v9462, 0
      %v9518 = vsel %vm4306, %v9463, 0
      %v9521 = vsel %vm4306, %v9464, 0
      %v9524 = vsel %vm4306, %v9465, 0
      %v9527 = vsel %vm4306, %v9466, 0
      %v9530 = vsel %vm4306, %v9467, 0
      %v9533 = vsel %vm4306, %v9468, 0
      %v9536 = vsel %vm4306, %v9469, 0
      %v9539 = vsel %vm4306, %v9470, 0
      %v9542 = vsel %vm4306, %v9471, 0
      %v9545 = vsel %vm4306, %v9472, 0
      %v9548 = vsel %vm4306, %v9473, 0
      %v9551 = vsel %vm4306, %v9474, 0
      %v9554 = vsel %vm4306, %v9475, 0
      %v9557 = vsel %vm4306, %v9476, 0
      %v9560 = vsel %vm4306, %v9477, 0
      %v9563 = vsel %vm4306, %v9478, 0
      %v9566 = vsel %vm4306, %v9479, 0
      %v9569 = vsel %vm4306, %v9480, 0
      %v9572 = vsel %vm4306, %v9481, 0
      %v9575 = vsel %vm4306, %v9482, 0
      %v9578 = vsel %vm4306, %v9483, 0
      %9580 = vmatpush.msra.mxu0 0.0
      %9581 = vmatpush.msra.mxu0 0.0
      %9582 = vmatpush.msra.mxu0 0.0
      %9583 = vmatpush.msra.mxu0 0.0
      %9584 = vmatpush.msra.mxu0 0.0
      %9585 = vmatpush.msra.mxu0 0.0
      %9586 = vmatpush.msra.mxu0 0.0
      %9587 = vmatpush.msra.mxu0 0.0
      %9588 = vmatpush.msra.mxu0 0.0
      %9589 = vmatpush.msra.mxu0 0.0
      %9590 = vmatpush.msra.mxu0 0.0
      %9591 = vmatpush.msra.mxu0 0.0
      %9592 = vmatpush.msra.mxu0 0.0
      %9593 = vmatpush.msra.mxu0 0.0
      %9594 = vmatpush.msra.mxu0 0.0
      %9595 = vmatpush.msra.mxu0 %v1005
      %9596 = vmatmul.f32.gmra.mxu0 %v9485
      %v9597 = vpop.f32.mrf.mxu0
      %v9598 = vadd.f32 0.0, %v9597
      %9599 = vmatmul.f32.gmra.mxu0 %v9488
      %v9600 = vpop.f32.mrf.mxu0
      %v9601 = vadd.f32 0.0, %v9600
      %9602 = vmatmul.f32.gmra.mxu0 %v9491
      %v9603 = vpop.f32.mrf.mxu0
      %v9604 = vadd.f32 0.0, %v9603
      %9605 = vmatmul.f32.gmra.mxu0 %v9494
      %v9606 = vpop.f32.mrf.mxu0
      %v9607 = vadd.f32 0.0, %v9606
      %9608 = vmatmul.f32.gmra.mxu0 %v9497
      %v9609 = vpop.f32.mrf.mxu0
      %v9610 = vadd.f32 0.0, %v9609
      %9611 = vmatmul.f32.gmra.mxu0 %v9500
      %v9612 = vpop.f32.mrf.mxu0
      %v9613 = vadd.f32 0.0, %v9612
      %9614 = vmatmul.f32.gmra.mxu0 %v9503
      %v9615 = vpop.f32.mrf.mxu0
      %v9616 = vadd.f32 0.0, %v9615
      %9617 = vmatmul.f32.gmra.mxu0 %v9506
      %v9618 = vpop.f32.mrf.mxu0
      %v9619 = vadd.f32 0.0, %v9618
      %9620 = vmatmul.f32.gmra.mxu0 %v9509
      %v9621 = vpop.f32.mrf.mxu0
      %v9622 = vadd.f32 0.0, %v9621
      %9623 = vmatmul.f32.gmra.mxu0 %v9512
      %v9624 = vpop.f32.mrf.mxu0
      %v9625 = vadd.f32 0.0, %v9624
      %9626 = vmatmul.f32.gmra.mxu0 %v9515
      %v9627 = vpop.f32.mrf.mxu0
      %v9628 = vadd.f32 0.0, %v9627
      %9629 = vmatmul.f32.gmra.mxu0 %v9518
      %v9630 = vpop.f32.mrf.mxu0
      %v9631 = vadd.f32 0.0, %v9630
      %9632 = vmatmul.f32.gmra.mxu0 %v9521
      %v9633 = vpop.f32.mrf.mxu0
      %v9634 = vadd.f32 0.0, %v9633
      %9635 = vmatmul.f32.gmra.mxu0 %v9524
      %v9636 = vpop.f32.mrf.mxu0
      %v9637 = vadd.f32 0.0, %v9636
      %9638 = vmatmul.f32.gmra.mxu0 %v9527
      %v9639 = vpop.f32.mrf.mxu0
      %v9640 = vadd.f32 0.0, %v9639
      %9641 = vmatmul.f32.gmra.mxu0 %v9530
      %v9642 = vpop.f32.mrf.mxu0
      %v9643 = vadd.f32 0.0, %v9642
      %9644 = vmatmul.f32.gmra.mxu0 %v9533
      %v9645 = vpop.f32.mrf.mxu0
      %v9646 = vadd.f32 0.0, %v9645
      %9647 = vmatmul.f32.gmra.mxu0 %v9536
      %v9648 = vpop.f32.mrf.mxu0
      %v9649 = vadd.f32 0.0, %v9648
      %9650 = vmatmul.f32.gmra.mxu0 %v9539
      %v9651 = vpop.f32.mrf.mxu0
      %v9652 = vadd.f32 0.0, %v9651
      %9653 = vmatmul.f32.gmra.mxu0 %v9542
      %v9654 = vpop.f32.mrf.mxu0
      %v9655 = vadd.f32 0.0, %v9654
      %9656 = vmatmul.f32.gmra.mxu0 %v9545
      %v9657 = vpop.f32.mrf.mxu0
      %v9658 = vadd.f32 0.0, %v9657
      %9659 = vmatmul.f32.gmra.mxu0 %v9548
      %v9660 = vpop.f32.mrf.mxu0
      %v9661 = vadd.f32 0.0, %v9660
      %9662 = vmatmul.f32.gmra.mxu0 %v9551
      %v9663 = vpop.f32.mrf.mxu0
      %v9664 = vadd.f32 0.0, %v9663
      %9665 = vmatmul.f32.gmra.mxu0 %v9554
      %v9666 = vpop.f32.mrf.mxu0
      %v9667 = vadd.f32 0.0, %v9666
      %9668 = vmatmul.f32.gmra.mxu0 %v9557
      %v9669 = vpop.f32.mrf.mxu0
      %v9670 = vadd.f32 0.0, %v9669
      %9671 = vmatmul.f32.gmra.mxu0 %v9560
      %v9672 = vpop.f32.mrf.mxu0
      %v9673 = vadd.f32 0.0, %v9672
      %9674 = vmatmul.f32.gmra.mxu0 %v9563
      %v9675 = vpop.f32.mrf.mxu0
      %v9676 = vadd.f32 0.0, %v9675
      %9677 = vmatmul.f32.gmra.mxu0 %v9566
      %v9678 = vpop.f32.mrf.mxu0
      %v9679 = vadd.f32 0.0, %v9678
      %9680 = vmatmul.f32.gmra.mxu0 %v9569
      %v9681 = vpop.f32.mrf.mxu0
      %v9682 = vadd.f32 0.0, %v9681
      %9683 = vmatmul.f32.gmra.mxu0 %v9572
      %v9684 = vpop.f32.mrf.mxu0
      %v9685 = vadd.f32 0.0, %v9684
      %9686 = vmatmul.f32.gmra.mxu0 %v9575
      %v9687 = vpop.f32.mrf.mxu0
      %v9688 = vadd.f32 0.0, %v9687
      %9689 = vmatmul.f32.gmra.mxu0 %v9578
      %v9690 = vpop.f32.mrf.mxu0
      %v9691 = vadd.f32 0.0, %v9690
      %9692 = vdwg.mxu0
      %9693 = vmatpush.msra.mxu0 0.0
      %9694 = vmatpush.msra.mxu0 0.0
      %9695 = vmatpush.msra.mxu0 0.0
      %9696 = vmatpush.msra.mxu0 0.0
      %9697 = vmatpush.msra.mxu0 0.0
      %9698 = vmatpush.msra.mxu0 0.0
      %9699 = vmatpush.msra.mxu0 0.0
      %9700 = vmatpush.msra.mxu0 0.0
      %9701 = vmatpush.msra.mxu0 0.0
      %9702 = vmatpush.msra.mxu0 0.0
      %9703 = vmatpush.msra.mxu0 0.0
      %9704 = vmatpush.msra.mxu0 0.0
      %9705 = vmatpush.msra.mxu0 0.0
      %9706 = vmatpush.msra.mxu0 0.0
      %9707 = vmatpush.msra.mxu0 0.0
      %9708 = vmatpush.msra.mxu0 %v1004
      %9709 = vmatmul.f32.gmra.mxu0 %v4307
      %v9710 = vpop.f32.mrf.mxu0
      %v9711 = vadd.f32 %v9598, %v9710
      %9712 = vmatmul.f32.gmra.mxu0 %v4307
      %v9713 = vpop.f32.mrf.mxu0
      %v9714 = vadd.f32 %v9601, %v9713
      %9715 = vmatmul.f32.gmra.mxu0 %v9485
      %v9716 = vpop.f32.mrf.mxu0
      %v9717 = vadd.f32 %v9604, %v9716
      %9718 = vmatmul.f32.gmra.mxu0 %v9488
      %v9719 = vpop.f32.mrf.mxu0
      %v9720 = vadd.f32 %v9607, %v9719
      %9721 = vmatmul.f32.gmra.mxu0 %v9491
      %v9722 = vpop.f32.mrf.mxu0
      %v9723 = vadd.f32 %v9610, %v9722
      %9724 = vmatmul.f32.gmra.mxu0 %v9494
      %v9725 = vpop.f32.mrf.mxu0
      %v9726 = vadd.f32 %v9613, %v9725
      %9727 = vmatmul.f32.gmra.mxu0 %v9497
      %v9728 = vpop.f32.mrf.mxu0
      %v9729 = vadd.f32 %v9616, %v9728
      %9730 = vmatmul.f32.gmra.mxu0 %v9500
      %v9731 = vpop.f32.mrf.mxu0
      %v9732 = vadd.f32 %v9619, %v9731
      %9733 = vmatmul.f32.gmra.mxu0 %v9503
      %v9734 = vpop.f32.mrf.mxu0
      %v9735 = vadd.f32 %v9622, %v9734
      %9736 = vmatmul.f32.gmra.mxu0 %v9506
      %v9737 = vpop.f32.mrf.mxu0
      %v9738 = vadd.f32 %v9625, %v9737
      %9739 = vmatmul.f32.gmra.mxu0 %v9509
      %v9740 = vpop.f32.mrf.mxu0
      %v9741 = vadd.f32 %v9628, %v9740
      %9742 = vmatmul.f32.gmra.mxu0 %v9512
      %v9743 = vpop.f32.mrf.mxu0
      %v9744 = vadd.f32 %v9631, %v9743
      %9745 = vmatmul.f32.gmra.mxu0 %v9515
      %v9746 = vpop.f32.mrf.mxu0
      %v9747 = vadd.f32 %v9634, %v9746
      %9748 = vmatmul.f32.gmra.mxu0 %v9518
      %v9749 = vpop.f32.mrf.mxu0
      %v9750 = vadd.f32 %v9637, %v9749
      %9751 = vmatmul.f32.gmra.mxu0 %v9521
      %v9752 = vpop.f32.mrf.mxu0
      %v9753 = vadd.f32 %v9640, %v9752
      %9754 = vmatmul.f32.gmra.mxu0 %v9524
      %v9755 = vpop.f32.mrf.mxu0
      %v9756 = vadd.f32 %v9643, %v9755
      %9757 = vmatmul.f32.gmra.mxu0 %v9527
      %v9758 = vpop.f32.mrf.mxu0
      %v9759 = vadd.f32 %v9646, %v9758
      %9760 = vmatmul.f32.gmra.mxu0 %v9530
      %v9761 = vpop.f32.mrf.mxu0
      %v9762 = vadd.f32 %v9649, %v9761
      %9763 = vmatmul.f32.gmra.mxu0 %v9533
      %v9764 = vpop.f32.mrf.mxu0
      %v9765 = vadd.f32 %v9652, %v9764
      %9766 = vmatmul.f32.gmra.mxu0 %v9536
      %v9767 = vpop.f32.mrf.mxu0
      %v9768 = vadd.f32 %v9655, %v9767
      %9769 = vmatmul.f32.gmra.mxu0 %v9539
      %v9770 = vpop.f32.mrf.mxu0
      %v9771 = vadd.f32 %v9658, %v9770
      %9772 = vmatmul.f32.gmra.mxu0 %v9542
      %v9773 = vpop.f32.mrf.mxu0
      %v9774 = vadd.f32 %v9661, %v9773
      %9775 = vmatmul.f32.gmra.mxu0 %v9545
      %v9776 = vpop.f32.mrf.mxu0
      %v9777 = vadd.f32 %v9664, %v9776
      %9778 = vmatmul.f32.gmra.mxu0 %v9548
      %v9779 = vpop.f32.mrf.mxu0
      %v9780 = vadd.f32 %v9667, %v9779
      %9781 = vmatmul.f32.gmra.mxu0 %v9551
      %v9782 = vpop.f32.mrf.mxu0
      %v9783 = vadd.f32 %v9670, %v9782
      %9784 = vmatmul.f32.gmra.mxu0 %v9554
      %v9785 = vpop.f32.mrf.mxu0
      %v9786 = vadd.f32 %v9673, %v9785
      %9787 = vmatmul.f32.gmra.mxu0 %v9557
      %v9788 = vpop.f32.mrf.mxu0
      %v9789 = vadd.f32 %v9676, %v9788
      %9790 = vmatmul.f32.gmra.mxu0 %v9560
      %v9791 = vpop.f32.mrf.mxu0
      %v9792 = vadd.f32 %v9679, %v9791
      %9793 = vmatmul.f32.gmra.mxu0 %v9563
      %v9794 = vpop.f32.mrf.mxu0
      %v9795 = vadd.f32 %v9682, %v9794
      %9796 = vmatmul.f32.gmra.mxu0 %v9566
      %v9797 = vpop.f32.mrf.mxu0
      %v9798 = vadd.f32 %v9685, %v9797
      %9799 = vmatmul.f32.gmra.mxu0 %v9569
      %v9800 = vpop.f32.mrf.mxu0
      %v9801 = vadd.f32 %v9688, %v9800
      %9802 = vmatmul.f32.gmra.mxu0 %v9572
      %v9803 = vpop.f32.mrf.mxu0
      %v9804 = vadd.f32 %v9691, %v9803
      %9805 = vdwg.mxu0
      %9806 = vmatpush.msra.mxu0 0.0
      %9807 = vmatpush.msra.mxu0 0.0
      %9808 = vmatpush.msra.mxu0 0.0
      %9809 = vmatpush.msra.mxu0 0.0
      %9810 = vmatpush.msra.mxu0 0.0
      %9811 = vmatpush.msra.mxu0 0.0
      %9812 = vmatpush.msra.mxu0 0.0
      %9813 = vmatpush.msra.mxu0 0.0
      %9814 = vmatpush.msra.mxu0 0.0
      %9815 = vmatpush.msra.mxu0 0.0
      %9816 = vmatpush.msra.mxu0 0.0
      %9817 = vmatpush.msra.mxu0 0.0
      %9818 = vmatpush.msra.mxu0 0.0
      %9819 = vmatpush.msra.mxu0 0.0
      %9820 = vmatpush.msra.mxu0 0.0
      %9821 = vmatpush.msra.mxu0 %v1006
      %9822 = vmatmul.f32.gmra.mxu0 %v9491
      %v9823 = vpop.f32.mrf.mxu0
      %v9824 = vadd.f32 0.0, %v9823
      %9825 = vmatmul.f32.gmra.mxu0 %v9494
      %v9826 = vpop.f32.mrf.mxu0
      %v9827 = vadd.f32 0.0, %v9826
      %9828 = vmatmul.f32.gmra.mxu0 %v9497
      %v9829 = vpop.f32.mrf.mxu0
      %v9830 = vadd.f32 0.0, %v9829
      %9831 = vmatmul.f32.gmra.mxu0 %v9500
      %v9832 = vpop.f32.mrf.mxu0
      %v9833 = vadd.f32 0.0, %v9832
      %9834 = vmatmul.f32.gmra.mxu0 %v9503
      %v9835 = vpop.f32.mrf.mxu0
      %v9836 = vadd.f32 0.0, %v9835
      %9837 = vmatmul.f32.gmra.mxu0 %v9506
      %v9838 = vpop.f32.mrf.mxu0
      %v9839 = vadd.f32 0.0, %v9838
      %9840 = vmatmul.f32.gmra.mxu0 %v9509
      %v9841 = vpop.f32.mrf.mxu0
      %v9842 = vadd.f32 0.0, %v9841
      %9843 = vmatmul.f32.gmra.mxu0 %v9512
      %v9844 = vpop.f32.mrf.mxu0
      %v9845 = vadd.f32 0.0, %v9844
      %9846 = vmatmul.f32.gmra.mxu0 %v9515
      %v9847 = vpop.f32.mrf.mxu0
      %v9848 = vadd.f32 0.0, %v9847
      %9849 = vmatmul.f32.gmra.mxu0 %v9518
      %v9850 = vpop.f32.mrf.mxu0
      %v9851 = vadd.f32 0.0, %v9850
      %9852 = vmatmul.f32.gmra.mxu0 %v9521
      %v9853 = vpop.f32.mrf.mxu0
      %v9854 = vadd.f32 0.0, %v9853
      %9855 = vmatmul.f32.gmra.mxu0 %v9524
      %v9856 = vpop.f32.mrf.mxu0
      %v9857 = vadd.f32 0.0, %v9856
      %9858 = vmatmul.f32.gmra.mxu0 %v9527
      %v9859 = vpop.f32.mrf.mxu0
      %v9860 = vadd.f32 0.0, %v9859
      %9861 = vmatmul.f32.gmra.mxu0 %v9530
      %v9862 = vpop.f32.mrf.mxu0
      %v9863 = vadd.f32 0.0, %v9862
      %9864 = vmatmul.f32.gmra.mxu0 %v9533
      %v9865 = vpop.f32.mrf.mxu0
      %v9866 = vadd.f32 0.0, %v9865
      %9867 = vmatmul.f32.gmra.mxu0 %v9536
      %v9868 = vpop.f32.mrf.mxu0
      %v9869 = vadd.f32 0.0, %v9868
      %9870 = vmatmul.f32.gmra.mxu0 %v9539
      %v9871 = vpop.f32.mrf.mxu0
      %v9872 = vadd.f32 0.0, %v9871
      %9873 = vmatmul.f32.gmra.mxu0 %v9542
      %v9874 = vpop.f32.mrf.mxu0
      %v9875 = vadd.f32 0.0, %v9874
      %9876 = vmatmul.f32.gmra.mxu0 %v9545
      %v9877 = vpop.f32.mrf.mxu0
      %v9878 = vadd.f32 0.0, %v9877
      %9879 = vmatmul.f32.gmra.mxu0 %v9548
      %v9880 = vpop.f32.mrf.mxu0
      %v9881 = vadd.f32 0.0, %v9880
      %9882 = vmatmul.f32.gmra.mxu0 %v9551
      %v9883 = vpop.f32.mrf.mxu0
      %v9884 = vadd.f32 0.0, %v9883
      %9885 = vmatmul.f32.gmra.mxu0 %v9554
      %v9886 = vpop.f32.mrf.mxu0
      %v9887 = vadd.f32 0.0, %v9886
      %9888 = vmatmul.f32.gmra.mxu0 %v9557
      %v9889 = vpop.f32.mrf.mxu0
      %v9890 = vadd.f32 0.0, %v9889
      %9891 = vmatmul.f32.gmra.mxu0 %v9560
      %v9892 = vpop.f32.mrf.mxu0
      %v9893 = vadd.f32 0.0, %v9892
      %9894 = vmatmul.f32.gmra.mxu0 %v9563
      %v9895 = vpop.f32.mrf.mxu0
      %v9896 = vadd.f32 0.0, %v9895
      %9897 = vmatmul.f32.gmra.mxu0 %v9566
      %v9898 = vpop.f32.mrf.mxu0
      %v9899 = vadd.f32 0.0, %v9898
      %9900 = vmatmul.f32.gmra.mxu0 %v9569
      %v9901 = vpop.f32.mrf.mxu0
      %v9902 = vadd.f32 0.0, %v9901
      %9903 = vmatmul.f32.gmra.mxu0 %v9572
      %v9904 = vpop.f32.mrf.mxu0
      %v9905 = vadd.f32 0.0, %v9904
      %9906 = vmatmul.f32.gmra.mxu0 %v9575
      %v9907 = vpop.f32.mrf.mxu0
      %v9908 = vadd.f32 0.0, %v9907
      %9909 = vmatmul.f32.gmra.mxu0 %v9578
      %v9910 = vpop.f32.mrf.mxu0
      %v9911 = vadd.f32 0.0, %v9910
      %9912 = vmatmul.f32.gmra.mxu0 %v4307
      %v9913 = vpop.f32.mrf.mxu0
      %v9914 = vadd.f32 0.0, %v9913
      %9915 = vmatmul.f32.gmra.mxu0 %v4307
      %v9916 = vpop.f32.mrf.mxu0
      %v9917 = vadd.f32 0.0, %v9916
      %9918 = vdwg.mxu0
      %v9919 = vadd.f32 %v9711, %v9824
      %v9920 = vadd.f32 %v9714, %v9827
      %v9921 = vadd.f32 %v9717, %v9830
      %v9922 = vadd.f32 %v9720, %v9833
      %v9923 = vadd.f32 %v9723, %v9836
      %v9924 = vadd.f32 %v9726, %v9839
      %v9925 = vadd.f32 %v9729, %v9842
      %v9926 = vadd.f32 %v9732, %v9845
      %v9927 = vadd.f32 %v9735, %v9848
      %v9928 = vadd.f32 %v9738, %v9851
      %v9929 = vadd.f32 %v9741, %v9854
      %v9930 = vadd.f32 %v9744, %v9857
      %v9931 = vadd.f32 %v9747, %v9860
      %v9932 = vadd.f32 %v9750, %v9863
      %v9933 = vadd.f32 %v9753, %v9866
      %v9934 = vadd.f32 %v9756, %v9869
      %v9935 = vadd.f32 %v9759, %v9872
      %v9936 = vadd.f32 %v9762, %v9875
      %v9937 = vadd.f32 %v9765, %v9878
      %v9938 = vadd.f32 %v9768, %v9881
      %v9939 = vadd.f32 %v9771, %v9884
      %v9940 = vadd.f32 %v9774, %v9887
      %v9941 = vadd.f32 %v9777, %v9890
      %v9942 = vadd.f32 %v9780, %v9893
      %v9943 = vadd.f32 %v9783, %v9896
      %v9944 = vadd.f32 %v9786, %v9899
      %v9945 = vadd.f32 %v9789, %v9902
      %v9946 = vadd.f32 %v9792, %v9905
      %v9947 = vadd.f32 %v9795, %v9908
      %v9948 = vadd.f32 %v9798, %v9911
      %v9949 = vadd.f32 %v9801, %v9914
      %v9950 = vadd.f32 %v9804, %v9917
      %v9952 = vperm.slane %v1007, 0
      %v9954 = vmul.f32 %v9919, %v9952
      %v9955 = vmul.f32 %v9920, %v9952
      %v9956 = vmul.f32 %v9921, %v9952
      %v9957 = vmul.f32 %v9922, %v9952
      %v9958 = vmul.f32 %v9923, %v9952
      %v9959 = vmul.f32 %v9924, %v9952
      %v9960 = vmul.f32 %v9925, %v9952
      %v9961 = vmul.f32 %v9926, %v9952
      %v9962 = vmul.f32 %v9927, %v9952
      %v9963 = vmul.f32 %v9928, %v9952
      %v9964 = vmul.f32 %v9929, %v9952
      %v9965 = vmul.f32 %v9930, %v9952
      %v9966 = vmul.f32 %v9931, %v9952
      %v9967 = vmul.f32 %v9932, %v9952
      %v9968 = vmul.f32 %v9933, %v9952
      %v9969 = vmul.f32 %v9934, %v9952
      %v9970 = vmul.f32 %v9935, %v9952
      %v9971 = vmul.f32 %v9936, %v9952
      %v9972 = vmul.f32 %v9937, %v9952
      %v9973 = vmul.f32 %v9938, %v9952
      %v9974 = vmul.f32 %v9939, %v9952
      %v9975 = vmul.f32 %v9940, %v9952
      %v9976 = vmul.f32 %v9941, %v9952
      %v9977 = vmul.f32 %v9942, %v9952
      %v9978 = vmul.f32 %v9943, %v9952
      %v9979 = vmul.f32 %v9944, %v9952
      %v9980 = vmul.f32 %v9945, %v9952
      %v9981 = vmul.f32 %v9946, %v9952
      %v9982 = vmul.f32 %v9947, %v9952
      %v9983 = vmul.f32 %v9948, %v9952
      %v9984 = vmul.f32 %v9949, %v9952
      %v9985 = vmul.f32 %v9950, %v9952
      %v9987 = vperm.slane %v1008, 0
      %v9989 = vadd.f32 %v9954, %v9987
      %v9990 = vadd.f32 %v9955, %v9987
      %v9991 = vadd.f32 %v9956, %v9987
      %v9992 = vadd.f32 %v9957, %v9987
      %v9993 = vadd.f32 %v9958, %v9987
      %v9994 = vadd.f32 %v9959, %v9987
      %v9995 = vadd.f32 %v9960, %v9987
      %v9996 = vadd.f32 %v9961, %v9987
      %v9997 = vadd.f32 %v9962, %v9987
      %v9998 = vadd.f32 %v9963, %v9987
      %v9999 = vadd.f32 %v9964, %v9987
      %v10000 = vadd.f32 %v9965, %v9987
      %v10001 = vadd.f32 %v9966, %v9987
      %v10002 = vadd.f32 %v9967, %v9987
      %v10003 = vadd.f32 %v9968, %v9987
      %v10004 = vadd.f32 %v9969, %v9987
      %v10005 = vadd.f32 %v9970, %v9987
      %v10006 = vadd.f32 %v9971, %v9987
      %v10007 = vadd.f32 %v9972, %v9987
      %v10008 = vadd.f32 %v9973, %v9987
      %v10009 = vadd.f32 %v9974, %v9987
      %v10010 = vadd.f32 %v9975, %v9987
      %v10011 = vadd.f32 %v9976, %v9987
      %v10012 = vadd.f32 %v9977, %v9987
      %v10013 = vadd.f32 %v9978, %v9987
      %v10014 = vadd.f32 %v9979, %v9987
      %v10015 = vadd.f32 %v9980, %v9987
      %v10016 = vadd.f32 %v9981, %v9987
      %v10017 = vadd.f32 %v9982, %v9987
      %v10018 = vadd.f32 %v9983, %v9987
      %v10019 = vadd.f32 %v9984, %v9987
      %v10020 = vadd.f32 %v9985, %v9987
      %v10021 = vmax.f32 %v9989, 0.0
      %v10022 = vmax.f32 %v9990, 0.0
      %v10023 = vmax.f32 %v9991, 0.0
      %v10024 = vmax.f32 %v9992, 0.0
      %v10025 = vmax.f32 %v9993, 0.0
      %v10026 = vmax.f32 %v9994, 0.0
      %v10027 = vmax.f32 %v9995, 0.0
      %v10028 = vmax.f32 %v9996, 0.0
      %v10029 = vmax.f32 %v9997, 0.0
      %v10030 = vmax.f32 %v9998, 0.0
      %v10031 = vmax.f32 %v9999, 0.0
      %v10032 = vmax.f32 %v10000, 0.0
      %v10033 = vmax.f32 %v10001, 0.0
      %v10034 = vmax.f32 %v10002, 0.0
      %v10035 = vmax.f32 %v10003, 0.0
      %v10036 = vmax.f32 %v10004, 0.0
      %v10037 = vmax.f32 %v10005, 0.0
      %v10038 = vmax.f32 %v10006, 0.0
      %v10039 = vmax.f32 %v10007, 0.0
      %v10040 = vmax.f32 %v10008, 0.0
      %v10041 = vmax.f32 %v10009, 0.0
      %v10042 = vmax.f32 %v10010, 0.0
      %v10043 = vmax.f32 %v10011, 0.0
      %v10044 = vmax.f32 %v10012, 0.0
      %v10045 = vmax.f32 %v10013, 0.0
      %v10046 = vmax.f32 %v10014, 0.0
      %v10047 = vmax.f32 %v10015, 0.0
      %v10048 = vmax.f32 %v10016, 0.0
      %v10049 = vmax.f32 %v10017, 0.0
      %v10050 = vmax.f32 %v10018, 0.0
      %v10051 = vmax.f32 %v10019, 0.0
      %v10052 = vmax.f32 %v10020, 0.0
      %v10053 = vadd.f32 %v8970, %v10021
      %v10054 = vadd.f32 %v8971, %v10022
      %v10055 = vadd.f32 %v8972, %v10023
      %v10056 = vadd.f32 %v8973, %v10024
      %v10057 = vadd.f32 %v8974, %v10025
      %v10058 = vadd.f32 %v8975, %v10026
      %v10059 = vadd.f32 %v8976, %v10027
      %v10060 = vadd.f32 %v8977, %v10028
      %v10061 = vadd.f32 %v8978, %v10029
      %v10062 = vadd.f32 %v8979, %v10030
      %v10063 = vadd.f32 %v8980, %v10031
      %v10064 = vadd.f32 %v8981, %v10032
      %v10065 = vadd.f32 %v8982, %v10033
      %v10066 = vadd.f32 %v8983, %v10034
      %v10067 = vadd.f32 %v8984, %v10035
      %v10068 = vadd.f32 %v8985, %v10036
      %v10069 = vadd.f32 %v8986, %v10037
      %v10070 = vadd.f32 %v8987, %v10038
      %v10071 = vadd.f32 %v8988, %v10039
      %v10072 = vadd.f32 %v8989, %v10040
      %v10073 = vadd.f32 %v8990, %v10041
      %v10074 = vadd.f32 %v8991, %v10042
      %v10075 = vadd.f32 %v8992, %v10043
      %v10076 = vadd.f32 %v8993, %v10044
      %v10077 = vadd.f32 %v8994, %v10045
      %v10078 = vadd.f32 %v8995, %v10046
      %v10079 = vadd.f32 %v8996, %v10047
      %v10080 = vadd.f32 %v8997, %v10048
      %v10081 = vadd.f32 %v8998, %v10049
      %v10082 = vadd.f32 %v8999, %v10050
      %v10083 = vadd.f32 %v9000, %v10051
      %v10084 = vadd.f32 %v9001, %v10052
      %v10085 = vmax.f32 %v10053, 0.0
      %v10086 = vmax.f32 %v10054, 0.0
      %v10087 = vmax.f32 %v10055, 0.0
      %v10088 = vmax.f32 %v10056, 0.0
      %v10089 = vmax.f32 %v10057, 0.0
      %v10090 = vmax.f32 %v10058, 0.0
      %v10091 = vmax.f32 %v10059, 0.0
      %v10092 = vmax.f32 %v10060, 0.0
      %v10093 = vmax.f32 %v10061, 0.0
      %v10094 = vmax.f32 %v10062, 0.0
      %v10095 = vmax.f32 %v10063, 0.0
      %v10096 = vmax.f32 %v10064, 0.0
      %v10097 = vmax.f32 %v10065, 0.0
      %v10098 = vmax.f32 %v10066, 0.0
      %v10099 = vmax.f32 %v10067, 0.0
      %v10100 = vmax.f32 %v10068, 0.0
      %v10101 = vmax.f32 %v10069, 0.0
      %v10102 = vmax.f32 %v10070, 0.0
      %v10103 = vmax.f32 %v10071, 0.0
      %v10104 = vmax.f32 %v10072, 0.0
      %v10105 = vmax.f32 %v10073, 0.0
      %v10106 = vmax.f32 %v10074, 0.0
      %v10107 = vmax.f32 %v10075, 0.0
      %v10108 = vmax.f32 %v10076, 0.0
      %v10109 = vmax.f32 %v10077, 0.0
      %v10110 = vmax.f32 %v10078, 0.0
      %v10111 = vmax.f32 %v10079, 0.0
      %v10112 = vmax.f32 %v10080, 0.0
      %v10113 = vmax.f32 %v10081, 0.0
      %v10114 = vmax.f32 %v10082, 0.0
      %v10115 = vmax.f32 %v10083, 0.0
      %v10116 = vmax.f32 %v10084, 0.0
      %10117 = vst.msk [vmem:[%s958] sm:$0xff] %vm2394, %v2678
      %10118 = vst.msk [vmem:[%s958 + $0x8] sm:$0xff] %vm2394, %v2679
      %10119 = vst.msk [vmem:[%s958 + $0x10] sm:$0xff] %vm2394, %v2680
      %10120 = vst.msk [vmem:[%s958 + $0x18] sm:$0xff] %vm2394, %v2681
      %10121 = vst.msk [vmem:[%s958 + $0x20] sm:$0xff] %vm2394, %v2682
      %10122 = vst.msk [vmem:[%s958 + $0x28] sm:$0xff] %vm2394, %v2683
      %10123 = vst.msk [vmem:[%s958 + $0x30] sm:$0xff] %vm2394, %v2684
      %10124 = vst.msk [vmem:[%s958 + $0x38] sm:$0xff] %vm2394, %v2685
      %10125 = vst.msk [vmem:[%s958 + $0x40] sm:$0xff] %vm2394, %v2686
      %10126 = vst.msk [vmem:[%s958 + $0x48] sm:$0xff] %vm2394, %v2687
      %10127 = vst.msk [vmem:[%s958 + $0x50] sm:$0xff] %vm2394, %v2688
      %10128 = vst.msk [vmem:[%s958 + $0x58] sm:$0xff] %vm2394, %v2689
      %10129 = vst.msk [vmem:[%s958 + $0x60] sm:$0xff] %vm2394, %v2690
      %10130 = vst.msk [vmem:[%s958 + $0x68] sm:$0xff] %vm2394, %v2691
      %10131 = vst.msk [vmem:[%s958 + $0x70] sm:$0xff] %vm2394, %v2692
      %10132 = vst.msk [vmem:[%s958 + $0x78] sm:$0xff] %vm2394, %v2693
      %10133 = vst.msk [vmem:[%s958 + $0x80] sm:$0xff] %vm2394, %v2694
      %10134 = vst.msk [vmem:[%s958 + $0x88] sm:$0xff] %vm2394, %v2695
      %10135 = vst.msk [vmem:[%s958 + $0x90] sm:$0xff] %vm2394, %v2696
      %10136 = vst.msk [vmem:[%s958 + $0x98] sm:$0xff] %vm2394, %v2697
      %10137 = vst.msk [vmem:[%s958 + $0xa0] sm:$0xff] %vm2394, %v2698
      %10138 = vst.msk [vmem:[%s958 + $0xa8] sm:$0xff] %vm2394, %v2699
      %10139 = vst.msk [vmem:[%s958 + $0xb0] sm:$0xff] %vm2394, %v2700
      %10140 = vst.msk [vmem:[%s958 + $0xb8] sm:$0xff] %vm2394, %v2701
      %10141 = vst.msk [vmem:[%s958 + $0xc0] sm:$0xff] %vm2394, %v2702
      %10142 = vst.msk [vmem:[%s958 + $0xc8] sm:$0xff] %vm2394, %v2703
      %10143 = vst.msk [vmem:[%s958 + $0xd0] sm:$0xff] %vm2394, %v2704
      %10144 = vst.msk [vmem:[%s958 + $0xd8] sm:$0xff] %vm2394, %v2705
      %10145 = vst.msk [vmem:[%s958 + $0xe0] sm:$0xff] %vm2394, %v2706
      %10146 = vst.msk [vmem:[%s958 + $0xe8] sm:$0xff] %vm2394, %v2707
      %10147 = vst.msk [vmem:[%s958 + $0xf0] sm:$0xff] %vm2394, %v2708
      %10148 = vst.msk [vmem:[%s958 + $0xf8] sm:$0xff] %vm2394, %v2709
      %10181 = vrot.lane.b32.xlu0 %v8240, 4
      %v10182 = vpop.permute.xlu0 %10181
      %10183 = vrot.lane.b32.xlu0 %v8241, 4
      %v10184 = vpop.permute.xlu0 %10183
      %10185 = vrot.lane.b32.xlu0 %v8242, 4
      %v10186 = vpop.permute.xlu0 %10185
      %10187 = vrot.lane.b32.xlu0 %v8243, 4
      %v10188 = vpop.permute.xlu0 %10187
      %10189 = vrot.lane.b32.xlu0 %v8244, 4
      %v10190 = vpop.permute.xlu0 %10189
      %10191 = vrot.lane.b32.xlu0 %v8245, 4
      %v10192 = vpop.permute.xlu0 %10191
      %10193 = vrot.lane.b32.xlu0 %v8246, 4
      %v10194 = vpop.permute.xlu0 %10193
      %10195 = vrot.lane.b32.xlu0 %v8247, 4
      %v10196 = vpop.permute.xlu0 %10195
      %10197 = vrot.lane.b32.xlu0 %v8248, 4
      %v10198 = vpop.permute.xlu0 %10197
      %10199 = vrot.lane.b32.xlu0 %v8249, 4
      %v10200 = vpop.permute.xlu0 %10199
      %10201 = vrot.lane.b32.xlu0 %v8250, 4
      %v10202 = vpop.permute.xlu0 %10201
      %10203 = vrot.lane.b32.xlu0 %v8251, 4
      %v10204 = vpop.permute.xlu0 %10203
      %10205 = vrot.lane.b32.xlu0 %v8252, 4
      %v10206 = vpop.permute.xlu0 %10205
      %10207 = vrot.lane.b32.xlu0 %v8253, 4
      %v10208 = vpop.permute.xlu0 %10207
      %10209 = vrot.lane.b32.xlu0 %v8254, 4
      %v10210 = vpop.permute.xlu0 %10209
      %10211 = vrot.lane.b32.xlu0 %v8255, 4
      %v10212 = vpop.permute.xlu0 %10211
      %10213 = vrot.lane.b32.xlu0 %v8256, 4
      %v10214 = vpop.permute.xlu0 %10213
      %10215 = vrot.lane.b32.xlu0 %v8257, 4
      %v10216 = vpop.permute.xlu0 %10215
      %10217 = vrot.lane.b32.xlu0 %v8258, 4
      %v10218 = vpop.permute.xlu0 %10217
      %10219 = vrot.lane.b32.xlu0 %v8259, 4
      %v10220 = vpop.permute.xlu0 %10219
      %10221 = vrot.lane.b32.xlu0 %v8260, 4
      %v10222 = vpop.permute.xlu0 %10221
      %10223 = vrot.lane.b32.xlu0 %v8261, 4
      %v10224 = vpop.permute.xlu0 %10223
      %10225 = vrot.lane.b32.xlu0 %v8262, 4
      %v10226 = vpop.permute.xlu0 %10225
      %10227 = vrot.lane.b32.xlu0 %v8263, 4
      %v10228 = vpop.permute.xlu0 %10227
      %10229 = vrot.lane.b32.xlu0 %v8264, 4
      %v10230 = vpop.permute.xlu0 %10229
      %10231 = vrot.lane.b32.xlu0 %v8265, 4
      %v10232 = vpop.permute.xlu0 %10231
      %10233 = vrot.lane.b32.xlu0 %v8266, 4
      %v10234 = vpop.permute.xlu0 %10233
      %10235 = vrot.lane.b32.xlu0 %v8267, 4
      %v10236 = vpop.permute.xlu0 %10235
      %10237 = vrot.lane.b32.xlu0 %v8268, 4
      %v10238 = vpop.permute.xlu0 %10237
      %10239 = vrot.lane.b32.xlu0 %v8269, 4
      %v10240 = vpop.permute.xlu0 %10239
      %10241 = vrot.lane.b32.xlu0 %v8270, 4
      %v10242 = vpop.permute.xlu0 %10241
      %10243 = vrot.lane.b32.xlu0 %v8271, 4
      %v10244 = vpop.permute.xlu0 %10243
      %vm10277 = vcmask 64544
      %10278 = vst.msk [vmem:[%s958] sm:$0xff] %vm10277, %v10182
      %10279 = vst.msk [vmem:[%s958 + $0x8] sm:$0xff] %vm10277, %v10184
      %10280 = vst.msk [vmem:[%s958 + $0x10] sm:$0xff] %vm10277, %v10186
      %10281 = vst.msk [vmem:[%s958 + $0x18] sm:$0xff] %vm10277, %v10188
      %10282 = vst.msk [vmem:[%s958 + $0x20] sm:$0xff] %vm10277, %v10190
      %10283 = vst.msk [vmem:[%s958 + $0x28] sm:$0xff] %vm10277, %v10192
      %10284 = vst.msk [vmem:[%s958 + $0x30] sm:$0xff] %vm10277, %v10194
      %10285 = vst.msk [vmem:[%s958 + $0x38] sm:$0xff] %vm10277, %v10196
      %10286 = vst.msk [vmem:[%s958 + $0x40] sm:$0xff] %vm10277, %v10198
      %10287 = vst.msk [vmem:[%s958 + $0x48] sm:$0xff] %vm10277, %v10200
      %10288 = vst.msk [vmem:[%s958 + $0x50] sm:$0xff] %vm10277, %v10202
      %10289 = vst.msk [vmem:[%s958 + $0x58] sm:$0xff] %vm10277, %v10204
      %10290 = vst.msk [vmem:[%s958 + $0x60] sm:$0xff] %vm10277, %v10206
      %10291 = vst.msk [vmem:[%s958 + $0x68] sm:$0xff] %vm10277, %v10208
      %10292 = vst.msk [vmem:[%s958 + $0x70] sm:$0xff] %vm10277, %v10210
      %10293 = vst.msk [vmem:[%s958 + $0x78] sm:$0xff] %vm10277, %v10212
      %10294 = vst.msk [vmem:[%s958 + $0x80] sm:$0xff] %vm10277, %v10214
      %10295 = vst.msk [vmem:[%s958 + $0x88] sm:$0xff] %vm10277, %v10216
      %10296 = vst.msk [vmem:[%s958 + $0x90] sm:$0xff] %vm10277, %v10218
      %10297 = vst.msk [vmem:[%s958 + $0x98] sm:$0xff] %vm10277, %v10220
      %10298 = vst.msk [vmem:[%s958 + $0xa0] sm:$0xff] %vm10277, %v10222
      %10299 = vst.msk [vmem:[%s958 + $0xa8] sm:$0xff] %vm10277, %v10224
      %10300 = vst.msk [vmem:[%s958 + $0xb0] sm:$0xff] %vm10277, %v10226
      %10301 = vst.msk [vmem:[%s958 + $0xb8] sm:$0xff] %vm10277, %v10228
      %10302 = vst.msk [vmem:[%s958 + $0xc0] sm:$0xff] %vm10277, %v10230
      %10303 = vst.msk [vmem:[%s958 + $0xc8] sm:$0xff] %vm10277, %v10232
      %10304 = vst.msk [vmem:[%s958 + $0xd0] sm:$0xff] %vm10277, %v10234
      %10305 = vst.msk [vmem:[%s958 + $0xd8] sm:$0xff] %vm10277, %v10236
      %10306 = vst.msk [vmem:[%s958 + $0xe0] sm:$0xff] %vm10277, %v10238
      %10307 = vst.msk [vmem:[%s958 + $0xe8] sm:$0xff] %vm10277, %v10240
      %10308 = vst.msk [vmem:[%s958 + $0xf0] sm:$0xff] %vm10277, %v10242
      %10309 = vst.msk [vmem:[%s958 + $0xf8] sm:$0xff] %vm10277, %v10244
      %10342 = vrot.lane.b32.xlu0 %v10085, 8
      %v10343 = vpop.permute.xlu0 %10342
      %10344 = vrot.lane.b32.xlu0 %v10086, 8
      %v10345 = vpop.permute.xlu0 %10344
      %10346 = vrot.lane.b32.xlu0 %v10087, 8
      %v10347 = vpop.permute.xlu0 %10346
      %10348 = vrot.lane.b32.xlu0 %v10088, 8
      %v10349 = vpop.permute.xlu0 %10348
      %10350 = vrot.lane.b32.xlu0 %v10089, 8
      %v10351 = vpop.permute.xlu0 %10350
      %10352 = vrot.lane.b32.xlu0 %v10090, 8
      %v10353 = vpop.permute.xlu0 %10352
      %10354 = vrot.lane.b32.xlu0 %v10091, 8
      %v10355 = vpop.permute.xlu0 %10354
      %10356 = vrot.lane.b32.xlu0 %v10092, 8
      %v10357 = vpop.permute.xlu0 %10356
      %10358 = vrot.lane.b32.xlu0 %v10093, 8
      %v10359 = vpop.permute.xlu0 %10358
      %10360 = vrot.lane.b32.xlu0 %v10094, 8
      %v10361 = vpop.permute.xlu0 %10360
      %10362 = vrot.lane.b32.xlu0 %v10095, 8
      %v10363 = vpop.permute.xlu0 %10362
      %10364 = vrot.lane.b32.xlu0 %v10096, 8
      %v10365 = vpop.permute.xlu0 %10364
      %10366 = vrot.lane.b32.xlu0 %v10097, 8
      %v10367 = vpop.permute.xlu0 %10366
      %10368 = vrot.lane.b32.xlu0 %v10098, 8
      %v10369 = vpop.permute.xlu0 %10368
      %10370 = vrot.lane.b32.xlu0 %v10099, 8
      %v10371 = vpop.permute.xlu0 %10370
      %10372 = vrot.lane.b32.xlu0 %v10100, 8
      %v10373 = vpop.permute.xlu0 %10372
      %10374 = vrot.lane.b32.xlu0 %v10101, 8
      %v10375 = vpop.permute.xlu0 %10374
      %10376 = vrot.lane.b32.xlu0 %v10102, 8
      %v10377 = vpop.permute.xlu0 %10376
      %10378 = vrot.lane.b32.xlu0 %v10103, 8
      %v10379 = vpop.permute.xlu0 %10378
      %10380 = vrot.lane.b32.xlu0 %v10104, 8
      %v10381 = vpop.permute.xlu0 %10380
      %10382 = vrot.lane.b32.xlu0 %v10105, 8
      %v10383 = vpop.permute.xlu0 %10382
      %10384 = vrot.lane.b32.xlu0 %v10106, 8
      %v10385 = vpop.permute.xlu0 %10384
      %10386 = vrot.lane.b32.xlu0 %v10107, 8
      %v10387 = vpop.permute.xlu0 %10386
      %10388 = vrot.lane.b32.xlu0 %v10108, 8
      %v10389 = vpop.permute.xlu0 %10388
      %10390 = vrot.lane.b32.xlu0 %v10109, 8
      %v10391 = vpop.permute.xlu0 %10390
      %10392 = vrot.lane.b32.xlu0 %v10110, 8
      %v10393 = vpop.permute.xlu0 %10392
      %10394 = vrot.lane.b32.xlu0 %v10111, 8
      %v10395 = vpop.permute.xlu0 %10394
      %10396 = vrot.lane.b32.xlu0 %v10112, 8
      %v10397 = vpop.permute.xlu0 %10396
      %10398 = vrot.lane.b32.xlu0 %v10113, 8
      %v10399 = vpop.permute.xlu0 %10398
      %10400 = vrot.lane.b32.xlu0 %v10114, 8
      %v10401 = vpop.permute.xlu0 %10400
      %10402 = vrot.lane.b32.xlu0 %v10115, 8
      %v10403 = vpop.permute.xlu0 %10402
      %10404 = vrot.lane.b32.xlu0 %v10116, 8
      %v10405 = vpop.permute.xlu0 %10404
      %vm10438 = vcmask 97344
      %10439 = vst.msk [vmem:[%s958] sm:$0xff] %vm10438, %v10343
      %10440 = vst.msk [vmem:[%s958 + $0x8] sm:$0xff] %vm10438, %v10345
      %10441 = vst.msk [vmem:[%s958 + $0x10] sm:$0xff] %vm10438, %v10347
      %10442 = vst.msk [vmem:[%s958 + $0x18] sm:$0xff] %vm10438, %v10349
      %10443 = vst.msk [vmem:[%s958 + $0x20] sm:$0xff] %vm10438, %v10351
      %10444 = vst.msk [vmem:[%s958 + $0x28] sm:$0xff] %vm10438, %v10353
      %10445 = vst.msk [vmem:[%s958 + $0x30] sm:$0xff] %vm10438, %v10355
      %10446 = vst.msk [vmem:[%s958 + $0x38] sm:$0xff] %vm10438, %v10357
      %10447 = vst.msk [vmem:[%s958 + $0x40] sm:$0xff] %vm10438, %v10359
      %10448 = vst.msk [vmem:[%s958 + $0x48] sm:$0xff] %vm10438, %v10361
      %10449 = vst.msk [vmem:[%s958 + $0x50] sm:$0xff] %vm10438, %v10363
      %10450 = vst.msk [vmem:[%s958 + $0x58] sm:$0xff] %vm10438, %v10365
      %10451 = vst.msk [vmem:[%s958 + $0x60] sm:$0xff] %vm10438, %v10367
      %10452 = vst.msk [vmem:[%s958 + $0x68] sm:$0xff] %vm10438, %v10369
      %10453 = vst.msk [vmem:[%s958 + $0x70] sm:$0xff] %vm10438, %v10371
      %10454 = vst.msk [vmem:[%s958 + $0x78] sm:$0xff] %vm10438, %v10373
      %10455 = vst.msk [vmem:[%s958 + $0x80] sm:$0xff] %vm10438, %v10375
      %10456 = vst.msk [vmem:[%s958 + $0x88] sm:$0xff] %vm10438, %v10377
      %10457 = vst.msk [vmem:[%s958 + $0x90] sm:$0xff] %vm10438, %v10379
      %10458 = vst.msk [vmem:[%s958 + $0x98] sm:$0xff] %vm10438, %v10381
      %10459 = vst.msk [vmem:[%s958 + $0xa0] sm:$0xff] %vm10438, %v10383
      %10460 = vst.msk [vmem:[%s958 + $0xa8] sm:$0xff] %vm10438, %v10385
      %10461 = vst.msk [vmem:[%s958 + $0xb0] sm:$0xff] %vm10438, %v10387
      %10462 = vst.msk [vmem:[%s958 + $0xb8] sm:$0xff] %vm10438, %v10389
      %10463 = vst.msk [vmem:[%s958 + $0xc0] sm:$0xff] %vm10438, %v10391
      %10464 = vst.msk [vmem:[%s958 + $0xc8] sm:$0xff] %vm10438, %v10393
      %10465 = vst.msk [vmem:[%s958 + $0xd0] sm:$0xff] %vm10438, %v10395
      %10466 = vst.msk [vmem:[%s958 + $0xd8] sm:$0xff] %vm10438, %v10397
      %10467 = vst.msk [vmem:[%s958 + $0xe0] sm:$0xff] %vm10438, %v10399
      %10468 = vst.msk [vmem:[%s958 + $0xe8] sm:$0xff] %vm10438, %v10401
      %10469 = vst.msk [vmem:[%s958 + $0xf0] sm:$0xff] %vm10438, %v10403
      %10470 = vst.msk [vmem:[%s958 + $0xf8] sm:$0xff] %vm10438, %v10405
      %p10471 = scmp.lt.s32.totalorder %s74, 1
      %s10472 = scalar_select %p10471, %s74, 1
      %s10473 = smul.addr %s10472, 32
      %s10474 = smul.addr %s10473, 8
      %s10475 = scalar_lea.vmem %s63, %s10474
      // Predicated region
      $region145: #{normal_cell_pallas.1} parent=143 // pred_check
        %p10476 = pneg %p748
      $region146: #{normal_cell_pallas.1} parent=143 // pred_check_branch
        %10478 = sbr.rel (%p10476) target = $region148
      $region147: #{normal_cell_pallas.1} parent=143 // pred_region
        _
      $region148: #{normal_cell_pallas.1} parent=143 // pred_fallthru
        _
    $region144: #{normal_cell_pallas.1} parent=5 // pred_fallthru
      _
    %p10479 = scmp.le.s32.totalorder 2, %s69
    // Predicated region
    $region149: #{normal_cell_pallas.1} parent=5 // pred_check
      %p10480 = pneg %p10479
    $region150: #{normal_cell_pallas.1} parent=5 // pred_check_branch
      %10482 = sbr.rel (%p10480) target = $region152
    $region151: #{normal_cell_pallas.1} parent=5 // pred_region
      %s10483 = ssub.s32 %s69, 2
      // Predicated region
      $region153: #{normal_cell_pallas.1} parent=151 // pred_check
        %p10484 = pneg %p754
      $region154: #{normal_cell_pallas.1} parent=151 // pred_check_branch
        %10486 = sbr.rel (%p10484) target = $region156
      $region155: #{normal_cell_pallas.1} parent=151 // pred_region
        %p10487 = scmp.lt.s32.totalorder %s75, 1
        %s10488 = scalar_select %p10487, %s75, 1
        %s10489 = smul.addr %s10488, 32
        %s10490 = smul.addr %s10489, 8
        %s10491 = scalar_lea.vmem %s63, %s10490
      $region156: #{normal_cell_pallas.1} parent=151 // pred_fallthru
        _
    $region152: #{normal_cell_pallas.1} parent=5 // pred_fallthru
      _
  $region6: #{normal_cell_pallas.1} parent=0 // loop_footer
    %s73 = sadd.s32 1, %s69
  $region7: #{normal_cell_pallas.1} parent=0 // loop_footer_branch
    %68 = sbr.rel target = $region3
  $region8: #{normal_cell_pallas.1} parent=0 // loop_exit
    _

</llo_original>
